<compile_context>
chip_gen: v7x
topology: tpu7x:2x2x1
jax: 0.10.0
libtpu: 0.0.40
codegen_flags: <defaults>
</compile_context>

<pallas_src>
import jax
import jax.numpy as jnp
from jax.experimental import pallas as pl
from jax.experimental.pallas import tpu as pltpu

LANE = 128
SUBLANE = 8


def same_padding_size(kernel_size, dilation):
    # padding that keeps spatial size for a stride=1 conv
    return ((kernel_size - 1) * dilation) // 2


def fold_bn(gamma, beta, running_mean, running_var, eps=1e-5):
    scale = gamma / jnp.sqrt(running_var + eps)
    bias = beta - running_mean * scale
    return scale, bias


def _round_up(x, m):
    return ((x + m - 1) // m) * m


def _prep_weight(w_hwio, scale, cp):
    """HWIO weight with the BN scale folded in, zero-padded to cp in/out
    channels, cast to bf16.  Shape (3, 3, cp, cp)."""
    kh, kw, cin, cout = w_hwio.shape
    wf = w_hwio * scale                                   # fold BN scale (f32)
    wp = jnp.zeros((kh, kw, cp, cp), jnp.float32)
    wp = wp.at[:, :, :cin, :cout].set(wf)
    return wp.astype(jnp.bfloat16)


def _prep_bias(bias, cp):
    return jnp.zeros((1, cp), jnp.float32).at[0, : bias.shape[0]].set(bias)


def _make_block_kernel(H, W, Cp, Wm):
    HW = H * W

    def kernel(xp_ref, w1_ref, b1_ref, w2_ref, b2_ref, out_ref, mid_ref):
        # ---- zero ONLY the 2-wide halo frame of the mid scratch ----------
        # The interior [2:2+H, 2:2+W] is fully overwritten below; the halo
        # must be zero (conv2's dilation-2 "same" padding).  Columns >= W+4
        # (sublane round-up pad) are never read by conv2, zeroing them is
        # harmless.  Per-step cost is tiny vs. the old full-scratch zero.
        zr = jnp.zeros((2, Wm, Cp), jnp.bfloat16)
        mid_ref[0:2, :, :] = zr
        mid_ref[H + 2:H + 4, :, :] = zr
        mid_ref[2:2 + H, 0:2, :] = jnp.zeros((H, 2, Cp), jnp.bfloat16)
        mid_ref[2:2 + H, W + 2:Wm, :] = jnp.zeros((H, Wm - (W + 2), Cp),
                                                  jnp.bfloat16)

        def conv3x3(load_patch, w_ref):
            # 9 per-tap MXU matmuls (K = Cp each).  Operands are direct
            # shifted window loads from VMEM refs (no im2col concatenate
            # temps) and the f32 partial sum stays a value - no VMEM
            # accumulator round-trips.
            acc = None
            for ky in range(3):
                for kx in range(3):
                    contrib = jnp.dot(load_patch(ky, kx), w_ref[ky, kx],
                                      preferred_element_type=jnp.float32)
                    acc = contrib if acc is None else acc + contrib
            return acc                                         # (HW, Cp) f32

        # ---- conv1 (3x3, pad=1) + bn1(folded) + relu -> mid interior ----
        acc1 = conv3x3(
            lambda ky, kx: xp_ref[0, ky:ky + H, kx:kx + W, :].reshape(HW, Cp),
            w1_ref)
        o1 = jnp.maximum(acc1 + b1_ref[...], 0.0)              # f32
        mid_ref[2:2 + H, 2:2 + W, :] = o1.reshape(H, W, Cp).astype(jnp.bfloat16)

        # ---- conv2 (3x3, dil=2, pad=2) + bn2(folded) + residual + relu ----
        acc2 = conv3x3(
            lambda ky, kx: mid_ref[2 * ky:2 * ky + H,
                                   2 * kx:2 * kx + W, :].reshape(HW, Cp),
            w2_ref)
        # residual read from the bf16 padded input already resident in VMEM
        # (bf16-rounded x; no separate f32 residual stream).
        res = xp_ref[0, 1:1 + H, 1:1 + W, :].astype(jnp.float32).reshape(HW, Cp)
        o2 = jnp.maximum(acc2 + b2_ref[...] + res, 0.0)
        out_ref[...] = o2.reshape(1, H, W, Cp).astype(out_ref.dtype)

    return kernel


def basic_block_forward(x_nchw, params):
    """Forward pass of BasicBlock (stride=1, downsample=None). Input NCHW."""
    x = jnp.transpose(x_nchw, (0, 2, 3, 1)).astype(jnp.float32)    # -> NHWC
    N, H, W, Cin = x.shape
    Cout = params["w1"].shape[-1]
    Cp = _round_up(max(Cin, Cout), LANE)       # lane-dense channel axis
    # TODO(synk): for genuinely small-channel layers (Cin,Cout << 128) fold
    # spatial width into the lane axis instead of padding channels to 128.

    scale1, bias1 = fold_bn(params["bn1_gamma"], params["bn1_beta"],
                            params["bn1_mean"], params["bn1_var"])
    scale2, bias2 = fold_bn(params["bn2_gamma"], params["bn2_beta"],
                            params["bn2_mean"], params["bn2_var"])

    w1r = _prep_weight(params["w1"], scale1, Cp)      # bf16, BN1 folded
    w2r = _prep_weight(params["w2"], scale2, Cp)      # bf16, BN2 folded
    b1p = _prep_bias(bias1, Cp)
    b2p = _prep_bias(bias2, Cp)

    # single wrapper pad: 1-px spatial halo for conv1 + channel pad to Cp;
    # the same bf16 array doubles as the residual source inside the kernel.
    xp = jnp.pad(x, ((0, 0), (1, 1), (1, 1), (0, Cp - Cin))).astype(jnp.bfloat16)

    Wm = _round_up(W + 4, SUBLANE)            # mid scratch sublane-aligned W
    kernel = _make_block_kernel(H, W, Cp, Wm)

    const4 = lambda n: (0, 0, 0, 0)
    const2 = lambda n: (0, 0)
    per_n4 = lambda n: (n, 0, 0, 0)

    out_p = pl.pallas_call(
        kernel,
        out_shape=jax.ShapeDtypeStruct((N, H, W, Cp), jnp.bfloat16),
        grid=(N,),
        in_specs=[
            pl.BlockSpec((1, H + 2, W + 2, Cp), per_n4),   # padded input (bf16)
            pl.BlockSpec((3, 3, Cp, Cp), const4),           # w1 (constant block)
            pl.BlockSpec((1, Cp), const2),                  # bias1
            pl.BlockSpec((3, 3, Cp, Cp), const4),           # w2 (constant block)
            pl.BlockSpec((1, Cp), const2),                  # bias2
        ],
        out_specs=pl.BlockSpec((1, H, W, Cp), per_n4),
        scratch_shapes=[
            pltpu.VMEM((H + 4, Wm, Cp), jnp.bfloat16),      # conv1 out + halo 2
        ],
        compiler_params=pltpu.CompilerParams(
            dimension_semantics=("parallel",),              # megacore
            vmem_limit_bytes=32 * 1024 * 1024,              # safe on v5e/v6e/v7x
        ),
    )(xp, w1r, b1p, w2r, b2p)

    # TODO(synk): add a spatial row-tile grid axis (3-row input halo for
    # conv1, 2-row dilated mid halo for conv2) for v7x (64 MiB VMEM, 2 TCs)
    # at production H,W; one image per step fits easily at these shapes.
    # TODO(synk): keep activations NHWC / channel-padded across the whole
    # network so the wrapper transpose/pad/slice HBM passes disappear.
    return jnp.transpose(out_p[..., :Cout].astype(jnp.float32), (0, 3, 1, 2))


def _reference_bf16(x_nchw, params):
    """Same math as the kernel (bf16 MXU inputs, BN folded into the weights,
    bf16 residual, bf16 output) via lax.conv — tight correctness check."""
    x = jnp.transpose(x_nchw, (0, 2, 3, 1)).astype(jnp.float32)
    dn = ("NHWC", "HWIO", "NHWC")
    scale1, bias1 = fold_bn(params["bn1_gamma"], params["bn1_beta"],
                            params["bn1_mean"], params["bn1_var"])
    scale2, bias2 = fold_bn(params["bn2_gamma"], params["bn2_beta"],
                            params["bn2_mean"], params["bn2_var"])
    w1f = (params["w1"] * scale1).astype(jnp.bfloat16)
    w2f = (params["w2"] * scale2).astype(jnp.bfloat16)
    xb = x.astype(jnp.bfloat16)
    out = jax.lax.conv_general_dilated(
        xb, w1f, (1, 1), [(1, 1), (1, 1)],
        dimension_numbers=dn, preferred_element_type=jnp.float32)
    out = jnp.maximum(out + bias1, 0.0)
    p2 = same_padding_size(3, 2)
    out = jax.lax.conv_general_dilated(
        out.astype(jnp.bfloat16), w2f, (1, 1), [(p2, p2), (p2, p2)],
        rhs_dilation=(2, 2), dimension_numbers=dn,
        preferred_element_type=jnp.float32)
    out = jnp.maximum(out + bias2 + xb.astype(jnp.float32), 0.0)
    out = out.astype(jnp.bfloat16).astype(jnp.float32)   # kernel output dtype
    return jnp.transpose(out, (0, 3, 1, 2))


def _reference_f32(x_nchw, params):
    """Full-f32 module semantics (eval-mode BN), for a loose sanity check."""
    x = jnp.transpose(x_nchw, (0, 2, 3, 1)).astype(jnp.float32)
    dn = ("NHWC", "HWIO", "NHWC")
    scale1, bias1 = fold_bn(params["bn1_gamma"], params["bn1_beta"],
                            params["bn1_mean"], params["bn1_var"])
    scale2, bias2 = fold_bn(params["bn2_gamma"], params["bn2_beta"],
                            params["bn2_mean"], params["bn2_var"])
    out = jax.lax.conv_general_dilated(x, params["w1"], (1, 1),
                                       [(1, 1), (1, 1)], dimension_numbers=dn)
    out = jnp.maximum(out * scale1 + bias1, 0.0)
    p2 = same_padding_size(3, 2)
    out = jax.lax.conv_general_dilated(out, params["w2"], (1, 1),
                                       [(p2, p2), (p2, p2)],
                                       rhs_dilation=(2, 2),
                                       dimension_numbers=dn)
    out = jnp.maximum(out * scale2 + bias2 + x, 0.0)
    return jnp.transpose(out, (0, 3, 1, 2))


def init_params(key, inplanes, planes):
    ks = jax.random.split(key, 10)
    return {
        # weights stored HWIO (kh, kw, cin, cout); PyTorch OIHW -> transposed
        "w1": 0.1 * jax.random.normal(ks[0], (3, 3, inplanes, planes), jnp.float32),
        "w2": 0.1 * jax.random.normal(ks[1], (3, 3, planes, planes), jnp.float32),
        "bn1_gamma": jax.random.uniform(ks[2], (planes,), jnp.float32, 0.5, 1.5),
        "bn1_beta":  0.1 * jax.random.normal(ks[3], (planes,), jnp.float32),
        "bn1_mean":  0.1 * jax.random.normal(ks[4], (planes,), jnp.float32),
        "bn1_var":   jax.random.uniform(ks[5], (planes,), jnp.float32, 0.5, 1.5),
        "bn2_gamma": jax.random.uniform(ks[6], (planes,), jnp.float32, 0.5, 1.5),
        "bn2_beta":  0.1 * jax.random.normal(ks[7], (planes,), jnp.float32),
        "bn2_mean":  0.1 * jax.random.normal(ks[8], (planes,), jnp.float32),
        "bn2_var":   jax.random.uniform(ks[9], (planes,), jnp.float32, 0.5, 1.5),
    }


if __name__ == "__main__":
    key = jax.random.PRNGKey(0)
    k_x, k_p = jax.random.split(key)

    N, C, H, W = 2, 4, 16, 16   # inplanes == planes, stride=1, downsample=None
    x = jax.random.normal(k_x, (N, C, H, W), jnp.float32)
    params = init_params(k_p, C, C)

    out = jax.block_until_ready(basic_block_forward(x, params))
    assert out.shape == (N, C, H, W)

    # Tight check vs. a reference that uses the same bf16 MXU inputs,
    # folded-BN weights, bf16 residual and bf16 output (residual differences
    # are only f32 accumulation order + 1-ulp bf16 rounding).
    ref_b = jax.block_until_ready(_reference_bf16(x, params))
    assert jnp.allclose(out, ref_b, atol=3e-2, rtol=3e-2), "mismatch vs bf16 ref"

    # Loose check vs. full-f32 module semantics; the gap is the documented
    # bf16 MXU-input / residual / output rounding chosen for TPU throughput.
    ref_f = jax.block_until_ready(_reference_f32(x, params))
    assert jnp.allclose(out, ref_f, atol=1.5e-1, rtol=1.5e-1), "mismatch vs f32 ref"

    # TODO(synk): BatchNorm is eval-mode (running statistics); PyTorch
    # training-mode batch-statistics BN is not reproduced.
    print("KERNEL_OK")
</pallas_src>

<mosaic_0001>
module attributes {stable_mosaic.version = 11 : i64} {
  func.func @kernel(%arg0: i32, %arg1: memref<1x18x18x128xbf16, #tpu.memory_space<vmem>>, %arg2: memref<3x3x128x128xbf16, #tpu.memory_space<vmem>>, %arg3: memref<1x128xf32, #tpu.memory_space<vmem>>, %arg4: memref<3x3x128x128xbf16, #tpu.memory_space<vmem>>, %arg5: memref<1x128xf32, #tpu.memory_space<vmem>>, %arg6: memref<1x16x16x128xbf16, #tpu.memory_space<vmem>>, %arg7: memref<20x24x128xbf16, #tpu.memory_space<vmem>>) attributes {dimension_semantics = [#tpu.dimension_semantics<parallel>], iteration_bounds = array<i64: 2>, scalar_prefetch = 0 : i64, scratch_operands = 1 : i64, tpu.core_type = #tpu.core_type<tc>, window_params = [{transform_indices = @transform_0, window_bounds = array<i64: 1, 18, 18, 128>}, {pipeline_mode = #tpu.pipeline_mode<synchronous>, transform_indices = @transform_1, window_bounds = array<i64: 3, 3, 128, 128>}, {pipeline_mode = #tpu.pipeline_mode<synchronous>, transform_indices = @transform_2, window_bounds = array<i64: 1, 128>}, {pipeline_mode = #tpu.pipeline_mode<synchronous>, transform_indices = @transform_3, window_bounds = array<i64: 3, 3, 128, 128>}, {pipeline_mode = #tpu.pipeline_mode<synchronous>, transform_indices = @transform_4, window_bounds = array<i64: 1, 128>}, {transform_indices = @transform_5, window_bounds = array<i64: 1, 16, 16, 128>}]} {
    %cst = arith.constant 0.000000e+00 : bf16
    %0 = vector.broadcast %cst : bf16 to vector<2x24x128xbf16>
    %c0 = arith.constant 0 : index
    %c0_0 = arith.constant 0 : index
    %c0_1 = arith.constant 0 : index
    %1 = vector.load %arg7[%c0, %c0_0, %c0_1] : memref<20x24x128xbf16, #tpu.memory_space<vmem>>, vector<2x24x128xbf16>
    tpu.vector_store %arg7[%c0, %c0_0, %c0_1], %0 {strides = array<i32>} : memref<20x24x128xbf16, #tpu.memory_space<vmem>>, vector<2x24x128xbf16>,
    %c18 = arith.constant 18 : index
    %c0_2 = arith.constant 0 : index
    %c0_3 = arith.constant 0 : index
    %2 = vector.load %arg7[%c18, %c0_2, %c0_3] : memref<20x24x128xbf16, #tpu.memory_space<vmem>>, vector<2x24x128xbf16>
    tpu.vector_store %arg7[%c18, %c0_2, %c0_3], %0 {strides = array<i32>} : memref<20x24x128xbf16, #tpu.memory_space<vmem>>, vector<2x24x128xbf16>,
    %cst_4 = arith.constant 0.000000e+00 : bf16
    %3 = vector.broadcast %cst_4 : bf16 to vector<16x2x128xbf16>
    %c2 = arith.constant 2 : index
    %c0_5 = arith.constant 0 : index
    %c0_6 = arith.constant 0 : index
    %4 = vector.load %arg7[%c2, %c0_5, %c0_6] : memref<20x24x128xbf16, #tpu.memory_space<vmem>>, vector<16x2x128xbf16>
    tpu.vector_store %arg7[%c2, %c0_5, %c0_6], %3 {strides = array<i32>} : memref<20x24x128xbf16, #tpu.memory_space<vmem>>, vector<16x2x128xbf16>,
    %cst_7 = arith.constant 0.000000e+00 : bf16
    %5 = vector.broadcast %cst_7 : bf16 to vector<16x6x128xbf16>
    %c2_8 = arith.constant 2 : index
    %c18_9 = arith.constant 18 : index
    %c0_10 = arith.constant 0 : index
    %6 = vector.load %arg7[%c2_8, %c18_9, %c0_10] : memref<20x24x128xbf16, #tpu.memory_space<vmem>>, vector<16x6x128xbf16>
    tpu.vector_store %arg7[%c2_8, %c18_9, %c0_10], %5 {strides = array<i32>} : memref<20x24x128xbf16, #tpu.memory_space<vmem>>, vector<16x6x128xbf16>,
    %c0_11 = arith.constant 0 : index
    %c0_12 = arith.constant 0 : index
    %c0_13 = arith.constant 0 : index
    %c0_14 = arith.constant 0 : index
    %7 = vector.load %arg1[%c0_11, %c0_12, %c0_13, %c0_14] : memref<1x18x18x128xbf16, #tpu.memory_space<vmem>>, vector<1x16x16x128xbf16>
    %8 = vector.shape_cast %7 : vector<1x16x16x128xbf16> to vector<16x16x128xbf16>
    %9 = vector.shape_cast %8 : vector<16x16x128xbf16> to vector<256x128xbf16>
    %c0_15 = arith.constant 0 : index
    %c0_16 = arith.constant 0 : index
    %c0_17 = arith.constant 0 : index
    %c0_18 = arith.constant 0 : index
    %10 = vector.load %arg2[%c0_15, %c0_16, %c0_17, %c0_18] : memref<3x3x128x128xbf16, #tpu.memory_space<vmem>>, vector<1x1x128x128xbf16>
    %11 = vector.shape_cast %10 : vector<1x1x128x128xbf16> to vector<128x128xbf16>
    %cst_19 = arith.constant dense<0.000000e+00> : vector<256x128xf32>
    %12 = tpu.matmul %9, %11, %cst_19 {dimension_numbers = #tpu.dot_dimension_numbers<[1], [0], [0], [1], [0, 0, 1, 1], [], []>} : vector<256x128xbf16>, vector<128x128xbf16>, vector<256x128xf32> -> vector<256x128xf32>
    %c0_20 = arith.constant 0 : index
    %c0_21 = arith.constant 0 : index
    %c1 = arith.constant 1 : index
    %c0_22 = arith.constant 0 : index
    %13 = vector.load %arg1[%c0_20, %c0_21, %c1, %c0_22] : memref<1x18x18x128xbf16, #tpu.memory_space<vmem>>, vector<1x16x16x128xbf16>
    %14 = vector.shape_cast %13 : vector<1x16x16x128xbf16> to vector<16x16x128xbf16>
    %15 = vector.shape_cast %14 : vector<16x16x128xbf16> to vector<256x128xbf16>
    %c0_23 = arith.constant 0 : index
    %c1_24 = arith.constant 1 : index
    %c0_25 = arith.constant 0 : index
    %c0_26 = arith.constant 0 : index
    %16 = vector.load %arg2[%c0_23, %c1_24, %c0_25, %c0_26] : memref<3x3x128x128xbf16, #tpu.memory_space<vmem>>, vector<1x1x128x128xbf16>
    %17 = vector.shape_cast %16 : vector<1x1x128x128xbf16> to vector<128x128xbf16>
    %cst_27 = arith.constant dense<0.000000e+00> : vector<256x128xf32>
    %18 = tpu.matmul %15, %17, %cst_27 {dimension_numbers = #tpu.dot_dimension_numbers<[1], [0], [0], [1], [0, 0, 1, 1], [], []>} : vector<256x128xbf16>, vector<128x128xbf16>, vector<256x128xf32> -> vector<256x128xf32>
    %19 = arith.addf %12, %18 : vector<256x128xf32>
    %c0_28 = arith.constant 0 : index
    %c0_29 = arith.constant 0 : index
    %c2_30 = arith.constant 2 : index
    %c0_31 = arith.constant 0 : index
    %20 = vector.load %arg1[%c0_28, %c0_29, %c2_30, %c0_31] : memref<1x18x18x128xbf16, #tpu.memory_space<vmem>>, vector<1x16x16x128xbf16>
    %21 = vector.shape_cast %20 : vector<1x16x16x128xbf16> to vector<16x16x128xbf16>
    %22 = vector.shape_cast %21 : vector<16x16x128xbf16> to vector<256x128xbf16>
    %c0_32 = arith.constant 0 : index
    %c2_33 = arith.constant 2 : index
    %c0_34 = arith.constant 0 : index
    %c0_35 = arith.constant 0 : index
    %23 = vector.load %arg2[%c0_32, %c2_33, %c0_34, %c0_35] : memref<3x3x128x128xbf16, #tpu.memory_space<vmem>>, vector<1x1x128x128xbf16>
    %24 = vector.shape_cast %23 : vector<1x1x128x128xbf16> to vector<128x128xbf16>
    %cst_36 = arith.constant dense<0.000000e+00> : vector<256x128xf32>
    %25 = tpu.matmul %22, %24, %cst_36 {dimension_numbers = #tpu.dot_dimension_numbers<[1], [0], [0], [1], [0, 0, 1, 1], [], []>} : vector<256x128xbf16>, vector<128x128xbf16>, vector<256x128xf32> -> vector<256x128xf32>
    %26 = arith.addf %19, %25 : vector<256x128xf32>
    %c0_37 = arith.constant 0 : index
    %c1_38 = arith.constant 1 : index
    %c0_39 = arith.constant 0 : index
    %c0_40 = arith.constant 0 : index
    %27 = vector.load %arg1[%c0_37, %c1_38, %c0_39, %c0_40] : memref<1x18x18x128xbf16, #tpu.memory_space<vmem>>, vector<1x16x16x128xbf16>
    %28 = vector.shape_cast %27 : vector<1x16x16x128xbf16> to vector<16x16x128xbf16>
    %29 = vector.shape_cast %28 : vector<16x16x128xbf16> to vector<256x128xbf16>
    %c1_41 = arith.constant 1 : index
    %c0_42 = arith.constant 0 : index
    %c0_43 = arith.constant 0 : index
    %c0_44 = arith.constant 0 : index
    %30 = vector.load %arg2[%c1_41, %c0_42, %c0_43, %c0_44] : memref<3x3x128x128xbf16, #tpu.memory_space<vmem>>, vector<1x1x128x128xbf16>
    %31 = vector.shape_cast %30 : vector<1x1x128x128xbf16> to vector<128x128xbf16>
    %cst_45 = arith.constant dense<0.000000e+00> : vector<256x128xf32>
    %32 = tpu.matmul %29, %31, %cst_45 {dimension_numbers = #tpu.dot_dimension_numbers<[1], [0], [0], [1], [0, 0, 1, 1], [], []>} : vector<256x128xbf16>, vector<128x128xbf16>, vector<256x128xf32> -> vector<256x128xf32>
    %33 = arith.addf %26, %32 : vector<256x128xf32>
    %c0_46 = arith.constant 0 : index
    %c1_47 = arith.constant 1 : index
    %c1_48 = arith.constant 1 : index
    %c0_49 = arith.constant 0 : index
    %34 = vector.load %arg1[%c0_46, %c1_47, %c1_48, %c0_49] : memref<1x18x18x128xbf16, #tpu.memory_space<vmem>>, vector<1x16x16x128xbf16>
    %35 = vector.shape_cast %34 : vector<1x16x16x128xbf16> to vector<16x16x128xbf16>
    %36 = vector.shape_cast %35 : vector<16x16x128xbf16> to vector<256x128xbf16>
    %c1_50 = arith.constant 1 : index
    %c1_51 = arith.constant 1 : index
    %c0_52 = arith.constant 0 : index
    %c0_53 = arith.constant 0 : index
    %37 = vector.load %arg2[%c1_50, %c1_51, %c0_52, %c0_53] : memref<3x3x128x128xbf16, #tpu.memory_space<vmem>>, vector<1x1x128x128xbf16>
    %38 = vector.shape_cast %37 : vector<1x1x128x128xbf16> to vector<128x128xbf16>
    %cst_54 = arith.constant dense<0.000000e+00> : vector<256x128xf32>
    %39 = tpu.matmul %36, %38, %cst_54 {dimension_numbers = #tpu.dot_dimension_numbers<[1], [0], [0], [1], [0, 0, 1, 1], [], []>} : vector<256x128xbf16>, vector<128x128xbf16>, vector<256x128xf32> -> vector<256x128xf32>
    %40 = arith.addf %33, %39 : vector<256x128xf32>
    %c0_55 = arith.constant 0 : index
    %c1_56 = arith.constant 1 : index
    %c2_57 = arith.constant 2 : index
    %c0_58 = arith.constant 0 : index
    %41 = vector.load %arg1[%c0_55, %c1_56, %c2_57, %c0_58] : memref<1x18x18x128xbf16, #tpu.memory_space<vmem>>, vector<1x16x16x128xbf16>
    %42 = vector.shape_cast %41 : vector<1x16x16x128xbf16> to vector<16x16x128xbf16>
    %43 = vector.shape_cast %42 : vector<16x16x128xbf16> to vector<256x128xbf16>
    %c1_59 = arith.constant 1 : index
    %c2_60 = arith.constant 2 : index
    %c0_61 = arith.constant 0 : index
    %c0_62 = arith.constant 0 : index
    %44 = vector.load %arg2[%c1_59, %c2_60, %c0_61, %c0_62] : memref<3x3x128x128xbf16, #tpu.memory_space<vmem>>, vector<1x1x128x128xbf16>
    %45 = vector.shape_cast %44 : vector<1x1x128x128xbf16> to vector<128x128xbf16>
    %cst_63 = arith.constant dense<0.000000e+00> : vector<256x128xf32>
    %46 = tpu.matmul %43, %45, %cst_63 {dimension_numbers = #tpu.dot_dimension_numbers<[1], [0], [0], [1], [0, 0, 1, 1], [], []>} : vector<256x128xbf16>, vector<128x128xbf16>, vector<256x128xf32> -> vector<256x128xf32>
    %47 = arith.addf %40, %46 : vector<256x128xf32>
    %c0_64 = arith.constant 0 : index
    %c2_65 = arith.constant 2 : index
    %c0_66 = arith.constant 0 : index
    %c0_67 = arith.constant 0 : index
    %48 = vector.load %arg1[%c0_64, %c2_65, %c0_66, %c0_67] : memref<1x18x18x128xbf16, #tpu.memory_space<vmem>>, vector<1x16x16x128xbf16>
    %49 = vector.shape_cast %48 : vector<1x16x16x128xbf16> to vector<16x16x128xbf16>
    %50 = vector.shape_cast %49 : vector<16x16x128xbf16> to vector<256x128xbf16>
    %c2_68 = arith.constant 2 : index
    %c0_69 = arith.constant 0 : index
    %c0_70 = arith.constant 0 : index
    %c0_71 = arith.constant 0 : index
    %51 = vector.load %arg2[%c2_68, %c0_69, %c0_70, %c0_71] : memref<3x3x128x128xbf16, #tpu.memory_space<vmem>>, vector<1x1x128x128xbf16>
    %52 = vector.shape_cast %51 : vector<1x1x128x128xbf16> to vector<128x128xbf16>
    %cst_72 = arith.constant dense<0.000000e+00> : vector<256x128xf32>
    %53 = tpu.matmul %50, %52, %cst_72 {dimension_numbers = #tpu.dot_dimension_numbers<[1], [0], [0], [1], [0, 0, 1, 1], [], []>} : vector<256x128xbf16>, vector<128x128xbf16>, vector<256x128xf32> -> vector<256x128xf32>
    %54 = arith.addf %47, %53 : vector<256x128xf32>
    %c0_73 = arith.constant 0 : index
    %c2_74 = arith.constant 2 : index
    %c1_75 = arith.constant 1 : index
    %c0_76 = arith.constant 0 : index
    %55 = vector.load %arg1[%c0_73, %c2_74, %c1_75, %c0_76] : memref<1x18x18x128xbf16, #tpu.memory_space<vmem>>, vector<1x16x16x128xbf16>
    %56 = vector.shape_cast %55 : vector<1x16x16x128xbf16> to vector<16x16x128xbf16>
    %57 = vector.shape_cast %56 : vector<16x16x128xbf16> to vector<256x128xbf16>
    %c2_77 = arith.constant 2 : index
    %c1_78 = arith.constant 1 : index
    %c0_79 = arith.constant 0 : index
    %c0_80 = arith.constant 0 : index
    %58 = vector.load %arg2[%c2_77, %c1_78, %c0_79, %c0_80] : memref<3x3x128x128xbf16, #tpu.memory_space<vmem>>, vector<1x1x128x128xbf16>
    %59 = vector.shape_cast %58 : vector<1x1x128x128xbf16> to vector<128x128xbf16>
    %cst_81 = arith.constant dense<0.000000e+00> : vector<256x128xf32>
    %60 = tpu.matmul %57, %59, %cst_81 {dimension_numbers = #tpu.dot_dimension_numbers<[1], [0], [0], [1], [0, 0, 1, 1], [], []>} : vector<256x128xbf16>, vector<128x128xbf16>, vector<256x128xf32> -> vector<256x128xf32>
    %61 = arith.addf %54, %60 : vector<256x128xf32>
    %c0_82 = arith.constant 0 : index
    %c2_83 = arith.constant 2 : index
    %c2_84 = arith.constant 2 : index
    %c0_85 = arith.constant 0 : index
    %62 = vector.load %arg1[%c0_82, %c2_83, %c2_84, %c0_85] : memref<1x18x18x128xbf16, #tpu.memory_space<vmem>>, vector<1x16x16x128xbf16>
    %63 = vector.shape_cast %62 : vector<1x16x16x128xbf16> to vector<16x16x128xbf16>
    %64 = vector.shape_cast %63 : vector<16x16x128xbf16> to vector<256x128xbf16>
    %c2_86 = arith.constant 2 : index
    %c2_87 = arith.constant 2 : index
    %c0_88 = arith.constant 0 : index
    %c0_89 = arith.constant 0 : index
    %65 = vector.load %arg2[%c2_86, %c2_87, %c0_88, %c0_89] : memref<3x3x128x128xbf16, #tpu.memory_space<vmem>>, vector<1x1x128x128xbf16>
    %66 = vector.shape_cast %65 : vector<1x1x128x128xbf16> to vector<128x128xbf16>
    %cst_90 = arith.constant dense<0.000000e+00> : vector<256x128xf32>
    %67 = tpu.matmul %64, %66, %cst_90 {dimension_numbers = #tpu.dot_dimension_numbers<[1], [0], [0], [1], [0, 0, 1, 1], [], []>} : vector<256x128xbf16>, vector<128x128xbf16>, vector<256x128xf32> -> vector<256x128xf32>
    %68 = arith.addf %61, %67 : vector<256x128xf32>
    %c0_91 = arith.constant 0 : index
    %c0_92 = arith.constant 0 : index
    %69 = vector.load %arg3[%c0_91, %c0_92] : memref<1x128xf32, #tpu.memory_space<vmem>>, vector<1x128xf32>
    %70 = vector.broadcast %69 : vector<1x128xf32> to vector<256x128xf32>
    %71 = arith.addf %68, %70 : vector<256x128xf32>
    %cst_93 = arith.constant 0.000000e+00 : f32
    %72 = vector.broadcast %cst_93 : f32 to vector<256x128xf32>
    %73 = arith.maximumf %71, %72 : vector<256x128xf32>
    %74 = vector.shape_cast %73 : vector<256x128xf32> to vector<16x16x128xf32>
    %75 = arith.truncf %74 : vector<16x16x128xf32> to vector<16x16x128xbf16>
    %c2_94 = arith.constant 2 : index
    %c2_95 = arith.constant 2 : index
    %c0_96 = arith.constant 0 : index
    %76 = vector.load %arg7[%c2_94, %c2_95, %c0_96] : memref<20x24x128xbf16, #tpu.memory_space<vmem>>, vector<16x16x128xbf16>
    tpu.vector_store %arg7[%c2_94, %c2_95, %c0_96], %75 {strides = array<i32>} : memref<20x24x128xbf16, #tpu.memory_space<vmem>>, vector<16x16x128xbf16>,
    %c0_97 = arith.constant 0 : index
    %c0_98 = arith.constant 0 : index
    %c0_99 = arith.constant 0 : index
    %77 = vector.load %arg7[%c0_97, %c0_98, %c0_99] : memref<20x24x128xbf16, #tpu.memory_space<vmem>>, vector<16x16x128xbf16>
    %78 = vector.shape_cast %77 : vector<16x16x128xbf16> to vector<256x128xbf16>
    %c0_100 = arith.constant 0 : index
    %c0_101 = arith.constant 0 : index
    %c0_102 = arith.constant 0 : index
    %c0_103 = arith.constant 0 : index
    %79 = vector.load %arg4[%c0_100, %c0_101, %c0_102, %c0_103] : memref<3x3x128x128xbf16, #tpu.memory_space<vmem>>, vector<1x1x128x128xbf16>
    %80 = vector.shape_cast %79 : vector<1x1x128x128xbf16> to vector<128x128xbf16>
    %cst_104 = arith.constant dense<0.000000e+00> : vector<256x128xf32>
    %81 = tpu.matmul %78, %80, %cst_104 {dimension_numbers = #tpu.dot_dimension_numbers<[1], [0], [0], [1], [0, 0, 1, 1], [], []>} : vector<256x128xbf16>, vector<128x128xbf16>, vector<256x128xf32> -> vector<256x128xf32>
    %c0_105 = arith.constant 0 : index
    %c2_106 = arith.constant 2 : index
    %c0_107 = arith.constant 0 : index
    %82 = vector.load %arg7[%c0_105, %c2_106, %c0_107] : memref<20x24x128xbf16, #tpu.memory_space<vmem>>, vector<16x16x128xbf16>
    %83 = vector.shape_cast %82 : vector<16x16x128xbf16> to vector<256x128xbf16>
    %c0_108 = arith.constant 0 : index
    %c1_109 = arith.constant 1 : index
    %c0_110 = arith.constant 0 : index
    %c0_111 = arith.constant 0 : index
    %84 = vector.load %arg4[%c0_108, %c1_109, %c0_110, %c0_111] : memref<3x3x128x128xbf16, #tpu.memory_space<vmem>>, vector<1x1x128x128xbf16>
    %85 = vector.shape_cast %84 : vector<1x1x128x128xbf16> to vector<128x128xbf16>
    %cst_112 = arith.constant dense<0.000000e+00> : vector<256x128xf32>
    %86 = tpu.matmul %83, %85, %cst_112 {dimension_numbers = #tpu.dot_dimension_numbers<[1], [0], [0], [1], [0, 0, 1, 1], [], []>} : vector<256x128xbf16>, vector<128x128xbf16>, vector<256x128xf32> -> vector<256x128xf32>
    %87 = arith.addf %81, %86 : vector<256x128xf32>
    %c0_113 = arith.constant 0 : index
    %c4 = arith.constant 4 : index
    %c0_114 = arith.constant 0 : index
    %88 = vector.load %arg7[%c0_113, %c4, %c0_114] : memref<20x24x128xbf16, #tpu.memory_space<vmem>>, vector<16x16x128xbf16>
    %89 = vector.shape_cast %88 : vector<16x16x128xbf16> to vector<256x128xbf16>
    %c0_115 = arith.constant 0 : index
    %c2_116 = arith.constant 2 : index
    %c0_117 = arith.constant 0 : index
    %c0_118 = arith.constant 0 : index
    %90 = vector.load %arg4[%c0_115, %c2_116, %c0_117, %c0_118] : memref<3x3x128x128xbf16, #tpu.memory_space<vmem>>, vector<1x1x128x128xbf16>
    %91 = vector.shape_cast %90 : vector<1x1x128x128xbf16> to vector<128x128xbf16>
    %cst_119 = arith.constant dense<0.000000e+00> : vector<256x128xf32>
    %92 = tpu.matmul %89, %91, %cst_119 {dimension_numbers = #tpu.dot_dimension_numbers<[1], [0], [0], [1], [0, 0, 1, 1], [], []>} : vector<256x128xbf16>, vector<128x128xbf16>, vector<256x128xf32> -> vector<256x128xf32>
    %93 = arith.addf %87, %92 : vector<256x128xf32>
    %c2_120 = arith.constant 2 : index
    %c0_121 = arith.constant 0 : index
    %c0_122 = arith.constant 0 : index
    %94 = vector.load %arg7[%c2_120, %c0_121, %c0_122] : memref<20x24x128xbf16, #tpu.memory_space<vmem>>, vector<16x16x128xbf16>
    %95 = vector.shape_cast %94 : vector<16x16x128xbf16> to vector<256x128xbf16>
    %c1_123 = arith.constant 1 : index
    %c0_124 = arith.constant 0 : index
    %c0_125 = arith.constant 0 : index
    %c0_126 = arith.constant 0 : index
    %96 = vector.load %arg4[%c1_123, %c0_124, %c0_125, %c0_126] : memref<3x3x128x128xbf16, #tpu.memory_space<vmem>>, vector<1x1x128x128xbf16>
    %97 = vector.shape_cast %96 : vector<1x1x128x128xbf16> to vector<128x128xbf16>
    %cst_127 = arith.constant dense<0.000000e+00> : vector<256x128xf32>
    %98 = tpu.matmul %95, %97, %cst_127 {dimension_numbers = #tpu.dot_dimension_numbers<[1], [0], [0], [1], [0, 0, 1, 1], [], []>} : vector<256x128xbf16>, vector<128x128xbf16>, vector<256x128xf32> -> vector<256x128xf32>
    %99 = arith.addf %93, %98 : vector<256x128xf32>
    %c2_128 = arith.constant 2 : index
    %c2_129 = arith.constant 2 : index
    %c0_130 = arith.constant 0 : index
    %100 = vector.load %arg7[%c2_128, %c2_129, %c0_130] : memref<20x24x128xbf16, #tpu.memory_space<vmem>>, vector<16x16x128xbf16>
    %101 = vector.shape_cast %100 : vector<16x16x128xbf16> to vector<256x128xbf16>
    %c1_131 = arith.constant 1 : index
    %c1_132 = arith.constant 1 : index
    %c0_133 = arith.constant 0 : index
    %c0_134 = arith.constant 0 : index
    %102 = vector.load %arg4[%c1_131, %c1_132, %c0_133, %c0_134] : memref<3x3x128x128xbf16, #tpu.memory_space<vmem>>, vector<1x1x128x128xbf16>
    %103 = vector.shape_cast %102 : vector<1x1x128x128xbf16> to vector<128x128xbf16>
    %cst_135 = arith.constant dense<0.000000e+00> : vector<256x128xf32>
    %104 = tpu.matmul %101, %103, %cst_135 {dimension_numbers = #tpu.dot_dimension_numbers<[1], [0], [0], [1], [0, 0, 1, 1], [], []>} : vector<256x128xbf16>, vector<128x128xbf16>, vector<256x128xf32> -> vector<256x128xf32>
    %105 = arith.addf %99, %104 : vector<256x128xf32>
    %c2_136 = arith.constant 2 : index
    %c4_137 = arith.constant 4 : index
    %c0_138 = arith.constant 0 : index
    %106 = vector.load %arg7[%c2_136, %c4_137, %c0_138] : memref<20x24x128xbf16, #tpu.memory_space<vmem>>, vector<16x16x128xbf16>
    %107 = vector.shape_cast %106 : vector<16x16x128xbf16> to vector<256x128xbf16>
    %c1_139 = arith.constant 1 : index
    %c2_140 = arith.constant 2 : index
    %c0_141 = arith.constant 0 : index
    %c0_142 = arith.constant 0 : index
    %108 = vector.load %arg4[%c1_139, %c2_140, %c0_141, %c0_142] : memref<3x3x128x128xbf16, #tpu.memory_space<vmem>>, vector<1x1x128x128xbf16>
    %109 = vector.shape_cast %108 : vector<1x1x128x128xbf16> to vector<128x128xbf16>
    %cst_143 = arith.constant dense<0.000000e+00> : vector<256x128xf32>
    %110 = tpu.matmul %107, %109, %cst_143 {dimension_numbers = #tpu.dot_dimension_numbers<[1], [0], [0], [1], [0, 0, 1, 1], [], []>} : vector<256x128xbf16>, vector<128x128xbf16>, vector<256x128xf32> -> vector<256x128xf32>
    %111 = arith.addf %105, %110 : vector<256x128xf32>
    %c4_144 = arith.constant 4 : index
    %c0_145 = arith.constant 0 : index
    %c0_146 = arith.constant 0 : index
    %112 = vector.load %arg7[%c4_144, %c0_145, %c0_146] : memref<20x24x128xbf16, #tpu.memory_space<vmem>>, vector<16x16x128xbf16>
    %113 = vector.shape_cast %112 : vector<16x16x128xbf16> to vector<256x128xbf16>
    %c2_147 = arith.constant 2 : index
    %c0_148 = arith.constant 0 : index
    %c0_149 = arith.constant 0 : index
    %c0_150 = arith.constant 0 : index
    %114 = vector.load %arg4[%c2_147, %c0_148, %c0_149, %c0_150] : memref<3x3x128x128xbf16, #tpu.memory_space<vmem>>, vector<1x1x128x128xbf16>
    %115 = vector.shape_cast %114 : vector<1x1x128x128xbf16> to vector<128x128xbf16>
    %cst_151 = arith.constant dense<0.000000e+00> : vector<256x128xf32>
    %116 = tpu.matmul %113, %115, %cst_151 {dimension_numbers = #tpu.dot_dimension_numbers<[1], [0], [0], [1], [0, 0, 1, 1], [], []>} : vector<256x128xbf16>, vector<128x128xbf16>, vector<256x128xf32> -> vector<256x128xf32>
    %117 = arith.addf %111, %116 : vector<256x128xf32>
    %c4_152 = arith.constant 4 : index
    %c2_153 = arith.constant 2 : index
    %c0_154 = arith.constant 0 : index
    %118 = vector.load %arg7[%c4_152, %c2_153, %c0_154] : memref<20x24x128xbf16, #tpu.memory_space<vmem>>, vector<16x16x128xbf16>
    %119 = vector.shape_cast %118 : vector<16x16x128xbf16> to vector<256x128xbf16>
    %c2_155 = arith.constant 2 : index
    %c1_156 = arith.constant 1 : index
    %c0_157 = arith.constant 0 : index
    %c0_158 = arith.constant 0 : index
    %120 = vector.load %arg4[%c2_155, %c1_156, %c0_157, %c0_158] : memref<3x3x128x128xbf16, #tpu.memory_space<vmem>>, vector<1x1x128x128xbf16>
    %121 = vector.shape_cast %120 : vector<1x1x128x128xbf16> to vector<128x128xbf16>
    %cst_159 = arith.constant dense<0.000000e+00> : vector<256x128xf32>
    %122 = tpu.matmul %119, %121, %cst_159 {dimension_numbers = #tpu.dot_dimension_numbers<[1], [0], [0], [1], [0, 0, 1, 1], [], []>} : vector<256x128xbf16>, vector<128x128xbf16>, vector<256x128xf32> -> vector<256x128xf32>
    %123 = arith.addf %117, %122 : vector<256x128xf32>
    %c4_160 = arith.constant 4 : index
    %c4_161 = arith.constant 4 : index
    %c0_162 = arith.constant 0 : index
    %124 = vector.load %arg7[%c4_160, %c4_161, %c0_162] : memref<20x24x128xbf16, #tpu.memory_space<vmem>>, vector<16x16x128xbf16>
    %125 = vector.shape_cast %124 : vector<16x16x128xbf16> to vector<256x128xbf16>
    %c2_163 = arith.constant 2 : index
    %c2_164 = arith.constant 2 : index
    %c0_165 = arith.constant 0 : index
    %c0_166 = arith.constant 0 : index
    %126 = vector.load %arg4[%c2_163, %c2_164, %c0_165, %c0_166] : memref<3x3x128x128xbf16, #tpu.memory_space<vmem>>, vector<1x1x128x128xbf16>
    %127 = vector.shape_cast %126 : vector<1x1x128x128xbf16> to vector<128x128xbf16>
    %cst_167 = arith.constant dense<0.000000e+00> : vector<256x128xf32>
    %128 = tpu.matmul %125, %127, %cst_167 {dimension_numbers = #tpu.dot_dimension_numbers<[1], [0], [0], [1], [0, 0, 1, 1], [], []>} : vector<256x128xbf16>, vector<128x128xbf16>, vector<256x128xf32> -> vector<256x128xf32>
    %129 = arith.addf %123, %128 : vector<256x128xf32>
    %c0_168 = arith.constant 0 : index
    %c1_169 = arith.constant 1 : index
    %c1_170 = arith.constant 1 : index
    %c0_171 = arith.constant 0 : index
    %130 = vector.load %arg1[%c0_168, %c1_169, %c1_170, %c0_171] : memref<1x18x18x128xbf16, #tpu.memory_space<vmem>>, vector<1x16x16x128xbf16>
    %131 = vector.shape_cast %130 : vector<1x16x16x128xbf16> to vector<16x16x128xbf16>
    %132 = arith.extf %131 : vector<16x16x128xbf16> to vector<16x16x128xf32>
    %133 = vector.shape_cast %132 : vector<16x16x128xf32> to vector<256x128xf32>
    %c0_172 = arith.constant 0 : index
    %c0_173 = arith.constant 0 : index
    %134 = vector.load %arg5[%c0_172, %c0_173] : memref<1x128xf32, #tpu.memory_space<vmem>>, vector<1x128xf32>
    %135 = vector.broadcast %134 : vector<1x128xf32> to vector<256x128xf32>
    %136 = arith.addf %129, %135 : vector<256x128xf32>
    %137 = arith.addf %136, %133 : vector<256x128xf32>
    %cst_174 = arith.constant 0.000000e+00 : f32
    %138 = vector.broadcast %cst_174 : f32 to vector<256x128xf32>
    %139 = arith.maximumf %137, %138 : vector<256x128xf32>
    %140 = vector.shape_cast %139 : vector<256x128xf32> to vector<1x16x16x128xf32>
    %141 = arith.truncf %140 : vector<1x16x16x128xf32> to vector<1x16x16x128xbf16>
    %c0_175 = arith.constant 0 : index
    %c0_176 = arith.constant 0 : index
    %c0_177 = arith.constant 0 : index
    %c0_178 = arith.constant 0 : index
    %142 = vector.load %arg6[%c0_175, %c0_176, %c0_177, %c0_178] : memref<1x16x16x128xbf16, #tpu.memory_space<vmem>>, vector<1x16x16x128xbf16>
    tpu.vector_store %arg6[%c0_175, %c0_176, %c0_177, %c0_178], %141 {strides = array<i32>} : memref<1x16x16x128xbf16, #tpu.memory_space<vmem>>, vector<1x16x16x128xbf16>,
    return
  }
  func.func @transform_0(%arg0: i32) -> (i32, i32, i32, i32) {
    %c0_i32 = arith.constant 0 : i32
    %c0_i32_0 = arith.constant 0 : i32
    %c0_i32_1 = arith.constant 0 : i32
    %c0_i32_2 = arith.constant 0 : i32
    return %arg0, %c0_i32, %c0_i32_0, %c0_i32_1 : i32, i32, i32, i32
  }
  func.func @transform_1(%arg0: i32) -> (i32, i32, i32, i32) {
    %c0_i32 = arith.constant 0 : i32
    %c0_i32_0 = arith.constant 0 : i32
    %c0_i32_1 = arith.constant 0 : i32
    %c0_i32_2 = arith.constant 0 : i32
    %c0_i32_3 = arith.constant 0 : i32
    return %c0_i32, %c0_i32_0, %c0_i32_1, %c0_i32_2 : i32, i32, i32, i32
  }
  func.func @transform_2(%arg0: i32) -> (i32, i32) {
    %c0_i32 = arith.constant 0 : i32
    %c0_i32_0 = arith.constant 0 : i32
    %c0_i32_1 = arith.constant 0 : i32
    return %c0_i32, %c0_i32_0 : i32, i32
  }
  func.func @transform_3(%arg0: i32) -> (i32, i32, i32, i32) {
    %c0_i32 = arith.constant 0 : i32
    %c0_i32_0 = arith.constant 0 : i32
    %c0_i32_1 = arith.constant 0 : i32
    %c0_i32_2 = arith.constant 0 : i32
    %c0_i32_3 = arith.constant 0 : i32
    return %c0_i32, %c0_i32_0, %c0_i32_1, %c0_i32_2 : i32, i32, i32, i32
  }
  func.func @transform_4(%arg0: i32) -> (i32, i32) {
    %c0_i32 = arith.constant 0 : i32
    %c0_i32_0 = arith.constant 0 : i32
    %c0_i32_1 = arith.constant 0 : i32
    return %c0_i32, %c0_i32_0 : i32, i32
  }
  func.func @transform_5(%arg0: i32) -> (i32, i32, i32, i32) {
    %c0_i32 = arith.constant 0 : i32
    %c0_i32_0 = arith.constant 0 : i32
    %c0_i32_1 = arith.constant 0 : i32
    %c0_i32_2 = arith.constant 0 : i32
    return %arg0, %c0_i32, %c0_i32_0, %c0_i32_1 : i32, i32, i32, i32
  }
}

</mosaic_0001>

<llo_original>
// kernel: tpu_custom_call.1
$region0: #{tpu_custom_call.1}
  #allocation0 [shape = 'u32[]', space=smem, size = 0x4, offset = 0x4, fixed_abs, tag = 'smem constant byte address 0x4 - core index']
  #allocation1 [shape = 'u32[144,128]{1,0:T(1,128)}', space=vmem, size = 0x12000, scoped, tag = 'internal scratch']
  #allocation2 [shape = 'bf16[20,24,128]{2,1,0:T(8,128)(2,1)}', space=vmem, size = 0x1e000, scoped, tag = 'scratch operand']
  %s0 = inlined_call_operand.vmem [shape: bf16[2,18,18,128], index: 0, kind: input, shape index: {}]
  %s1 = inlined_call_operand.vmem [shape: bf16[3,3,128,128], index: 1, kind: input, shape index: {}]
  %s2 = inlined_call_operand.vmem [shape: f32[1,128], index: 2, kind: input, shape index: {}]
  %s3 = inlined_call_operand.hbm [shape: bf16[3,3,128,128], index: 3, kind: input, shape index: {}]
  %s4 = inlined_call_operand.vmem [shape: f32[1,128], index: 4, kind: input, shape index: {}]
  %s5 = inlined_call_operand.hbm [shape: bf16[2,16,16,128], index: 5, kind: output, shape index: {}]
  %s6 = sld [smem:[#allocation0]]
  $region57: #{tpu_custom_call.1} parent=0
    _
  %s8 = ssub.s32 1, %s6
  %s9 = scalar_select 0, %s8, %s6
  $region1: #{tpu_custom_call.1} parent=0
    #allocation3 [shape = 'u8[294912]{0}', space=vmem, size = 0x48000, scoped, tag = 'input window, operand 3, single buffered']
    #allocation4 [shape = 's32[2]{0}', space=sflag, size = 0x8, scoped, tag = 'scoped memory for tpu_custom_call.1']
    #allocation5 [shape = 's32[2]{0}', space=sflag, size = 0x8, scoped, tag = 'scoped memory for tpu_custom_call.1']
    #allocation6 [shape = 'u8[131072]{0}', space=vmem, size = 0x20000, scoped, tag = 'output window, operand 0']
    %10 = vsyncpa [#allocation4], 0
    %11 = vsyncpa [#allocation5], 0
    %s12 = scalar_lea.sflag [#allocation5], 1
    %13 = vsyncpa %s12, 0
    loop: start=0, step=1, limit=4
    $region2: #{tpu_custom_call.1} parent=1 // loop_pre_header
      _
    $region3: #{tpu_custom_call.1} parent=1 // loop_header
      %s15 = sphi 0, %s19
      %p16 = scmp.ge.s32.totalorder %s15, 4
      %s25 = sphi 0, %s27
      %s28 = sphi 0, %s25
      %s29 = sphi 0, %s28
      %s45 = sphi 0, %s29
      %s49 = sphi 0, %s49
      %s51 = sphi 0, %s49
      %s52 = sphi 0, %s51
      %s66 = sphi 0, %s52
      %s70 = sphi 0, %s70
      %s72 = sphi 0, %s70
      %s73 = sphi 0, %s72
      %s87 = sphi 0, %s73
      %s91 = sphi 0, %s91
      %s93 = sphi 0, %s91
      %s94 = sphi 0, %s93
      %s108 = sphi 0, %s94
      %s112 = sphi 0, %s112
      %s114 = sphi 0, %s112
      %s115 = sphi 0, %s114
      %s129 = sphi 0, %s115
      %s135 = sphi 0, %s137
      %s138 = sphi 0, %s135
      %s139 = sphi 0, %s138
      %s155 = sphi 0, %s139
    $region4: #{tpu_custom_call.1} parent=1 // loop_header_branch
      %18 = sbr.rel (%p16) target = $region8
    $region5: #{tpu_custom_call.1} parent=1 // loop_body
      %s20 = ssub.s32 %s15, 1
      %s21 = ssub.s32 %s15, 2
      %s22 = sadd.s32 %s15, 1
      %s23 = ssub.s32 %s15, %s22
      %p24 = scmp.eq.s32.totalorder %s23, 0
      %s26 = sadd.s32 %s25, 1
      %s27 = scalar_select %p24, %s25, %s26
      %p30 = pneg %p24
      %p31 = scmp.eq.s32.totalorder %s15, 1
      %p32 = por %p30, %p31
      %p33 = scmp.ne.s32.totalorder %s25, %s28
      %p34 = scmp.eq.s32.totalorder %s15, 0
      %p35 = por %p33, %p34
      %p36 = scmp.ne.s32.totalorder %s25, %s28
      %p37 = scmp.eq.s32.totalorder %s20, 1
      %p38 = por %p36, %p37
      %p39 = scmp.ne.s32.totalorder %s28, %s29
      %p40 = scmp.eq.s32.totalorder %s20, 0
      %p41 = por %p39, %p40
      %p42 = scmp.ne.s32.totalorder %s28, %s29
      %p43 = scmp.eq.s32.totalorder %s21, 1
      %p44 = por %p42, %p43
      %p46 = scmp.ne.s32.totalorder %s29, %s45
      %p47 = scmp.eq.s32.totalorder %s21, 0
      %p48 = por %p46, %p47
      %s50 = sadd.s32 %s49, 1
      %p53 = scmp.eq.s32.totalorder %s15, 1
      %p54 = scmp.ne.s32.totalorder %s49, %s51
      %p55 = scmp.eq.s32.totalorder %s15, 0
      %p56 = por %p54, %p55
      %p57 = scmp.ne.s32.totalorder %s49, %s51
      %p58 = scmp.eq.s32.totalorder %s20, 1
      %p59 = por %p57, %p58
      %p60 = scmp.ne.s32.totalorder %s51, %s52
      %p61 = scmp.eq.s32.totalorder %s20, 0
      %p62 = por %p60, %p61
      %p63 = scmp.ne.s32.totalorder %s51, %s52
      %p64 = scmp.eq.s32.totalorder %s21, 1
      %p65 = por %p63, %p64
      %p67 = scmp.ne.s32.totalorder %s52, %s66
      %p68 = scmp.eq.s32.totalorder %s21, 0
      %p69 = por %p67, %p68
      %s71 = sadd.s32 %s70, 1
      %p74 = scmp.eq.s32.totalorder %s15, 1
      %p75 = scmp.ne.s32.totalorder %s70, %s72
      %p76 = scmp.eq.s32.totalorder %s15, 0
      %p77 = por %p75, %p76
      %p78 = scmp.ne.s32.totalorder %s70, %s72
      %p79 = scmp.eq.s32.totalorder %s20, 1
      %p80 = por %p78, %p79
      %p81 = scmp.ne.s32.totalorder %s72, %s73
      %p82 = scmp.eq.s32.totalorder %s20, 0
      %p83 = por %p81, %p82
      %p84 = scmp.ne.s32.totalorder %s72, %s73
      %p85 = scmp.eq.s32.totalorder %s21, 1
      %p86 = por %p84, %p85
      %p88 = scmp.ne.s32.totalorder %s73, %s87
      %p89 = scmp.eq.s32.totalorder %s21, 0
      %p90 = por %p88, %p89
      %s92 = sadd.s32 %s91, 1
      %p95 = scmp.eq.s32.totalorder %s15, 1
      %p96 = scmp.ne.s32.totalorder %s91, %s93
      %p97 = scmp.eq.s32.totalorder %s15, 0
      %p98 = por %p96, %p97
      %p99 = scmp.ne.s32.totalorder %s91, %s93
      %p100 = scmp.eq.s32.totalorder %s20, 1
      %p101 = por %p99, %p100
      %p102 = scmp.ne.s32.totalorder %s93, %s94
      %p103 = scmp.eq.s32.totalorder %s20, 0
      %p104 = por %p102, %p103
      %p105 = scmp.ne.s32.totalorder %s93, %s94
      %p106 = scmp.eq.s32.totalorder %s21, 1
      %p107 = por %p105, %p106
      %p109 = scmp.ne.s32.totalorder %s94, %s108
      %p110 = scmp.eq.s32.totalorder %s21, 0
      %p111 = por %p109, %p110
      %s113 = sadd.s32 %s112, 1
      %p116 = scmp.eq.s32.totalorder %s15, 1
      %p117 = scmp.ne.s32.totalorder %s112, %s114
      %p118 = scmp.eq.s32.totalorder %s15, 0
      %p119 = por %p117, %p118
      %p120 = scmp.ne.s32.totalorder %s112, %s114
      %p121 = scmp.eq.s32.totalorder %s20, 1
      %p122 = por %p120, %p121
      %p123 = scmp.ne.s32.totalorder %s114, %s115
      %p124 = scmp.eq.s32.totalorder %s20, 0
      %p125 = por %p123, %p124
      %p126 = scmp.ne.s32.totalorder %s114, %s115
      %p127 = scmp.eq.s32.totalorder %s21, 1
      %p128 = por %p126, %p127
      %p130 = scmp.ne.s32.totalorder %s115, %s129
      %p131 = scmp.eq.s32.totalorder %s21, 0
      %p132 = por %p130, %p131
      %s133 = ssub.s32 %s15, %s22
      %p134 = scmp.eq.s32.totalorder %s133, 0
      %s136 = sadd.s32 %s135, 1
      %s137 = scalar_select %p134, %s135, %s136
      %p140 = pneg %p134
      %p141 = scmp.eq.s32.totalorder %s15, 1
      %p142 = por %p140, %p141
      %p143 = scmp.ne.s32.totalorder %s135, %s138
      %p144 = scmp.eq.s32.totalorder %s15, 0
      %p145 = por %p143, %p144
      %p146 = scmp.ne.s32.totalorder %s135, %s138
      %p147 = scmp.eq.s32.totalorder %s20, 1
      %p148 = por %p146, %p147
      %p149 = scmp.ne.s32.totalorder %s138, %s139
      %p150 = scmp.eq.s32.totalorder %s20, 0
      %p151 = por %p149, %p150
      %p152 = scmp.ne.s32.totalorder %s138, %s139
      %p153 = scmp.eq.s32.totalorder %s21, 1
      %p154 = por %p152, %p153
      %p156 = scmp.ne.s32.totalorder %s139, %s155
      %p157 = scmp.eq.s32.totalorder %s21, 0
      %p158 = por %p156, %p157
      %p159 = scmp.le.s32.totalorder 1, %s15
      %p160 = scmp.lt.s32.totalorder %s15, 3
      %p161 = pnand %p159, %p160
      %p162 = pneg %p161
      // Predicated region
      $region9: #{tpu_custom_call.1} parent=5 // pred_check
        _
      $region10: #{tpu_custom_call.1} parent=5 // pred_check_branch
        %164 = sbr.rel (%p161) target = $region12
      $region11: #{tpu_custom_call.1} parent=5 // pred_region
        %s165 = ssub.s32 %s15, 1
        // Predicated region
        $region13: #{tpu_custom_call.1} parent=11 // pred_check
          %p166 = pneg %p62
        $region14: #{tpu_custom_call.1} parent=11 // pred_check_branch
          %168 = sbr.rel (%p166) target = $region16
        $region15: #{tpu_custom_call.1} parent=11 // pred_region
          _
        $region16: #{tpu_custom_call.1} parent=11 // pred_fallthru
          _
        // Predicated region
        $region17: #{tpu_custom_call.1} parent=11 // pred_check
          %p169 = pneg %p83
        $region18: #{tpu_custom_call.1} parent=11 // pred_check_branch
          %171 = sbr.rel (%p169) target = $region20
        $region19: #{tpu_custom_call.1} parent=11 // pred_region
          _
        $region20: #{tpu_custom_call.1} parent=11 // pred_fallthru
          _
        // Predicated region
        $region21: #{tpu_custom_call.1} parent=11 // pred_check
          %p172 = pneg %p104
        $region22: #{tpu_custom_call.1} parent=11 // pred_check_branch
          %174 = sbr.rel (%p172) target = $region24
        $region23: #{tpu_custom_call.1} parent=11 // pred_region
          %s176 = ssub.s32 9216, 9216
          %177 = vsyncadd [#allocation4], %s176
          %s178 = sshll.u32 [#allocation3], 4
          %s179 = int_to_ptr.vmem [resolvable:$true] %s178
          %184 = dma.hbm_to_vmem [thread:$0]  %s3, 9216, %s179, [#allocation4], 64, 64, 4
        $region24: #{tpu_custom_call.1} parent=11 // pred_fallthru
          _
        // Predicated region
        $region25: #{tpu_custom_call.1} parent=11 // pred_check
          %p185 = pneg %p125
        $region26: #{tpu_custom_call.1} parent=11 // pred_check_branch
          %187 = sbr.rel (%p185) target = $region28
        $region27: #{tpu_custom_call.1} parent=11 // pred_region
          _
        $region28: #{tpu_custom_call.1} parent=11 // pred_fallthru
          _
      $region12: #{tpu_custom_call.1} parent=5 // pred_fallthru
        _
      %p188 = scmp.lt.s32.totalorder %s15, 2
      // Predicated region
      $region29: #{tpu_custom_call.1} parent=5 // pred_check
        %p189 = pneg %p188
      $region30: #{tpu_custom_call.1} parent=5 // pred_check_branch
        %191 = sbr.rel (%p189) target = $region32
      $region31: #{tpu_custom_call.1} parent=5 // pred_region
        // Predicated region
        $region33: #{tpu_custom_call.1} parent=31 // pred_check
          %p192 = pneg %p35
        $region34: #{tpu_custom_call.1} parent=31 // pred_check_branch
          %194 = sbr.rel (%p192) target = $region36
        $region35: #{tpu_custom_call.1} parent=31 // pred_region
          %p195 = scmp.lt.s32.totalorder %s15, 1
          %s196 = scalar_select %p195, %s15, 1
          %s197 = smul.addr %s196, 54
          %s198 = smul.addr %s197, 4
          %s199 = scalar_lea.vmem %s0, %s198
        $region36: #{tpu_custom_call.1} parent=31 // pred_fallthru
          _
      $region32: #{tpu_custom_call.1} parent=5 // pred_fallthru
        _
      %p200 = scmp.le.s32.totalorder 1, %s15
      %p201 = scmp.lt.s32.totalorder %s15, 3
      %p202 = pnand %p200, %p201
      %p203 = pneg %p202
      // Predicated region
      $region37: #{tpu_custom_call.1} parent=5 // pred_check
        _
      $region38: #{tpu_custom_call.1} parent=5 // pred_check_branch
        %205 = sbr.rel (%p202) target = $region40
      $region39: #{tpu_custom_call.1} parent=5 // pred_region
        %s206 = ssub.s32 %s15, 1
        // Predicated region
        $region41: #{tpu_custom_call.1} parent=39 // pred_check
          %p207 = pneg %p104
        $region42: #{tpu_custom_call.1} parent=39 // pred_check_branch
          %209 = sbr.rel (%p207) target = $region44
        $region43: #{tpu_custom_call.1} parent=39 // pred_region
          %210 = dma.done [#allocation4], 9216
        $region44: #{tpu_custom_call.1} parent=39 // pred_fallthru
          _
        %p211 = scmp.lt.s32.totalorder %s20, 1
        %s212 = scalar_select %p211, %s20, 1
        %s213 = smul.addr %s212, 54
        %s214 = smul.addr %s213, 4
        %s215 = scalar_lea.vmem %s0, %s214
        %p216 = pneg %p41
        %p217 = pneg %p38
        %p218 = pneg %p62
        %p219 = pneg %p59
        %p220 = pneg %p83
        %p221 = pneg %p80
        %p222 = pneg %p104
        %p223 = pneg %p101
        %p224 = pneg %p125
        %p225 = pneg %p122
        %p226 = pneg %p151
        %p227 = pneg %p148
        %s228 = sand.u32 %s138, 1
        %s229 = scalar_lea.sflag [#allocation5], %s228
        %s230 = sand.u32 %s138, 1
        %s231 = smul.addr %s230, 128
        %s232 = scalar_lea.vmem [#allocation6], %s231
        %p233 = scmp.lt.s32.totalorder %s20, 1
        %s234 = scalar_select %p233, %s20, 1
        %s235 = smul.addr %s234, 54
        %s236 = smul.addr %s235, 4
        %s237 = scalar_lea.vmem %s0, %s236
        %239 = vst [vmem:[#allocation2] sm:$0xf] 0
        %240 = vst [vmem:[#allocation2 + $0x4] sm:$0xf] 0
        %241 = vst [vmem:[#allocation2 + $0x8] sm:$0xf] 0
        %242 = vst [vmem:[#allocation2 + $0xc] sm:$0xf] 0
        %243 = vst [vmem:[#allocation2 + $0x10] sm:$0xf] 0
        %244 = vst [vmem:[#allocation2 + $0x14] sm:$0xf] 0
        %s245 = scalar_lea.vmem [#allocation2], 216
        %246 = vst [vmem:[%s245] sm:$0xf] 0
        %247 = vst [vmem:[%s245 + $0x4] sm:$0xf] 0
        %248 = vst [vmem:[%s245 + $0x8] sm:$0xf] 0
        %249 = vst [vmem:[%s245 + $0xc] sm:$0xf] 0
        %250 = vst [vmem:[%s245 + $0x10] sm:$0xf] 0
        %251 = vst [vmem:[%s245 + $0x14] sm:$0xf] 0
        %s252 = scalar_lea.vmem [#allocation2], 24
        %253 = vst [vmem:[%s252] sm:$0x1] 0
        %254 = vst [vmem:[%s252 + $0xc] sm:$0x1] 0
        %255 = vst [vmem:[%s252 + $0x18] sm:$0x1] 0
        %256 = vst [vmem:[%s252 + $0x24] sm:$0x1] 0
        %257 = vst [vmem:[%s252 + $0x30] sm:$0x1] 0
        %258 = vst [vmem:[%s252 + $0x3c] sm:$0x1] 0
        %259 = vst [vmem:[%s252 + $0x48] sm:$0x1] 0
        %260 = vst [vmem:[%s252 + $0x54] sm:$0x1] 0
        %261 = vst [vmem:[%s252 + $0x60] sm:$0x1] 0
        %262 = vst [vmem:[%s252 + $0x6c] sm:$0x1] 0
        %263 = vst [vmem:[%s252 + $0x78] sm:$0x1] 0
        %264 = vst [vmem:[%s252 + $0x84] sm:$0x1] 0
        %265 = vst [vmem:[%s252 + $0x90] sm:$0x1] 0
        %266 = vst [vmem:[%s252 + $0x9c] sm:$0x1] 0
        %267 = vst [vmem:[%s252 + $0xa8] sm:$0x1] 0
        %268 = vst [vmem:[%s252 + $0xb4] sm:$0x1] 0
        %269 = vst [vmem:[%s252 + $0x8] sm:$0xe] 0
        %270 = vst [vmem:[%s252 + $0x14] sm:$0xe] 0
        %271 = vst [vmem:[%s252 + $0x20] sm:$0xe] 0
        %272 = vst [vmem:[%s252 + $0x2c] sm:$0xe] 0
        %273 = vst [vmem:[%s252 + $0x38] sm:$0xe] 0
        %274 = vst [vmem:[%s252 + $0x44] sm:$0xe] 0
        %275 = vst [vmem:[%s252 + $0x50] sm:$0xe] 0
        %276 = vst [vmem:[%s252 + $0x5c] sm:$0xe] 0
        %277 = vst [vmem:[%s252 + $0x68] sm:$0xe] 0
        %278 = vst [vmem:[%s252 + $0x74] sm:$0xe] 0
        %279 = vst [vmem:[%s252 + $0x80] sm:$0xe] 0
        %280 = vst [vmem:[%s252 + $0x8c] sm:$0xe] 0
        %281 = vst [vmem:[%s252 + $0x98] sm:$0xe] 0
        %282 = vst [vmem:[%s252 + $0xa4] sm:$0xe] 0
        %283 = vst [vmem:[%s252 + $0xb0] sm:$0xe] 0
        %284 = vst [vmem:[%s252 + $0xbc] sm:$0xe] 0
        %v285 = vld [vmem:[%s237] sm:$0xf]
        %v286 = vld [vmem:[%s237 + $0x4] sm:$0xf]
        %v287 = vld [vmem:[%s237 + $0xc] sm:$0xf]
        %v288 = vld [vmem:[%s237 + $0x10] sm:$0xf]
        %v289 = vld [vmem:[%s237 + $0x18] sm:$0xf]
        %v290 = vld [vmem:[%s237 + $0x1c] sm:$0xf]
        %v291 = vld [vmem:[%s237 + $0x24] sm:$0xf]
        %v292 = vld [vmem:[%s237 + $0x28] sm:$0xf]
        %v293 = vld [vmem:[%s237 + $0x30] sm:$0xf]
        %v294 = vld [vmem:[%s237 + $0x34] sm:$0xf]
        %v295 = vld [vmem:[%s237 + $0x3c] sm:$0xf]
        %v296 = vld [vmem:[%s237 + $0x40] sm:$0xf]
        %v297 = vld [vmem:[%s237 + $0x48] sm:$0xf]
        %v298 = vld [vmem:[%s237 + $0x4c] sm:$0xf]
        %v299 = vld [vmem:[%s237 + $0x54] sm:$0xf]
        %v300 = vld [vmem:[%s237 + $0x58] sm:$0xf]
        %v301 = vld [vmem:[%s237 + $0x60] sm:$0xf]
        %v302 = vld [vmem:[%s237 + $0x64] sm:$0xf]
        %v303 = vld [vmem:[%s237 + $0x6c] sm:$0xf]
        %v304 = vld [vmem:[%s237 + $0x70] sm:$0xf]
        %v305 = vld [vmem:[%s237 + $0x78] sm:$0xf]
        %v306 = vld [vmem:[%s237 + $0x7c] sm:$0xf]
        %v307 = vld [vmem:[%s237 + $0x84] sm:$0xf]
        %v308 = vld [vmem:[%s237 + $0x88] sm:$0xf]
        %v309 = vld [vmem:[%s237 + $0x90] sm:$0xf]
        %v310 = vld [vmem:[%s237 + $0x94] sm:$0xf]
        %v311 = vld [vmem:[%s237 + $0x9c] sm:$0xf]
        %v312 = vld [vmem:[%s237 + $0xa0] sm:$0xf]
        %v313 = vld [vmem:[%s237 + $0xa8] sm:$0xf]
        %v314 = vld [vmem:[%s237 + $0xac] sm:$0xf]
        %v315 = vld [vmem:[%s237 + $0xb4] sm:$0xf]
        %v316 = vld [vmem:[%s237 + $0xb8] sm:$0xf]
        %v317 = vld [vmem:[%s1] sm:$0xf]
        %v318 = vld [vmem:[%s1 + $0x4] sm:$0xf]
        %v319 = vld [vmem:[%s1 + $0x8] sm:$0xf]
        %v320 = vld [vmem:[%s1 + $0xc] sm:$0xf]
        %v321 = vld [vmem:[%s1 + $0x10] sm:$0xf]
        %v322 = vld [vmem:[%s1 + $0x14] sm:$0xf]
        %v323 = vld [vmem:[%s1 + $0x18] sm:$0xf]
        %v324 = vld [vmem:[%s1 + $0x1c] sm:$0xf]
        %v325 = vld [vmem:[%s1 + $0x20] sm:$0xf]
        %v326 = vld [vmem:[%s1 + $0x24] sm:$0xf]
        %v327 = vld [vmem:[%s1 + $0x28] sm:$0xf]
        %v328 = vld [vmem:[%s1 + $0x2c] sm:$0xf]
        %v329 = vld [vmem:[%s1 + $0x30] sm:$0xf]
        %v330 = vld [vmem:[%s1 + $0x34] sm:$0xf]
        %v331 = vld [vmem:[%s1 + $0x38] sm:$0xf]
        %v332 = vld [vmem:[%s1 + $0x3c] sm:$0xf]
        %v333 = vld [vmem:[%s237 + $0x8] sm:$0x1]
        %v334 = vld [vmem:[%s237 + $0x14] sm:$0x1]
        %v335 = vld [vmem:[%s237 + $0x20] sm:$0x1]
        %v336 = vld [vmem:[%s237 + $0x2c] sm:$0x1]
        %v337 = vld [vmem:[%s237 + $0x38] sm:$0x1]
        %v338 = vld [vmem:[%s237 + $0x44] sm:$0x1]
        %v339 = vld [vmem:[%s237 + $0x50] sm:$0x1]
        %v340 = vld [vmem:[%s237 + $0x5c] sm:$0x1]
        %v341 = vld [vmem:[%s237 + $0x68] sm:$0x1]
        %v342 = vld [vmem:[%s237 + $0x74] sm:$0x1]
        %v343 = vld [vmem:[%s237 + $0x80] sm:$0x1]
        %v344 = vld [vmem:[%s237 + $0x8c] sm:$0x1]
        %v345 = vld [vmem:[%s237 + $0x98] sm:$0x1]
        %v346 = vld [vmem:[%s237 + $0xa4] sm:$0x1]
        %v347 = vld [vmem:[%s237 + $0xb0] sm:$0x1]
        %v348 = vld [vmem:[%s237 + $0xbc] sm:$0x1]
        %vm349 = vsmask.f32 3328
        %vm350 = vsmask.f32 7440
        %vm351 = vmor %vm349, %vm350
        %v353 = vshrl.u32 %v285, 16
        %v355 = vrot.slane %v353, 4
        %v356 = vshll.u32 %v285, 16
        %v358 = vrot.slane %v356, 5
        %v359 = vor.u32 %v355, %v358
        %v360 = vrot.slane %v359, 4
        %v362 = vshll.u32 %v286, 16
        %v364 = vrot.slane %v362, 5
        %v365 = vsel %vm351, %v360, %v364
        %v366 = vshrl.u32 %v286, 16
        %v368 = vrot.slane %v366, 4
        %v369 = vor.u32 %v368, %v364
        %v370 = vrot.slane %v369, 4
        %v372 = vshll.u32 %v333, 16
        %v374 = vrot.slane %v372, 5
        %v375 = vsel %vm351, %v370, %v374
        %v377 = vshrl.u32 %v287, 16
        %v379 = vrot.slane %v377, 4
        %v380 = vshll.u32 %v287, 16
        %v382 = vrot.slane %v380, 5
        %v383 = vor.u32 %v379, %v382
        %v384 = vrot.slane %v383, 4
        %v386 = vshll.u32 %v288, 16
        %v388 = vrot.slane %v386, 5
        %v389 = vsel %vm351, %v384, %v388
        %v390 = vshrl.u32 %v288, 16
        %v392 = vrot.slane %v390, 4
        %v393 = vor.u32 %v392, %v388
        %v394 = vrot.slane %v393, 4
        %v396 = vshll.u32 %v334, 16
        %v398 = vrot.slane %v396, 5
        %v399 = vsel %vm351, %v394, %v398
        %v401 = vshrl.u32 %v289, 16
        %v403 = vrot.slane %v401, 4
        %v404 = vshll.u32 %v289, 16
        %v406 = vrot.slane %v404, 5
        %v407 = vor.u32 %v403, %v406
        %v408 = vrot.slane %v407, 4
        %v410 = vshll.u32 %v290, 16
        %v412 = vrot.slane %v410, 5
        %v413 = vsel %vm351, %v408, %v412
        %v414 = vshrl.u32 %v290, 16
        %v416 = vrot.slane %v414, 4
        %v417 = vor.u32 %v416, %v412
        %v418 = vrot.slane %v417, 4
        %v420 = vshll.u32 %v335, 16
        %v422 = vrot.slane %v420, 5
        %v423 = vsel %vm351, %v418, %v422
        %v425 = vshrl.u32 %v291, 16
        %v427 = vrot.slane %v425, 4
        %v428 = vshll.u32 %v291, 16
        %v430 = vrot.slane %v428, 5
        %v431 = vor.u32 %v427, %v430
        %v432 = vrot.slane %v431, 4
        %v434 = vshll.u32 %v292, 16
        %v436 = vrot.slane %v434, 5
        %v437 = vsel %vm351, %v432, %v436
        %v438 = vshrl.u32 %v292, 16
        %v440 = vrot.slane %v438, 4
        %v441 = vor.u32 %v440, %v436
        %v442 = vrot.slane %v441, 4
        %v444 = vshll.u32 %v336, 16
        %v446 = vrot.slane %v444, 5
        %v447 = vsel %vm351, %v442, %v446
        %v449 = vshrl.u32 %v293, 16
        %v451 = vrot.slane %v449, 4
        %v452 = vshll.u32 %v293, 16
        %v454 = vrot.slane %v452, 5
        %v455 = vor.u32 %v451, %v454
        %v456 = vrot.slane %v455, 4
        %v458 = vshll.u32 %v294, 16
        %v460 = vrot.slane %v458, 5
        %v461 = vsel %vm351, %v456, %v460
        %v462 = vshrl.u32 %v294, 16
        %v464 = vrot.slane %v462, 4
        %v465 = vor.u32 %v464, %v460
        %v466 = vrot.slane %v465, 4
        %v468 = vshll.u32 %v337, 16
        %v470 = vrot.slane %v468, 5
        %v471 = vsel %vm351, %v466, %v470
        %v473 = vshrl.u32 %v295, 16
        %v475 = vrot.slane %v473, 4
        %v476 = vshll.u32 %v295, 16
        %v478 = vrot.slane %v476, 5
        %v479 = vor.u32 %v475, %v478
        %v480 = vrot.slane %v479, 4
        %v482 = vshll.u32 %v296, 16
        %v484 = vrot.slane %v482, 5
        %v485 = vsel %vm351, %v480, %v484
        %v486 = vshrl.u32 %v296, 16
        %v488 = vrot.slane %v486, 4
        %v489 = vor.u32 %v488, %v484
        %v490 = vrot.slane %v489, 4
        %v492 = vshll.u32 %v338, 16
        %v494 = vrot.slane %v492, 5
        %v495 = vsel %vm351, %v490, %v494
        %v497 = vshrl.u32 %v297, 16
        %v499 = vrot.slane %v497, 4
        %v500 = vshll.u32 %v297, 16
        %v502 = vrot.slane %v500, 5
        %v503 = vor.u32 %v499, %v502
        %v504 = vrot.slane %v503, 4
        %v506 = vshll.u32 %v298, 16
        %v508 = vrot.slane %v506, 5
        %v509 = vsel %vm351, %v504, %v508
        %v510 = vshrl.u32 %v298, 16
        %v512 = vrot.slane %v510, 4
        %v513 = vor.u32 %v512, %v508
        %v514 = vrot.slane %v513, 4
        %v516 = vshll.u32 %v339, 16
        %v518 = vrot.slane %v516, 5
        %v519 = vsel %vm351, %v514, %v518
        %v521 = vshrl.u32 %v299, 16
        %v523 = vrot.slane %v521, 4
        %v524 = vshll.u32 %v299, 16
        %v526 = vrot.slane %v524, 5
        %v527 = vor.u32 %v523, %v526
        %v528 = vrot.slane %v527, 4
        %v530 = vshll.u32 %v300, 16
        %v532 = vrot.slane %v530, 5
        %v533 = vsel %vm351, %v528, %v532
        %v534 = vshrl.u32 %v300, 16
        %v536 = vrot.slane %v534, 4
        %v537 = vor.u32 %v536, %v532
        %v538 = vrot.slane %v537, 4
        %v540 = vshll.u32 %v340, 16
        %v542 = vrot.slane %v540, 5
        %v543 = vsel %vm351, %v538, %v542
        %v545 = vshrl.u32 %v301, 16
        %v547 = vrot.slane %v545, 4
        %v548 = vshll.u32 %v301, 16
        %v550 = vrot.slane %v548, 5
        %v551 = vor.u32 %v547, %v550
        %v552 = vrot.slane %v551, 4
        %v554 = vshll.u32 %v302, 16
        %v556 = vrot.slane %v554, 5
        %v557 = vsel %vm351, %v552, %v556
        %v558 = vshrl.u32 %v302, 16
        %v560 = vrot.slane %v558, 4
        %v561 = vor.u32 %v560, %v556
        %v562 = vrot.slane %v561, 4
        %v564 = vshll.u32 %v341, 16
        %v566 = vrot.slane %v564, 5
        %v567 = vsel %vm351, %v562, %v566
        %v569 = vshrl.u32 %v303, 16
        %v571 = vrot.slane %v569, 4
        %v572 = vshll.u32 %v303, 16
        %v574 = vrot.slane %v572, 5
        %v575 = vor.u32 %v571, %v574
        %v576 = vrot.slane %v575, 4
        %v578 = vshll.u32 %v304, 16
        %v580 = vrot.slane %v578, 5
        %v581 = vsel %vm351, %v576, %v580
        %v582 = vshrl.u32 %v304, 16
        %v584 = vrot.slane %v582, 4
        %v585 = vor.u32 %v584, %v580
        %v586 = vrot.slane %v585, 4
        %v588 = vshll.u32 %v342, 16
        %v590 = vrot.slane %v588, 5
        %v591 = vsel %vm351, %v586, %v590
        %v593 = vshrl.u32 %v305, 16
        %v595 = vrot.slane %v593, 4
        %v596 = vshll.u32 %v305, 16
        %v598 = vrot.slane %v596, 5
        %v599 = vor.u32 %v595, %v598
        %v600 = vrot.slane %v599, 4
        %v602 = vshll.u32 %v306, 16
        %v604 = vrot.slane %v602, 5
        %v605 = vsel %vm351, %v600, %v604
        %v606 = vshrl.u32 %v306, 16
        %v608 = vrot.slane %v606, 4
        %v609 = vor.u32 %v608, %v604
        %v610 = vrot.slane %v609, 4
        %v612 = vshll.u32 %v343, 16
        %v614 = vrot.slane %v612, 5
        %v615 = vsel %vm351, %v610, %v614
        %v617 = vshrl.u32 %v307, 16
        %v619 = vrot.slane %v617, 4
        %v620 = vshll.u32 %v307, 16
        %v622 = vrot.slane %v620, 5
        %v623 = vor.u32 %v619, %v622
        %v624 = vrot.slane %v623, 4
        %v626 = vshll.u32 %v308, 16
        %v628 = vrot.slane %v626, 5
        %v629 = vsel %vm351, %v624, %v628
        %v630 = vshrl.u32 %v308, 16
        %v632 = vrot.slane %v630, 4
        %v633 = vor.u32 %v632, %v628
        %v634 = vrot.slane %v633, 4
        %v636 = vshll.u32 %v344, 16
        %v638 = vrot.slane %v636, 5
        %v639 = vsel %vm351, %v634, %v638
        %v641 = vshrl.u32 %v309, 16
        %v643 = vrot.slane %v641, 4
        %v644 = vshll.u32 %v309, 16
        %v646 = vrot.slane %v644, 5
        %v647 = vor.u32 %v643, %v646
        %v648 = vrot.slane %v647, 4
        %v650 = vshll.u32 %v310, 16
        %v652 = vrot.slane %v650, 5
        %v653 = vsel %vm351, %v648, %v652
        %v654 = vshrl.u32 %v310, 16
        %v656 = vrot.slane %v654, 4
        %v657 = vor.u32 %v656, %v652
        %v658 = vrot.slane %v657, 4
        %v660 = vshll.u32 %v345, 16
        %v662 = vrot.slane %v660, 5
        %v663 = vsel %vm351, %v658, %v662
        %v665 = vshrl.u32 %v311, 16
        %v667 = vrot.slane %v665, 4
        %v668 = vshll.u32 %v311, 16
        %v670 = vrot.slane %v668, 5
        %v671 = vor.u32 %v667, %v670
        %v672 = vrot.slane %v671, 4
        %v674 = vshll.u32 %v312, 16
        %v676 = vrot.slane %v674, 5
        %v677 = vsel %vm351, %v672, %v676
        %v678 = vshrl.u32 %v312, 16
        %v680 = vrot.slane %v678, 4
        %v681 = vor.u32 %v680, %v676
        %v682 = vrot.slane %v681, 4
        %v684 = vshll.u32 %v346, 16
        %v686 = vrot.slane %v684, 5
        %v687 = vsel %vm351, %v682, %v686
        %v689 = vshrl.u32 %v313, 16
        %v691 = vrot.slane %v689, 4
        %v692 = vshll.u32 %v313, 16
        %v694 = vrot.slane %v692, 5
        %v695 = vor.u32 %v691, %v694
        %v696 = vrot.slane %v695, 4
        %v698 = vshll.u32 %v314, 16
        %v700 = vrot.slane %v698, 5
        %v701 = vsel %vm351, %v696, %v700
        %v702 = vshrl.u32 %v314, 16
        %v704 = vrot.slane %v702, 4
        %v705 = vor.u32 %v704, %v700
        %v706 = vrot.slane %v705, 4
        %v708 = vshll.u32 %v347, 16
        %v710 = vrot.slane %v708, 5
        %v711 = vsel %vm351, %v706, %v710
        %v713 = vshrl.u32 %v315, 16
        %v715 = vrot.slane %v713, 4
        %v716 = vshll.u32 %v315, 16
        %v718 = vrot.slane %v716, 5
        %v719 = vor.u32 %v715, %v718
        %v720 = vrot.slane %v719, 4
        %v722 = vshll.u32 %v316, 16
        %v724 = vrot.slane %v722, 5
        %v725 = vsel %vm351, %v720, %v724
        %v726 = vshrl.u32 %v316, 16
        %v728 = vrot.slane %v726, 4
        %v729 = vor.u32 %v728, %v724
        %v730 = vrot.slane %v729, 4
        %v732 = vshll.u32 %v348, 16
        %v734 = vrot.slane %v732, 5
        %v735 = vsel %vm351, %v730, %v734
        %s736 = scalar_lea.vmem %s1, 64
        %v737 = vld [vmem:[%s736] sm:$0xf]
        %v738 = vld [vmem:[%s736 + $0x4] sm:$0xf]
        %v739 = vld [vmem:[%s736 + $0x8] sm:$0xf]
        %v740 = vld [vmem:[%s736 + $0xc] sm:$0xf]
        %v741 = vld [vmem:[%s736 + $0x10] sm:$0xf]
        %v742 = vld [vmem:[%s736 + $0x14] sm:$0xf]
        %v743 = vld [vmem:[%s736 + $0x18] sm:$0xf]
        %v744 = vld [vmem:[%s736 + $0x1c] sm:$0xf]
        %v745 = vld [vmem:[%s736 + $0x20] sm:$0xf]
        %v746 = vld [vmem:[%s736 + $0x24] sm:$0xf]
        %v747 = vld [vmem:[%s736 + $0x28] sm:$0xf]
        %v748 = vld [vmem:[%s736 + $0x2c] sm:$0xf]
        %v749 = vld [vmem:[%s736 + $0x30] sm:$0xf]
        %v750 = vld [vmem:[%s736 + $0x34] sm:$0xf]
        %v751 = vld [vmem:[%s736 + $0x38] sm:$0xf]
        %v752 = vld [vmem:[%s736 + $0x3c] sm:$0xf]
        %v753 = vunpack.c.l.b16 %v365
        %v754 = vunpack.c.l.b16 %v375
        %v755 = vunpack.c.l.b16 %v389
        %v756 = vunpack.c.l.b16 %v399
        %v757 = vunpack.c.l.b16 %v413
        %v758 = vunpack.c.l.b16 %v423
        %v759 = vunpack.c.l.b16 %v437
        %v760 = vunpack.c.l.b16 %v447
        %v761 = vunpack.c.l.b16 %v461
        %v762 = vunpack.c.l.b16 %v471
        %v763 = vunpack.c.l.b16 %v485
        %v764 = vunpack.c.l.b16 %v495
        %v765 = vunpack.c.l.b16 %v509
        %v766 = vunpack.c.l.b16 %v519
        %v767 = vunpack.c.l.b16 %v533
        %v768 = vunpack.c.l.b16 %v543
        %v769 = vunpack.c.l.b16 %v557
        %v770 = vunpack.c.l.b16 %v567
        %v771 = vunpack.c.l.b16 %v581
        %v772 = vunpack.c.l.b16 %v591
        %v773 = vunpack.c.l.b16 %v605
        %v774 = vunpack.c.l.b16 %v615
        %v775 = vunpack.c.l.b16 %v629
        %v776 = vunpack.c.l.b16 %v639
        %v777 = vunpack.c.l.b16 %v653
        %v778 = vunpack.c.l.b16 %v663
        %v779 = vunpack.c.l.b16 %v677
        %v780 = vunpack.c.l.b16 %v687
        %v781 = vunpack.c.l.b16 %v701
        %v782 = vunpack.c.l.b16 %v711
        %v783 = vunpack.c.l.b16 %v725
        %v784 = vunpack.c.l.b16 %v735
        %v785 = vpack.c.b16 %v754, %v753
        %v786 = vpack.c.b16 %v756, %v755
        %v787 = vpack.c.b16 %v758, %v757
        %v788 = vpack.c.b16 %v760, %v759
        %v789 = vpack.c.b16 %v762, %v761
        %v790 = vpack.c.b16 %v764, %v763
        %v791 = vpack.c.b16 %v766, %v765
        %v792 = vpack.c.b16 %v768, %v767
        %v793 = vpack.c.b16 %v770, %v769
        %v794 = vpack.c.b16 %v772, %v771
        %v795 = vpack.c.b16 %v774, %v773
        %v796 = vpack.c.b16 %v776, %v775
        %v797 = vpack.c.b16 %v778, %v777
        %v798 = vpack.c.b16 %v780, %v779
        %v799 = vpack.c.b16 %v782, %v781
        %v800 = vpack.c.b16 %v784, %v783
        %v833 = vunpack.c.l.b16 %v737
        %v834 = vunpack.c.l.b16 %v738
        %v835 = vunpack.c.l.b16 %v739
        %v836 = vunpack.c.l.b16 %v740
        %v837 = vunpack.c.l.b16 %v741
        %v838 = vunpack.c.l.b16 %v742
        %v839 = vunpack.c.l.b16 %v743
        %v840 = vunpack.c.l.b16 %v744
        %v841 = vunpack.c.l.b16 %v745
        %v842 = vunpack.c.l.b16 %v746
        %v843 = vunpack.c.l.b16 %v747
        %v844 = vunpack.c.l.b16 %v748
        %v845 = vunpack.c.l.b16 %v749
        %v846 = vunpack.c.l.b16 %v750
        %v847 = vunpack.c.l.b16 %v751
        %v848 = vunpack.c.l.b16 %v752
        %v849 = vpack.c.b16 %v834, %v833
        %v850 = vpack.c.b16 %v836, %v835
        %v851 = vpack.c.b16 %v838, %v837
        %v852 = vpack.c.b16 %v840, %v839
        %v853 = vpack.c.b16 %v842, %v841
        %v854 = vpack.c.b16 %v844, %v843
        %v855 = vpack.c.b16 %v846, %v845
        %v856 = vpack.c.b16 %v848, %v847
        %865 = vmatprep.subr.bf16.mxu0 0
        %866 = vmatpush1.bf16.msra.mxu0 %v849
        %867 = vmatprep.subr.bf16.mxu0 0
        %868 = vmatpush1.bf16.msra.mxu0 %v850
        %869 = vmatprep.subr.bf16.mxu0 0
        %870 = vmatpush1.bf16.msra.mxu0 %v851
        %871 = vmatprep.subr.bf16.mxu0 0
        %872 = vmatpush1.bf16.msra.mxu0 %v852
        %873 = vmatprep.subr.bf16.mxu0 0
        %874 = vmatpush1.bf16.msra.mxu0 %v853
        %875 = vmatprep.subr.bf16.mxu0 0
        %876 = vmatpush1.bf16.msra.mxu0 %v854
        %877 = vmatprep.subr.bf16.mxu0 0
        %878 = vmatpush1.bf16.msra.mxu0 %v855
        %879 = vmatprep.subr.bf16.mxu0 0
        %880 = vmatpush1.bf16.msra.mxu0 %v856
        %881 = vmatprep.subr.bf16.mxu0 0
        %882 = vmatpush1.bf16.msra.mxu0 0
        %883 = vmatprep.subr.bf16.mxu0 0
        %884 = vmatpush1.bf16.msra.mxu0 0
        %885 = vmatprep.subr.bf16.mxu0 0
        %886 = vmatpush1.bf16.msra.mxu0 0
        %887 = vmatprep.subr.bf16.mxu0 0
        %888 = vmatpush1.bf16.msra.mxu0 0
        %889 = vmatprep.subr.bf16.mxu0 0
        %890 = vmatpush1.bf16.msra.mxu0 0
        %891 = vmatprep.subr.bf16.mxu0 0
        %892 = vmatpush1.bf16.msra.mxu0 0
        %893 = vmatprep.subr.bf16.mxu0 0
        %894 = vmatpush1.bf16.msra.mxu0 0
        %895 = vmatprep.subr.bf16.mxu0 0
        %896 = vmatpush1.bf16.msra.mxu0 0
        %897 = vmatprep.mubr.bf16.mxu0 0
        %898 = vmatmul.mubr.bf16.gmra.mrb[0].mxu0 %v785
        %v899 = vpop.f32.mrb[0].mxu0
        %v900 = vadd.f32 0.0, %v899
        %v901 = vpop.f32.mrb[0].mxu0
        %v902 = vpop.f32.mrb[0].mxu0
        %v903 = vadd.f32 0.0, %v902
        %v904 = vpop.f32.mrb[0].mxu0
        %905 = vmatprep.mubr.bf16.mxu0 0
        %906 = vmatmul.mubr.bf16.gmra.mrb[0].mxu0 %v786
        %v907 = vpop.f32.mrb[0].mxu0
        %v908 = vadd.f32 0.0, %v907
        %v909 = vpop.f32.mrb[0].mxu0
        %v910 = vpop.f32.mrb[0].mxu0
        %v911 = vadd.f32 0.0, %v910
        %v912 = vpop.f32.mrb[0].mxu0
        %913 = vmatprep.mubr.bf16.mxu0 0
        %914 = vmatmul.mubr.bf16.gmra.mrb[0].mxu0 %v787
        %v915 = vpop.f32.mrb[0].mxu0
        %v916 = vadd.f32 0.0, %v915
        %v917 = vpop.f32.mrb[0].mxu0
        %v918 = vpop.f32.mrb[0].mxu0
        %v919 = vadd.f32 0.0, %v918
        %v920 = vpop.f32.mrb[0].mxu0
        %921 = vmatprep.mubr.bf16.mxu0 0
        %922 = vmatmul.mubr.bf16.gmra.mrb[0].mxu0 %v788
        %v923 = vpop.f32.mrb[0].mxu0
        %v924 = vadd.f32 0.0, %v923
        %v925 = vpop.f32.mrb[0].mxu0
        %v926 = vpop.f32.mrb[0].mxu0
        %v927 = vadd.f32 0.0, %v926
        %v928 = vpop.f32.mrb[0].mxu0
        %929 = vmatprep.mubr.bf16.mxu0 0
        %930 = vmatmul.mubr.bf16.gmra.mrb[0].mxu0 %v789
        %v931 = vpop.f32.mrb[0].mxu0
        %v932 = vadd.f32 0.0, %v931
        %v933 = vpop.f32.mrb[0].mxu0
        %v934 = vpop.f32.mrb[0].mxu0
        %v935 = vadd.f32 0.0, %v934
        %v936 = vpop.f32.mrb[0].mxu0
        %937 = vmatprep.mubr.bf16.mxu0 0
        %938 = vmatmul.mubr.bf16.gmra.mrb[0].mxu0 %v790
        %v939 = vpop.f32.mrb[0].mxu0
        %v940 = vadd.f32 0.0, %v939
        %v941 = vpop.f32.mrb[0].mxu0
        %v942 = vpop.f32.mrb[0].mxu0
        %v943 = vadd.f32 0.0, %v942
        %v944 = vpop.f32.mrb[0].mxu0
        %945 = vmatprep.mubr.bf16.mxu0 0
        %946 = vmatmul.mubr.bf16.gmra.mrb[0].mxu0 %v791
        %v947 = vpop.f32.mrb[0].mxu0
        %v948 = vadd.f32 0.0, %v947
        %v949 = vpop.f32.mrb[0].mxu0
        %v950 = vpop.f32.mrb[0].mxu0
        %v951 = vadd.f32 0.0, %v950
        %v952 = vpop.f32.mrb[0].mxu0
        %953 = vmatprep.mubr.bf16.mxu0 0
        %954 = vmatmul.mubr.bf16.gmra.mrb[0].mxu0 %v792
        %v955 = vpop.f32.mrb[0].mxu0
        %v956 = vadd.f32 0.0, %v955
        %v957 = vpop.f32.mrb[0].mxu0
        %v958 = vpop.f32.mrb[0].mxu0
        %v959 = vadd.f32 0.0, %v958
        %v960 = vpop.f32.mrb[0].mxu0
        %961 = vmatprep.mubr.bf16.mxu0 0
        %962 = vmatmul.mubr.bf16.gmra.mrb[0].mxu0 %v793
        %v963 = vpop.f32.mrb[0].mxu0
        %v964 = vadd.f32 0.0, %v963
        %v965 = vpop.f32.mrb[0].mxu0
        %v966 = vpop.f32.mrb[0].mxu0
        %v967 = vadd.f32 0.0, %v966
        %v968 = vpop.f32.mrb[0].mxu0
        %969 = vmatprep.mubr.bf16.mxu0 0
        %970 = vmatmul.mubr.bf16.gmra.mrb[0].mxu0 %v794
        %v971 = vpop.f32.mrb[0].mxu0
        %v972 = vadd.f32 0.0, %v971
        %v973 = vpop.f32.mrb[0].mxu0
        %v974 = vpop.f32.mrb[0].mxu0
        %v975 = vadd.f32 0.0, %v974
        %v976 = vpop.f32.mrb[0].mxu0
        %977 = vmatprep.mubr.bf16.mxu0 0
        %978 = vmatmul.mubr.bf16.gmra.mrb[0].mxu0 %v795
        %v979 = vpop.f32.mrb[0].mxu0
        %v980 = vadd.f32 0.0, %v979
        %v981 = vpop.f32.mrb[0].mxu0
        %v982 = vpop.f32.mrb[0].mxu0
        %v983 = vadd.f32 0.0, %v982
        %v984 = vpop.f32.mrb[0].mxu0
        %985 = vmatprep.mubr.bf16.mxu0 0
        %986 = vmatmul.mubr.bf16.gmra.mrb[0].mxu0 %v796
        %v987 = vpop.f32.mrb[0].mxu0
        %v988 = vadd.f32 0.0, %v987
        %v989 = vpop.f32.mrb[0].mxu0
        %v990 = vpop.f32.mrb[0].mxu0
        %v991 = vadd.f32 0.0, %v990
        %v992 = vpop.f32.mrb[0].mxu0
        %993 = vmatprep.mubr.bf16.mxu0 0
        %994 = vmatmul.mubr.bf16.gmra.mrb[0].mxu0 %v797
        %v995 = vpop.f32.mrb[0].mxu0
        %v996 = vadd.f32 0.0, %v995
        %v997 = vpop.f32.mrb[0].mxu0
        %v998 = vpop.f32.mrb[0].mxu0
        %v999 = vadd.f32 0.0, %v998
        %v1000 = vpop.f32.mrb[0].mxu0
        %1001 = vmatprep.mubr.bf16.mxu0 0
        %1002 = vmatmul.mubr.bf16.gmra.mrb[0].mxu0 %v798
        %v1003 = vpop.f32.mrb[0].mxu0
        %v1004 = vadd.f32 0.0, %v1003
        %v1005 = vpop.f32.mrb[0].mxu0
        %v1006 = vpop.f32.mrb[0].mxu0
        %v1007 = vadd.f32 0.0, %v1006
        %v1008 = vpop.f32.mrb[0].mxu0
        %1009 = vmatprep.mubr.bf16.mxu0 0
        %1010 = vmatmul.mubr.bf16.gmra.mrb[0].mxu0 %v799
        %v1011 = vpop.f32.mrb[0].mxu0
        %v1012 = vadd.f32 0.0, %v1011
        %v1013 = vpop.f32.mrb[0].mxu0
        %v1014 = vpop.f32.mrb[0].mxu0
        %v1015 = vadd.f32 0.0, %v1014
        %v1016 = vpop.f32.mrb[0].mxu0
        %1017 = vmatprep.mubr.bf16.mxu0 0
        %1018 = vmatmul.mubr.bf16.gmra.mrb[0].mxu0 %v800
        %v1019 = vpop.f32.mrb[0].mxu0
        %v1020 = vadd.f32 0.0, %v1019
        %v1021 = vpop.f32.mrb[0].mxu0
        %v1022 = vpop.f32.mrb[0].mxu0
        %v1023 = vadd.f32 0.0, %v1022
        %v1024 = vpop.f32.mrb[0].mxu0
        %1025 = vdwg.mxu0
        %v1058 = vunpack.c.l.b16 %v285
        %v1059 = vunpack.c.l.b16 %v286
        %v1060 = vunpack.c.l.b16 %v287
        %v1061 = vunpack.c.l.b16 %v288
        %v1062 = vunpack.c.l.b16 %v289
        %v1063 = vunpack.c.l.b16 %v290
        %v1064 = vunpack.c.l.b16 %v291
        %v1065 = vunpack.c.l.b16 %v292
        %v1066 = vunpack.c.l.b16 %v293
        %v1067 = vunpack.c.l.b16 %v294
        %v1068 = vunpack.c.l.b16 %v295
        %v1069 = vunpack.c.l.b16 %v296
        %v1070 = vunpack.c.l.b16 %v297
        %v1071 = vunpack.c.l.b16 %v298
        %v1072 = vunpack.c.l.b16 %v299
        %v1073 = vunpack.c.l.b16 %v300
        %v1074 = vunpack.c.l.b16 %v301
        %v1075 = vunpack.c.l.b16 %v302
        %v1076 = vunpack.c.l.b16 %v303
        %v1077 = vunpack.c.l.b16 %v304
        %v1078 = vunpack.c.l.b16 %v305
        %v1079 = vunpack.c.l.b16 %v306
        %v1080 = vunpack.c.l.b16 %v307
        %v1081 = vunpack.c.l.b16 %v308
        %v1082 = vunpack.c.l.b16 %v309
        %v1083 = vunpack.c.l.b16 %v310
        %v1084 = vunpack.c.l.b16 %v311
        %v1085 = vunpack.c.l.b16 %v312
        %v1086 = vunpack.c.l.b16 %v313
        %v1087 = vunpack.c.l.b16 %v314
        %v1088 = vunpack.c.l.b16 %v315
        %v1089 = vunpack.c.l.b16 %v316
        %v1090 = vpack.c.b16 %v1059, %v1058
        %v1091 = vpack.c.b16 %v1061, %v1060
        %v1092 = vpack.c.b16 %v1063, %v1062
        %v1093 = vpack.c.b16 %v1065, %v1064
        %v1094 = vpack.c.b16 %v1067, %v1066
        %v1095 = vpack.c.b16 %v1069, %v1068
        %v1096 = vpack.c.b16 %v1071, %v1070
        %v1097 = vpack.c.b16 %v1073, %v1072
        %v1098 = vpack.c.b16 %v1075, %v1074
        %v1099 = vpack.c.b16 %v1077, %v1076
        %v1100 = vpack.c.b16 %v1079, %v1078
        %v1101 = vpack.c.b16 %v1081, %v1080
        %v1102 = vpack.c.b16 %v1083, %v1082
        %v1103 = vpack.c.b16 %v1085, %v1084
        %v1104 = vpack.c.b16 %v1087, %v1086
        %v1105 = vpack.c.b16 %v1089, %v1088
        %v1138 = vunpack.c.l.b16 %v317
        %v1139 = vunpack.c.l.b16 %v318
        %v1140 = vunpack.c.l.b16 %v319
        %v1141 = vunpack.c.l.b16 %v320
        %v1142 = vunpack.c.l.b16 %v321
        %v1143 = vunpack.c.l.b16 %v322
        %v1144 = vunpack.c.l.b16 %v323
        %v1145 = vunpack.c.l.b16 %v324
        %v1146 = vunpack.c.l.b16 %v325
        %v1147 = vunpack.c.l.b16 %v326
        %v1148 = vunpack.c.l.b16 %v327
        %v1149 = vunpack.c.l.b16 %v328
        %v1150 = vunpack.c.l.b16 %v329
        %v1151 = vunpack.c.l.b16 %v330
        %v1152 = vunpack.c.l.b16 %v331
        %v1153 = vunpack.c.l.b16 %v332
        %v1154 = vpack.c.b16 %v1139, %v1138
        %v1155 = vpack.c.b16 %v1141, %v1140
        %v1156 = vpack.c.b16 %v1143, %v1142
        %v1157 = vpack.c.b16 %v1145, %v1144
        %v1158 = vpack.c.b16 %v1147, %v1146
        %v1159 = vpack.c.b16 %v1149, %v1148
        %v1160 = vpack.c.b16 %v1151, %v1150
        %v1161 = vpack.c.b16 %v1153, %v1152
        %1170 = vmatprep.subr.bf16.mxu0 0
        %1171 = vmatpush1.bf16.msra.mxu0 %v1154
        %1172 = vmatprep.subr.bf16.mxu0 0
        %1173 = vmatpush1.bf16.msra.mxu0 %v1155
        %1174 = vmatprep.subr.bf16.mxu0 0
        %1175 = vmatpush1.bf16.msra.mxu0 %v1156
        %1176 = vmatprep.subr.bf16.mxu0 0
        %1177 = vmatpush1.bf16.msra.mxu0 %v1157
        %1178 = vmatprep.subr.bf16.mxu0 0
        %1179 = vmatpush1.bf16.msra.mxu0 %v1158
        %1180 = vmatprep.subr.bf16.mxu0 0
        %1181 = vmatpush1.bf16.msra.mxu0 %v1159
        %1182 = vmatprep.subr.bf16.mxu0 0
        %1183 = vmatpush1.bf16.msra.mxu0 %v1160
        %1184 = vmatprep.subr.bf16.mxu0 0
        %1185 = vmatpush1.bf16.msra.mxu0 %v1161
        %1186 = vmatprep.subr.bf16.mxu0 0
        %1187 = vmatpush1.bf16.msra.mxu0 0
        %1188 = vmatprep.subr.bf16.mxu0 0
        %1189 = vmatpush1.bf16.msra.mxu0 0
        %1190 = vmatprep.subr.bf16.mxu0 0
        %1191 = vmatpush1.bf16.msra.mxu0 0
        %1192 = vmatprep.subr.bf16.mxu0 0
        %1193 = vmatpush1.bf16.msra.mxu0 0
        %1194 = vmatprep.subr.bf16.mxu0 0
        %1195 = vmatpush1.bf16.msra.mxu0 0
        %1196 = vmatprep.subr.bf16.mxu0 0
        %1197 = vmatpush1.bf16.msra.mxu0 0
        %1198 = vmatprep.subr.bf16.mxu0 0
        %1199 = vmatpush1.bf16.msra.mxu0 0
        %1200 = vmatprep.subr.bf16.mxu0 0
        %1201 = vmatpush1.bf16.msra.mxu0 0
        %1202 = vmatprep.mubr.bf16.mxu0 0
        %1203 = vmatmul.mubr.bf16.gmra.mrb[0].mxu0 %v1090
        %v1204 = vpop.f32.mrb[0].mxu0
        %v1205 = vadd.f32 %v900, %v1204
        %v1206 = vpop.f32.mrb[0].mxu0
        %v1207 = vpop.f32.mrb[0].mxu0
        %v1208 = vadd.f32 %v903, %v1207
        %v1209 = vpop.f32.mrb[0].mxu0
        %1210 = vmatprep.mubr.bf16.mxu0 0
        %1211 = vmatmul.mubr.bf16.gmra.mrb[0].mxu0 %v1091
        %v1212 = vpop.f32.mrb[0].mxu0
        %v1213 = vadd.f32 %v908, %v1212
        %v1214 = vpop.f32.mrb[0].mxu0
        %v1215 = vpop.f32.mrb[0].mxu0
        %v1216 = vadd.f32 %v911, %v1215
        %v1217 = vpop.f32.mrb[0].mxu0
        %1218 = vmatprep.mubr.bf16.mxu0 0
        %1219 = vmatmul.mubr.bf16.gmra.mrb[0].mxu0 %v1092
        %v1220 = vpop.f32.mrb[0].mxu0
        %v1221 = vadd.f32 %v916, %v1220
        %v1222 = vpop.f32.mrb[0].mxu0
        %v1223 = vpop.f32.mrb[0].mxu0
        %v1224 = vadd.f32 %v919, %v1223
        %v1225 = vpop.f32.mrb[0].mxu0
        %1226 = vmatprep.mubr.bf16.mxu0 0
        %1227 = vmatmul.mubr.bf16.gmra.mrb[0].mxu0 %v1093
        %v1228 = vpop.f32.mrb[0].mxu0
        %v1229 = vadd.f32 %v924, %v1228
        %v1230 = vpop.f32.mrb[0].mxu0
        %v1231 = vpop.f32.mrb[0].mxu0
        %v1232 = vadd.f32 %v927, %v1231
        %v1233 = vpop.f32.mrb[0].mxu0
        %1234 = vmatprep.mubr.bf16.mxu0 0
        %1235 = vmatmul.mubr.bf16.gmra.mrb[0].mxu0 %v1094
        %v1236 = vpop.f32.mrb[0].mxu0
        %v1237 = vadd.f32 %v932, %v1236
        %v1238 = vpop.f32.mrb[0].mxu0
        %v1239 = vpop.f32.mrb[0].mxu0
        %v1240 = vadd.f32 %v935, %v1239
        %v1241 = vpop.f32.mrb[0].mxu0
        %1242 = vmatprep.mubr.bf16.mxu0 0
        %1243 = vmatmul.mubr.bf16.gmra.mrb[0].mxu0 %v1095
        %v1244 = vpop.f32.mrb[0].mxu0
        %v1245 = vadd.f32 %v940, %v1244
        %v1246 = vpop.f32.mrb[0].mxu0
        %v1247 = vpop.f32.mrb[0].mxu0
        %v1248 = vadd.f32 %v943, %v1247
        %v1249 = vpop.f32.mrb[0].mxu0
        %1250 = vmatprep.mubr.bf16.mxu0 0
        %1251 = vmatmul.mubr.bf16.gmra.mrb[0].mxu0 %v1096
        %v1252 = vpop.f32.mrb[0].mxu0
        %v1253 = vadd.f32 %v948, %v1252
        %v1254 = vpop.f32.mrb[0].mxu0
        %v1255 = vpop.f32.mrb[0].mxu0
        %v1256 = vadd.f32 %v951, %v1255
        %v1257 = vpop.f32.mrb[0].mxu0
        %1258 = vmatprep.mubr.bf16.mxu0 0
        %1259 = vmatmul.mubr.bf16.gmra.mrb[0].mxu0 %v1097
        %v1260 = vpop.f32.mrb[0].mxu0
        %v1261 = vadd.f32 %v956, %v1260
        %v1262 = vpop.f32.mrb[0].mxu0
        %v1263 = vpop.f32.mrb[0].mxu0
        %v1264 = vadd.f32 %v959, %v1263
        %v1265 = vpop.f32.mrb[0].mxu0
        %1266 = vmatprep.mubr.bf16.mxu0 0
        %1267 = vmatmul.mubr.bf16.gmra.mrb[0].mxu0 %v1098
        %v1268 = vpop.f32.mrb[0].mxu0
        %v1269 = vadd.f32 %v964, %v1268
        %v1270 = vpop.f32.mrb[0].mxu0
        %v1271 = vpop.f32.mrb[0].mxu0
        %v1272 = vadd.f32 %v967, %v1271
        %v1273 = vpop.f32.mrb[0].mxu0
        %1274 = vmatprep.mubr.bf16.mxu0 0
        %1275 = vmatmul.mubr.bf16.gmra.mrb[0].mxu0 %v1099
        %v1276 = vpop.f32.mrb[0].mxu0
        %v1277 = vadd.f32 %v972, %v1276
        %v1278 = vpop.f32.mrb[0].mxu0
        %v1279 = vpop.f32.mrb[0].mxu0
        %v1280 = vadd.f32 %v975, %v1279
        %v1281 = vpop.f32.mrb[0].mxu0
        %1282 = vmatprep.mubr.bf16.mxu0 0
        %1283 = vmatmul.mubr.bf16.gmra.mrb[0].mxu0 %v1100
        %v1284 = vpop.f32.mrb[0].mxu0
        %v1285 = vadd.f32 %v980, %v1284
        %v1286 = vpop.f32.mrb[0].mxu0
        %v1287 = vpop.f32.mrb[0].mxu0
        %v1288 = vadd.f32 %v983, %v1287
        %v1289 = vpop.f32.mrb[0].mxu0
        %1290 = vmatprep.mubr.bf16.mxu0 0
        %1291 = vmatmul.mubr.bf16.gmra.mrb[0].mxu0 %v1101
        %v1292 = vpop.f32.mrb[0].mxu0
        %v1293 = vadd.f32 %v988, %v1292
        %v1294 = vpop.f32.mrb[0].mxu0
        %v1295 = vpop.f32.mrb[0].mxu0
        %v1296 = vadd.f32 %v991, %v1295
        %v1297 = vpop.f32.mrb[0].mxu0
        %1298 = vmatprep.mubr.bf16.mxu0 0
        %1299 = vmatmul.mubr.bf16.gmra.mrb[0].mxu0 %v1102
        %v1300 = vpop.f32.mrb[0].mxu0
        %v1301 = vadd.f32 %v996, %v1300
        %v1302 = vpop.f32.mrb[0].mxu0
        %v1303 = vpop.f32.mrb[0].mxu0
        %v1304 = vadd.f32 %v999, %v1303
        %v1305 = vpop.f32.mrb[0].mxu0
        %1306 = vmatprep.mubr.bf16.mxu0 0
        %1307 = vmatmul.mubr.bf16.gmra.mrb[0].mxu0 %v1103
        %v1308 = vpop.f32.mrb[0].mxu0
        %v1309 = vadd.f32 %v1004, %v1308
        %v1310 = vpop.f32.mrb[0].mxu0
        %v1311 = vpop.f32.mrb[0].mxu0
        %v1312 = vadd.f32 %v1007, %v1311
        %v1313 = vpop.f32.mrb[0].mxu0
        %1314 = vmatprep.mubr.bf16.mxu0 0
        %1315 = vmatmul.mubr.bf16.gmra.mrb[0].mxu0 %v1104
        %v1316 = vpop.f32.mrb[0].mxu0
        %v1317 = vadd.f32 %v1012, %v1316
        %v1318 = vpop.f32.mrb[0].mxu0
        %v1319 = vpop.f32.mrb[0].mxu0
        %v1320 = vadd.f32 %v1015, %v1319
        %v1321 = vpop.f32.mrb[0].mxu0
        %1322 = vmatprep.mubr.bf16.mxu0 0
        %1323 = vmatmul.mubr.bf16.gmra.mrb[0].mxu0 %v1105
        %v1324 = vpop.f32.mrb[0].mxu0
        %v1325 = vadd.f32 %v1020, %v1324
        %v1326 = vpop.f32.mrb[0].mxu0
        %v1327 = vpop.f32.mrb[0].mxu0
        %v1328 = vadd.f32 %v1023, %v1327
        %v1329 = vpop.f32.mrb[0].mxu0
        %1330 = vdwg.mxu0
        %v1331 = vld [vmem:[%s237] sm:$0xe]
        %v1332 = vld [vmem:[%s237 + $0xc] sm:$0xe]
        %v1333 = vld [vmem:[%s237 + $0x18] sm:$0xe]
        %v1334 = vld [vmem:[%s237 + $0x24] sm:$0xe]
        %v1335 = vld [vmem:[%s237 + $0x30] sm:$0xe]
        %v1336 = vld [vmem:[%s237 + $0x3c] sm:$0xe]
        %v1337 = vld [vmem:[%s237 + $0x48] sm:$0xe]
        %v1338 = vld [vmem:[%s237 + $0x54] sm:$0xe]
        %v1339 = vld [vmem:[%s237 + $0x60] sm:$0xe]
        %v1340 = vld [vmem:[%s237 + $0x6c] sm:$0xe]
        %v1341 = vld [vmem:[%s237 + $0x78] sm:$0xe]
        %v1342 = vld [vmem:[%s237 + $0x84] sm:$0xe]
        %v1343 = vld [vmem:[%s237 + $0x90] sm:$0xe]
        %v1344 = vld [vmem:[%s237 + $0x9c] sm:$0xe]
        %v1345 = vld [vmem:[%s237 + $0xa8] sm:$0xe]
        %v1346 = vld [vmem:[%s237 + $0xb4] sm:$0xe]
        %vm1379 = vcmask 1042432
        %vm1380 = vcmask 1046532
        %vm1381 = vmor %vm1379, %vm1380
        %v1382 = vrot.slane %v1331, 5
        %v1383 = vrot.slane %v1382, 4
        %v1384 = vrot.slane %v286, 5
        %v1385 = vsel %vm1381, %v1383, %v1384
        %v1386 = vrot.slane %v1384, 4
        %v1387 = vrot.slane %v333, 5
        %v1388 = vsel %vm1381, %v1386, %v1387
        %v1389 = vrot.slane %v1332, 5
        %v1390 = vrot.slane %v1389, 4
        %v1391 = vrot.slane %v288, 5
        %v1392 = vsel %vm1381, %v1390, %v1391
        %v1393 = vrot.slane %v1391, 4
        %v1394 = vrot.slane %v334, 5
        %v1395 = vsel %vm1381, %v1393, %v1394
        %v1396 = vrot.slane %v1333, 5
        %v1397 = vrot.slane %v1396, 4
        %v1398 = vrot.slane %v290, 5
        %v1399 = vsel %vm1381, %v1397, %v1398
        %v1400 = vrot.slane %v1398, 4
        %v1401 = vrot.slane %v335, 5
        %v1402 = vsel %vm1381, %v1400, %v1401
        %v1403 = vrot.slane %v1334, 5
        %v1404 = vrot.slane %v1403, 4
        %v1405 = vrot.slane %v292, 5
        %v1406 = vsel %vm1381, %v1404, %v1405
        %v1407 = vrot.slane %v1405, 4
        %v1408 = vrot.slane %v336, 5
        %v1409 = vsel %vm1381, %v1407, %v1408
        %v1410 = vrot.slane %v1335, 5
        %v1411 = vrot.slane %v1410, 4
        %v1412 = vrot.slane %v294, 5
        %v1413 = vsel %vm1381, %v1411, %v1412
        %v1414 = vrot.slane %v1412, 4
        %v1415 = vrot.slane %v337, 5
        %v1416 = vsel %vm1381, %v1414, %v1415
        %v1417 = vrot.slane %v1336, 5
        %v1418 = vrot.slane %v1417, 4
        %v1419 = vrot.slane %v296, 5
        %v1420 = vsel %vm1381, %v1418, %v1419
        %v1421 = vrot.slane %v1419, 4
        %v1422 = vrot.slane %v338, 5
        %v1423 = vsel %vm1381, %v1421, %v1422
        %v1424 = vrot.slane %v1337, 5
        %v1425 = vrot.slane %v1424, 4
        %v1426 = vrot.slane %v298, 5
        %v1427 = vsel %vm1381, %v1425, %v1426
        %v1428 = vrot.slane %v1426, 4
        %v1429 = vrot.slane %v339, 5
        %v1430 = vsel %vm1381, %v1428, %v1429
        %v1431 = vrot.slane %v1338, 5
        %v1432 = vrot.slane %v1431, 4
        %v1433 = vrot.slane %v300, 5
        %v1434 = vsel %vm1381, %v1432, %v1433
        %v1435 = vrot.slane %v1433, 4
        %v1436 = vrot.slane %v340, 5
        %v1437 = vsel %vm1381, %v1435, %v1436
        %v1438 = vrot.slane %v1339, 5
        %v1439 = vrot.slane %v1438, 4
        %v1440 = vrot.slane %v302, 5
        %v1441 = vsel %vm1381, %v1439, %v1440
        %v1442 = vrot.slane %v1440, 4
        %v1443 = vrot.slane %v341, 5
        %v1444 = vsel %vm1381, %v1442, %v1443
        %v1445 = vrot.slane %v1340, 5
        %v1446 = vrot.slane %v1445, 4
        %v1447 = vrot.slane %v304, 5
        %v1448 = vsel %vm1381, %v1446, %v1447
        %v1449 = vrot.slane %v1447, 4
        %v1450 = vrot.slane %v342, 5
        %v1451 = vsel %vm1381, %v1449, %v1450
        %v1452 = vrot.slane %v1341, 5
        %v1453 = vrot.slane %v1452, 4
        %v1454 = vrot.slane %v306, 5
        %v1455 = vsel %vm1381, %v1453, %v1454
        %v1456 = vrot.slane %v1454, 4
        %v1457 = vrot.slane %v343, 5
        %v1458 = vsel %vm1381, %v1456, %v1457
        %v1459 = vrot.slane %v1342, 5
        %v1460 = vrot.slane %v1459, 4
        %v1461 = vrot.slane %v308, 5
        %v1462 = vsel %vm1381, %v1460, %v1461
        %v1463 = vrot.slane %v1461, 4
        %v1464 = vrot.slane %v344, 5
        %v1465 = vsel %vm1381, %v1463, %v1464
        %v1466 = vrot.slane %v1343, 5
        %v1467 = vrot.slane %v1466, 4
        %v1468 = vrot.slane %v310, 5
        %v1469 = vsel %vm1381, %v1467, %v1468
        %v1470 = vrot.slane %v1468, 4
        %v1471 = vrot.slane %v345, 5
        %v1472 = vsel %vm1381, %v1470, %v1471
        %v1473 = vrot.slane %v1344, 5
        %v1474 = vrot.slane %v1473, 4
        %v1475 = vrot.slane %v312, 5
        %v1476 = vsel %vm1381, %v1474, %v1475
        %v1477 = vrot.slane %v1475, 4
        %v1478 = vrot.slane %v346, 5
        %v1479 = vsel %vm1381, %v1477, %v1478
        %v1480 = vrot.slane %v1345, 5
        %v1481 = vrot.slane %v1480, 4
        %v1482 = vrot.slane %v314, 5
        %v1483 = vsel %vm1381, %v1481, %v1482
        %v1484 = vrot.slane %v1482, 4
        %v1485 = vrot.slane %v347, 5
        %v1486 = vsel %vm1381, %v1484, %v1485
        %v1487 = vrot.slane %v1346, 5
        %v1488 = vrot.slane %v1487, 4
        %v1489 = vrot.slane %v316, 5
        %v1490 = vsel %vm1381, %v1488, %v1489
        %v1491 = vrot.slane %v1489, 4
        %v1492 = vrot.slane %v348, 5
        %v1493 = vsel %vm1381, %v1491, %v1492
        %s1494 = scalar_lea.vmem %s1, 128
        %v1495 = vld [vmem:[%s1494] sm:$0xf]
        %v1496 = vld [vmem:[%s1494 + $0x4] sm:$0xf]
        %v1497 = vld [vmem:[%s1494 + $0x8] sm:$0xf]
        %v1498 = vld [vmem:[%s1494 + $0xc] sm:$0xf]
        %v1499 = vld [vmem:[%s1494 + $0x10] sm:$0xf]
        %v1500 = vld [vmem:[%s1494 + $0x14] sm:$0xf]
        %v1501 = vld [vmem:[%s1494 + $0x18] sm:$0xf]
        %v1502 = vld [vmem:[%s1494 + $0x1c] sm:$0xf]
        %v1503 = vld [vmem:[%s1494 + $0x20] sm:$0xf]
        %v1504 = vld [vmem:[%s1494 + $0x24] sm:$0xf]
        %v1505 = vld [vmem:[%s1494 + $0x28] sm:$0xf]
        %v1506 = vld [vmem:[%s1494 + $0x2c] sm:$0xf]
        %v1507 = vld [vmem:[%s1494 + $0x30] sm:$0xf]
        %v1508 = vld [vmem:[%s1494 + $0x34] sm:$0xf]
        %v1509 = vld [vmem:[%s1494 + $0x38] sm:$0xf]
        %v1510 = vld [vmem:[%s1494 + $0x3c] sm:$0xf]
        %v1511 = vunpack.c.l.b16 %v1385
        %v1512 = vunpack.c.l.b16 %v1388
        %v1513 = vunpack.c.l.b16 %v1392
        %v1514 = vunpack.c.l.b16 %v1395
        %v1515 = vunpack.c.l.b16 %v1399
        %v1516 = vunpack.c.l.b16 %v1402
        %v1517 = vunpack.c.l.b16 %v1406
        %v1518 = vunpack.c.l.b16 %v1409
        %v1519 = vunpack.c.l.b16 %v1413
        %v1520 = vunpack.c.l.b16 %v1416
        %v1521 = vunpack.c.l.b16 %v1420
        %v1522 = vunpack.c.l.b16 %v1423
        %v1523 = vunpack.c.l.b16 %v1427
        %v1524 = vunpack.c.l.b16 %v1430
        %v1525 = vunpack.c.l.b16 %v1434
        %v1526 = vunpack.c.l.b16 %v1437
        %v1527 = vunpack.c.l.b16 %v1441
        %v1528 = vunpack.c.l.b16 %v1444
        %v1529 = vunpack.c.l.b16 %v1448
        %v1530 = vunpack.c.l.b16 %v1451
        %v1531 = vunpack.c.l.b16 %v1455
        %v1532 = vunpack.c.l.b16 %v1458
        %v1533 = vunpack.c.l.b16 %v1462
        %v1534 = vunpack.c.l.b16 %v1465
        %v1535 = vunpack.c.l.b16 %v1469
        %v1536 = vunpack.c.l.b16 %v1472
        %v1537 = vunpack.c.l.b16 %v1476
        %v1538 = vunpack.c.l.b16 %v1479
        %v1539 = vunpack.c.l.b16 %v1483
        %v1540 = vunpack.c.l.b16 %v1486
        %v1541 = vunpack.c.l.b16 %v1490
        %v1542 = vunpack.c.l.b16 %v1493
        %v1543 = vpack.c.b16 %v1512, %v1511
        %v1544 = vpack.c.b16 %v1514, %v1513
        %v1545 = vpack.c.b16 %v1516, %v1515
        %v1546 = vpack.c.b16 %v1518, %v1517
        %v1547 = vpack.c.b16 %v1520, %v1519
        %v1548 = vpack.c.b16 %v1522, %v1521
        %v1549 = vpack.c.b16 %v1524, %v1523
        %v1550 = vpack.c.b16 %v1526, %v1525
        %v1551 = vpack.c.b16 %v1528, %v1527
        %v1552 = vpack.c.b16 %v1530, %v1529
        %v1553 = vpack.c.b16 %v1532, %v1531
        %v1554 = vpack.c.b16 %v1534, %v1533
        %v1555 = vpack.c.b16 %v1536, %v1535
        %v1556 = vpack.c.b16 %v1538, %v1537
        %v1557 = vpack.c.b16 %v1540, %v1539
        %v1558 = vpack.c.b16 %v1542, %v1541
        %v1591 = vunpack.c.l.b16 %v1495
        %v1592 = vunpack.c.l.b16 %v1496
        %v1593 = vunpack.c.l.b16 %v1497
        %v1594 = vunpack.c.l.b16 %v1498
        %v1595 = vunpack.c.l.b16 %v1499
        %v1596 = vunpack.c.l.b16 %v1500
        %v1597 = vunpack.c.l.b16 %v1501
        %v1598 = vunpack.c.l.b16 %v1502
        %v1599 = vunpack.c.l.b16 %v1503
        %v1600 = vunpack.c.l.b16 %v1504
        %v1601 = vunpack.c.l.b16 %v1505
        %v1602 = vunpack.c.l.b16 %v1506
        %v1603 = vunpack.c.l.b16 %v1507
        %v1604 = vunpack.c.l.b16 %v1508
        %v1605 = vunpack.c.l.b16 %v1509
        %v1606 = vunpack.c.l.b16 %v1510
        %v1607 = vpack.c.b16 %v1592, %v1591
        %v1608 = vpack.c.b16 %v1594, %v1593
        %v1609 = vpack.c.b16 %v1596, %v1595
        %v1610 = vpack.c.b16 %v1598, %v1597
        %v1611 = vpack.c.b16 %v1600, %v1599
        %v1612 = vpack.c.b16 %v1602, %v1601
        %v1613 = vpack.c.b16 %v1604, %v1603
        %v1614 = vpack.c.b16 %v1606, %v1605
        %1623 = vmatprep.subr.bf16.mxu0 0
        %1624 = vmatpush1.bf16.msra.mxu0 %v1607
        %1625 = vmatprep.subr.bf16.mxu0 0
        %1626 = vmatpush1.bf16.msra.mxu0 %v1608
        %1627 = vmatprep.subr.bf16.mxu0 0
        %1628 = vmatpush1.bf16.msra.mxu0 %v1609
        %1629 = vmatprep.subr.bf16.mxu0 0
        %1630 = vmatpush1.bf16.msra.mxu0 %v1610
        %1631 = vmatprep.subr.bf16.mxu0 0
        %1632 = vmatpush1.bf16.msra.mxu0 %v1611
        %1633 = vmatprep.subr.bf16.mxu0 0
        %1634 = vmatpush1.bf16.msra.mxu0 %v1612
        %1635 = vmatprep.subr.bf16.mxu0 0
        %1636 = vmatpush1.bf16.msra.mxu0 %v1613
        %1637 = vmatprep.subr.bf16.mxu0 0
        %1638 = vmatpush1.bf16.msra.mxu0 %v1614
        %1639 = vmatprep.subr.bf16.mxu0 0
        %1640 = vmatpush1.bf16.msra.mxu0 0
        %1641 = vmatprep.subr.bf16.mxu0 0
        %1642 = vmatpush1.bf16.msra.mxu0 0
        %1643 = vmatprep.subr.bf16.mxu0 0
        %1644 = vmatpush1.bf16.msra.mxu0 0
        %1645 = vmatprep.subr.bf16.mxu0 0
        %1646 = vmatpush1.bf16.msra.mxu0 0
        %1647 = vmatprep.subr.bf16.mxu0 0
        %1648 = vmatpush1.bf16.msra.mxu0 0
        %1649 = vmatprep.subr.bf16.mxu0 0
        %1650 = vmatpush1.bf16.msra.mxu0 0
        %1651 = vmatprep.subr.bf16.mxu0 0
        %1652 = vmatpush1.bf16.msra.mxu0 0
        %1653 = vmatprep.subr.bf16.mxu0 0
        %1654 = vmatpush1.bf16.msra.mxu0 0
        %1655 = vmatprep.mubr.bf16.mxu0 0
        %1656 = vmatmul.mubr.bf16.gmra.mrb[0].mxu0 %v1543
        %v1657 = vpop.f32.mrb[0].mxu0
        %v1658 = vadd.f32 0.0, %v1657
        %v1659 = vpop.f32.mrb[0].mxu0
        %v1660 = vpop.f32.mrb[0].mxu0
        %v1661 = vadd.f32 0.0, %v1660
        %v1662 = vpop.f32.mrb[0].mxu0
        %1663 = vmatprep.mubr.bf16.mxu0 0
        %1664 = vmatmul.mubr.bf16.gmra.mrb[0].mxu0 %v1544
        %v1665 = vpop.f32.mrb[0].mxu0
        %v1666 = vadd.f32 0.0, %v1665
        %v1667 = vpop.f32.mrb[0].mxu0
        %v1668 = vpop.f32.mrb[0].mxu0
        %v1669 = vadd.f32 0.0, %v1668
        %v1670 = vpop.f32.mrb[0].mxu0
        %1671 = vmatprep.mubr.bf16.mxu0 0
        %1672 = vmatmul.mubr.bf16.gmra.mrb[0].mxu0 %v1545
        %v1673 = vpop.f32.mrb[0].mxu0
        %v1674 = vadd.f32 0.0, %v1673
        %v1675 = vpop.f32.mrb[0].mxu0
        %v1676 = vpop.f32.mrb[0].mxu0
        %v1677 = vadd.f32 0.0, %v1676
        %v1678 = vpop.f32.mrb[0].mxu0
        %1679 = vmatprep.mubr.bf16.mxu0 0
        %1680 = vmatmul.mubr.bf16.gmra.mrb[0].mxu0 %v1546
        %v1681 = vpop.f32.mrb[0].mxu0
        %v1682 = vadd.f32 0.0, %v1681
        %v1683 = vpop.f32.mrb[0].mxu0
        %v1684 = vpop.f32.mrb[0].mxu0
        %v1685 = vadd.f32 0.0, %v1684
        %v1686 = vpop.f32.mrb[0].mxu0
        %1687 = vmatprep.mubr.bf16.mxu0 0
        %1688 = vmatmul.mubr.bf16.gmra.mrb[0].mxu0 %v1547
        %v1689 = vpop.f32.mrb[0].mxu0
        %v1690 = vadd.f32 0.0, %v1689
        %v1691 = vpop.f32.mrb[0].mxu0
        %v1692 = vpop.f32.mrb[0].mxu0
        %v1693 = vadd.f32 0.0, %v1692
        %v1694 = vpop.f32.mrb[0].mxu0
        %1695 = vmatprep.mubr.bf16.mxu0 0
        %1696 = vmatmul.mubr.bf16.gmra.mrb[0].mxu0 %v1548
        %v1697 = vpop.f32.mrb[0].mxu0
        %v1698 = vadd.f32 0.0, %v1697
        %v1699 = vpop.f32.mrb[0].mxu0
        %v1700 = vpop.f32.mrb[0].mxu0
        %v1701 = vadd.f32 0.0, %v1700
        %v1702 = vpop.f32.mrb[0].mxu0
        %1703 = vmatprep.mubr.bf16.mxu0 0
        %1704 = vmatmul.mubr.bf16.gmra.mrb[0].mxu0 %v1549
        %v1705 = vpop.f32.mrb[0].mxu0
        %v1706 = vadd.f32 0.0, %v1705
        %v1707 = vpop.f32.mrb[0].mxu0
        %v1708 = vpop.f32.mrb[0].mxu0
        %v1709 = vadd.f32 0.0, %v1708
        %v1710 = vpop.f32.mrb[0].mxu0
        %1711 = vmatprep.mubr.bf16.mxu0 0
        %1712 = vmatmul.mubr.bf16.gmra.mrb[0].mxu0 %v1550
        %v1713 = vpop.f32.mrb[0].mxu0
        %v1714 = vadd.f32 0.0, %v1713
        %v1715 = vpop.f32.mrb[0].mxu0
        %v1716 = vpop.f32.mrb[0].mxu0
        %v1717 = vadd.f32 0.0, %v1716
        %v1718 = vpop.f32.mrb[0].mxu0
        %1719 = vmatprep.mubr.bf16.mxu0 0
        %1720 = vmatmul.mubr.bf16.gmra.mrb[0].mxu0 %v1551
        %v1721 = vpop.f32.mrb[0].mxu0
        %v1722 = vadd.f32 0.0, %v1721
        %v1723 = vpop.f32.mrb[0].mxu0
        %v1724 = vpop.f32.mrb[0].mxu0
        %v1725 = vadd.f32 0.0, %v1724
        %v1726 = vpop.f32.mrb[0].mxu0
        %1727 = vmatprep.mubr.bf16.mxu0 0
        %1728 = vmatmul.mubr.bf16.gmra.mrb[0].mxu0 %v1552
        %v1729 = vpop.f32.mrb[0].mxu0
        %v1730 = vadd.f32 0.0, %v1729
        %v1731 = vpop.f32.mrb[0].mxu0
        %v1732 = vpop.f32.mrb[0].mxu0
        %v1733 = vadd.f32 0.0, %v1732
        %v1734 = vpop.f32.mrb[0].mxu0
        %1735 = vmatprep.mubr.bf16.mxu0 0
        %1736 = vmatmul.mubr.bf16.gmra.mrb[0].mxu0 %v1553
        %v1737 = vpop.f32.mrb[0].mxu0
        %v1738 = vadd.f32 0.0, %v1737
        %v1739 = vpop.f32.mrb[0].mxu0
        %v1740 = vpop.f32.mrb[0].mxu0
        %v1741 = vadd.f32 0.0, %v1740
        %v1742 = vpop.f32.mrb[0].mxu0
        %1743 = vmatprep.mubr.bf16.mxu0 0
        %1744 = vmatmul.mubr.bf16.gmra.mrb[0].mxu0 %v1554
        %v1745 = vpop.f32.mrb[0].mxu0
        %v1746 = vadd.f32 0.0, %v1745
        %v1747 = vpop.f32.mrb[0].mxu0
        %v1748 = vpop.f32.mrb[0].mxu0
        %v1749 = vadd.f32 0.0, %v1748
        %v1750 = vpop.f32.mrb[0].mxu0
        %1751 = vmatprep.mubr.bf16.mxu0 0
        %1752 = vmatmul.mubr.bf16.gmra.mrb[0].mxu0 %v1555
        %v1753 = vpop.f32.mrb[0].mxu0
        %v1754 = vadd.f32 0.0, %v1753
        %v1755 = vpop.f32.mrb[0].mxu0
        %v1756 = vpop.f32.mrb[0].mxu0
        %v1757 = vadd.f32 0.0, %v1756
        %v1758 = vpop.f32.mrb[0].mxu0
        %1759 = vmatprep.mubr.bf16.mxu0 0
        %1760 = vmatmul.mubr.bf16.gmra.mrb[0].mxu0 %v1556
        %v1761 = vpop.f32.mrb[0].mxu0
        %v1762 = vadd.f32 0.0, %v1761
        %v1763 = vpop.f32.mrb[0].mxu0
        %v1764 = vpop.f32.mrb[0].mxu0
        %v1765 = vadd.f32 0.0, %v1764
        %v1766 = vpop.f32.mrb[0].mxu0
        %1767 = vmatprep.mubr.bf16.mxu0 0
        %1768 = vmatmul.mubr.bf16.gmra.mrb[0].mxu0 %v1557
        %v1769 = vpop.f32.mrb[0].mxu0
        %v1770 = vadd.f32 0.0, %v1769
        %v1771 = vpop.f32.mrb[0].mxu0
        %v1772 = vpop.f32.mrb[0].mxu0
        %v1773 = vadd.f32 0.0, %v1772
        %v1774 = vpop.f32.mrb[0].mxu0
        %1775 = vmatprep.mubr.bf16.mxu0 0
        %1776 = vmatmul.mubr.bf16.gmra.mrb[0].mxu0 %v1558
        %v1777 = vpop.f32.mrb[0].mxu0
        %v1778 = vadd.f32 0.0, %v1777
        %v1779 = vpop.f32.mrb[0].mxu0
        %v1780 = vpop.f32.mrb[0].mxu0
        %v1781 = vadd.f32 0.0, %v1780
        %v1782 = vpop.f32.mrb[0].mxu0
        %1783 = vdwg.mxu0
        %v1784 = vadd.f32 %v1205, %v1658
        %v1785 = vadd.f32 %v1208, %v1661
        %v1786 = vadd.f32 %v1213, %v1666
        %v1787 = vadd.f32 %v1216, %v1669
        %v1788 = vadd.f32 %v1221, %v1674
        %v1789 = vadd.f32 %v1224, %v1677
        %v1790 = vadd.f32 %v1229, %v1682
        %v1791 = vadd.f32 %v1232, %v1685
        %v1792 = vadd.f32 %v1237, %v1690
        %v1793 = vadd.f32 %v1240, %v1693
        %v1794 = vadd.f32 %v1245, %v1698
        %v1795 = vadd.f32 %v1248, %v1701
        %v1796 = vadd.f32 %v1253, %v1706
        %v1797 = vadd.f32 %v1256, %v1709
        %v1798 = vadd.f32 %v1261, %v1714
        %v1799 = vadd.f32 %v1264, %v1717
        %v1800 = vadd.f32 %v1269, %v1722
        %v1801 = vadd.f32 %v1272, %v1725
        %v1802 = vadd.f32 %v1277, %v1730
        %v1803 = vadd.f32 %v1280, %v1733
        %v1804 = vadd.f32 %v1285, %v1738
        %v1805 = vadd.f32 %v1288, %v1741
        %v1806 = vadd.f32 %v1293, %v1746
        %v1807 = vadd.f32 %v1296, %v1749
        %v1808 = vadd.f32 %v1301, %v1754
        %v1809 = vadd.f32 %v1304, %v1757
        %v1810 = vadd.f32 %v1309, %v1762
        %v1811 = vadd.f32 %v1312, %v1765
        %v1812 = vadd.f32 %v1317, %v1770
        %v1813 = vadd.f32 %v1320, %v1773
        %v1814 = vadd.f32 %v1325, %v1778
        %v1815 = vadd.f32 %v1328, %v1781
        %s1816 = scalar_lea.vmem %s237, 12
        %v1817 = vld [vmem:[%s1816] sm:$0xf]
        %v1818 = vld [vmem:[%s1816 + $0x4] sm:$0xf]
        %v1819 = vld [vmem:[%s1816 + $0xc] sm:$0xf]
        %v1820 = vld [vmem:[%s1816 + $0x10] sm:$0xf]
        %v1821 = vld [vmem:[%s1816 + $0x18] sm:$0xf]
        %v1822 = vld [vmem:[%s1816 + $0x1c] sm:$0xf]
        %v1823 = vld [vmem:[%s1816 + $0x24] sm:$0xf]
        %v1824 = vld [vmem:[%s1816 + $0x28] sm:$0xf]
        %v1825 = vld [vmem:[%s1816 + $0x30] sm:$0xf]
        %v1826 = vld [vmem:[%s1816 + $0x34] sm:$0xf]
        %v1827 = vld [vmem:[%s1816 + $0x3c] sm:$0xf]
        %v1828 = vld [vmem:[%s1816 + $0x40] sm:$0xf]
        %v1829 = vld [vmem:[%s1816 + $0x48] sm:$0xf]
        %v1830 = vld [vmem:[%s1816 + $0x4c] sm:$0xf]
        %v1831 = vld [vmem:[%s1816 + $0x54] sm:$0xf]
        %v1832 = vld [vmem:[%s1816 + $0x58] sm:$0xf]
        %v1833 = vld [vmem:[%s1816 + $0x60] sm:$0xf]
        %v1834 = vld [vmem:[%s1816 + $0x64] sm:$0xf]
        %v1835 = vld [vmem:[%s1816 + $0x6c] sm:$0xf]
        %v1836 = vld [vmem:[%s1816 + $0x70] sm:$0xf]
        %v1837 = vld [vmem:[%s1816 + $0x78] sm:$0xf]
        %v1838 = vld [vmem:[%s1816 + $0x7c] sm:$0xf]
        %v1839 = vld [vmem:[%s1816 + $0x84] sm:$0xf]
        %v1840 = vld [vmem:[%s1816 + $0x88] sm:$0xf]
        %v1841 = vld [vmem:[%s1816 + $0x90] sm:$0xf]
        %v1842 = vld [vmem:[%s1816 + $0x94] sm:$0xf]
        %v1843 = vld [vmem:[%s1816 + $0x9c] sm:$0xf]
        %v1844 = vld [vmem:[%s1816 + $0xa0] sm:$0xf]
        %v1845 = vld [vmem:[%s1816 + $0xa8] sm:$0xf]
        %v1846 = vld [vmem:[%s1816 + $0xac] sm:$0xf]
        %v1847 = vld [vmem:[%s1816 + $0xb4] sm:$0xf]
        %v1848 = vld [vmem:[%s1816 + $0xb8] sm:$0xf]
        %s1849 = scalar_lea.vmem %s1, 192
        %v1850 = vld [vmem:[%s1849] sm:$0xf]
        %v1851 = vld [vmem:[%s1849 + $0x4] sm:$0xf]
        %v1852 = vld [vmem:[%s1849 + $0x8] sm:$0xf]
        %v1853 = vld [vmem:[%s1849 + $0xc] sm:$0xf]
        %v1854 = vld [vmem:[%s1849 + $0x10] sm:$0xf]
        %v1855 = vld [vmem:[%s1849 + $0x14] sm:$0xf]
        %v1856 = vld [vmem:[%s1849 + $0x18] sm:$0xf]
        %v1857 = vld [vmem:[%s1849 + $0x1c] sm:$0xf]
        %v1858 = vld [vmem:[%s1849 + $0x20] sm:$0xf]
        %v1859 = vld [vmem:[%s1849 + $0x24] sm:$0xf]
        %v1860 = vld [vmem:[%s1849 + $0x28] sm:$0xf]
        %v1861 = vld [vmem:[%s1849 + $0x2c] sm:$0xf]
        %v1862 = vld [vmem:[%s1849 + $0x30] sm:$0xf]
        %v1863 = vld [vmem:[%s1849 + $0x34] sm:$0xf]
        %v1864 = vld [vmem:[%s1849 + $0x38] sm:$0xf]
        %v1865 = vld [vmem:[%s1849 + $0x3c] sm:$0xf]
        %v1898 = vunpack.c.l.b16 %v1817
        %v1899 = vunpack.c.l.b16 %v1818
        %v1900 = vunpack.c.l.b16 %v1819
        %v1901 = vunpack.c.l.b16 %v1820
        %v1902 = vunpack.c.l.b16 %v1821
        %v1903 = vunpack.c.l.b16 %v1822
        %v1904 = vunpack.c.l.b16 %v1823
        %v1905 = vunpack.c.l.b16 %v1824
        %v1906 = vunpack.c.l.b16 %v1825
        %v1907 = vunpack.c.l.b16 %v1826
        %v1908 = vunpack.c.l.b16 %v1827
        %v1909 = vunpack.c.l.b16 %v1828
        %v1910 = vunpack.c.l.b16 %v1829
        %v1911 = vunpack.c.l.b16 %v1830
        %v1912 = vunpack.c.l.b16 %v1831
        %v1913 = vunpack.c.l.b16 %v1832
        %v1914 = vunpack.c.l.b16 %v1833
        %v1915 = vunpack.c.l.b16 %v1834
        %v1916 = vunpack.c.l.b16 %v1835
        %v1917 = vunpack.c.l.b16 %v1836
        %v1918 = vunpack.c.l.b16 %v1837
        %v1919 = vunpack.c.l.b16 %v1838
        %v1920 = vunpack.c.l.b16 %v1839
        %v1921 = vunpack.c.l.b16 %v1840
        %v1922 = vunpack.c.l.b16 %v1841
        %v1923 = vunpack.c.l.b16 %v1842
        %v1924 = vunpack.c.l.b16 %v1843
        %v1925 = vunpack.c.l.b16 %v1844
        %v1926 = vunpack.c.l.b16 %v1845
        %v1927 = vunpack.c.l.b16 %v1846
        %v1928 = vunpack.c.l.b16 %v1847
        %v1929 = vunpack.c.l.b16 %v1848
        %v1930 = vpack.c.b16 %v1899, %v1898
        %v1931 = vpack.c.b16 %v1901, %v1900
        %v1932 = vpack.c.b16 %v1903, %v1902
        %v1933 = vpack.c.b16 %v1905, %v1904
        %v1934 = vpack.c.b16 %v1907, %v1906
        %v1935 = vpack.c.b16 %v1909, %v1908
        %v1936 = vpack.c.b16 %v1911, %v1910
        %v1937 = vpack.c.b16 %v1913, %v1912
        %v1938 = vpack.c.b16 %v1915, %v1914
        %v1939 = vpack.c.b16 %v1917, %v1916
        %v1940 = vpack.c.b16 %v1919, %v1918
        %v1941 = vpack.c.b16 %v1921, %v1920
        %v1942 = vpack.c.b16 %v1923, %v1922
        %v1943 = vpack.c.b16 %v1925, %v1924
        %v1944 = vpack.c.b16 %v1927, %v1926
        %v1945 = vpack.c.b16 %v1929, %v1928
        %v1978 = vunpack.c.l.b16 %v1850
        %v1979 = vunpack.c.l.b16 %v1851
        %v1980 = vunpack.c.l.b16 %v1852
        %v1981 = vunpack.c.l.b16 %v1853
        %v1982 = vunpack.c.l.b16 %v1854
        %v1983 = vunpack.c.l.b16 %v1855
        %v1984 = vunpack.c.l.b16 %v1856
        %v1985 = vunpack.c.l.b16 %v1857
        %v1986 = vunpack.c.l.b16 %v1858
        %v1987 = vunpack.c.l.b16 %v1859
        %v1988 = vunpack.c.l.b16 %v1860
        %v1989 = vunpack.c.l.b16 %v1861
        %v1990 = vunpack.c.l.b16 %v1862
        %v1991 = vunpack.c.l.b16 %v1863
        %v1992 = vunpack.c.l.b16 %v1864
        %v1993 = vunpack.c.l.b16 %v1865
        %v1994 = vpack.c.b16 %v1979, %v1978
        %v1995 = vpack.c.b16 %v1981, %v1980
        %v1996 = vpack.c.b16 %v1983, %v1982
        %v1997 = vpack.c.b16 %v1985, %v1984
        %v1998 = vpack.c.b16 %v1987, %v1986
        %v1999 = vpack.c.b16 %v1989, %v1988
        %v2000 = vpack.c.b16 %v1991, %v1990
        %v2001 = vpack.c.b16 %v1993, %v1992
        %2010 = vmatprep.subr.bf16.mxu0 0
        %2011 = vmatpush1.bf16.msra.mxu0 %v1994
        %2012 = vmatprep.subr.bf16.mxu0 0
        %2013 = vmatpush1.bf16.msra.mxu0 %v1995
        %2014 = vmatprep.subr.bf16.mxu0 0
        %2015 = vmatpush1.bf16.msra.mxu0 %v1996
        %2016 = vmatprep.subr.bf16.mxu0 0
        %2017 = vmatpush1.bf16.msra.mxu0 %v1997
        %2018 = vmatprep.subr.bf16.mxu0 0
        %2019 = vmatpush1.bf16.msra.mxu0 %v1998
        %2020 = vmatprep.subr.bf16.mxu0 0
        %2021 = vmatpush1.bf16.msra.mxu0 %v1999
        %2022 = vmatprep.subr.bf16.mxu0 0
        %2023 = vmatpush1.bf16.msra.mxu0 %v2000
        %2024 = vmatprep.subr.bf16.mxu0 0
        %2025 = vmatpush1.bf16.msra.mxu0 %v2001
        %2026 = vmatprep.subr.bf16.mxu0 0
        %2027 = vmatpush1.bf16.msra.mxu0 0
        %2028 = vmatprep.subr.bf16.mxu0 0
        %2029 = vmatpush1.bf16.msra.mxu0 0
        %2030 = vmatprep.subr.bf16.mxu0 0
        %2031 = vmatpush1.bf16.msra.mxu0 0
        %2032 = vmatprep.subr.bf16.mxu0 0
        %2033 = vmatpush1.bf16.msra.mxu0 0
        %2034 = vmatprep.subr.bf16.mxu0 0
        %2035 = vmatpush1.bf16.msra.mxu0 0
        %2036 = vmatprep.subr.bf16.mxu0 0
        %2037 = vmatpush1.bf16.msra.mxu0 0
        %2038 = vmatprep.subr.bf16.mxu0 0
        %2039 = vmatpush1.bf16.msra.mxu0 0
        %2040 = vmatprep.subr.bf16.mxu0 0
        %2041 = vmatpush1.bf16.msra.mxu0 0
        %2042 = vmatprep.mubr.bf16.mxu0 0
        %2043 = vmatmul.mubr.bf16.gmra.mrb[0].mxu0 %v1930
        %v2044 = vpop.f32.mrb[0].mxu0
        %v2045 = vadd.f32 0.0, %v2044
        %v2046 = vpop.f32.mrb[0].mxu0
        %v2047 = vpop.f32.mrb[0].mxu0
        %v2048 = vadd.f32 0.0, %v2047
        %v2049 = vpop.f32.mrb[0].mxu0
        %2050 = vmatprep.mubr.bf16.mxu0 0
        %2051 = vmatmul.mubr.bf16.gmra.mrb[0].mxu0 %v1931
        %v2052 = vpop.f32.mrb[0].mxu0
        %v2053 = vadd.f32 0.0, %v2052
        %v2054 = vpop.f32.mrb[0].mxu0
        %v2055 = vpop.f32.mrb[0].mxu0
        %v2056 = vadd.f32 0.0, %v2055
        %v2057 = vpop.f32.mrb[0].mxu0
        %2058 = vmatprep.mubr.bf16.mxu0 0
        %2059 = vmatmul.mubr.bf16.gmra.mrb[0].mxu0 %v1932
        %v2060 = vpop.f32.mrb[0].mxu0
        %v2061 = vadd.f32 0.0, %v2060
        %v2062 = vpop.f32.mrb[0].mxu0
        %v2063 = vpop.f32.mrb[0].mxu0
        %v2064 = vadd.f32 0.0, %v2063
        %v2065 = vpop.f32.mrb[0].mxu0
        %2066 = vmatprep.mubr.bf16.mxu0 0
        %2067 = vmatmul.mubr.bf16.gmra.mrb[0].mxu0 %v1933
        %v2068 = vpop.f32.mrb[0].mxu0
        %v2069 = vadd.f32 0.0, %v2068
        %v2070 = vpop.f32.mrb[0].mxu0
        %v2071 = vpop.f32.mrb[0].mxu0
        %v2072 = vadd.f32 0.0, %v2071
        %v2073 = vpop.f32.mrb[0].mxu0
        %2074 = vmatprep.mubr.bf16.mxu0 0
        %2075 = vmatmul.mubr.bf16.gmra.mrb[0].mxu0 %v1934
        %v2076 = vpop.f32.mrb[0].mxu0
        %v2077 = vadd.f32 0.0, %v2076
        %v2078 = vpop.f32.mrb[0].mxu0
        %v2079 = vpop.f32.mrb[0].mxu0
        %v2080 = vadd.f32 0.0, %v2079
        %v2081 = vpop.f32.mrb[0].mxu0
        %2082 = vmatprep.mubr.bf16.mxu0 0
        %2083 = vmatmul.mubr.bf16.gmra.mrb[0].mxu0 %v1935
        %v2084 = vpop.f32.mrb[0].mxu0
        %v2085 = vadd.f32 0.0, %v2084
        %v2086 = vpop.f32.mrb[0].mxu0
        %v2087 = vpop.f32.mrb[0].mxu0
        %v2088 = vadd.f32 0.0, %v2087
        %v2089 = vpop.f32.mrb[0].mxu0
        %2090 = vmatprep.mubr.bf16.mxu0 0
        %2091 = vmatmul.mubr.bf16.gmra.mrb[0].mxu0 %v1936
        %v2092 = vpop.f32.mrb[0].mxu0
        %v2093 = vadd.f32 0.0, %v2092
        %v2094 = vpop.f32.mrb[0].mxu0
        %v2095 = vpop.f32.mrb[0].mxu0
        %v2096 = vadd.f32 0.0, %v2095
        %v2097 = vpop.f32.mrb[0].mxu0
        %2098 = vmatprep.mubr.bf16.mxu0 0
        %2099 = vmatmul.mubr.bf16.gmra.mrb[0].mxu0 %v1937
        %v2100 = vpop.f32.mrb[0].mxu0
        %v2101 = vadd.f32 0.0, %v2100
        %v2102 = vpop.f32.mrb[0].mxu0
        %v2103 = vpop.f32.mrb[0].mxu0
        %v2104 = vadd.f32 0.0, %v2103
        %v2105 = vpop.f32.mrb[0].mxu0
        %2106 = vmatprep.mubr.bf16.mxu0 0
        %2107 = vmatmul.mubr.bf16.gmra.mrb[0].mxu0 %v1938
        %v2108 = vpop.f32.mrb[0].mxu0
        %v2109 = vadd.f32 0.0, %v2108
        %v2110 = vpop.f32.mrb[0].mxu0
        %v2111 = vpop.f32.mrb[0].mxu0
        %v2112 = vadd.f32 0.0, %v2111
        %v2113 = vpop.f32.mrb[0].mxu0
        %2114 = vmatprep.mubr.bf16.mxu0 0
        %2115 = vmatmul.mubr.bf16.gmra.mrb[0].mxu0 %v1939
        %v2116 = vpop.f32.mrb[0].mxu0
        %v2117 = vadd.f32 0.0, %v2116
        %v2118 = vpop.f32.mrb[0].mxu0
        %v2119 = vpop.f32.mrb[0].mxu0
        %v2120 = vadd.f32 0.0, %v2119
        %v2121 = vpop.f32.mrb[0].mxu0
        %2122 = vmatprep.mubr.bf16.mxu0 0
        %2123 = vmatmul.mubr.bf16.gmra.mrb[0].mxu0 %v1940
        %v2124 = vpop.f32.mrb[0].mxu0
        %v2125 = vadd.f32 0.0, %v2124
        %v2126 = vpop.f32.mrb[0].mxu0
        %v2127 = vpop.f32.mrb[0].mxu0
        %v2128 = vadd.f32 0.0, %v2127
        %v2129 = vpop.f32.mrb[0].mxu0
        %2130 = vmatprep.mubr.bf16.mxu0 0
        %2131 = vmatmul.mubr.bf16.gmra.mrb[0].mxu0 %v1941
        %v2132 = vpop.f32.mrb[0].mxu0
        %v2133 = vadd.f32 0.0, %v2132
        %v2134 = vpop.f32.mrb[0].mxu0
        %v2135 = vpop.f32.mrb[0].mxu0
        %v2136 = vadd.f32 0.0, %v2135
        %v2137 = vpop.f32.mrb[0].mxu0
        %2138 = vmatprep.mubr.bf16.mxu0 0
        %2139 = vmatmul.mubr.bf16.gmra.mrb[0].mxu0 %v1942
        %v2140 = vpop.f32.mrb[0].mxu0
        %v2141 = vadd.f32 0.0, %v2140
        %v2142 = vpop.f32.mrb[0].mxu0
        %v2143 = vpop.f32.mrb[0].mxu0
        %v2144 = vadd.f32 0.0, %v2143
        %v2145 = vpop.f32.mrb[0].mxu0
        %2146 = vmatprep.mubr.bf16.mxu0 0
        %2147 = vmatmul.mubr.bf16.gmra.mrb[0].mxu0 %v1943
        %v2148 = vpop.f32.mrb[0].mxu0
        %v2149 = vadd.f32 0.0, %v2148
        %v2150 = vpop.f32.mrb[0].mxu0
        %v2151 = vpop.f32.mrb[0].mxu0
        %v2152 = vadd.f32 0.0, %v2151
        %v2153 = vpop.f32.mrb[0].mxu0
        %2154 = vmatprep.mubr.bf16.mxu0 0
        %2155 = vmatmul.mubr.bf16.gmra.mrb[0].mxu0 %v1944
        %v2156 = vpop.f32.mrb[0].mxu0
        %v2157 = vadd.f32 0.0, %v2156
        %v2158 = vpop.f32.mrb[0].mxu0
        %v2159 = vpop.f32.mrb[0].mxu0
        %v2160 = vadd.f32 0.0, %v2159
        %v2161 = vpop.f32.mrb[0].mxu0
        %2162 = vmatprep.mubr.bf16.mxu0 0
        %2163 = vmatmul.mubr.bf16.gmra.mrb[0].mxu0 %v1945
        %v2164 = vpop.f32.mrb[0].mxu0
        %v2165 = vadd.f32 0.0, %v2164
        %v2166 = vpop.f32.mrb[0].mxu0
        %v2167 = vpop.f32.mrb[0].mxu0
        %v2168 = vadd.f32 0.0, %v2167
        %v2169 = vpop.f32.mrb[0].mxu0
        %2170 = vdwg.mxu0
        %v2171 = vadd.f32 %v1784, %v2045
        %v2172 = vadd.f32 %v1785, %v2048
        %v2173 = vadd.f32 %v1786, %v2053
        %v2174 = vadd.f32 %v1787, %v2056
        %v2175 = vadd.f32 %v1788, %v2061
        %v2176 = vadd.f32 %v1789, %v2064
        %v2177 = vadd.f32 %v1790, %v2069
        %v2178 = vadd.f32 %v1791, %v2072
        %v2179 = vadd.f32 %v1792, %v2077
        %v2180 = vadd.f32 %v1793, %v2080
        %v2181 = vadd.f32 %v1794, %v2085
        %v2182 = vadd.f32 %v1795, %v2088
        %v2183 = vadd.f32 %v1796, %v2093
        %v2184 = vadd.f32 %v1797, %v2096
        %v2185 = vadd.f32 %v1798, %v2101
        %v2186 = vadd.f32 %v1799, %v2104
        %v2187 = vadd.f32 %v1800, %v2109
        %v2188 = vadd.f32 %v1801, %v2112
        %v2189 = vadd.f32 %v1802, %v2117
        %v2190 = vadd.f32 %v1803, %v2120
        %v2191 = vadd.f32 %v1804, %v2125
        %v2192 = vadd.f32 %v1805, %v2128
        %v2193 = vadd.f32 %v1806, %v2133
        %v2194 = vadd.f32 %v1807, %v2136
        %v2195 = vadd.f32 %v1808, %v2141
        %v2196 = vadd.f32 %v1809, %v2144
        %v2197 = vadd.f32 %v1810, %v2149
        %v2198 = vadd.f32 %v1811, %v2152
        %v2199 = vadd.f32 %v1812, %v2157
        %v2200 = vadd.f32 %v1813, %v2160
        %v2201 = vadd.f32 %v1814, %v2165
        %v2202 = vadd.f32 %v1815, %v2168
        %v2203 = vld [vmem:[%s1816] sm:$0xf]
        %v2204 = vld [vmem:[%s1816 + $0x4] sm:$0xf]
        %v2205 = vld [vmem:[%s1816 + $0x8] sm:$0x1]
        %v2206 = vld [vmem:[%s1816 + $0xc] sm:$0xf]
        %v2207 = vld [vmem:[%s1816 + $0x10] sm:$0xf]
        %v2208 = vld [vmem:[%s1816 + $0x14] sm:$0x1]
        %v2209 = vld [vmem:[%s1816 + $0x18] sm:$0xf]
        %v2210 = vld [vmem:[%s1816 + $0x1c] sm:$0xf]
        %v2211 = vld [vmem:[%s1816 + $0x20] sm:$0x1]
        %v2212 = vld [vmem:[%s1816 + $0x24] sm:$0xf]
        %v2213 = vld [vmem:[%s1816 + $0x28] sm:$0xf]
        %v2214 = vld [vmem:[%s1816 + $0x2c] sm:$0x1]
        %v2215 = vld [vmem:[%s1816 + $0x30] sm:$0xf]
        %v2216 = vld [vmem:[%s1816 + $0x34] sm:$0xf]
        %v2217 = vld [vmem:[%s1816 + $0x38] sm:$0x1]
        %v2218 = vld [vmem:[%s1816 + $0x3c] sm:$0xf]
        %v2219 = vld [vmem:[%s1816 + $0x40] sm:$0xf]
        %v2220 = vld [vmem:[%s1816 + $0x44] sm:$0x1]
        %v2221 = vld [vmem:[%s1816 + $0x48] sm:$0xf]
        %v2222 = vld [vmem:[%s1816 + $0x4c] sm:$0xf]
        %v2223 = vld [vmem:[%s1816 + $0x50] sm:$0x1]
        %v2224 = vld [vmem:[%s1816 + $0x54] sm:$0xf]
        %v2225 = vld [vmem:[%s1816 + $0x58] sm:$0xf]
        %v2226 = vld [vmem:[%s1816 + $0x5c] sm:$0x1]
        %v2227 = vld [vmem:[%s1816 + $0x60] sm:$0xf]
        %v2228 = vld [vmem:[%s1816 + $0x64] sm:$0xf]
        %v2229 = vld [vmem:[%s1816 + $0x68] sm:$0x1]
        %v2230 = vld [vmem:[%s1816 + $0x6c] sm:$0xf]
        %v2231 = vld [vmem:[%s1816 + $0x70] sm:$0xf]
        %v2232 = vld [vmem:[%s1816 + $0x74] sm:$0x1]
        %v2233 = vld [vmem:[%s1816 + $0x78] sm:$0xf]
        %v2234 = vld [vmem:[%s1816 + $0x7c] sm:$0xf]
        %v2235 = vld [vmem:[%s1816 + $0x80] sm:$0x1]
        %v2236 = vld [vmem:[%s1816 + $0x84] sm:$0xf]
        %v2237 = vld [vmem:[%s1816 + $0x88] sm:$0xf]
        %v2238 = vld [vmem:[%s1816 + $0x8c] sm:$0x1]
        %v2239 = vld [vmem:[%s1816 + $0x90] sm:$0xf]
        %v2240 = vld [vmem:[%s1816 + $0x94] sm:$0xf]
        %v2241 = vld [vmem:[%s1816 + $0x98] sm:$0x1]
        %v2242 = vld [vmem:[%s1816 + $0x9c] sm:$0xf]
        %v2243 = vld [vmem:[%s1816 + $0xa0] sm:$0xf]
        %v2244 = vld [vmem:[%s1816 + $0xa4] sm:$0x1]
        %v2245 = vld [vmem:[%s1816 + $0xa8] sm:$0xf]
        %v2246 = vld [vmem:[%s1816 + $0xac] sm:$0xf]
        %v2247 = vld [vmem:[%s1816 + $0xb0] sm:$0x1]
        %v2248 = vld [vmem:[%s1816 + $0xb4] sm:$0xf]
        %v2249 = vld [vmem:[%s1816 + $0xb8] sm:$0xf]
        %v2250 = vld [vmem:[%s1816 + $0xbc] sm:$0x1]
        %v2252 = vshrl.u32 %v2203, 16
        %v2254 = vrot.slane %v2252, 4
        %v2255 = vshll.u32 %v2203, 16
        %v2257 = vrot.slane %v2255, 5
        %v2258 = vor.u32 %v2254, %v2257
        %v2259 = vrot.slane %v2258, 4
        %v2261 = vshll.u32 %v2204, 16
        %v2263 = vrot.slane %v2261, 5
        %v2264 = vsel %vm351, %v2259, %v2263
        %v2265 = vshrl.u32 %v2204, 16
        %v2267 = vrot.slane %v2265, 4
        %v2268 = vor.u32 %v2267, %v2263
        %v2269 = vrot.slane %v2268, 4
        %v2271 = vshll.u32 %v2205, 16
        %v2273 = vrot.slane %v2271, 5
        %v2274 = vsel %vm351, %v2269, %v2273
        %v2276 = vshrl.u32 %v2206, 16
        %v2278 = vrot.slane %v2276, 4
        %v2279 = vshll.u32 %v2206, 16
        %v2281 = vrot.slane %v2279, 5
        %v2282 = vor.u32 %v2278, %v2281
        %v2283 = vrot.slane %v2282, 4
        %v2285 = vshll.u32 %v2207, 16
        %v2287 = vrot.slane %v2285, 5
        %v2288 = vsel %vm351, %v2283, %v2287
        %v2289 = vshrl.u32 %v2207, 16
        %v2291 = vrot.slane %v2289, 4
        %v2292 = vor.u32 %v2291, %v2287
        %v2293 = vrot.slane %v2292, 4
        %v2295 = vshll.u32 %v2208, 16
        %v2297 = vrot.slane %v2295, 5
        %v2298 = vsel %vm351, %v2293, %v2297
        %v2300 = vshrl.u32 %v2209, 16
        %v2302 = vrot.slane %v2300, 4
        %v2303 = vshll.u32 %v2209, 16
        %v2305 = vrot.slane %v2303, 5
        %v2306 = vor.u32 %v2302, %v2305
        %v2307 = vrot.slane %v2306, 4
        %v2309 = vshll.u32 %v2210, 16
        %v2311 = vrot.slane %v2309, 5
        %v2312 = vsel %vm351, %v2307, %v2311
        %v2313 = vshrl.u32 %v2210, 16
        %v2315 = vrot.slane %v2313, 4
        %v2316 = vor.u32 %v2315, %v2311
        %v2317 = vrot.slane %v2316, 4
        %v2319 = vshll.u32 %v2211, 16
        %v2321 = vrot.slane %v2319, 5
        %v2322 = vsel %vm351, %v2317, %v2321
        %v2324 = vshrl.u32 %v2212, 16
        %v2326 = vrot.slane %v2324, 4
        %v2327 = vshll.u32 %v2212, 16
        %v2329 = vrot.slane %v2327, 5
        %v2330 = vor.u32 %v2326, %v2329
        %v2331 = vrot.slane %v2330, 4
        %v2333 = vshll.u32 %v2213, 16
        %v2335 = vrot.slane %v2333, 5
        %v2336 = vsel %vm351, %v2331, %v2335
        %v2337 = vshrl.u32 %v2213, 16
        %v2339 = vrot.slane %v2337, 4
        %v2340 = vor.u32 %v2339, %v2335
        %v2341 = vrot.slane %v2340, 4
        %v2343 = vshll.u32 %v2214, 16
        %v2345 = vrot.slane %v2343, 5
        %v2346 = vsel %vm351, %v2341, %v2345
        %v2348 = vshrl.u32 %v2215, 16
        %v2350 = vrot.slane %v2348, 4
        %v2351 = vshll.u32 %v2215, 16
        %v2353 = vrot.slane %v2351, 5
        %v2354 = vor.u32 %v2350, %v2353
        %v2355 = vrot.slane %v2354, 4
        %v2357 = vshll.u32 %v2216, 16
        %v2359 = vrot.slane %v2357, 5
        %v2360 = vsel %vm351, %v2355, %v2359
        %v2361 = vshrl.u32 %v2216, 16
        %v2363 = vrot.slane %v2361, 4
        %v2364 = vor.u32 %v2363, %v2359
        %v2365 = vrot.slane %v2364, 4
        %v2367 = vshll.u32 %v2217, 16
        %v2369 = vrot.slane %v2367, 5
        %v2370 = vsel %vm351, %v2365, %v2369
        %v2372 = vshrl.u32 %v2218, 16
        %v2374 = vrot.slane %v2372, 4
        %v2375 = vshll.u32 %v2218, 16
        %v2377 = vrot.slane %v2375, 5
        %v2378 = vor.u32 %v2374, %v2377
        %v2379 = vrot.slane %v2378, 4
        %v2381 = vshll.u32 %v2219, 16
        %v2383 = vrot.slane %v2381, 5
        %v2384 = vsel %vm351, %v2379, %v2383
        %v2385 = vshrl.u32 %v2219, 16
        %v2387 = vrot.slane %v2385, 4
        %v2388 = vor.u32 %v2387, %v2383
        %v2389 = vrot.slane %v2388, 4
        %v2391 = vshll.u32 %v2220, 16
        %v2393 = vrot.slane %v2391, 5
        %v2394 = vsel %vm351, %v2389, %v2393
        %v2396 = vshrl.u32 %v2221, 16
        %v2398 = vrot.slane %v2396, 4
        %v2399 = vshll.u32 %v2221, 16
        %v2401 = vrot.slane %v2399, 5
        %v2402 = vor.u32 %v2398, %v2401
        %v2403 = vrot.slane %v2402, 4
        %v2405 = vshll.u32 %v2222, 16
        %v2407 = vrot.slane %v2405, 5
        %v2408 = vsel %vm351, %v2403, %v2407
        %v2409 = vshrl.u32 %v2222, 16
        %v2411 = vrot.slane %v2409, 4
        %v2412 = vor.u32 %v2411, %v2407
        %v2413 = vrot.slane %v2412, 4
        %v2415 = vshll.u32 %v2223, 16
        %v2417 = vrot.slane %v2415, 5
        %v2418 = vsel %vm351, %v2413, %v2417
        %v2420 = vshrl.u32 %v2224, 16
        %v2422 = vrot.slane %v2420, 4
        %v2423 = vshll.u32 %v2224, 16
        %v2425 = vrot.slane %v2423, 5
        %v2426 = vor.u32 %v2422, %v2425
        %v2427 = vrot.slane %v2426, 4
        %v2429 = vshll.u32 %v2225, 16
        %v2431 = vrot.slane %v2429, 5
        %v2432 = vsel %vm351, %v2427, %v2431
        %v2433 = vshrl.u32 %v2225, 16
        %v2435 = vrot.slane %v2433, 4
        %v2436 = vor.u32 %v2435, %v2431
        %v2437 = vrot.slane %v2436, 4
        %v2439 = vshll.u32 %v2226, 16
        %v2441 = vrot.slane %v2439, 5
        %v2442 = vsel %vm351, %v2437, %v2441
        %v2444 = vshrl.u32 %v2227, 16
        %v2446 = vrot.slane %v2444, 4
        %v2447 = vshll.u32 %v2227, 16
        %v2449 = vrot.slane %v2447, 5
        %v2450 = vor.u32 %v2446, %v2449
        %v2451 = vrot.slane %v2450, 4
        %v2453 = vshll.u32 %v2228, 16
        %v2455 = vrot.slane %v2453, 5
        %v2456 = vsel %vm351, %v2451, %v2455
        %v2457 = vshrl.u32 %v2228, 16
        %v2459 = vrot.slane %v2457, 4
        %v2460 = vor.u32 %v2459, %v2455
        %v2461 = vrot.slane %v2460, 4
        %v2463 = vshll.u32 %v2229, 16
        %v2465 = vrot.slane %v2463, 5
        %v2466 = vsel %vm351, %v2461, %v2465
        %v2468 = vshrl.u32 %v2230, 16
        %v2470 = vrot.slane %v2468, 4
        %v2471 = vshll.u32 %v2230, 16
        %v2473 = vrot.slane %v2471, 5
        %v2474 = vor.u32 %v2470, %v2473
        %v2475 = vrot.slane %v2474, 4
        %v2477 = vshll.u32 %v2231, 16
        %v2479 = vrot.slane %v2477, 5
        %v2480 = vsel %vm351, %v2475, %v2479
        %v2481 = vshrl.u32 %v2231, 16
        %v2483 = vrot.slane %v2481, 4
        %v2484 = vor.u32 %v2483, %v2479
        %v2485 = vrot.slane %v2484, 4
        %v2487 = vshll.u32 %v2232, 16
        %v2489 = vrot.slane %v2487, 5
        %v2490 = vsel %vm351, %v2485, %v2489
        %v2492 = vshrl.u32 %v2233, 16
        %v2494 = vrot.slane %v2492, 4
        %v2495 = vshll.u32 %v2233, 16
        %v2497 = vrot.slane %v2495, 5
        %v2498 = vor.u32 %v2494, %v2497
        %v2499 = vrot.slane %v2498, 4
        %v2501 = vshll.u32 %v2234, 16
        %v2503 = vrot.slane %v2501, 5
        %v2504 = vsel %vm351, %v2499, %v2503
        %v2505 = vshrl.u32 %v2234, 16
        %v2507 = vrot.slane %v2505, 4
        %v2508 = vor.u32 %v2507, %v2503
        %v2509 = vrot.slane %v2508, 4
        %v2511 = vshll.u32 %v2235, 16
        %v2513 = vrot.slane %v2511, 5
        %v2514 = vsel %vm351, %v2509, %v2513
        %v2516 = vshrl.u32 %v2236, 16
        %v2518 = vrot.slane %v2516, 4
        %v2519 = vshll.u32 %v2236, 16
        %v2521 = vrot.slane %v2519, 5
        %v2522 = vor.u32 %v2518, %v2521
        %v2523 = vrot.slane %v2522, 4
        %v2525 = vshll.u32 %v2237, 16
        %v2527 = vrot.slane %v2525, 5
        %v2528 = vsel %vm351, %v2523, %v2527
        %v2529 = vshrl.u32 %v2237, 16
        %v2531 = vrot.slane %v2529, 4
        %v2532 = vor.u32 %v2531, %v2527
        %v2533 = vrot.slane %v2532, 4
        %v2535 = vshll.u32 %v2238, 16
        %v2537 = vrot.slane %v2535, 5
        %v2538 = vsel %vm351, %v2533, %v2537
        %v2540 = vshrl.u32 %v2239, 16
        %v2542 = vrot.slane %v2540, 4
        %v2543 = vshll.u32 %v2239, 16
        %v2545 = vrot.slane %v2543, 5
        %v2546 = vor.u32 %v2542, %v2545
        %v2547 = vrot.slane %v2546, 4
        %v2549 = vshll.u32 %v2240, 16
        %v2551 = vrot.slane %v2549, 5
        %v2552 = vsel %vm351, %v2547, %v2551
        %v2553 = vshrl.u32 %v2240, 16
        %v2555 = vrot.slane %v2553, 4
        %v2556 = vor.u32 %v2555, %v2551
        %v2557 = vrot.slane %v2556, 4
        %v2559 = vshll.u32 %v2241, 16
        %v2561 = vrot.slane %v2559, 5
        %v2562 = vsel %vm351, %v2557, %v2561
        %v2564 = vshrl.u32 %v2242, 16
        %v2566 = vrot.slane %v2564, 4
        %v2567 = vshll.u32 %v2242, 16
        %v2569 = vrot.slane %v2567, 5
        %v2570 = vor.u32 %v2566, %v2569
        %v2571 = vrot.slane %v2570, 4
        %v2573 = vshll.u32 %v2243, 16
        %v2575 = vrot.slane %v2573, 5
        %v2576 = vsel %vm351, %v2571, %v2575
        %v2577 = vshrl.u32 %v2243, 16
        %v2579 = vrot.slane %v2577, 4
        %v2580 = vor.u32 %v2579, %v2575
        %v2581 = vrot.slane %v2580, 4
        %v2583 = vshll.u32 %v2244, 16
        %v2585 = vrot.slane %v2583, 5
        %v2586 = vsel %vm351, %v2581, %v2585
        %v2588 = vshrl.u32 %v2245, 16
        %v2590 = vrot.slane %v2588, 4
        %v2591 = vshll.u32 %v2245, 16
        %v2593 = vrot.slane %v2591, 5
        %v2594 = vor.u32 %v2590, %v2593
        %v2595 = vrot.slane %v2594, 4
        %v2597 = vshll.u32 %v2246, 16
        %v2599 = vrot.slane %v2597, 5
        %v2600 = vsel %vm351, %v2595, %v2599
        %v2601 = vshrl.u32 %v2246, 16
        %v2603 = vrot.slane %v2601, 4
        %v2604 = vor.u32 %v2603, %v2599
        %v2605 = vrot.slane %v2604, 4
        %v2607 = vshll.u32 %v2247, 16
        %v2609 = vrot.slane %v2607, 5
        %v2610 = vsel %vm351, %v2605, %v2609
        %v2612 = vshrl.u32 %v2248, 16
        %v2614 = vrot.slane %v2612, 4
        %v2615 = vshll.u32 %v2248, 16
        %v2617 = vrot.slane %v2615, 5
        %v2618 = vor.u32 %v2614, %v2617
        %v2619 = vrot.slane %v2618, 4
        %v2621 = vshll.u32 %v2249, 16
        %v2623 = vrot.slane %v2621, 5
        %v2624 = vsel %vm351, %v2619, %v2623
        %v2625 = vshrl.u32 %v2249, 16
        %v2627 = vrot.slane %v2625, 4
        %v2628 = vor.u32 %v2627, %v2623
        %v2629 = vrot.slane %v2628, 4
        %v2631 = vshll.u32 %v2250, 16
        %v2633 = vrot.slane %v2631, 5
        %v2634 = vsel %vm351, %v2629, %v2633
        %s2635 = scalar_lea.vmem %s1, 256
        %v2636 = vld [vmem:[%s2635] sm:$0xf]
        %v2637 = vld [vmem:[%s2635 + $0x4] sm:$0xf]
        %v2638 = vld [vmem:[%s2635 + $0x8] sm:$0xf]
        %v2639 = vld [vmem:[%s2635 + $0xc] sm:$0xf]
        %v2640 = vld [vmem:[%s2635 + $0x10] sm:$0xf]
        %v2641 = vld [vmem:[%s2635 + $0x14] sm:$0xf]
        %v2642 = vld [vmem:[%s2635 + $0x18] sm:$0xf]
        %v2643 = vld [vmem:[%s2635 + $0x1c] sm:$0xf]
        %v2644 = vld [vmem:[%s2635 + $0x20] sm:$0xf]
        %v2645 = vld [vmem:[%s2635 + $0x24] sm:$0xf]
        %v2646 = vld [vmem:[%s2635 + $0x28] sm:$0xf]
        %v2647 = vld [vmem:[%s2635 + $0x2c] sm:$0xf]
        %v2648 = vld [vmem:[%s2635 + $0x30] sm:$0xf]
        %v2649 = vld [vmem:[%s2635 + $0x34] sm:$0xf]
        %v2650 = vld [vmem:[%s2635 + $0x38] sm:$0xf]
        %v2651 = vld [vmem:[%s2635 + $0x3c] sm:$0xf]
        %v2652 = vunpack.c.l.b16 %v2264
        %v2653 = vunpack.c.l.b16 %v2274
        %v2654 = vunpack.c.l.b16 %v2288
        %v2655 = vunpack.c.l.b16 %v2298
        %v2656 = vunpack.c.l.b16 %v2312
        %v2657 = vunpack.c.l.b16 %v2322
        %v2658 = vunpack.c.l.b16 %v2336
        %v2659 = vunpack.c.l.b16 %v2346
        %v2660 = vunpack.c.l.b16 %v2360
        %v2661 = vunpack.c.l.b16 %v2370
        %v2662 = vunpack.c.l.b16 %v2384
        %v2663 = vunpack.c.l.b16 %v2394
        %v2664 = vunpack.c.l.b16 %v2408
        %v2665 = vunpack.c.l.b16 %v2418
        %v2666 = vunpack.c.l.b16 %v2432
        %v2667 = vunpack.c.l.b16 %v2442
        %v2668 = vunpack.c.l.b16 %v2456
        %v2669 = vunpack.c.l.b16 %v2466
        %v2670 = vunpack.c.l.b16 %v2480
        %v2671 = vunpack.c.l.b16 %v2490
        %v2672 = vunpack.c.l.b16 %v2504
        %v2673 = vunpack.c.l.b16 %v2514
        %v2674 = vunpack.c.l.b16 %v2528
        %v2675 = vunpack.c.l.b16 %v2538
        %v2676 = vunpack.c.l.b16 %v2552
        %v2677 = vunpack.c.l.b16 %v2562
        %v2678 = vunpack.c.l.b16 %v2576
        %v2679 = vunpack.c.l.b16 %v2586
        %v2680 = vunpack.c.l.b16 %v2600
        %v2681 = vunpack.c.l.b16 %v2610
        %v2682 = vunpack.c.l.b16 %v2624
        %v2683 = vunpack.c.l.b16 %v2634
        %v2684 = vpack.c.b16 %v2653, %v2652
        %v2685 = vpack.c.b16 %v2655, %v2654
        %v2686 = vpack.c.b16 %v2657, %v2656
        %v2687 = vpack.c.b16 %v2659, %v2658
        %v2688 = vpack.c.b16 %v2661, %v2660
        %v2689 = vpack.c.b16 %v2663, %v2662
        %v2690 = vpack.c.b16 %v2665, %v2664
        %v2691 = vpack.c.b16 %v2667, %v2666
        %v2692 = vpack.c.b16 %v2669, %v2668
        %v2693 = vpack.c.b16 %v2671, %v2670
        %v2694 = vpack.c.b16 %v2673, %v2672
        %v2695 = vpack.c.b16 %v2675, %v2674
        %v2696 = vpack.c.b16 %v2677, %v2676
        %v2697 = vpack.c.b16 %v2679, %v2678
        %v2698 = vpack.c.b16 %v2681, %v2680
        %v2699 = vpack.c.b16 %v2683, %v2682
        %v2732 = vunpack.c.l.b16 %v2636
        %v2733 = vunpack.c.l.b16 %v2637
        %v2734 = vunpack.c.l.b16 %v2638
        %v2735 = vunpack.c.l.b16 %v2639
        %v2736 = vunpack.c.l.b16 %v2640
        %v2737 = vunpack.c.l.b16 %v2641
        %v2738 = vunpack.c.l.b16 %v2642
        %v2739 = vunpack.c.l.b16 %v2643
        %v2740 = vunpack.c.l.b16 %v2644
        %v2741 = vunpack.c.l.b16 %v2645
        %v2742 = vunpack.c.l.b16 %v2646
        %v2743 = vunpack.c.l.b16 %v2647
        %v2744 = vunpack.c.l.b16 %v2648
        %v2745 = vunpack.c.l.b16 %v2649
        %v2746 = vunpack.c.l.b16 %v2650
        %v2747 = vunpack.c.l.b16 %v2651
        %v2748 = vpack.c.b16 %v2733, %v2732
        %v2749 = vpack.c.b16 %v2735, %v2734
        %v2750 = vpack.c.b16 %v2737, %v2736
        %v2751 = vpack.c.b16 %v2739, %v2738
        %v2752 = vpack.c.b16 %v2741, %v2740
        %v2753 = vpack.c.b16 %v2743, %v2742
        %v2754 = vpack.c.b16 %v2745, %v2744
        %v2755 = vpack.c.b16 %v2747, %v2746
        %2764 = vmatprep.subr.bf16.mxu0 0
        %2765 = vmatpush1.bf16.msra.mxu0 %v2748
        %2766 = vmatprep.subr.bf16.mxu0 0
        %2767 = vmatpush1.bf16.msra.mxu0 %v2749
        %2768 = vmatprep.subr.bf16.mxu0 0
        %2769 = vmatpush1.bf16.msra.mxu0 %v2750
        %2770 = vmatprep.subr.bf16.mxu0 0
        %2771 = vmatpush1.bf16.msra.mxu0 %v2751
        %2772 = vmatprep.subr.bf16.mxu0 0
        %2773 = vmatpush1.bf16.msra.mxu0 %v2752
        %2774 = vmatprep.subr.bf16.mxu0 0
        %2775 = vmatpush1.bf16.msra.mxu0 %v2753
        %2776 = vmatprep.subr.bf16.mxu0 0
        %2777 = vmatpush1.bf16.msra.mxu0 %v2754
        %2778 = vmatprep.subr.bf16.mxu0 0
        %2779 = vmatpush1.bf16.msra.mxu0 %v2755
        %2780 = vmatprep.subr.bf16.mxu0 0
        %2781 = vmatpush1.bf16.msra.mxu0 0
        %2782 = vmatprep.subr.bf16.mxu0 0
        %2783 = vmatpush1.bf16.msra.mxu0 0
        %2784 = vmatprep.subr.bf16.mxu0 0
        %2785 = vmatpush1.bf16.msra.mxu0 0
        %2786 = vmatprep.subr.bf16.mxu0 0
        %2787 = vmatpush1.bf16.msra.mxu0 0
        %2788 = vmatprep.subr.bf16.mxu0 0
        %2789 = vmatpush1.bf16.msra.mxu0 0
        %2790 = vmatprep.subr.bf16.mxu0 0
        %2791 = vmatpush1.bf16.msra.mxu0 0
        %2792 = vmatprep.subr.bf16.mxu0 0
        %2793 = vmatpush1.bf16.msra.mxu0 0
        %2794 = vmatprep.subr.bf16.mxu0 0
        %2795 = vmatpush1.bf16.msra.mxu0 0
        %2796 = vmatprep.mubr.bf16.mxu0 0
        %2797 = vmatmul.mubr.bf16.gmra.mrb[0].mxu0 %v2684
        %v2798 = vpop.f32.mrb[0].mxu0
        %v2799 = vadd.f32 0.0, %v2798
        %v2800 = vpop.f32.mrb[0].mxu0
        %v2801 = vpop.f32.mrb[0].mxu0
        %v2802 = vadd.f32 0.0, %v2801
        %v2803 = vpop.f32.mrb[0].mxu0
        %2804 = vmatprep.mubr.bf16.mxu0 0
        %2805 = vmatmul.mubr.bf16.gmra.mrb[0].mxu0 %v2685
        %v2806 = vpop.f32.mrb[0].mxu0
        %v2807 = vadd.f32 0.0, %v2806
        %v2808 = vpop.f32.mrb[0].mxu0
        %v2809 = vpop.f32.mrb[0].mxu0
        %v2810 = vadd.f32 0.0, %v2809
        %v2811 = vpop.f32.mrb[0].mxu0
        %2812 = vmatprep.mubr.bf16.mxu0 0
        %2813 = vmatmul.mubr.bf16.gmra.mrb[0].mxu0 %v2686
        %v2814 = vpop.f32.mrb[0].mxu0
        %v2815 = vadd.f32 0.0, %v2814
        %v2816 = vpop.f32.mrb[0].mxu0
        %v2817 = vpop.f32.mrb[0].mxu0
        %v2818 = vadd.f32 0.0, %v2817
        %v2819 = vpop.f32.mrb[0].mxu0
        %2820 = vmatprep.mubr.bf16.mxu0 0
        %2821 = vmatmul.mubr.bf16.gmra.mrb[0].mxu0 %v2687
        %v2822 = vpop.f32.mrb[0].mxu0
        %v2823 = vadd.f32 0.0, %v2822
        %v2824 = vpop.f32.mrb[0].mxu0
        %v2825 = vpop.f32.mrb[0].mxu0
        %v2826 = vadd.f32 0.0, %v2825
        %v2827 = vpop.f32.mrb[0].mxu0
        %2828 = vmatprep.mubr.bf16.mxu0 0
        %2829 = vmatmul.mubr.bf16.gmra.mrb[0].mxu0 %v2688
        %v2830 = vpop.f32.mrb[0].mxu0
        %v2831 = vadd.f32 0.0, %v2830
        %v2832 = vpop.f32.mrb[0].mxu0
        %v2833 = vpop.f32.mrb[0].mxu0
        %v2834 = vadd.f32 0.0, %v2833
        %v2835 = vpop.f32.mrb[0].mxu0
        %2836 = vmatprep.mubr.bf16.mxu0 0
        %2837 = vmatmul.mubr.bf16.gmra.mrb[0].mxu0 %v2689
        %v2838 = vpop.f32.mrb[0].mxu0
        %v2839 = vadd.f32 0.0, %v2838
        %v2840 = vpop.f32.mrb[0].mxu0
        %v2841 = vpop.f32.mrb[0].mxu0
        %v2842 = vadd.f32 0.0, %v2841
        %v2843 = vpop.f32.mrb[0].mxu0
        %2844 = vmatprep.mubr.bf16.mxu0 0
        %2845 = vmatmul.mubr.bf16.gmra.mrb[0].mxu0 %v2690
        %v2846 = vpop.f32.mrb[0].mxu0
        %v2847 = vadd.f32 0.0, %v2846
        %v2848 = vpop.f32.mrb[0].mxu0
        %v2849 = vpop.f32.mrb[0].mxu0
        %v2850 = vadd.f32 0.0, %v2849
        %v2851 = vpop.f32.mrb[0].mxu0
        %2852 = vmatprep.mubr.bf16.mxu0 0
        %2853 = vmatmul.mubr.bf16.gmra.mrb[0].mxu0 %v2691
        %v2854 = vpop.f32.mrb[0].mxu0
        %v2855 = vadd.f32 0.0, %v2854
        %v2856 = vpop.f32.mrb[0].mxu0
        %v2857 = vpop.f32.mrb[0].mxu0
        %v2858 = vadd.f32 0.0, %v2857
        %v2859 = vpop.f32.mrb[0].mxu0
        %2860 = vmatprep.mubr.bf16.mxu0 0
        %2861 = vmatmul.mubr.bf16.gmra.mrb[0].mxu0 %v2692
        %v2862 = vpop.f32.mrb[0].mxu0
        %v2863 = vadd.f32 0.0, %v2862
        %v2864 = vpop.f32.mrb[0].mxu0
        %v2865 = vpop.f32.mrb[0].mxu0
        %v2866 = vadd.f32 0.0, %v2865
        %v2867 = vpop.f32.mrb[0].mxu0
        %2868 = vmatprep.mubr.bf16.mxu0 0
        %2869 = vmatmul.mubr.bf16.gmra.mrb[0].mxu0 %v2693
        %v2870 = vpop.f32.mrb[0].mxu0
        %v2871 = vadd.f32 0.0, %v2870
        %v2872 = vpop.f32.mrb[0].mxu0
        %v2873 = vpop.f32.mrb[0].mxu0
        %v2874 = vadd.f32 0.0, %v2873
        %v2875 = vpop.f32.mrb[0].mxu0
        %2876 = vmatprep.mubr.bf16.mxu0 0
        %2877 = vmatmul.mubr.bf16.gmra.mrb[0].mxu0 %v2694
        %v2878 = vpop.f32.mrb[0].mxu0
        %v2879 = vadd.f32 0.0, %v2878
        %v2880 = vpop.f32.mrb[0].mxu0
        %v2881 = vpop.f32.mrb[0].mxu0
        %v2882 = vadd.f32 0.0, %v2881
        %v2883 = vpop.f32.mrb[0].mxu0
        %2884 = vmatprep.mubr.bf16.mxu0 0
        %2885 = vmatmul.mubr.bf16.gmra.mrb[0].mxu0 %v2695
        %v2886 = vpop.f32.mrb[0].mxu0
        %v2887 = vadd.f32 0.0, %v2886
        %v2888 = vpop.f32.mrb[0].mxu0
        %v2889 = vpop.f32.mrb[0].mxu0
        %v2890 = vadd.f32 0.0, %v2889
        %v2891 = vpop.f32.mrb[0].mxu0
        %2892 = vmatprep.mubr.bf16.mxu0 0
        %2893 = vmatmul.mubr.bf16.gmra.mrb[0].mxu0 %v2696
        %v2894 = vpop.f32.mrb[0].mxu0
        %v2895 = vadd.f32 0.0, %v2894
        %v2896 = vpop.f32.mrb[0].mxu0
        %v2897 = vpop.f32.mrb[0].mxu0
        %v2898 = vadd.f32 0.0, %v2897
        %v2899 = vpop.f32.mrb[0].mxu0
        %2900 = vmatprep.mubr.bf16.mxu0 0
        %2901 = vmatmul.mubr.bf16.gmra.mrb[0].mxu0 %v2697
        %v2902 = vpop.f32.mrb[0].mxu0
        %v2903 = vadd.f32 0.0, %v2902
        %v2904 = vpop.f32.mrb[0].mxu0
        %v2905 = vpop.f32.mrb[0].mxu0
        %v2906 = vadd.f32 0.0, %v2905
        %v2907 = vpop.f32.mrb[0].mxu0
        %2908 = vmatprep.mubr.bf16.mxu0 0
        %2909 = vmatmul.mubr.bf16.gmra.mrb[0].mxu0 %v2698
        %v2910 = vpop.f32.mrb[0].mxu0
        %v2911 = vadd.f32 0.0, %v2910
        %v2912 = vpop.f32.mrb[0].mxu0
        %v2913 = vpop.f32.mrb[0].mxu0
        %v2914 = vadd.f32 0.0, %v2913
        %v2915 = vpop.f32.mrb[0].mxu0
        %2916 = vmatprep.mubr.bf16.mxu0 0
        %2917 = vmatmul.mubr.bf16.gmra.mrb[0].mxu0 %v2699
        %v2918 = vpop.f32.mrb[0].mxu0
        %v2919 = vadd.f32 0.0, %v2918
        %v2920 = vpop.f32.mrb[0].mxu0
        %v2921 = vpop.f32.mrb[0].mxu0
        %v2922 = vadd.f32 0.0, %v2921
        %v2923 = vpop.f32.mrb[0].mxu0
        %2924 = vdwg.mxu0
        %v2925 = vadd.f32 %v2171, %v2799
        %v2926 = vadd.f32 %v2172, %v2802
        %v2927 = vadd.f32 %v2173, %v2807
        %v2928 = vadd.f32 %v2174, %v2810
        %v2929 = vadd.f32 %v2175, %v2815
        %v2930 = vadd.f32 %v2176, %v2818
        %v2931 = vadd.f32 %v2177, %v2823
        %v2932 = vadd.f32 %v2178, %v2826
        %v2933 = vadd.f32 %v2179, %v2831
        %v2934 = vadd.f32 %v2180, %v2834
        %v2935 = vadd.f32 %v2181, %v2839
        %v2936 = vadd.f32 %v2182, %v2842
        %v2937 = vadd.f32 %v2183, %v2847
        %v2938 = vadd.f32 %v2184, %v2850
        %v2939 = vadd.f32 %v2185, %v2855
        %v2940 = vadd.f32 %v2186, %v2858
        %v2941 = vadd.f32 %v2187, %v2863
        %v2942 = vadd.f32 %v2188, %v2866
        %v2943 = vadd.f32 %v2189, %v2871
        %v2944 = vadd.f32 %v2190, %v2874
        %v2945 = vadd.f32 %v2191, %v2879
        %v2946 = vadd.f32 %v2192, %v2882
        %v2947 = vadd.f32 %v2193, %v2887
        %v2948 = vadd.f32 %v2194, %v2890
        %v2949 = vadd.f32 %v2195, %v2895
        %v2950 = vadd.f32 %v2196, %v2898
        %v2951 = vadd.f32 %v2197, %v2903
        %v2952 = vadd.f32 %v2198, %v2906
        %v2953 = vadd.f32 %v2199, %v2911
        %v2954 = vadd.f32 %v2200, %v2914
        %v2955 = vadd.f32 %v2201, %v2919
        %v2956 = vadd.f32 %v2202, %v2922
        %v2957 = vld [vmem:[%s1816] sm:$0xe]
        %v2958 = vld [vmem:[%s1816 + $0xc] sm:$0xe]
        %v2959 = vld [vmem:[%s1816 + $0x18] sm:$0xe]
        %v2960 = vld [vmem:[%s1816 + $0x24] sm:$0xe]
        %v2961 = vld [vmem:[%s1816 + $0x30] sm:$0xe]
        %v2962 = vld [vmem:[%s1816 + $0x3c] sm:$0xe]
        %v2963 = vld [vmem:[%s1816 + $0x48] sm:$0xe]
        %v2964 = vld [vmem:[%s1816 + $0x54] sm:$0xe]
        %v2965 = vld [vmem:[%s1816 + $0x60] sm:$0xe]
        %v2966 = vld [vmem:[%s1816 + $0x6c] sm:$0xe]
        %v2967 = vld [vmem:[%s1816 + $0x78] sm:$0xe]
        %v2968 = vld [vmem:[%s1816 + $0x84] sm:$0xe]
        %v2969 = vld [vmem:[%s1816 + $0x90] sm:$0xe]
        %v2970 = vld [vmem:[%s1816 + $0x9c] sm:$0xe]
        %v2971 = vld [vmem:[%s1816 + $0xa8] sm:$0xe]
        %v2972 = vld [vmem:[%s1816 + $0xb4] sm:$0xe]
        %v3021 = vrot.slane %v2957, 5
        %v3022 = vrot.slane %v3021, 4
        %v3023 = vrot.slane %v2204, 5
        %v3024 = vsel %vm1381, %v3022, %v3023
        %v3025 = vrot.slane %v3023, 4
        %v3026 = vrot.slane %v2205, 5
        %v3027 = vsel %vm1381, %v3025, %v3026
        %v3028 = vrot.slane %v2958, 5
        %v3029 = vrot.slane %v3028, 4
        %v3030 = vrot.slane %v2207, 5
        %v3031 = vsel %vm1381, %v3029, %v3030
        %v3032 = vrot.slane %v3030, 4
        %v3033 = vrot.slane %v2208, 5
        %v3034 = vsel %vm1381, %v3032, %v3033
        %v3035 = vrot.slane %v2959, 5
        %v3036 = vrot.slane %v3035, 4
        %v3037 = vrot.slane %v2210, 5
        %v3038 = vsel %vm1381, %v3036, %v3037
        %v3039 = vrot.slane %v3037, 4
        %v3040 = vrot.slane %v2211, 5
        %v3041 = vsel %vm1381, %v3039, %v3040
        %v3042 = vrot.slane %v2960, 5
        %v3043 = vrot.slane %v3042, 4
        %v3044 = vrot.slane %v2213, 5
        %v3045 = vsel %vm1381, %v3043, %v3044
        %v3046 = vrot.slane %v3044, 4
        %v3047 = vrot.slane %v2214, 5
        %v3048 = vsel %vm1381, %v3046, %v3047
        %v3049 = vrot.slane %v2961, 5
        %v3050 = vrot.slane %v3049, 4
        %v3051 = vrot.slane %v2216, 5
        %v3052 = vsel %vm1381, %v3050, %v3051
        %v3053 = vrot.slane %v3051, 4
        %v3054 = vrot.slane %v2217, 5
        %v3055 = vsel %vm1381, %v3053, %v3054
        %v3056 = vrot.slane %v2962, 5
        %v3057 = vrot.slane %v3056, 4
        %v3058 = vrot.slane %v2219, 5
        %v3059 = vsel %vm1381, %v3057, %v3058
        %v3060 = vrot.slane %v3058, 4
        %v3061 = vrot.slane %v2220, 5
        %v3062 = vsel %vm1381, %v3060, %v3061
        %v3063 = vrot.slane %v2963, 5
        %v3064 = vrot.slane %v3063, 4
        %v3065 = vrot.slane %v2222, 5
        %v3066 = vsel %vm1381, %v3064, %v3065
        %v3067 = vrot.slane %v3065, 4
        %v3068 = vrot.slane %v2223, 5
        %v3069 = vsel %vm1381, %v3067, %v3068
        %v3070 = vrot.slane %v2964, 5
        %v3071 = vrot.slane %v3070, 4
        %v3072 = vrot.slane %v2225, 5
        %v3073 = vsel %vm1381, %v3071, %v3072
        %v3074 = vrot.slane %v3072, 4
        %v3075 = vrot.slane %v2226, 5
        %v3076 = vsel %vm1381, %v3074, %v3075
        %v3077 = vrot.slane %v2965, 5
        %v3078 = vrot.slane %v3077, 4
        %v3079 = vrot.slane %v2228, 5
        %v3080 = vsel %vm1381, %v3078, %v3079
        %v3081 = vrot.slane %v3079, 4
        %v3082 = vrot.slane %v2229, 5
        %v3083 = vsel %vm1381, %v3081, %v3082
        %v3084 = vrot.slane %v2966, 5
        %v3085 = vrot.slane %v3084, 4
        %v3086 = vrot.slane %v2231, 5
        %v3087 = vsel %vm1381, %v3085, %v3086
        %v3088 = vrot.slane %v3086, 4
        %v3089 = vrot.slane %v2232, 5
        %v3090 = vsel %vm1381, %v3088, %v3089
        %v3091 = vrot.slane %v2967, 5
        %v3092 = vrot.slane %v3091, 4
        %v3093 = vrot.slane %v2234, 5
        %v3094 = vsel %vm1381, %v3092, %v3093
        %v3095 = vrot.slane %v3093, 4
        %v3096 = vrot.slane %v2235, 5
        %v3097 = vsel %vm1381, %v3095, %v3096
        %v3098 = vrot.slane %v2968, 5
        %v3099 = vrot.slane %v3098, 4
        %v3100 = vrot.slane %v2237, 5
        %v3101 = vsel %vm1381, %v3099, %v3100
        %v3102 = vrot.slane %v3100, 4
        %v3103 = vrot.slane %v2238, 5
        %v3104 = vsel %vm1381, %v3102, %v3103
        %v3105 = vrot.slane %v2969, 5
        %v3106 = vrot.slane %v3105, 4
        %v3107 = vrot.slane %v2240, 5
        %v3108 = vsel %vm1381, %v3106, %v3107
        %v3109 = vrot.slane %v3107, 4
        %v3110 = vrot.slane %v2241, 5
        %v3111 = vsel %vm1381, %v3109, %v3110
        %v3112 = vrot.slane %v2970, 5
        %v3113 = vrot.slane %v3112, 4
        %v3114 = vrot.slane %v2243, 5
        %v3115 = vsel %vm1381, %v3113, %v3114
        %v3116 = vrot.slane %v3114, 4
        %v3117 = vrot.slane %v2244, 5
        %v3118 = vsel %vm1381, %v3116, %v3117
        %v3119 = vrot.slane %v2971, 5
        %v3120 = vrot.slane %v3119, 4
        %v3121 = vrot.slane %v2246, 5
        %v3122 = vsel %vm1381, %v3120, %v3121
        %v3123 = vrot.slane %v3121, 4
        %v3124 = vrot.slane %v2247, 5
        %v3125 = vsel %vm1381, %v3123, %v3124
        %v3126 = vrot.slane %v2972, 5
        %v3127 = vrot.slane %v3126, 4
        %v3128 = vrot.slane %v2249, 5
        %v3129 = vsel %vm1381, %v3127, %v3128
        %v3130 = vrot.slane %v3128, 4
        %v3131 = vrot.slane %v2250, 5
        %v3132 = vsel %vm1381, %v3130, %v3131
        %s3133 = scalar_lea.vmem %s1, 320
        %v3134 = vld [vmem:[%s3133] sm:$0xf]
        %v3135 = vld [vmem:[%s3133 + $0x4] sm:$0xf]
        %v3136 = vld [vmem:[%s3133 + $0x8] sm:$0xf]
        %v3137 = vld [vmem:[%s3133 + $0xc] sm:$0xf]
        %v3138 = vld [vmem:[%s3133 + $0x10] sm:$0xf]
        %v3139 = vld [vmem:[%s3133 + $0x14] sm:$0xf]
        %v3140 = vld [vmem:[%s3133 + $0x18] sm:$0xf]
        %v3141 = vld [vmem:[%s3133 + $0x1c] sm:$0xf]
        %v3142 = vld [vmem:[%s3133 + $0x20] sm:$0xf]
        %v3143 = vld [vmem:[%s3133 + $0x24] sm:$0xf]
        %v3144 = vld [vmem:[%s3133 + $0x28] sm:$0xf]
        %v3145 = vld [vmem:[%s3133 + $0x2c] sm:$0xf]
        %v3146 = vld [vmem:[%s3133 + $0x30] sm:$0xf]
        %v3147 = vld [vmem:[%s3133 + $0x34] sm:$0xf]
        %v3148 = vld [vmem:[%s3133 + $0x38] sm:$0xf]
        %v3149 = vld [vmem:[%s3133 + $0x3c] sm:$0xf]
        %v3150 = vunpack.c.l.b16 %v3024
        %v3151 = vunpack.c.l.b16 %v3027
        %v3152 = vunpack.c.l.b16 %v3031
        %v3153 = vunpack.c.l.b16 %v3034
        %v3154 = vunpack.c.l.b16 %v3038
        %v3155 = vunpack.c.l.b16 %v3041
        %v3156 = vunpack.c.l.b16 %v3045
        %v3157 = vunpack.c.l.b16 %v3048
        %v3158 = vunpack.c.l.b16 %v3052
        %v3159 = vunpack.c.l.b16 %v3055
        %v3160 = vunpack.c.l.b16 %v3059
        %v3161 = vunpack.c.l.b16 %v3062
        %v3162 = vunpack.c.l.b16 %v3066
        %v3163 = vunpack.c.l.b16 %v3069
        %v3164 = vunpack.c.l.b16 %v3073
        %v3165 = vunpack.c.l.b16 %v3076
        %v3166 = vunpack.c.l.b16 %v3080
        %v3167 = vunpack.c.l.b16 %v3083
        %v3168 = vunpack.c.l.b16 %v3087
        %v3169 = vunpack.c.l.b16 %v3090
        %v3170 = vunpack.c.l.b16 %v3094
        %v3171 = vunpack.c.l.b16 %v3097
        %v3172 = vunpack.c.l.b16 %v3101
        %v3173 = vunpack.c.l.b16 %v3104
        %v3174 = vunpack.c.l.b16 %v3108
        %v3175 = vunpack.c.l.b16 %v3111
        %v3176 = vunpack.c.l.b16 %v3115
        %v3177 = vunpack.c.l.b16 %v3118
        %v3178 = vunpack.c.l.b16 %v3122
        %v3179 = vunpack.c.l.b16 %v3125
        %v3180 = vunpack.c.l.b16 %v3129
        %v3181 = vunpack.c.l.b16 %v3132
        %v3182 = vpack.c.b16 %v3151, %v3150
        %v3183 = vpack.c.b16 %v3153, %v3152
        %v3184 = vpack.c.b16 %v3155, %v3154
        %v3185 = vpack.c.b16 %v3157, %v3156
        %v3186 = vpack.c.b16 %v3159, %v3158
        %v3187 = vpack.c.b16 %v3161, %v3160
        %v3188 = vpack.c.b16 %v3163, %v3162
        %v3189 = vpack.c.b16 %v3165, %v3164
        %v3190 = vpack.c.b16 %v3167, %v3166
        %v3191 = vpack.c.b16 %v3169, %v3168
        %v3192 = vpack.c.b16 %v3171, %v3170
        %v3193 = vpack.c.b16 %v3173, %v3172
        %v3194 = vpack.c.b16 %v3175, %v3174
        %v3195 = vpack.c.b16 %v3177, %v3176
        %v3196 = vpack.c.b16 %v3179, %v3178
        %v3197 = vpack.c.b16 %v3181, %v3180
        %v3230 = vunpack.c.l.b16 %v3134
        %v3231 = vunpack.c.l.b16 %v3135
        %v3232 = vunpack.c.l.b16 %v3136
        %v3233 = vunpack.c.l.b16 %v3137
        %v3234 = vunpack.c.l.b16 %v3138
        %v3235 = vunpack.c.l.b16 %v3139
        %v3236 = vunpack.c.l.b16 %v3140
        %v3237 = vunpack.c.l.b16 %v3141
        %v3238 = vunpack.c.l.b16 %v3142
        %v3239 = vunpack.c.l.b16 %v3143
        %v3240 = vunpack.c.l.b16 %v3144
        %v3241 = vunpack.c.l.b16 %v3145
        %v3242 = vunpack.c.l.b16 %v3146
        %v3243 = vunpack.c.l.b16 %v3147
        %v3244 = vunpack.c.l.b16 %v3148
        %v3245 = vunpack.c.l.b16 %v3149
        %v3246 = vpack.c.b16 %v3231, %v3230
        %v3247 = vpack.c.b16 %v3233, %v3232
        %v3248 = vpack.c.b16 %v3235, %v3234
        %v3249 = vpack.c.b16 %v3237, %v3236
        %v3250 = vpack.c.b16 %v3239, %v3238
        %v3251 = vpack.c.b16 %v3241, %v3240
        %v3252 = vpack.c.b16 %v3243, %v3242
        %v3253 = vpack.c.b16 %v3245, %v3244
        %3262 = vmatprep.subr.bf16.mxu0 0
        %3263 = vmatpush1.bf16.msra.mxu0 %v3246
        %3264 = vmatprep.subr.bf16.mxu0 0
        %3265 = vmatpush1.bf16.msra.mxu0 %v3247
        %3266 = vmatprep.subr.bf16.mxu0 0
        %3267 = vmatpush1.bf16.msra.mxu0 %v3248
        %3268 = vmatprep.subr.bf16.mxu0 0
        %3269 = vmatpush1.bf16.msra.mxu0 %v3249
        %3270 = vmatprep.subr.bf16.mxu0 0
        %3271 = vmatpush1.bf16.msra.mxu0 %v3250
        %3272 = vmatprep.subr.bf16.mxu0 0
        %3273 = vmatpush1.bf16.msra.mxu0 %v3251
        %3274 = vmatprep.subr.bf16.mxu0 0
        %3275 = vmatpush1.bf16.msra.mxu0 %v3252
        %3276 = vmatprep.subr.bf16.mxu0 0
        %3277 = vmatpush1.bf16.msra.mxu0 %v3253
        %3278 = vmatprep.subr.bf16.mxu0 0
        %3279 = vmatpush1.bf16.msra.mxu0 0
        %3280 = vmatprep.subr.bf16.mxu0 0
        %3281 = vmatpush1.bf16.msra.mxu0 0
        %3282 = vmatprep.subr.bf16.mxu0 0
        %3283 = vmatpush1.bf16.msra.mxu0 0
        %3284 = vmatprep.subr.bf16.mxu0 0
        %3285 = vmatpush1.bf16.msra.mxu0 0
        %3286 = vmatprep.subr.bf16.mxu0 0
        %3287 = vmatpush1.bf16.msra.mxu0 0
        %3288 = vmatprep.subr.bf16.mxu0 0
        %3289 = vmatpush1.bf16.msra.mxu0 0
        %3290 = vmatprep.subr.bf16.mxu0 0
        %3291 = vmatpush1.bf16.msra.mxu0 0
        %3292 = vmatprep.subr.bf16.mxu0 0
        %3293 = vmatpush1.bf16.msra.mxu0 0
        %3294 = vmatprep.mubr.bf16.mxu0 0
        %3295 = vmatmul.mubr.bf16.gmra.mrb[0].mxu0 %v3182
        %v3296 = vpop.f32.mrb[0].mxu0
        %v3297 = vadd.f32 0.0, %v3296
        %v3298 = vpop.f32.mrb[0].mxu0
        %v3299 = vpop.f32.mrb[0].mxu0
        %v3300 = vadd.f32 0.0, %v3299
        %v3301 = vpop.f32.mrb[0].mxu0
        %3302 = vmatprep.mubr.bf16.mxu0 0
        %3303 = vmatmul.mubr.bf16.gmra.mrb[0].mxu0 %v3183
        %v3304 = vpop.f32.mrb[0].mxu0
        %v3305 = vadd.f32 0.0, %v3304
        %v3306 = vpop.f32.mrb[0].mxu0
        %v3307 = vpop.f32.mrb[0].mxu0
        %v3308 = vadd.f32 0.0, %v3307
        %v3309 = vpop.f32.mrb[0].mxu0
        %3310 = vmatprep.mubr.bf16.mxu0 0
        %3311 = vmatmul.mubr.bf16.gmra.mrb[0].mxu0 %v3184
        %v3312 = vpop.f32.mrb[0].mxu0
        %v3313 = vadd.f32 0.0, %v3312
        %v3314 = vpop.f32.mrb[0].mxu0
        %v3315 = vpop.f32.mrb[0].mxu0
        %v3316 = vadd.f32 0.0, %v3315
        %v3317 = vpop.f32.mrb[0].mxu0
        %3318 = vmatprep.mubr.bf16.mxu0 0
        %3319 = vmatmul.mubr.bf16.gmra.mrb[0].mxu0 %v3185
        %v3320 = vpop.f32.mrb[0].mxu0
        %v3321 = vadd.f32 0.0, %v3320
        %v3322 = vpop.f32.mrb[0].mxu0
        %v3323 = vpop.f32.mrb[0].mxu0
        %v3324 = vadd.f32 0.0, %v3323
        %v3325 = vpop.f32.mrb[0].mxu0
        %3326 = vmatprep.mubr.bf16.mxu0 0
        %3327 = vmatmul.mubr.bf16.gmra.mrb[0].mxu0 %v3186
        %v3328 = vpop.f32.mrb[0].mxu0
        %v3329 = vadd.f32 0.0, %v3328
        %v3330 = vpop.f32.mrb[0].mxu0
        %v3331 = vpop.f32.mrb[0].mxu0
        %v3332 = vadd.f32 0.0, %v3331
        %v3333 = vpop.f32.mrb[0].mxu0
        %3334 = vmatprep.mubr.bf16.mxu0 0
        %3335 = vmatmul.mubr.bf16.gmra.mrb[0].mxu0 %v3187
        %v3336 = vpop.f32.mrb[0].mxu0
        %v3337 = vadd.f32 0.0, %v3336
        %v3338 = vpop.f32.mrb[0].mxu0
        %v3339 = vpop.f32.mrb[0].mxu0
        %v3340 = vadd.f32 0.0, %v3339
        %v3341 = vpop.f32.mrb[0].mxu0
        %3342 = vmatprep.mubr.bf16.mxu0 0
        %3343 = vmatmul.mubr.bf16.gmra.mrb[0].mxu0 %v3188
        %v3344 = vpop.f32.mrb[0].mxu0
        %v3345 = vadd.f32 0.0, %v3344
        %v3346 = vpop.f32.mrb[0].mxu0
        %v3347 = vpop.f32.mrb[0].mxu0
        %v3348 = vadd.f32 0.0, %v3347
        %v3349 = vpop.f32.mrb[0].mxu0
        %3350 = vmatprep.mubr.bf16.mxu0 0
        %3351 = vmatmul.mubr.bf16.gmra.mrb[0].mxu0 %v3189
        %v3352 = vpop.f32.mrb[0].mxu0
        %v3353 = vadd.f32 0.0, %v3352
        %v3354 = vpop.f32.mrb[0].mxu0
        %v3355 = vpop.f32.mrb[0].mxu0
        %v3356 = vadd.f32 0.0, %v3355
        %v3357 = vpop.f32.mrb[0].mxu0
        %3358 = vmatprep.mubr.bf16.mxu0 0
        %3359 = vmatmul.mubr.bf16.gmra.mrb[0].mxu0 %v3190
        %v3360 = vpop.f32.mrb[0].mxu0
        %v3361 = vadd.f32 0.0, %v3360
        %v3362 = vpop.f32.mrb[0].mxu0
        %v3363 = vpop.f32.mrb[0].mxu0
        %v3364 = vadd.f32 0.0, %v3363
        %v3365 = vpop.f32.mrb[0].mxu0
        %3366 = vmatprep.mubr.bf16.mxu0 0
        %3367 = vmatmul.mubr.bf16.gmra.mrb[0].mxu0 %v3191
        %v3368 = vpop.f32.mrb[0].mxu0
        %v3369 = vadd.f32 0.0, %v3368
        %v3370 = vpop.f32.mrb[0].mxu0
        %v3371 = vpop.f32.mrb[0].mxu0
        %v3372 = vadd.f32 0.0, %v3371
        %v3373 = vpop.f32.mrb[0].mxu0
        %3374 = vmatprep.mubr.bf16.mxu0 0
        %3375 = vmatmul.mubr.bf16.gmra.mrb[0].mxu0 %v3192
        %v3376 = vpop.f32.mrb[0].mxu0
        %v3377 = vadd.f32 0.0, %v3376
        %v3378 = vpop.f32.mrb[0].mxu0
        %v3379 = vpop.f32.mrb[0].mxu0
        %v3380 = vadd.f32 0.0, %v3379
        %v3381 = vpop.f32.mrb[0].mxu0
        %3382 = vmatprep.mubr.bf16.mxu0 0
        %3383 = vmatmul.mubr.bf16.gmra.mrb[0].mxu0 %v3193
        %v3384 = vpop.f32.mrb[0].mxu0
        %v3385 = vadd.f32 0.0, %v3384
        %v3386 = vpop.f32.mrb[0].mxu0
        %v3387 = vpop.f32.mrb[0].mxu0
        %v3388 = vadd.f32 0.0, %v3387
        %v3389 = vpop.f32.mrb[0].mxu0
        %3390 = vmatprep.mubr.bf16.mxu0 0
        %3391 = vmatmul.mubr.bf16.gmra.mrb[0].mxu0 %v3194
        %v3392 = vpop.f32.mrb[0].mxu0
        %v3393 = vadd.f32 0.0, %v3392
        %v3394 = vpop.f32.mrb[0].mxu0
        %v3395 = vpop.f32.mrb[0].mxu0
        %v3396 = vadd.f32 0.0, %v3395
        %v3397 = vpop.f32.mrb[0].mxu0
        %3398 = vmatprep.mubr.bf16.mxu0 0
        %3399 = vmatmul.mubr.bf16.gmra.mrb[0].mxu0 %v3195
        %v3400 = vpop.f32.mrb[0].mxu0
        %v3401 = vadd.f32 0.0, %v3400
        %v3402 = vpop.f32.mrb[0].mxu0
        %v3403 = vpop.f32.mrb[0].mxu0
        %v3404 = vadd.f32 0.0, %v3403
        %v3405 = vpop.f32.mrb[0].mxu0
        %3406 = vmatprep.mubr.bf16.mxu0 0
        %3407 = vmatmul.mubr.bf16.gmra.mrb[0].mxu0 %v3196
        %v3408 = vpop.f32.mrb[0].mxu0
        %v3409 = vadd.f32 0.0, %v3408
        %v3410 = vpop.f32.mrb[0].mxu0
        %v3411 = vpop.f32.mrb[0].mxu0
        %v3412 = vadd.f32 0.0, %v3411
        %v3413 = vpop.f32.mrb[0].mxu0
        %3414 = vmatprep.mubr.bf16.mxu0 0
        %3415 = vmatmul.mubr.bf16.gmra.mrb[0].mxu0 %v3197
        %v3416 = vpop.f32.mrb[0].mxu0
        %v3417 = vadd.f32 0.0, %v3416
        %v3418 = vpop.f32.mrb[0].mxu0
        %v3419 = vpop.f32.mrb[0].mxu0
        %v3420 = vadd.f32 0.0, %v3419
        %v3421 = vpop.f32.mrb[0].mxu0
        %3422 = vdwg.mxu0
        %v3423 = vadd.f32 %v2925, %v3297
        %v3424 = vadd.f32 %v2926, %v3300
        %v3425 = vadd.f32 %v2927, %v3305
        %v3426 = vadd.f32 %v2928, %v3308
        %v3427 = vadd.f32 %v2929, %v3313
        %v3428 = vadd.f32 %v2930, %v3316
        %v3429 = vadd.f32 %v2931, %v3321
        %v3430 = vadd.f32 %v2932, %v3324
        %v3431 = vadd.f32 %v2933, %v3329
        %v3432 = vadd.f32 %v2934, %v3332
        %v3433 = vadd.f32 %v2935, %v3337
        %v3434 = vadd.f32 %v2936, %v3340
        %v3435 = vadd.f32 %v2937, %v3345
        %v3436 = vadd.f32 %v2938, %v3348
        %v3437 = vadd.f32 %v2939, %v3353
        %v3438 = vadd.f32 %v2940, %v3356
        %v3439 = vadd.f32 %v2941, %v3361
        %v3440 = vadd.f32 %v2942, %v3364
        %v3441 = vadd.f32 %v2943, %v3369
        %v3442 = vadd.f32 %v2944, %v3372
        %v3443 = vadd.f32 %v2945, %v3377
        %v3444 = vadd.f32 %v2946, %v3380
        %v3445 = vadd.f32 %v2947, %v3385
        %v3446 = vadd.f32 %v2948, %v3388
        %v3447 = vadd.f32 %v2949, %v3393
        %v3448 = vadd.f32 %v2950, %v3396
        %v3449 = vadd.f32 %v2951, %v3401
        %v3450 = vadd.f32 %v2952, %v3404
        %v3451 = vadd.f32 %v2953, %v3409
        %v3452 = vadd.f32 %v2954, %v3412
        %v3453 = vadd.f32 %v2955, %v3417
        %v3454 = vadd.f32 %v2956, %v3420
        %s3455 = scalar_lea.vmem %s237, 24
        %v3456 = vld [vmem:[%s3455] sm:$0xf]
        %v3457 = vld [vmem:[%s3455 + $0x4] sm:$0xf]
        %v3458 = vld [vmem:[%s3455 + $0xc] sm:$0xf]
        %v3459 = vld [vmem:[%s3455 + $0x10] sm:$0xf]
        %v3460 = vld [vmem:[%s3455 + $0x18] sm:$0xf]
        %v3461 = vld [vmem:[%s3455 + $0x1c] sm:$0xf]
        %v3462 = vld [vmem:[%s3455 + $0x24] sm:$0xf]
        %v3463 = vld [vmem:[%s3455 + $0x28] sm:$0xf]
        %v3464 = vld [vmem:[%s3455 + $0x30] sm:$0xf]
        %v3465 = vld [vmem:[%s3455 + $0x34] sm:$0xf]
        %v3466 = vld [vmem:[%s3455 + $0x3c] sm:$0xf]
        %v3467 = vld [vmem:[%s3455 + $0x40] sm:$0xf]
        %v3468 = vld [vmem:[%s3455 + $0x48] sm:$0xf]
        %v3469 = vld [vmem:[%s3455 + $0x4c] sm:$0xf]
        %v3470 = vld [vmem:[%s3455 + $0x54] sm:$0xf]
        %v3471 = vld [vmem:[%s3455 + $0x58] sm:$0xf]
        %v3472 = vld [vmem:[%s3455 + $0x60] sm:$0xf]
        %v3473 = vld [vmem:[%s3455 + $0x64] sm:$0xf]
        %v3474 = vld [vmem:[%s3455 + $0x6c] sm:$0xf]
        %v3475 = vld [vmem:[%s3455 + $0x70] sm:$0xf]
        %v3476 = vld [vmem:[%s3455 + $0x78] sm:$0xf]
        %v3477 = vld [vmem:[%s3455 + $0x7c] sm:$0xf]
        %v3478 = vld [vmem:[%s3455 + $0x84] sm:$0xf]
        %v3479 = vld [vmem:[%s3455 + $0x88] sm:$0xf]
        %v3480 = vld [vmem:[%s3455 + $0x90] sm:$0xf]
        %v3481 = vld [vmem:[%s3455 + $0x94] sm:$0xf]
        %v3482 = vld [vmem:[%s3455 + $0x9c] sm:$0xf]
        %v3483 = vld [vmem:[%s3455 + $0xa0] sm:$0xf]
        %v3484 = vld [vmem:[%s3455 + $0xa8] sm:$0xf]
        %v3485 = vld [vmem:[%s3455 + $0xac] sm:$0xf]
        %v3486 = vld [vmem:[%s3455 + $0xb4] sm:$0xf]
        %v3487 = vld [vmem:[%s3455 + $0xb8] sm:$0xf]
        %s3488 = scalar_lea.vmem %s1, 384
        %v3489 = vld [vmem:[%s3488] sm:$0xf]
        %v3490 = vld [vmem:[%s3488 + $0x4] sm:$0xf]
        %v3491 = vld [vmem:[%s3488 + $0x8] sm:$0xf]
        %v3492 = vld [vmem:[%s3488 + $0xc] sm:$0xf]
        %v3493 = vld [vmem:[%s3488 + $0x10] sm:$0xf]
        %v3494 = vld [vmem:[%s3488 + $0x14] sm:$0xf]
        %v3495 = vld [vmem:[%s3488 + $0x18] sm:$0xf]
        %v3496 = vld [vmem:[%s3488 + $0x1c] sm:$0xf]
        %v3497 = vld [vmem:[%s3488 + $0x20] sm:$0xf]
        %v3498 = vld [vmem:[%s3488 + $0x24] sm:$0xf]
        %v3499 = vld [vmem:[%s3488 + $0x28] sm:$0xf]
        %v3500 = vld [vmem:[%s3488 + $0x2c] sm:$0xf]
        %v3501 = vld [vmem:[%s3488 + $0x30] sm:$0xf]
        %v3502 = vld [vmem:[%s3488 + $0x34] sm:$0xf]
        %v3503 = vld [vmem:[%s3488 + $0x38] sm:$0xf]
        %v3504 = vld [vmem:[%s3488 + $0x3c] sm:$0xf]
        %v3537 = vunpack.c.l.b16 %v3456
        %v3538 = vunpack.c.l.b16 %v3457
        %v3539 = vunpack.c.l.b16 %v3458
        %v3540 = vunpack.c.l.b16 %v3459
        %v3541 = vunpack.c.l.b16 %v3460
        %v3542 = vunpack.c.l.b16 %v3461
        %v3543 = vunpack.c.l.b16 %v3462
        %v3544 = vunpack.c.l.b16 %v3463
        %v3545 = vunpack.c.l.b16 %v3464
        %v3546 = vunpack.c.l.b16 %v3465
        %v3547 = vunpack.c.l.b16 %v3466
        %v3548 = vunpack.c.l.b16 %v3467
        %v3549 = vunpack.c.l.b16 %v3468
        %v3550 = vunpack.c.l.b16 %v3469
        %v3551 = vunpack.c.l.b16 %v3470
        %v3552 = vunpack.c.l.b16 %v3471
        %v3553 = vunpack.c.l.b16 %v3472
        %v3554 = vunpack.c.l.b16 %v3473
        %v3555 = vunpack.c.l.b16 %v3474
        %v3556 = vunpack.c.l.b16 %v3475
        %v3557 = vunpack.c.l.b16 %v3476
        %v3558 = vunpack.c.l.b16 %v3477
        %v3559 = vunpack.c.l.b16 %v3478
        %v3560 = vunpack.c.l.b16 %v3479
        %v3561 = vunpack.c.l.b16 %v3480
        %v3562 = vunpack.c.l.b16 %v3481
        %v3563 = vunpack.c.l.b16 %v3482
        %v3564 = vunpack.c.l.b16 %v3483
        %v3565 = vunpack.c.l.b16 %v3484
        %v3566 = vunpack.c.l.b16 %v3485
        %v3567 = vunpack.c.l.b16 %v3486
        %v3568 = vunpack.c.l.b16 %v3487
        %v3569 = vpack.c.b16 %v3538, %v3537
        %v3570 = vpack.c.b16 %v3540, %v3539
        %v3571 = vpack.c.b16 %v3542, %v3541
        %v3572 = vpack.c.b16 %v3544, %v3543
        %v3573 = vpack.c.b16 %v3546, %v3545
        %v3574 = vpack.c.b16 %v3548, %v3547
        %v3575 = vpack.c.b16 %v3550, %v3549
        %v3576 = vpack.c.b16 %v3552, %v3551
        %v3577 = vpack.c.b16 %v3554, %v3553
        %v3578 = vpack.c.b16 %v3556, %v3555
        %v3579 = vpack.c.b16 %v3558, %v3557
        %v3580 = vpack.c.b16 %v3560, %v3559
        %v3581 = vpack.c.b16 %v3562, %v3561
        %v3582 = vpack.c.b16 %v3564, %v3563
        %v3583 = vpack.c.b16 %v3566, %v3565
        %v3584 = vpack.c.b16 %v3568, %v3567
        %v3617 = vunpack.c.l.b16 %v3489
        %v3618 = vunpack.c.l.b16 %v3490
        %v3619 = vunpack.c.l.b16 %v3491
        %v3620 = vunpack.c.l.b16 %v3492
        %v3621 = vunpack.c.l.b16 %v3493
        %v3622 = vunpack.c.l.b16 %v3494
        %v3623 = vunpack.c.l.b16 %v3495
        %v3624 = vunpack.c.l.b16 %v3496
        %v3625 = vunpack.c.l.b16 %v3497
        %v3626 = vunpack.c.l.b16 %v3498
        %v3627 = vunpack.c.l.b16 %v3499
        %v3628 = vunpack.c.l.b16 %v3500
        %v3629 = vunpack.c.l.b16 %v3501
        %v3630 = vunpack.c.l.b16 %v3502
        %v3631 = vunpack.c.l.b16 %v3503
        %v3632 = vunpack.c.l.b16 %v3504
        %v3633 = vpack.c.b16 %v3618, %v3617
        %v3634 = vpack.c.b16 %v3620, %v3619
        %v3635 = vpack.c.b16 %v3622, %v3621
        %v3636 = vpack.c.b16 %v3624, %v3623
        %v3637 = vpack.c.b16 %v3626, %v3625
        %v3638 = vpack.c.b16 %v3628, %v3627
        %v3639 = vpack.c.b16 %v3630, %v3629
        %v3640 = vpack.c.b16 %v3632, %v3631
        %3649 = vmatprep.subr.bf16.mxu0 0
        %3650 = vmatpush1.bf16.msra.mxu0 %v3633
        %3651 = vmatprep.subr.bf16.mxu0 0
        %3652 = vmatpush1.bf16.msra.mxu0 %v3634
        %3653 = vmatprep.subr.bf16.mxu0 0
        %3654 = vmatpush1.bf16.msra.mxu0 %v3635
        %3655 = vmatprep.subr.bf16.mxu0 0
        %3656 = vmatpush1.bf16.msra.mxu0 %v3636
        %3657 = vmatprep.subr.bf16.mxu0 0
        %3658 = vmatpush1.bf16.msra.mxu0 %v3637
        %3659 = vmatprep.subr.bf16.mxu0 0
        %3660 = vmatpush1.bf16.msra.mxu0 %v3638
        %3661 = vmatprep.subr.bf16.mxu0 0
        %3662 = vmatpush1.bf16.msra.mxu0 %v3639
        %3663 = vmatprep.subr.bf16.mxu0 0
        %3664 = vmatpush1.bf16.msra.mxu0 %v3640
        %3665 = vmatprep.subr.bf16.mxu0 0
        %3666 = vmatpush1.bf16.msra.mxu0 0
        %3667 = vmatprep.subr.bf16.mxu0 0
        %3668 = vmatpush1.bf16.msra.mxu0 0
        %3669 = vmatprep.subr.bf16.mxu0 0
        %3670 = vmatpush1.bf16.msra.mxu0 0
        %3671 = vmatprep.subr.bf16.mxu0 0
        %3672 = vmatpush1.bf16.msra.mxu0 0
        %3673 = vmatprep.subr.bf16.mxu0 0
        %3674 = vmatpush1.bf16.msra.mxu0 0
        %3675 = vmatprep.subr.bf16.mxu0 0
        %3676 = vmatpush1.bf16.msra.mxu0 0
        %3677 = vmatprep.subr.bf16.mxu0 0
        %3678 = vmatpush1.bf16.msra.mxu0 0
        %3679 = vmatprep.subr.bf16.mxu0 0
        %3680 = vmatpush1.bf16.msra.mxu0 0
        %3681 = vmatprep.mubr.bf16.mxu0 0
        %3682 = vmatmul.mubr.bf16.gmra.mrb[0].mxu0 %v3569
        %v3683 = vpop.f32.mrb[0].mxu0
        %v3684 = vadd.f32 0.0, %v3683
        %v3685 = vpop.f32.mrb[0].mxu0
        %v3686 = vpop.f32.mrb[0].mxu0
        %v3687 = vadd.f32 0.0, %v3686
        %v3688 = vpop.f32.mrb[0].mxu0
        %3689 = vmatprep.mubr.bf16.mxu0 0
        %3690 = vmatmul.mubr.bf16.gmra.mrb[0].mxu0 %v3570
        %v3691 = vpop.f32.mrb[0].mxu0
        %v3692 = vadd.f32 0.0, %v3691
        %v3693 = vpop.f32.mrb[0].mxu0
        %v3694 = vpop.f32.mrb[0].mxu0
        %v3695 = vadd.f32 0.0, %v3694
        %v3696 = vpop.f32.mrb[0].mxu0
        %3697 = vmatprep.mubr.bf16.mxu0 0
        %3698 = vmatmul.mubr.bf16.gmra.mrb[0].mxu0 %v3571
        %v3699 = vpop.f32.mrb[0].mxu0
        %v3700 = vadd.f32 0.0, %v3699
        %v3701 = vpop.f32.mrb[0].mxu0
        %v3702 = vpop.f32.mrb[0].mxu0
        %v3703 = vadd.f32 0.0, %v3702
        %v3704 = vpop.f32.mrb[0].mxu0
        %3705 = vmatprep.mubr.bf16.mxu0 0
        %3706 = vmatmul.mubr.bf16.gmra.mrb[0].mxu0 %v3572
        %v3707 = vpop.f32.mrb[0].mxu0
        %v3708 = vadd.f32 0.0, %v3707
        %v3709 = vpop.f32.mrb[0].mxu0
        %v3710 = vpop.f32.mrb[0].mxu0
        %v3711 = vadd.f32 0.0, %v3710
        %v3712 = vpop.f32.mrb[0].mxu0
        %3713 = vmatprep.mubr.bf16.mxu0 0
        %3714 = vmatmul.mubr.bf16.gmra.mrb[0].mxu0 %v3573
        %v3715 = vpop.f32.mrb[0].mxu0
        %v3716 = vadd.f32 0.0, %v3715
        %v3717 = vpop.f32.mrb[0].mxu0
        %v3718 = vpop.f32.mrb[0].mxu0
        %v3719 = vadd.f32 0.0, %v3718
        %v3720 = vpop.f32.mrb[0].mxu0
        %3721 = vmatprep.mubr.bf16.mxu0 0
        %3722 = vmatmul.mubr.bf16.gmra.mrb[0].mxu0 %v3574
        %v3723 = vpop.f32.mrb[0].mxu0
        %v3724 = vadd.f32 0.0, %v3723
        %v3725 = vpop.f32.mrb[0].mxu0
        %v3726 = vpop.f32.mrb[0].mxu0
        %v3727 = vadd.f32 0.0, %v3726
        %v3728 = vpop.f32.mrb[0].mxu0
        %3729 = vmatprep.mubr.bf16.mxu0 0
        %3730 = vmatmul.mubr.bf16.gmra.mrb[0].mxu0 %v3575
        %v3731 = vpop.f32.mrb[0].mxu0
        %v3732 = vadd.f32 0.0, %v3731
        %v3733 = vpop.f32.mrb[0].mxu0
        %v3734 = vpop.f32.mrb[0].mxu0
        %v3735 = vadd.f32 0.0, %v3734
        %v3736 = vpop.f32.mrb[0].mxu0
        %3737 = vmatprep.mubr.bf16.mxu0 0
        %3738 = vmatmul.mubr.bf16.gmra.mrb[0].mxu0 %v3576
        %v3739 = vpop.f32.mrb[0].mxu0
        %v3740 = vadd.f32 0.0, %v3739
        %v3741 = vpop.f32.mrb[0].mxu0
        %v3742 = vpop.f32.mrb[0].mxu0
        %v3743 = vadd.f32 0.0, %v3742
        %v3744 = vpop.f32.mrb[0].mxu0
        %3745 = vmatprep.mubr.bf16.mxu0 0
        %3746 = vmatmul.mubr.bf16.gmra.mrb[0].mxu0 %v3577
        %v3747 = vpop.f32.mrb[0].mxu0
        %v3748 = vadd.f32 0.0, %v3747
        %v3749 = vpop.f32.mrb[0].mxu0
        %v3750 = vpop.f32.mrb[0].mxu0
        %v3751 = vadd.f32 0.0, %v3750
        %v3752 = vpop.f32.mrb[0].mxu0
        %3753 = vmatprep.mubr.bf16.mxu0 0
        %3754 = vmatmul.mubr.bf16.gmra.mrb[0].mxu0 %v3578
        %v3755 = vpop.f32.mrb[0].mxu0
        %v3756 = vadd.f32 0.0, %v3755
        %v3757 = vpop.f32.mrb[0].mxu0
        %v3758 = vpop.f32.mrb[0].mxu0
        %v3759 = vadd.f32 0.0, %v3758
        %v3760 = vpop.f32.mrb[0].mxu0
        %3761 = vmatprep.mubr.bf16.mxu0 0
        %3762 = vmatmul.mubr.bf16.gmra.mrb[0].mxu0 %v3579
        %v3763 = vpop.f32.mrb[0].mxu0
        %v3764 = vadd.f32 0.0, %v3763
        %v3765 = vpop.f32.mrb[0].mxu0
        %v3766 = vpop.f32.mrb[0].mxu0
        %v3767 = vadd.f32 0.0, %v3766
        %v3768 = vpop.f32.mrb[0].mxu0
        %3769 = vmatprep.mubr.bf16.mxu0 0
        %3770 = vmatmul.mubr.bf16.gmra.mrb[0].mxu0 %v3580
        %v3771 = vpop.f32.mrb[0].mxu0
        %v3772 = vadd.f32 0.0, %v3771
        %v3773 = vpop.f32.mrb[0].mxu0
        %v3774 = vpop.f32.mrb[0].mxu0
        %v3775 = vadd.f32 0.0, %v3774
        %v3776 = vpop.f32.mrb[0].mxu0
        %3777 = vmatprep.mubr.bf16.mxu0 0
        %3778 = vmatmul.mubr.bf16.gmra.mrb[0].mxu0 %v3581
        %v3779 = vpop.f32.mrb[0].mxu0
        %v3780 = vadd.f32 0.0, %v3779
        %v3781 = vpop.f32.mrb[0].mxu0
        %v3782 = vpop.f32.mrb[0].mxu0
        %v3783 = vadd.f32 0.0, %v3782
        %v3784 = vpop.f32.mrb[0].mxu0
        %3785 = vmatprep.mubr.bf16.mxu0 0
        %3786 = vmatmul.mubr.bf16.gmra.mrb[0].mxu0 %v3582
        %v3787 = vpop.f32.mrb[0].mxu0
        %v3788 = vadd.f32 0.0, %v3787
        %v3789 = vpop.f32.mrb[0].mxu0
        %v3790 = vpop.f32.mrb[0].mxu0
        %v3791 = vadd.f32 0.0, %v3790
        %v3792 = vpop.f32.mrb[0].mxu0
        %3793 = vmatprep.mubr.bf16.mxu0 0
        %3794 = vmatmul.mubr.bf16.gmra.mrb[0].mxu0 %v3583
        %v3795 = vpop.f32.mrb[0].mxu0
        %v3796 = vadd.f32 0.0, %v3795
        %v3797 = vpop.f32.mrb[0].mxu0
        %v3798 = vpop.f32.mrb[0].mxu0
        %v3799 = vadd.f32 0.0, %v3798
        %v3800 = vpop.f32.mrb[0].mxu0
        %3801 = vmatprep.mubr.bf16.mxu0 0
        %3802 = vmatmul.mubr.bf16.gmra.mrb[0].mxu0 %v3584
        %v3803 = vpop.f32.mrb[0].mxu0
        %v3804 = vadd.f32 0.0, %v3803
        %v3805 = vpop.f32.mrb[0].mxu0
        %v3806 = vpop.f32.mrb[0].mxu0
        %v3807 = vadd.f32 0.0, %v3806
        %v3808 = vpop.f32.mrb[0].mxu0
        %3809 = vdwg.mxu0
        %v3810 = vadd.f32 %v3423, %v3684
        %v3811 = vadd.f32 %v3424, %v3687
        %v3812 = vadd.f32 %v3425, %v3692
        %v3813 = vadd.f32 %v3426, %v3695
        %v3814 = vadd.f32 %v3427, %v3700
        %v3815 = vadd.f32 %v3428, %v3703
        %v3816 = vadd.f32 %v3429, %v3708
        %v3817 = vadd.f32 %v3430, %v3711
        %v3818 = vadd.f32 %v3431, %v3716
        %v3819 = vadd.f32 %v3432, %v3719
        %v3820 = vadd.f32 %v3433, %v3724
        %v3821 = vadd.f32 %v3434, %v3727
        %v3822 = vadd.f32 %v3435, %v3732
        %v3823 = vadd.f32 %v3436, %v3735
        %v3824 = vadd.f32 %v3437, %v3740
        %v3825 = vadd.f32 %v3438, %v3743
        %v3826 = vadd.f32 %v3439, %v3748
        %v3827 = vadd.f32 %v3440, %v3751
        %v3828 = vadd.f32 %v3441, %v3756
        %v3829 = vadd.f32 %v3442, %v3759
        %v3830 = vadd.f32 %v3443, %v3764
        %v3831 = vadd.f32 %v3444, %v3767
        %v3832 = vadd.f32 %v3445, %v3772
        %v3833 = vadd.f32 %v3446, %v3775
        %v3834 = vadd.f32 %v3447, %v3780
        %v3835 = vadd.f32 %v3448, %v3783
        %v3836 = vadd.f32 %v3449, %v3788
        %v3837 = vadd.f32 %v3450, %v3791
        %v3838 = vadd.f32 %v3451, %v3796
        %v3839 = vadd.f32 %v3452, %v3799
        %v3840 = vadd.f32 %v3453, %v3804
        %v3841 = vadd.f32 %v3454, %v3807
        %v3842 = vld [vmem:[%s3455] sm:$0xf]
        %v3843 = vld [vmem:[%s3455 + $0x4] sm:$0xf]
        %v3844 = vld [vmem:[%s3455 + $0x8] sm:$0x1]
        %v3845 = vld [vmem:[%s3455 + $0xc] sm:$0xf]
        %v3846 = vld [vmem:[%s3455 + $0x10] sm:$0xf]
        %v3847 = vld [vmem:[%s3455 + $0x14] sm:$0x1]
        %v3848 = vld [vmem:[%s3455 + $0x18] sm:$0xf]
        %v3849 = vld [vmem:[%s3455 + $0x1c] sm:$0xf]
        %v3850 = vld [vmem:[%s3455 + $0x20] sm:$0x1]
        %v3851 = vld [vmem:[%s3455 + $0x24] sm:$0xf]
        %v3852 = vld [vmem:[%s3455 + $0x28] sm:$0xf]
        %v3853 = vld [vmem:[%s3455 + $0x2c] sm:$0x1]
        %v3854 = vld [vmem:[%s3455 + $0x30] sm:$0xf]
        %v3855 = vld [vmem:[%s3455 + $0x34] sm:$0xf]
        %v3856 = vld [vmem:[%s3455 + $0x38] sm:$0x1]
        %v3857 = vld [vmem:[%s3455 + $0x3c] sm:$0xf]
        %v3858 = vld [vmem:[%s3455 + $0x40] sm:$0xf]
        %v3859 = vld [vmem:[%s3455 + $0x44] sm:$0x1]
        %v3860 = vld [vmem:[%s3455 + $0x48] sm:$0xf]
        %v3861 = vld [vmem:[%s3455 + $0x4c] sm:$0xf]
        %v3862 = vld [vmem:[%s3455 + $0x50] sm:$0x1]
        %v3863 = vld [vmem:[%s3455 + $0x54] sm:$0xf]
        %v3864 = vld [vmem:[%s3455 + $0x58] sm:$0xf]
        %v3865 = vld [vmem:[%s3455 + $0x5c] sm:$0x1]
        %v3866 = vld [vmem:[%s3455 + $0x60] sm:$0xf]
        %v3867 = vld [vmem:[%s3455 + $0x64] sm:$0xf]
        %v3868 = vld [vmem:[%s3455 + $0x68] sm:$0x1]
        %v3869 = vld [vmem:[%s3455 + $0x6c] sm:$0xf]
        %v3870 = vld [vmem:[%s3455 + $0x70] sm:$0xf]
        %v3871 = vld [vmem:[%s3455 + $0x74] sm:$0x1]
        %v3872 = vld [vmem:[%s3455 + $0x78] sm:$0xf]
        %v3873 = vld [vmem:[%s3455 + $0x7c] sm:$0xf]
        %v3874 = vld [vmem:[%s3455 + $0x80] sm:$0x1]
        %v3875 = vld [vmem:[%s3455 + $0x84] sm:$0xf]
        %v3876 = vld [vmem:[%s3455 + $0x88] sm:$0xf]
        %v3877 = vld [vmem:[%s3455 + $0x8c] sm:$0x1]
        %v3878 = vld [vmem:[%s3455 + $0x90] sm:$0xf]
        %v3879 = vld [vmem:[%s3455 + $0x94] sm:$0xf]
        %v3880 = vld [vmem:[%s3455 + $0x98] sm:$0x1]
        %v3881 = vld [vmem:[%s3455 + $0x9c] sm:$0xf]
        %v3882 = vld [vmem:[%s3455 + $0xa0] sm:$0xf]
        %v3883 = vld [vmem:[%s3455 + $0xa4] sm:$0x1]
        %v3884 = vld [vmem:[%s3455 + $0xa8] sm:$0xf]
        %v3885 = vld [vmem:[%s3455 + $0xac] sm:$0xf]
        %v3886 = vld [vmem:[%s3455 + $0xb0] sm:$0x1]
        %v3887 = vld [vmem:[%s3455 + $0xb4] sm:$0xf]
        %v3888 = vld [vmem:[%s3455 + $0xb8] sm:$0xf]
        %v3889 = vld [vmem:[%s3455 + $0xbc] sm:$0x1]
        %v3891 = vshrl.u32 %v3842, 16
        %v3893 = vrot.slane %v3891, 4
        %v3894 = vshll.u32 %v3842, 16
        %v3896 = vrot.slane %v3894, 5
        %v3897 = vor.u32 %v3893, %v3896
        %v3898 = vrot.slane %v3897, 4
        %v3900 = vshll.u32 %v3843, 16
        %v3902 = vrot.slane %v3900, 5
        %v3903 = vsel %vm351, %v3898, %v3902
        %v3904 = vshrl.u32 %v3843, 16
        %v3906 = vrot.slane %v3904, 4
        %v3907 = vor.u32 %v3906, %v3902
        %v3908 = vrot.slane %v3907, 4
        %v3910 = vshll.u32 %v3844, 16
        %v3912 = vrot.slane %v3910, 5
        %v3913 = vsel %vm351, %v3908, %v3912
        %v3915 = vshrl.u32 %v3845, 16
        %v3917 = vrot.slane %v3915, 4
        %v3918 = vshll.u32 %v3845, 16
        %v3920 = vrot.slane %v3918, 5
        %v3921 = vor.u32 %v3917, %v3920
        %v3922 = vrot.slane %v3921, 4
        %v3924 = vshll.u32 %v3846, 16
        %v3926 = vrot.slane %v3924, 5
        %v3927 = vsel %vm351, %v3922, %v3926
        %v3928 = vshrl.u32 %v3846, 16
        %v3930 = vrot.slane %v3928, 4
        %v3931 = vor.u32 %v3930, %v3926
        %v3932 = vrot.slane %v3931, 4
        %v3934 = vshll.u32 %v3847, 16
        %v3936 = vrot.slane %v3934, 5
        %v3937 = vsel %vm351, %v3932, %v3936
        %v3939 = vshrl.u32 %v3848, 16
        %v3941 = vrot.slane %v3939, 4
        %v3942 = vshll.u32 %v3848, 16
        %v3944 = vrot.slane %v3942, 5
        %v3945 = vor.u32 %v3941, %v3944
        %v3946 = vrot.slane %v3945, 4
        %v3948 = vshll.u32 %v3849, 16
        %v3950 = vrot.slane %v3948, 5
        %v3951 = vsel %vm351, %v3946, %v3950
        %v3952 = vshrl.u32 %v3849, 16
        %v3954 = vrot.slane %v3952, 4
        %v3955 = vor.u32 %v3954, %v3950
        %v3956 = vrot.slane %v3955, 4
        %v3958 = vshll.u32 %v3850, 16
        %v3960 = vrot.slane %v3958, 5
        %v3961 = vsel %vm351, %v3956, %v3960
        %v3963 = vshrl.u32 %v3851, 16
        %v3965 = vrot.slane %v3963, 4
        %v3966 = vshll.u32 %v3851, 16
        %v3968 = vrot.slane %v3966, 5
        %v3969 = vor.u32 %v3965, %v3968
        %v3970 = vrot.slane %v3969, 4
        %v3972 = vshll.u32 %v3852, 16
        %v3974 = vrot.slane %v3972, 5
        %v3975 = vsel %vm351, %v3970, %v3974
        %v3976 = vshrl.u32 %v3852, 16
        %v3978 = vrot.slane %v3976, 4
        %v3979 = vor.u32 %v3978, %v3974
        %v3980 = vrot.slane %v3979, 4
        %v3982 = vshll.u32 %v3853, 16
        %v3984 = vrot.slane %v3982, 5
        %v3985 = vsel %vm351, %v3980, %v3984
        %v3987 = vshrl.u32 %v3854, 16
        %v3989 = vrot.slane %v3987, 4
        %v3990 = vshll.u32 %v3854, 16
        %v3992 = vrot.slane %v3990, 5
        %v3993 = vor.u32 %v3989, %v3992
        %v3994 = vrot.slane %v3993, 4
        %v3996 = vshll.u32 %v3855, 16
        %v3998 = vrot.slane %v3996, 5
        %v3999 = vsel %vm351, %v3994, %v3998
        %v4000 = vshrl.u32 %v3855, 16
        %v4002 = vrot.slane %v4000, 4
        %v4003 = vor.u32 %v4002, %v3998
        %v4004 = vrot.slane %v4003, 4
        %v4006 = vshll.u32 %v3856, 16
        %v4008 = vrot.slane %v4006, 5
        %v4009 = vsel %vm351, %v4004, %v4008
        %v4011 = vshrl.u32 %v3857, 16
        %v4013 = vrot.slane %v4011, 4
        %v4014 = vshll.u32 %v3857, 16
        %v4016 = vrot.slane %v4014, 5
        %v4017 = vor.u32 %v4013, %v4016
        %v4018 = vrot.slane %v4017, 4
        %v4020 = vshll.u32 %v3858, 16
        %v4022 = vrot.slane %v4020, 5
        %v4023 = vsel %vm351, %v4018, %v4022
        %v4024 = vshrl.u32 %v3858, 16
        %v4026 = vrot.slane %v4024, 4
        %v4027 = vor.u32 %v4026, %v4022
        %v4028 = vrot.slane %v4027, 4
        %v4030 = vshll.u32 %v3859, 16
        %v4032 = vrot.slane %v4030, 5
        %v4033 = vsel %vm351, %v4028, %v4032
        %v4035 = vshrl.u32 %v3860, 16
        %v4037 = vrot.slane %v4035, 4
        %v4038 = vshll.u32 %v3860, 16
        %v4040 = vrot.slane %v4038, 5
        %v4041 = vor.u32 %v4037, %v4040
        %v4042 = vrot.slane %v4041, 4
        %v4044 = vshll.u32 %v3861, 16
        %v4046 = vrot.slane %v4044, 5
        %v4047 = vsel %vm351, %v4042, %v4046
        %v4048 = vshrl.u32 %v3861, 16
        %v4050 = vrot.slane %v4048, 4
        %v4051 = vor.u32 %v4050, %v4046
        %v4052 = vrot.slane %v4051, 4
        %v4054 = vshll.u32 %v3862, 16
        %v4056 = vrot.slane %v4054, 5
        %v4057 = vsel %vm351, %v4052, %v4056
        %v4059 = vshrl.u32 %v3863, 16
        %v4061 = vrot.slane %v4059, 4
        %v4062 = vshll.u32 %v3863, 16
        %v4064 = vrot.slane %v4062, 5
        %v4065 = vor.u32 %v4061, %v4064
        %v4066 = vrot.slane %v4065, 4
        %v4068 = vshll.u32 %v3864, 16
        %v4070 = vrot.slane %v4068, 5
        %v4071 = vsel %vm351, %v4066, %v4070
        %v4072 = vshrl.u32 %v3864, 16
        %v4074 = vrot.slane %v4072, 4
        %v4075 = vor.u32 %v4074, %v4070
        %v4076 = vrot.slane %v4075, 4
        %v4078 = vshll.u32 %v3865, 16
        %v4080 = vrot.slane %v4078, 5
        %v4081 = vsel %vm351, %v4076, %v4080
        %v4083 = vshrl.u32 %v3866, 16
        %v4085 = vrot.slane %v4083, 4
        %v4086 = vshll.u32 %v3866, 16
        %v4088 = vrot.slane %v4086, 5
        %v4089 = vor.u32 %v4085, %v4088
        %v4090 = vrot.slane %v4089, 4
        %v4092 = vshll.u32 %v3867, 16
        %v4094 = vrot.slane %v4092, 5
        %v4095 = vsel %vm351, %v4090, %v4094
        %v4096 = vshrl.u32 %v3867, 16
        %v4098 = vrot.slane %v4096, 4
        %v4099 = vor.u32 %v4098, %v4094
        %v4100 = vrot.slane %v4099, 4
        %v4102 = vshll.u32 %v3868, 16
        %v4104 = vrot.slane %v4102, 5
        %v4105 = vsel %vm351, %v4100, %v4104
        %v4107 = vshrl.u32 %v3869, 16
        %v4109 = vrot.slane %v4107, 4
        %v4110 = vshll.u32 %v3869, 16
        %v4112 = vrot.slane %v4110, 5
        %v4113 = vor.u32 %v4109, %v4112
        %v4114 = vrot.slane %v4113, 4
        %v4116 = vshll.u32 %v3870, 16
        %v4118 = vrot.slane %v4116, 5
        %v4119 = vsel %vm351, %v4114, %v4118
        %v4120 = vshrl.u32 %v3870, 16
        %v4122 = vrot.slane %v4120, 4
        %v4123 = vor.u32 %v4122, %v4118
        %v4124 = vrot.slane %v4123, 4
        %v4126 = vshll.u32 %v3871, 16
        %v4128 = vrot.slane %v4126, 5
        %v4129 = vsel %vm351, %v4124, %v4128
        %v4131 = vshrl.u32 %v3872, 16
        %v4133 = vrot.slane %v4131, 4
        %v4134 = vshll.u32 %v3872, 16
        %v4136 = vrot.slane %v4134, 5
        %v4137 = vor.u32 %v4133, %v4136
        %v4138 = vrot.slane %v4137, 4
        %v4140 = vshll.u32 %v3873, 16
        %v4142 = vrot.slane %v4140, 5
        %v4143 = vsel %vm351, %v4138, %v4142
        %v4144 = vshrl.u32 %v3873, 16
        %v4146 = vrot.slane %v4144, 4
        %v4147 = vor.u32 %v4146, %v4142
        %v4148 = vrot.slane %v4147, 4
        %v4150 = vshll.u32 %v3874, 16
        %v4152 = vrot.slane %v4150, 5
        %v4153 = vsel %vm351, %v4148, %v4152
        %v4155 = vshrl.u32 %v3875, 16
        %v4157 = vrot.slane %v4155, 4
        %v4158 = vshll.u32 %v3875, 16
        %v4160 = vrot.slane %v4158, 5
        %v4161 = vor.u32 %v4157, %v4160
        %v4162 = vrot.slane %v4161, 4
        %v4164 = vshll.u32 %v3876, 16
        %v4166 = vrot.slane %v4164, 5
        %v4167 = vsel %vm351, %v4162, %v4166
        %v4168 = vshrl.u32 %v3876, 16
        %v4170 = vrot.slane %v4168, 4
        %v4171 = vor.u32 %v4170, %v4166
        %v4172 = vrot.slane %v4171, 4
        %v4174 = vshll.u32 %v3877, 16
        %v4176 = vrot.slane %v4174, 5
        %v4177 = vsel %vm351, %v4172, %v4176
        %v4179 = vshrl.u32 %v3878, 16
        %v4181 = vrot.slane %v4179, 4
        %v4182 = vshll.u32 %v3878, 16
        %v4184 = vrot.slane %v4182, 5
        %v4185 = vor.u32 %v4181, %v4184
        %v4186 = vrot.slane %v4185, 4
        %v4188 = vshll.u32 %v3879, 16
        %v4190 = vrot.slane %v4188, 5
        %v4191 = vsel %vm351, %v4186, %v4190
        %v4192 = vshrl.u32 %v3879, 16
        %v4194 = vrot.slane %v4192, 4
        %v4195 = vor.u32 %v4194, %v4190
        %v4196 = vrot.slane %v4195, 4
        %v4198 = vshll.u32 %v3880, 16
        %v4200 = vrot.slane %v4198, 5
        %v4201 = vsel %vm351, %v4196, %v4200
        %v4203 = vshrl.u32 %v3881, 16
        %v4205 = vrot.slane %v4203, 4
        %v4206 = vshll.u32 %v3881, 16
        %v4208 = vrot.slane %v4206, 5
        %v4209 = vor.u32 %v4205, %v4208
        %v4210 = vrot.slane %v4209, 4
        %v4212 = vshll.u32 %v3882, 16
        %v4214 = vrot.slane %v4212, 5
        %v4215 = vsel %vm351, %v4210, %v4214
        %v4216 = vshrl.u32 %v3882, 16
        %v4218 = vrot.slane %v4216, 4
        %v4219 = vor.u32 %v4218, %v4214
        %v4220 = vrot.slane %v4219, 4
        %v4222 = vshll.u32 %v3883, 16
        %v4224 = vrot.slane %v4222, 5
        %v4225 = vsel %vm351, %v4220, %v4224
        %v4227 = vshrl.u32 %v3884, 16
        %v4229 = vrot.slane %v4227, 4
        %v4230 = vshll.u32 %v3884, 16
        %v4232 = vrot.slane %v4230, 5
        %v4233 = vor.u32 %v4229, %v4232
        %v4234 = vrot.slane %v4233, 4
        %v4236 = vshll.u32 %v3885, 16
        %v4238 = vrot.slane %v4236, 5
        %v4239 = vsel %vm351, %v4234, %v4238
        %v4240 = vshrl.u32 %v3885, 16
        %v4242 = vrot.slane %v4240, 4
        %v4243 = vor.u32 %v4242, %v4238
        %v4244 = vrot.slane %v4243, 4
        %v4246 = vshll.u32 %v3886, 16
        %v4248 = vrot.slane %v4246, 5
        %v4249 = vsel %vm351, %v4244, %v4248
        %v4251 = vshrl.u32 %v3887, 16
        %v4253 = vrot.slane %v4251, 4
        %v4254 = vshll.u32 %v3887, 16
        %v4256 = vrot.slane %v4254, 5
        %v4257 = vor.u32 %v4253, %v4256
        %v4258 = vrot.slane %v4257, 4
        %v4260 = vshll.u32 %v3888, 16
        %v4262 = vrot.slane %v4260, 5
        %v4263 = vsel %vm351, %v4258, %v4262
        %v4264 = vshrl.u32 %v3888, 16
        %v4266 = vrot.slane %v4264, 4
        %v4267 = vor.u32 %v4266, %v4262
        %v4268 = vrot.slane %v4267, 4
        %v4270 = vshll.u32 %v3889, 16
        %v4272 = vrot.slane %v4270, 5
        %v4273 = vsel %vm351, %v4268, %v4272
        %s4274 = scalar_lea.vmem %s1, 448
        %v4275 = vld [vmem:[%s4274] sm:$0xf]
        %v4276 = vld [vmem:[%s4274 + $0x4] sm:$0xf]
        %v4277 = vld [vmem:[%s4274 + $0x8] sm:$0xf]
        %v4278 = vld [vmem:[%s4274 + $0xc] sm:$0xf]
        %v4279 = vld [vmem:[%s4274 + $0x10] sm:$0xf]
        %v4280 = vld [vmem:[%s4274 + $0x14] sm:$0xf]
        %v4281 = vld [vmem:[%s4274 + $0x18] sm:$0xf]
        %v4282 = vld [vmem:[%s4274 + $0x1c] sm:$0xf]
        %v4283 = vld [vmem:[%s4274 + $0x20] sm:$0xf]
        %v4284 = vld [vmem:[%s4274 + $0x24] sm:$0xf]
        %v4285 = vld [vmem:[%s4274 + $0x28] sm:$0xf]
        %v4286 = vld [vmem:[%s4274 + $0x2c] sm:$0xf]
        %v4287 = vld [vmem:[%s4274 + $0x30] sm:$0xf]
        %v4288 = vld [vmem:[%s4274 + $0x34] sm:$0xf]
        %v4289 = vld [vmem:[%s4274 + $0x38] sm:$0xf]
        %v4290 = vld [vmem:[%s4274 + $0x3c] sm:$0xf]
        %v4291 = vunpack.c.l.b16 %v3903
        %v4292 = vunpack.c.l.b16 %v3913
        %v4293 = vunpack.c.l.b16 %v3927
        %v4294 = vunpack.c.l.b16 %v3937
        %v4295 = vunpack.c.l.b16 %v3951
        %v4296 = vunpack.c.l.b16 %v3961
        %v4297 = vunpack.c.l.b16 %v3975
        %v4298 = vunpack.c.l.b16 %v3985
        %v4299 = vunpack.c.l.b16 %v3999
        %v4300 = vunpack.c.l.b16 %v4009
        %v4301 = vunpack.c.l.b16 %v4023
        %v4302 = vunpack.c.l.b16 %v4033
        %v4303 = vunpack.c.l.b16 %v4047
        %v4304 = vunpack.c.l.b16 %v4057
        %v4305 = vunpack.c.l.b16 %v4071
        %v4306 = vunpack.c.l.b16 %v4081
        %v4307 = vunpack.c.l.b16 %v4095
        %v4308 = vunpack.c.l.b16 %v4105
        %v4309 = vunpack.c.l.b16 %v4119
        %v4310 = vunpack.c.l.b16 %v4129
        %v4311 = vunpack.c.l.b16 %v4143
        %v4312 = vunpack.c.l.b16 %v4153
        %v4313 = vunpack.c.l.b16 %v4167
        %v4314 = vunpack.c.l.b16 %v4177
        %v4315 = vunpack.c.l.b16 %v4191
        %v4316 = vunpack.c.l.b16 %v4201
        %v4317 = vunpack.c.l.b16 %v4215
        %v4318 = vunpack.c.l.b16 %v4225
        %v4319 = vunpack.c.l.b16 %v4239
        %v4320 = vunpack.c.l.b16 %v4249
        %v4321 = vunpack.c.l.b16 %v4263
        %v4322 = vunpack.c.l.b16 %v4273
        %v4323 = vpack.c.b16 %v4292, %v4291
        %v4324 = vpack.c.b16 %v4294, %v4293
        %v4325 = vpack.c.b16 %v4296, %v4295
        %v4326 = vpack.c.b16 %v4298, %v4297
        %v4327 = vpack.c.b16 %v4300, %v4299
        %v4328 = vpack.c.b16 %v4302, %v4301
        %v4329 = vpack.c.b16 %v4304, %v4303
        %v4330 = vpack.c.b16 %v4306, %v4305
        %v4331 = vpack.c.b16 %v4308, %v4307
        %v4332 = vpack.c.b16 %v4310, %v4309
        %v4333 = vpack.c.b16 %v4312, %v4311
        %v4334 = vpack.c.b16 %v4314, %v4313
        %v4335 = vpack.c.b16 %v4316, %v4315
        %v4336 = vpack.c.b16 %v4318, %v4317
        %v4337 = vpack.c.b16 %v4320, %v4319
        %v4338 = vpack.c.b16 %v4322, %v4321
        %v4371 = vunpack.c.l.b16 %v4275
        %v4372 = vunpack.c.l.b16 %v4276
        %v4373 = vunpack.c.l.b16 %v4277
        %v4374 = vunpack.c.l.b16 %v4278
        %v4375 = vunpack.c.l.b16 %v4279
        %v4376 = vunpack.c.l.b16 %v4280
        %v4377 = vunpack.c.l.b16 %v4281
        %v4378 = vunpack.c.l.b16 %v4282
        %v4379 = vunpack.c.l.b16 %v4283
        %v4380 = vunpack.c.l.b16 %v4284
        %v4381 = vunpack.c.l.b16 %v4285
        %v4382 = vunpack.c.l.b16 %v4286
        %v4383 = vunpack.c.l.b16 %v4287
        %v4384 = vunpack.c.l.b16 %v4288
        %v4385 = vunpack.c.l.b16 %v4289
        %v4386 = vunpack.c.l.b16 %v4290
        %v4387 = vpack.c.b16 %v4372, %v4371
        %v4388 = vpack.c.b16 %v4374, %v4373
        %v4389 = vpack.c.b16 %v4376, %v4375
        %v4390 = vpack.c.b16 %v4378, %v4377
        %v4391 = vpack.c.b16 %v4380, %v4379
        %v4392 = vpack.c.b16 %v4382, %v4381
        %v4393 = vpack.c.b16 %v4384, %v4383
        %v4394 = vpack.c.b16 %v4386, %v4385
        %4403 = vmatprep.subr.bf16.mxu0 0
        %4404 = vmatpush1.bf16.msra.mxu0 %v4387
        %4405 = vmatprep.subr.bf16.mxu0 0
        %4406 = vmatpush1.bf16.msra.mxu0 %v4388
        %4407 = vmatprep.subr.bf16.mxu0 0
        %4408 = vmatpush1.bf16.msra.mxu0 %v4389
        %4409 = vmatprep.subr.bf16.mxu0 0
        %4410 = vmatpush1.bf16.msra.mxu0 %v4390
        %4411 = vmatprep.subr.bf16.mxu0 0
        %4412 = vmatpush1.bf16.msra.mxu0 %v4391
        %4413 = vmatprep.subr.bf16.mxu0 0
        %4414 = vmatpush1.bf16.msra.mxu0 %v4392
        %4415 = vmatprep.subr.bf16.mxu0 0
        %4416 = vmatpush1.bf16.msra.mxu0 %v4393
        %4417 = vmatprep.subr.bf16.mxu0 0
        %4418 = vmatpush1.bf16.msra.mxu0 %v4394
        %4419 = vmatprep.subr.bf16.mxu0 0
        %4420 = vmatpush1.bf16.msra.mxu0 0
        %4421 = vmatprep.subr.bf16.mxu0 0
        %4422 = vmatpush1.bf16.msra.mxu0 0
        %4423 = vmatprep.subr.bf16.mxu0 0
        %4424 = vmatpush1.bf16.msra.mxu0 0
        %4425 = vmatprep.subr.bf16.mxu0 0
        %4426 = vmatpush1.bf16.msra.mxu0 0
        %4427 = vmatprep.subr.bf16.mxu0 0
        %4428 = vmatpush1.bf16.msra.mxu0 0
        %4429 = vmatprep.subr.bf16.mxu0 0
        %4430 = vmatpush1.bf16.msra.mxu0 0
        %4431 = vmatprep.subr.bf16.mxu0 0
        %4432 = vmatpush1.bf16.msra.mxu0 0
        %4433 = vmatprep.subr.bf16.mxu0 0
        %4434 = vmatpush1.bf16.msra.mxu0 0
        %4435 = vmatprep.mubr.bf16.mxu0 0
        %4436 = vmatmul.mubr.bf16.gmra.mrb[0].mxu0 %v4323
        %v4437 = vpop.f32.mrb[0].mxu0
        %v4438 = vadd.f32 0.0, %v4437
        %v4439 = vpop.f32.mrb[0].mxu0
        %v4440 = vpop.f32.mrb[0].mxu0
        %v4441 = vadd.f32 0.0, %v4440
        %v4442 = vpop.f32.mrb[0].mxu0
        %4443 = vmatprep.mubr.bf16.mxu0 0
        %4444 = vmatmul.mubr.bf16.gmra.mrb[0].mxu0 %v4324
        %v4445 = vpop.f32.mrb[0].mxu0
        %v4446 = vadd.f32 0.0, %v4445
        %v4447 = vpop.f32.mrb[0].mxu0
        %v4448 = vpop.f32.mrb[0].mxu0
        %v4449 = vadd.f32 0.0, %v4448
        %v4450 = vpop.f32.mrb[0].mxu0
        %4451 = vmatprep.mubr.bf16.mxu0 0
        %4452 = vmatmul.mubr.bf16.gmra.mrb[0].mxu0 %v4325
        %v4453 = vpop.f32.mrb[0].mxu0
        %v4454 = vadd.f32 0.0, %v4453
        %v4455 = vpop.f32.mrb[0].mxu0
        %v4456 = vpop.f32.mrb[0].mxu0
        %v4457 = vadd.f32 0.0, %v4456
        %v4458 = vpop.f32.mrb[0].mxu0
        %4459 = vmatprep.mubr.bf16.mxu0 0
        %4460 = vmatmul.mubr.bf16.gmra.mrb[0].mxu0 %v4326
        %v4461 = vpop.f32.mrb[0].mxu0
        %v4462 = vadd.f32 0.0, %v4461
        %v4463 = vpop.f32.mrb[0].mxu0
        %v4464 = vpop.f32.mrb[0].mxu0
        %v4465 = vadd.f32 0.0, %v4464
        %v4466 = vpop.f32.mrb[0].mxu0
        %4467 = vmatprep.mubr.bf16.mxu0 0
        %4468 = vmatmul.mubr.bf16.gmra.mrb[0].mxu0 %v4327
        %v4469 = vpop.f32.mrb[0].mxu0
        %v4470 = vadd.f32 0.0, %v4469
        %v4471 = vpop.f32.mrb[0].mxu0
        %v4472 = vpop.f32.mrb[0].mxu0
        %v4473 = vadd.f32 0.0, %v4472
        %v4474 = vpop.f32.mrb[0].mxu0
        %4475 = vmatprep.mubr.bf16.mxu0 0
        %4476 = vmatmul.mubr.bf16.gmra.mrb[0].mxu0 %v4328
        %v4477 = vpop.f32.mrb[0].mxu0
        %v4478 = vadd.f32 0.0, %v4477
        %v4479 = vpop.f32.mrb[0].mxu0
        %v4480 = vpop.f32.mrb[0].mxu0
        %v4481 = vadd.f32 0.0, %v4480
        %v4482 = vpop.f32.mrb[0].mxu0
        %4483 = vmatprep.mubr.bf16.mxu0 0
        %4484 = vmatmul.mubr.bf16.gmra.mrb[0].mxu0 %v4329
        %v4485 = vpop.f32.mrb[0].mxu0
        %v4486 = vadd.f32 0.0, %v4485
        %v4487 = vpop.f32.mrb[0].mxu0
        %v4488 = vpop.f32.mrb[0].mxu0
        %v4489 = vadd.f32 0.0, %v4488
        %v4490 = vpop.f32.mrb[0].mxu0
        %4491 = vmatprep.mubr.bf16.mxu0 0
        %4492 = vmatmul.mubr.bf16.gmra.mrb[0].mxu0 %v4330
        %v4493 = vpop.f32.mrb[0].mxu0
        %v4494 = vadd.f32 0.0, %v4493
        %v4495 = vpop.f32.mrb[0].mxu0
        %v4496 = vpop.f32.mrb[0].mxu0
        %v4497 = vadd.f32 0.0, %v4496
        %v4498 = vpop.f32.mrb[0].mxu0
        %4499 = vmatprep.mubr.bf16.mxu0 0
        %4500 = vmatmul.mubr.bf16.gmra.mrb[0].mxu0 %v4331
        %v4501 = vpop.f32.mrb[0].mxu0
        %v4502 = vadd.f32 0.0, %v4501
        %v4503 = vpop.f32.mrb[0].mxu0
        %v4504 = vpop.f32.mrb[0].mxu0
        %v4505 = vadd.f32 0.0, %v4504
        %v4506 = vpop.f32.mrb[0].mxu0
        %4507 = vmatprep.mubr.bf16.mxu0 0
        %4508 = vmatmul.mubr.bf16.gmra.mrb[0].mxu0 %v4332
        %v4509 = vpop.f32.mrb[0].mxu0
        %v4510 = vadd.f32 0.0, %v4509
        %v4511 = vpop.f32.mrb[0].mxu0
        %v4512 = vpop.f32.mrb[0].mxu0
        %v4513 = vadd.f32 0.0, %v4512
        %v4514 = vpop.f32.mrb[0].mxu0
        %4515 = vmatprep.mubr.bf16.mxu0 0
        %4516 = vmatmul.mubr.bf16.gmra.mrb[0].mxu0 %v4333
        %v4517 = vpop.f32.mrb[0].mxu0
        %v4518 = vadd.f32 0.0, %v4517
        %v4519 = vpop.f32.mrb[0].mxu0
        %v4520 = vpop.f32.mrb[0].mxu0
        %v4521 = vadd.f32 0.0, %v4520
        %v4522 = vpop.f32.mrb[0].mxu0
        %4523 = vmatprep.mubr.bf16.mxu0 0
        %4524 = vmatmul.mubr.bf16.gmra.mrb[0].mxu0 %v4334
        %v4525 = vpop.f32.mrb[0].mxu0
        %v4526 = vadd.f32 0.0, %v4525
        %v4527 = vpop.f32.mrb[0].mxu0
        %v4528 = vpop.f32.mrb[0].mxu0
        %v4529 = vadd.f32 0.0, %v4528
        %v4530 = vpop.f32.mrb[0].mxu0
        %4531 = vmatprep.mubr.bf16.mxu0 0
        %4532 = vmatmul.mubr.bf16.gmra.mrb[0].mxu0 %v4335
        %v4533 = vpop.f32.mrb[0].mxu0
        %v4534 = vadd.f32 0.0, %v4533
        %v4535 = vpop.f32.mrb[0].mxu0
        %v4536 = vpop.f32.mrb[0].mxu0
        %v4537 = vadd.f32 0.0, %v4536
        %v4538 = vpop.f32.mrb[0].mxu0
        %4539 = vmatprep.mubr.bf16.mxu0 0
        %4540 = vmatmul.mubr.bf16.gmra.mrb[0].mxu0 %v4336
        %v4541 = vpop.f32.mrb[0].mxu0
        %v4542 = vadd.f32 0.0, %v4541
        %v4543 = vpop.f32.mrb[0].mxu0
        %v4544 = vpop.f32.mrb[0].mxu0
        %v4545 = vadd.f32 0.0, %v4544
        %v4546 = vpop.f32.mrb[0].mxu0
        %4547 = vmatprep.mubr.bf16.mxu0 0
        %4548 = vmatmul.mubr.bf16.gmra.mrb[0].mxu0 %v4337
        %v4549 = vpop.f32.mrb[0].mxu0
        %v4550 = vadd.f32 0.0, %v4549
        %v4551 = vpop.f32.mrb[0].mxu0
        %v4552 = vpop.f32.mrb[0].mxu0
        %v4553 = vadd.f32 0.0, %v4552
        %v4554 = vpop.f32.mrb[0].mxu0
        %4555 = vmatprep.mubr.bf16.mxu0 0
        %4556 = vmatmul.mubr.bf16.gmra.mrb[0].mxu0 %v4338
        %v4557 = vpop.f32.mrb[0].mxu0
        %v4558 = vadd.f32 0.0, %v4557
        %v4559 = vpop.f32.mrb[0].mxu0
        %v4560 = vpop.f32.mrb[0].mxu0
        %v4561 = vadd.f32 0.0, %v4560
        %v4562 = vpop.f32.mrb[0].mxu0
        %4563 = vdwg.mxu0
        %v4564 = vadd.f32 %v3810, %v4438
        %v4565 = vadd.f32 %v3811, %v4441
        %v4566 = vadd.f32 %v3812, %v4446
        %v4567 = vadd.f32 %v3813, %v4449
        %v4568 = vadd.f32 %v3814, %v4454
        %v4569 = vadd.f32 %v3815, %v4457
        %v4570 = vadd.f32 %v3816, %v4462
        %v4571 = vadd.f32 %v3817, %v4465
        %v4572 = vadd.f32 %v3818, %v4470
        %v4573 = vadd.f32 %v3819, %v4473
        %v4574 = vadd.f32 %v3820, %v4478
        %v4575 = vadd.f32 %v3821, %v4481
        %v4576 = vadd.f32 %v3822, %v4486
        %v4577 = vadd.f32 %v3823, %v4489
        %v4578 = vadd.f32 %v3824, %v4494
        %v4579 = vadd.f32 %v3825, %v4497
        %v4580 = vadd.f32 %v3826, %v4502
        %v4581 = vadd.f32 %v3827, %v4505
        %v4582 = vadd.f32 %v3828, %v4510
        %v4583 = vadd.f32 %v3829, %v4513
        %v4584 = vadd.f32 %v3830, %v4518
        %v4585 = vadd.f32 %v3831, %v4521
        %v4586 = vadd.f32 %v3832, %v4526
        %v4587 = vadd.f32 %v3833, %v4529
        %v4588 = vadd.f32 %v3834, %v4534
        %v4589 = vadd.f32 %v3835, %v4537
        %v4590 = vadd.f32 %v3836, %v4542
        %v4591 = vadd.f32 %v3837, %v4545
        %v4592 = vadd.f32 %v3838, %v4550
        %v4593 = vadd.f32 %v3839, %v4553
        %v4594 = vadd.f32 %v3840, %v4558
        %v4595 = vadd.f32 %v3841, %v4561
        %v4596 = vld [vmem:[%s3455] sm:$0xe]
        %v4597 = vld [vmem:[%s3455 + $0xc] sm:$0xe]
        %v4598 = vld [vmem:[%s3455 + $0x18] sm:$0xe]
        %v4599 = vld [vmem:[%s3455 + $0x24] sm:$0xe]
        %v4600 = vld [vmem:[%s3455 + $0x30] sm:$0xe]
        %v4601 = vld [vmem:[%s3455 + $0x3c] sm:$0xe]
        %v4602 = vld [vmem:[%s3455 + $0x48] sm:$0xe]
        %v4603 = vld [vmem:[%s3455 + $0x54] sm:$0xe]
        %v4604 = vld [vmem:[%s3455 + $0x60] sm:$0xe]
        %v4605 = vld [vmem:[%s3455 + $0x6c] sm:$0xe]
        %v4606 = vld [vmem:[%s3455 + $0x78] sm:$0xe]
        %v4607 = vld [vmem:[%s3455 + $0x84] sm:$0xe]
        %v4608 = vld [vmem:[%s3455 + $0x90] sm:$0xe]
        %v4609 = vld [vmem:[%s3455 + $0x9c] sm:$0xe]
        %v4610 = vld [vmem:[%s3455 + $0xa8] sm:$0xe]
        %v4611 = vld [vmem:[%s3455 + $0xb4] sm:$0xe]
        %v4660 = vrot.slane %v4596, 5
        %v4661 = vrot.slane %v4660, 4
        %v4662 = vrot.slane %v3843, 5
        %v4663 = vsel %vm1381, %v4661, %v4662
        %v4664 = vrot.slane %v4662, 4
        %v4665 = vrot.slane %v3844, 5
        %v4666 = vsel %vm1381, %v4664, %v4665
        %v4667 = vrot.slane %v4597, 5
        %v4668 = vrot.slane %v4667, 4
        %v4669 = vrot.slane %v3846, 5
        %v4670 = vsel %vm1381, %v4668, %v4669
        %v4671 = vrot.slane %v4669, 4
        %v4672 = vrot.slane %v3847, 5
        %v4673 = vsel %vm1381, %v4671, %v4672
        %v4674 = vrot.slane %v4598, 5
        %v4675 = vrot.slane %v4674, 4
        %v4676 = vrot.slane %v3849, 5
        %v4677 = vsel %vm1381, %v4675, %v4676
        %v4678 = vrot.slane %v4676, 4
        %v4679 = vrot.slane %v3850, 5
        %v4680 = vsel %vm1381, %v4678, %v4679
        %v4681 = vrot.slane %v4599, 5
        %v4682 = vrot.slane %v4681, 4
        %v4683 = vrot.slane %v3852, 5
        %v4684 = vsel %vm1381, %v4682, %v4683
        %v4685 = vrot.slane %v4683, 4
        %v4686 = vrot.slane %v3853, 5
        %v4687 = vsel %vm1381, %v4685, %v4686
        %v4688 = vrot.slane %v4600, 5
        %v4689 = vrot.slane %v4688, 4
        %v4690 = vrot.slane %v3855, 5
        %v4691 = vsel %vm1381, %v4689, %v4690
        %v4692 = vrot.slane %v4690, 4
        %v4693 = vrot.slane %v3856, 5
        %v4694 = vsel %vm1381, %v4692, %v4693
        %v4695 = vrot.slane %v4601, 5
        %v4696 = vrot.slane %v4695, 4
        %v4697 = vrot.slane %v3858, 5
        %v4698 = vsel %vm1381, %v4696, %v4697
        %v4699 = vrot.slane %v4697, 4
        %v4700 = vrot.slane %v3859, 5
        %v4701 = vsel %vm1381, %v4699, %v4700
        %v4702 = vrot.slane %v4602, 5
        %v4703 = vrot.slane %v4702, 4
        %v4704 = vrot.slane %v3861, 5
        %v4705 = vsel %vm1381, %v4703, %v4704
        %v4706 = vrot.slane %v4704, 4
        %v4707 = vrot.slane %v3862, 5
        %v4708 = vsel %vm1381, %v4706, %v4707
        %v4709 = vrot.slane %v4603, 5
        %v4710 = vrot.slane %v4709, 4
        %v4711 = vrot.slane %v3864, 5
        %v4712 = vsel %vm1381, %v4710, %v4711
        %v4713 = vrot.slane %v4711, 4
        %v4714 = vrot.slane %v3865, 5
        %v4715 = vsel %vm1381, %v4713, %v4714
        %v4716 = vrot.slane %v4604, 5
        %v4717 = vrot.slane %v4716, 4
        %v4718 = vrot.slane %v3867, 5
        %v4719 = vsel %vm1381, %v4717, %v4718
        %v4720 = vrot.slane %v4718, 4
        %v4721 = vrot.slane %v3868, 5
        %v4722 = vsel %vm1381, %v4720, %v4721
        %v4723 = vrot.slane %v4605, 5
        %v4724 = vrot.slane %v4723, 4
        %v4725 = vrot.slane %v3870, 5
        %v4726 = vsel %vm1381, %v4724, %v4725
        %v4727 = vrot.slane %v4725, 4
        %v4728 = vrot.slane %v3871, 5
        %v4729 = vsel %vm1381, %v4727, %v4728
        %v4730 = vrot.slane %v4606, 5
        %v4731 = vrot.slane %v4730, 4
        %v4732 = vrot.slane %v3873, 5
        %v4733 = vsel %vm1381, %v4731, %v4732
        %v4734 = vrot.slane %v4732, 4
        %v4735 = vrot.slane %v3874, 5
        %v4736 = vsel %vm1381, %v4734, %v4735
        %v4737 = vrot.slane %v4607, 5
        %v4738 = vrot.slane %v4737, 4
        %v4739 = vrot.slane %v3876, 5
        %v4740 = vsel %vm1381, %v4738, %v4739
        %v4741 = vrot.slane %v4739, 4
        %v4742 = vrot.slane %v3877, 5
        %v4743 = vsel %vm1381, %v4741, %v4742
        %v4744 = vrot.slane %v4608, 5
        %v4745 = vrot.slane %v4744, 4
        %v4746 = vrot.slane %v3879, 5
        %v4747 = vsel %vm1381, %v4745, %v4746
        %v4748 = vrot.slane %v4746, 4
        %v4749 = vrot.slane %v3880, 5
        %v4750 = vsel %vm1381, %v4748, %v4749
        %v4751 = vrot.slane %v4609, 5
        %v4752 = vrot.slane %v4751, 4
        %v4753 = vrot.slane %v3882, 5
        %v4754 = vsel %vm1381, %v4752, %v4753
        %v4755 = vrot.slane %v4753, 4
        %v4756 = vrot.slane %v3883, 5
        %v4757 = vsel %vm1381, %v4755, %v4756
        %v4758 = vrot.slane %v4610, 5
        %v4759 = vrot.slane %v4758, 4
        %v4760 = vrot.slane %v3885, 5
        %v4761 = vsel %vm1381, %v4759, %v4760
        %v4762 = vrot.slane %v4760, 4
        %v4763 = vrot.slane %v3886, 5
        %v4764 = vsel %vm1381, %v4762, %v4763
        %v4765 = vrot.slane %v4611, 5
        %v4766 = vrot.slane %v4765, 4
        %v4767 = vrot.slane %v3888, 5
        %v4768 = vsel %vm1381, %v4766, %v4767
        %v4769 = vrot.slane %v4767, 4
        %v4770 = vrot.slane %v3889, 5
        %v4771 = vsel %vm1381, %v4769, %v4770
        %s4772 = scalar_lea.vmem %s1, 512
        %v4773 = vld [vmem:[%s4772] sm:$0xf]
        %v4774 = vld [vmem:[%s4772 + $0x4] sm:$0xf]
        %v4775 = vld [vmem:[%s4772 + $0x8] sm:$0xf]
        %v4776 = vld [vmem:[%s4772 + $0xc] sm:$0xf]
        %v4777 = vld [vmem:[%s4772 + $0x10] sm:$0xf]
        %v4778 = vld [vmem:[%s4772 + $0x14] sm:$0xf]
        %v4779 = vld [vmem:[%s4772 + $0x18] sm:$0xf]
        %v4780 = vld [vmem:[%s4772 + $0x1c] sm:$0xf]
        %v4781 = vld [vmem:[%s4772 + $0x20] sm:$0xf]
        %v4782 = vld [vmem:[%s4772 + $0x24] sm:$0xf]
        %v4783 = vld [vmem:[%s4772 + $0x28] sm:$0xf]
        %v4784 = vld [vmem:[%s4772 + $0x2c] sm:$0xf]
        %v4785 = vld [vmem:[%s4772 + $0x30] sm:$0xf]
        %v4786 = vld [vmem:[%s4772 + $0x34] sm:$0xf]
        %v4787 = vld [vmem:[%s4772 + $0x38] sm:$0xf]
        %v4788 = vld [vmem:[%s4772 + $0x3c] sm:$0xf]
        %v4789 = vunpack.c.l.b16 %v4663
        %v4790 = vunpack.c.l.b16 %v4666
        %v4791 = vunpack.c.l.b16 %v4670
        %v4792 = vunpack.c.l.b16 %v4673
        %v4793 = vunpack.c.l.b16 %v4677
        %v4794 = vunpack.c.l.b16 %v4680
        %v4795 = vunpack.c.l.b16 %v4684
        %v4796 = vunpack.c.l.b16 %v4687
        %v4797 = vunpack.c.l.b16 %v4691
        %v4798 = vunpack.c.l.b16 %v4694
        %v4799 = vunpack.c.l.b16 %v4698
        %v4800 = vunpack.c.l.b16 %v4701
        %v4801 = vunpack.c.l.b16 %v4705
        %v4802 = vunpack.c.l.b16 %v4708
        %v4803 = vunpack.c.l.b16 %v4712
        %v4804 = vunpack.c.l.b16 %v4715
        %v4805 = vunpack.c.l.b16 %v4719
        %v4806 = vunpack.c.l.b16 %v4722
        %v4807 = vunpack.c.l.b16 %v4726
        %v4808 = vunpack.c.l.b16 %v4729
        %v4809 = vunpack.c.l.b16 %v4733
        %v4810 = vunpack.c.l.b16 %v4736
        %v4811 = vunpack.c.l.b16 %v4740
        %v4812 = vunpack.c.l.b16 %v4743
        %v4813 = vunpack.c.l.b16 %v4747
        %v4814 = vunpack.c.l.b16 %v4750
        %v4815 = vunpack.c.l.b16 %v4754
        %v4816 = vunpack.c.l.b16 %v4757
        %v4817 = vunpack.c.l.b16 %v4761
        %v4818 = vunpack.c.l.b16 %v4764
        %v4819 = vunpack.c.l.b16 %v4768
        %v4820 = vunpack.c.l.b16 %v4771
        %v4821 = vpack.c.b16 %v4790, %v4789
        %v4822 = vpack.c.b16 %v4792, %v4791
        %v4823 = vpack.c.b16 %v4794, %v4793
        %v4824 = vpack.c.b16 %v4796, %v4795
        %v4825 = vpack.c.b16 %v4798, %v4797
        %v4826 = vpack.c.b16 %v4800, %v4799
        %v4827 = vpack.c.b16 %v4802, %v4801
        %v4828 = vpack.c.b16 %v4804, %v4803
        %v4829 = vpack.c.b16 %v4806, %v4805
        %v4830 = vpack.c.b16 %v4808, %v4807
        %v4831 = vpack.c.b16 %v4810, %v4809
        %v4832 = vpack.c.b16 %v4812, %v4811
        %v4833 = vpack.c.b16 %v4814, %v4813
        %v4834 = vpack.c.b16 %v4816, %v4815
        %v4835 = vpack.c.b16 %v4818, %v4817
        %v4836 = vpack.c.b16 %v4820, %v4819
        %v4869 = vunpack.c.l.b16 %v4773
        %v4870 = vunpack.c.l.b16 %v4774
        %v4871 = vunpack.c.l.b16 %v4775
        %v4872 = vunpack.c.l.b16 %v4776
        %v4873 = vunpack.c.l.b16 %v4777
        %v4874 = vunpack.c.l.b16 %v4778
        %v4875 = vunpack.c.l.b16 %v4779
        %v4876 = vunpack.c.l.b16 %v4780
        %v4877 = vunpack.c.l.b16 %v4781
        %v4878 = vunpack.c.l.b16 %v4782
        %v4879 = vunpack.c.l.b16 %v4783
        %v4880 = vunpack.c.l.b16 %v4784
        %v4881 = vunpack.c.l.b16 %v4785
        %v4882 = vunpack.c.l.b16 %v4786
        %v4883 = vunpack.c.l.b16 %v4787
        %v4884 = vunpack.c.l.b16 %v4788
        %v4885 = vpack.c.b16 %v4870, %v4869
        %v4886 = vpack.c.b16 %v4872, %v4871
        %v4887 = vpack.c.b16 %v4874, %v4873
        %v4888 = vpack.c.b16 %v4876, %v4875
        %v4889 = vpack.c.b16 %v4878, %v4877
        %v4890 = vpack.c.b16 %v4880, %v4879
        %v4891 = vpack.c.b16 %v4882, %v4881
        %v4892 = vpack.c.b16 %v4884, %v4883
        %4901 = vmatprep.subr.bf16.mxu0 0
        %4902 = vmatpush1.bf16.msra.mxu0 %v4885
        %4903 = vmatprep.subr.bf16.mxu0 0
        %4904 = vmatpush1.bf16.msra.mxu0 %v4886
        %4905 = vmatprep.subr.bf16.mxu0 0
        %4906 = vmatpush1.bf16.msra.mxu0 %v4887
        %4907 = vmatprep.subr.bf16.mxu0 0
        %4908 = vmatpush1.bf16.msra.mxu0 %v4888
        %4909 = vmatprep.subr.bf16.mxu0 0
        %4910 = vmatpush1.bf16.msra.mxu0 %v4889
        %4911 = vmatprep.subr.bf16.mxu0 0
        %4912 = vmatpush1.bf16.msra.mxu0 %v4890
        %4913 = vmatprep.subr.bf16.mxu0 0
        %4914 = vmatpush1.bf16.msra.mxu0 %v4891
        %4915 = vmatprep.subr.bf16.mxu0 0
        %4916 = vmatpush1.bf16.msra.mxu0 %v4892
        %4917 = vmatprep.subr.bf16.mxu0 0
        %4918 = vmatpush1.bf16.msra.mxu0 0
        %4919 = vmatprep.subr.bf16.mxu0 0
        %4920 = vmatpush1.bf16.msra.mxu0 0
        %4921 = vmatprep.subr.bf16.mxu0 0
        %4922 = vmatpush1.bf16.msra.mxu0 0
        %4923 = vmatprep.subr.bf16.mxu0 0
        %4924 = vmatpush1.bf16.msra.mxu0 0
        %4925 = vmatprep.subr.bf16.mxu0 0
        %4926 = vmatpush1.bf16.msra.mxu0 0
        %4927 = vmatprep.subr.bf16.mxu0 0
        %4928 = vmatpush1.bf16.msra.mxu0 0
        %4929 = vmatprep.subr.bf16.mxu0 0
        %4930 = vmatpush1.bf16.msra.mxu0 0
        %4931 = vmatprep.subr.bf16.mxu0 0
        %4932 = vmatpush1.bf16.msra.mxu0 0
        %4933 = vmatprep.mubr.bf16.mxu0 0
        %4934 = vmatmul.mubr.bf16.gmra.mrb[0].mxu0 %v4821
        %v4935 = vpop.f32.mrb[0].mxu0
        %v4936 = vadd.f32 0.0, %v4935
        %v4937 = vpop.f32.mrb[0].mxu0
        %v4938 = vpop.f32.mrb[0].mxu0
        %v4939 = vadd.f32 0.0, %v4938
        %v4940 = vpop.f32.mrb[0].mxu0
        %4941 = vmatprep.mubr.bf16.mxu0 0
        %4942 = vmatmul.mubr.bf16.gmra.mrb[0].mxu0 %v4822
        %v4943 = vpop.f32.mrb[0].mxu0
        %v4944 = vadd.f32 0.0, %v4943
        %v4945 = vpop.f32.mrb[0].mxu0
        %v4946 = vpop.f32.mrb[0].mxu0
        %v4947 = vadd.f32 0.0, %v4946
        %v4948 = vpop.f32.mrb[0].mxu0
        %4949 = vmatprep.mubr.bf16.mxu0 0
        %4950 = vmatmul.mubr.bf16.gmra.mrb[0].mxu0 %v4823
        %v4951 = vpop.f32.mrb[0].mxu0
        %v4952 = vadd.f32 0.0, %v4951
        %v4953 = vpop.f32.mrb[0].mxu0
        %v4954 = vpop.f32.mrb[0].mxu0
        %v4955 = vadd.f32 0.0, %v4954
        %v4956 = vpop.f32.mrb[0].mxu0
        %4957 = vmatprep.mubr.bf16.mxu0 0
        %4958 = vmatmul.mubr.bf16.gmra.mrb[0].mxu0 %v4824
        %v4959 = vpop.f32.mrb[0].mxu0
        %v4960 = vadd.f32 0.0, %v4959
        %v4961 = vpop.f32.mrb[0].mxu0
        %v4962 = vpop.f32.mrb[0].mxu0
        %v4963 = vadd.f32 0.0, %v4962
        %v4964 = vpop.f32.mrb[0].mxu0
        %4965 = vmatprep.mubr.bf16.mxu0 0
        %4966 = vmatmul.mubr.bf16.gmra.mrb[0].mxu0 %v4825
        %v4967 = vpop.f32.mrb[0].mxu0
        %v4968 = vadd.f32 0.0, %v4967
        %v4969 = vpop.f32.mrb[0].mxu0
        %v4970 = vpop.f32.mrb[0].mxu0
        %v4971 = vadd.f32 0.0, %v4970
        %v4972 = vpop.f32.mrb[0].mxu0
        %4973 = vmatprep.mubr.bf16.mxu0 0
        %4974 = vmatmul.mubr.bf16.gmra.mrb[0].mxu0 %v4826
        %v4975 = vpop.f32.mrb[0].mxu0
        %v4976 = vadd.f32 0.0, %v4975
        %v4977 = vpop.f32.mrb[0].mxu0
        %v4978 = vpop.f32.mrb[0].mxu0
        %v4979 = vadd.f32 0.0, %v4978
        %v4980 = vpop.f32.mrb[0].mxu0
        %4981 = vmatprep.mubr.bf16.mxu0 0
        %4982 = vmatmul.mubr.bf16.gmra.mrb[0].mxu0 %v4827
        %v4983 = vpop.f32.mrb[0].mxu0
        %v4984 = vadd.f32 0.0, %v4983
        %v4985 = vpop.f32.mrb[0].mxu0
        %v4986 = vpop.f32.mrb[0].mxu0
        %v4987 = vadd.f32 0.0, %v4986
        %v4988 = vpop.f32.mrb[0].mxu0
        %4989 = vmatprep.mubr.bf16.mxu0 0
        %4990 = vmatmul.mubr.bf16.gmra.mrb[0].mxu0 %v4828
        %v4991 = vpop.f32.mrb[0].mxu0
        %v4992 = vadd.f32 0.0, %v4991
        %v4993 = vpop.f32.mrb[0].mxu0
        %v4994 = vpop.f32.mrb[0].mxu0
        %v4995 = vadd.f32 0.0, %v4994
        %v4996 = vpop.f32.mrb[0].mxu0
        %4997 = vmatprep.mubr.bf16.mxu0 0
        %4998 = vmatmul.mubr.bf16.gmra.mrb[0].mxu0 %v4829
        %v4999 = vpop.f32.mrb[0].mxu0
        %v5000 = vadd.f32 0.0, %v4999
        %v5001 = vpop.f32.mrb[0].mxu0
        %v5002 = vpop.f32.mrb[0].mxu0
        %v5003 = vadd.f32 0.0, %v5002
        %v5004 = vpop.f32.mrb[0].mxu0
        %5005 = vmatprep.mubr.bf16.mxu0 0
        %5006 = vmatmul.mubr.bf16.gmra.mrb[0].mxu0 %v4830
        %v5007 = vpop.f32.mrb[0].mxu0
        %v5008 = vadd.f32 0.0, %v5007
        %v5009 = vpop.f32.mrb[0].mxu0
        %v5010 = vpop.f32.mrb[0].mxu0
        %v5011 = vadd.f32 0.0, %v5010
        %v5012 = vpop.f32.mrb[0].mxu0
        %5013 = vmatprep.mubr.bf16.mxu0 0
        %5014 = vmatmul.mubr.bf16.gmra.mrb[0].mxu0 %v4831
        %v5015 = vpop.f32.mrb[0].mxu0
        %v5016 = vadd.f32 0.0, %v5015
        %v5017 = vpop.f32.mrb[0].mxu0
        %v5018 = vpop.f32.mrb[0].mxu0
        %v5019 = vadd.f32 0.0, %v5018
        %v5020 = vpop.f32.mrb[0].mxu0
        %5021 = vmatprep.mubr.bf16.mxu0 0
        %5022 = vmatmul.mubr.bf16.gmra.mrb[0].mxu0 %v4832
        %v5023 = vpop.f32.mrb[0].mxu0
        %v5024 = vadd.f32 0.0, %v5023
        %v5025 = vpop.f32.mrb[0].mxu0
        %v5026 = vpop.f32.mrb[0].mxu0
        %v5027 = vadd.f32 0.0, %v5026
        %v5028 = vpop.f32.mrb[0].mxu0
        %5029 = vmatprep.mubr.bf16.mxu0 0
        %5030 = vmatmul.mubr.bf16.gmra.mrb[0].mxu0 %v4833
        %v5031 = vpop.f32.mrb[0].mxu0
        %v5032 = vadd.f32 0.0, %v5031
        %v5033 = vpop.f32.mrb[0].mxu0
        %v5034 = vpop.f32.mrb[0].mxu0
        %v5035 = vadd.f32 0.0, %v5034
        %v5036 = vpop.f32.mrb[0].mxu0
        %5037 = vmatprep.mubr.bf16.mxu0 0
        %5038 = vmatmul.mubr.bf16.gmra.mrb[0].mxu0 %v4834
        %v5039 = vpop.f32.mrb[0].mxu0
        %v5040 = vadd.f32 0.0, %v5039
        %v5041 = vpop.f32.mrb[0].mxu0
        %v5042 = vpop.f32.mrb[0].mxu0
        %v5043 = vadd.f32 0.0, %v5042
        %v5044 = vpop.f32.mrb[0].mxu0
        %5045 = vmatprep.mubr.bf16.mxu0 0
        %5046 = vmatmul.mubr.bf16.gmra.mrb[0].mxu0 %v4835
        %v5047 = vpop.f32.mrb[0].mxu0
        %v5048 = vadd.f32 0.0, %v5047
        %v5049 = vpop.f32.mrb[0].mxu0
        %v5050 = vpop.f32.mrb[0].mxu0
        %v5051 = vadd.f32 0.0, %v5050
        %v5052 = vpop.f32.mrb[0].mxu0
        %5053 = vmatprep.mubr.bf16.mxu0 0
        %5054 = vmatmul.mubr.bf16.gmra.mrb[0].mxu0 %v4836
        %v5055 = vpop.f32.mrb[0].mxu0
        %v5056 = vadd.f32 0.0, %v5055
        %v5057 = vpop.f32.mrb[0].mxu0
        %v5058 = vpop.f32.mrb[0].mxu0
        %v5059 = vadd.f32 0.0, %v5058
        %v5060 = vpop.f32.mrb[0].mxu0
        %5061 = vdwg.mxu0
        %v5062 = vadd.f32 %v4564, %v4936
        %v5063 = vadd.f32 %v4565, %v4939
        %v5064 = vadd.f32 %v4566, %v4944
        %v5065 = vadd.f32 %v4567, %v4947
        %v5066 = vadd.f32 %v4568, %v4952
        %v5067 = vadd.f32 %v4569, %v4955
        %v5068 = vadd.f32 %v4570, %v4960
        %v5069 = vadd.f32 %v4571, %v4963
        %v5070 = vadd.f32 %v4572, %v4968
        %v5071 = vadd.f32 %v4573, %v4971
        %v5072 = vadd.f32 %v4574, %v4976
        %v5073 = vadd.f32 %v4575, %v4979
        %v5074 = vadd.f32 %v4576, %v4984
        %v5075 = vadd.f32 %v4577, %v4987
        %v5076 = vadd.f32 %v4578, %v4992
        %v5077 = vadd.f32 %v4579, %v4995
        %v5078 = vadd.f32 %v4580, %v5000
        %v5079 = vadd.f32 %v4581, %v5003
        %v5080 = vadd.f32 %v4582, %v5008
        %v5081 = vadd.f32 %v4583, %v5011
        %v5082 = vadd.f32 %v4584, %v5016
        %v5083 = vadd.f32 %v4585, %v5019
        %v5084 = vadd.f32 %v4586, %v5024
        %v5085 = vadd.f32 %v4587, %v5027
        %v5086 = vadd.f32 %v4588, %v5032
        %v5087 = vadd.f32 %v4589, %v5035
        %v5088 = vadd.f32 %v4590, %v5040
        %v5089 = vadd.f32 %v4591, %v5043
        %v5090 = vadd.f32 %v4592, %v5048
        %v5091 = vadd.f32 %v4593, %v5051
        %v5092 = vadd.f32 %v4594, %v5056
        %v5093 = vadd.f32 %v4595, %v5059
        %v5094 = vld [vmem:[%s2] sm:$0x1]
        %v5096 = vlaneseq
        %v5097 = vshrl.u32 %v5096, 7
        %v5098 = vsub.s32 0, %v5097
        %v5099 = vrot.slane %v5094, %v5098
        %v5101 = vadd.f32 %v5062, %v5099
        %v5102 = vadd.f32 %v5063, %v5099
        %v5103 = vadd.f32 %v5064, %v5099
        %v5104 = vadd.f32 %v5065, %v5099
        %v5105 = vadd.f32 %v5066, %v5099
        %v5106 = vadd.f32 %v5067, %v5099
        %v5107 = vadd.f32 %v5068, %v5099
        %v5108 = vadd.f32 %v5069, %v5099
        %v5109 = vadd.f32 %v5070, %v5099
        %v5110 = vadd.f32 %v5071, %v5099
        %v5111 = vadd.f32 %v5072, %v5099
        %v5112 = vadd.f32 %v5073, %v5099
        %v5113 = vadd.f32 %v5074, %v5099
        %v5114 = vadd.f32 %v5075, %v5099
        %v5115 = vadd.f32 %v5076, %v5099
        %v5116 = vadd.f32 %v5077, %v5099
        %v5117 = vadd.f32 %v5078, %v5099
        %v5118 = vadd.f32 %v5079, %v5099
        %v5119 = vadd.f32 %v5080, %v5099
        %v5120 = vadd.f32 %v5081, %v5099
        %v5121 = vadd.f32 %v5082, %v5099
        %v5122 = vadd.f32 %v5083, %v5099
        %v5123 = vadd.f32 %v5084, %v5099
        %v5124 = vadd.f32 %v5085, %v5099
        %v5125 = vadd.f32 %v5086, %v5099
        %v5126 = vadd.f32 %v5087, %v5099
        %v5127 = vadd.f32 %v5088, %v5099
        %v5128 = vadd.f32 %v5089, %v5099
        %v5129 = vadd.f32 %v5090, %v5099
        %v5130 = vadd.f32 %v5091, %v5099
        %v5131 = vadd.f32 %v5092, %v5099
        %v5132 = vadd.f32 %v5093, %v5099
        %v5133 = vmax.f32 %v5101, 0.0
        %v5134 = vmax.f32 %v5102, 0.0
        %v5135 = vmax.f32 %v5103, 0.0
        %v5136 = vmax.f32 %v5104, 0.0
        %v5137 = vmax.f32 %v5105, 0.0
        %v5138 = vmax.f32 %v5106, 0.0
        %v5139 = vmax.f32 %v5107, 0.0
        %v5140 = vmax.f32 %v5108, 0.0
        %v5141 = vmax.f32 %v5109, 0.0
        %v5142 = vmax.f32 %v5110, 0.0
        %v5143 = vmax.f32 %v5111, 0.0
        %v5144 = vmax.f32 %v5112, 0.0
        %v5145 = vmax.f32 %v5113, 0.0
        %v5146 = vmax.f32 %v5114, 0.0
        %v5147 = vmax.f32 %v5115, 0.0
        %v5148 = vmax.f32 %v5116, 0.0
        %v5149 = vmax.f32 %v5117, 0.0
        %v5150 = vmax.f32 %v5118, 0.0
        %v5151 = vmax.f32 %v5119, 0.0
        %v5152 = vmax.f32 %v5120, 0.0
        %v5153 = vmax.f32 %v5121, 0.0
        %v5154 = vmax.f32 %v5122, 0.0
        %v5155 = vmax.f32 %v5123, 0.0
        %v5156 = vmax.f32 %v5124, 0.0
        %v5157 = vmax.f32 %v5125, 0.0
        %v5158 = vmax.f32 %v5126, 0.0
        %v5159 = vmax.f32 %v5127, 0.0
        %v5160 = vmax.f32 %v5128, 0.0
        %v5161 = vmax.f32 %v5129, 0.0
        %v5162 = vmax.f32 %v5130, 0.0
        %v5163 = vmax.f32 %v5131, 0.0
        %v5164 = vmax.f32 %v5132, 0.0
        %v5165 = vpack.c.bf16 %v5134, %v5133
        %v5166 = vpack.c.bf16 %v5136, %v5135
        %v5167 = vpack.c.bf16 %v5138, %v5137
        %v5168 = vpack.c.bf16 %v5140, %v5139
        %v5169 = vpack.c.bf16 %v5142, %v5141
        %v5170 = vpack.c.bf16 %v5144, %v5143
        %v5171 = vpack.c.bf16 %v5146, %v5145
        %v5172 = vpack.c.bf16 %v5148, %v5147
        %v5173 = vpack.c.bf16 %v5150, %v5149
        %v5174 = vpack.c.bf16 %v5152, %v5151
        %v5175 = vpack.c.bf16 %v5154, %v5153
        %v5176 = vpack.c.bf16 %v5156, %v5155
        %v5177 = vpack.c.bf16 %v5158, %v5157
        %v5178 = vpack.c.bf16 %v5160, %v5159
        %v5179 = vpack.c.bf16 %v5162, %v5161
        %v5180 = vpack.c.bf16 %v5164, %v5163
        %v5197 = vunpack.c.l.b16 %v5165
        %v5198 = vunpack.c.h.b16 %v5165
        %v5199 = vunpack.c.l.b16 %v5166
        %v5200 = vunpack.c.h.b16 %v5166
        %v5201 = vunpack.c.l.b16 %v5167
        %v5202 = vunpack.c.h.b16 %v5167
        %v5203 = vunpack.c.l.b16 %v5168
        %v5204 = vunpack.c.h.b16 %v5168
        %v5205 = vunpack.c.l.b16 %v5169
        %v5206 = vunpack.c.h.b16 %v5169
        %v5207 = vunpack.c.l.b16 %v5170
        %v5208 = vunpack.c.h.b16 %v5170
        %v5209 = vunpack.c.l.b16 %v5171
        %v5210 = vunpack.c.h.b16 %v5171
        %v5211 = vunpack.c.l.b16 %v5172
        %v5212 = vunpack.c.h.b16 %v5172
        %v5213 = vunpack.c.l.b16 %v5173
        %v5214 = vunpack.c.h.b16 %v5173
        %v5215 = vunpack.c.l.b16 %v5174
        %v5216 = vunpack.c.h.b16 %v5174
        %v5217 = vunpack.c.l.b16 %v5175
        %v5218 = vunpack.c.h.b16 %v5175
        %v5219 = vunpack.c.l.b16 %v5176
        %v5220 = vunpack.c.h.b16 %v5176
        %v5221 = vunpack.c.l.b16 %v5177
        %v5222 = vunpack.c.h.b16 %v5177
        %v5223 = vunpack.c.l.b16 %v5178
        %v5224 = vunpack.c.h.b16 %v5178
        %v5225 = vunpack.c.l.b16 %v5179
        %v5226 = vunpack.c.h.b16 %v5179
        %v5227 = vunpack.c.l.b16 %v5180
        %v5228 = vunpack.c.h.b16 %v5180
        %v5229 = vpack.c.b16 %v5197, %v5197
        %v5230 = vpack.c.b16 %v5198, %v5198
        %v5231 = vpack.c.b16 %v5199, %v5199
        %v5232 = vpack.c.b16 %v5200, %v5200
        %v5233 = vpack.c.b16 %v5201, %v5201
        %v5234 = vpack.c.b16 %v5202, %v5202
        %v5235 = vpack.c.b16 %v5203, %v5203
        %v5236 = vpack.c.b16 %v5204, %v5204
        %v5237 = vpack.c.b16 %v5205, %v5205
        %v5238 = vpack.c.b16 %v5206, %v5206
        %v5239 = vpack.c.b16 %v5207, %v5207
        %v5240 = vpack.c.b16 %v5208, %v5208
        %v5241 = vpack.c.b16 %v5209, %v5209
        %v5242 = vpack.c.b16 %v5210, %v5210
        %v5243 = vpack.c.b16 %v5211, %v5211
        %v5244 = vpack.c.b16 %v5212, %v5212
        %v5245 = vpack.c.b16 %v5213, %v5213
        %v5246 = vpack.c.b16 %v5214, %v5214
        %v5247 = vpack.c.b16 %v5215, %v5215
        %v5248 = vpack.c.b16 %v5216, %v5216
        %v5249 = vpack.c.b16 %v5217, %v5217
        %v5250 = vpack.c.b16 %v5218, %v5218
        %v5251 = vpack.c.b16 %v5219, %v5219
        %v5252 = vpack.c.b16 %v5220, %v5220
        %v5253 = vpack.c.b16 %v5221, %v5221
        %v5254 = vpack.c.b16 %v5222, %v5222
        %v5255 = vpack.c.b16 %v5223, %v5223
        %v5256 = vpack.c.b16 %v5224, %v5224
        %v5257 = vpack.c.b16 %v5225, %v5225
        %v5258 = vpack.c.b16 %v5226, %v5226
        %v5259 = vpack.c.b16 %v5227, %v5227
        %v5260 = vpack.c.b16 %v5228, %v5228
        %vm5261 = vcmask 1040384
        %vm5262 = vcmask 1044484
        %vm5263 = vmor %vm5261, %vm5262
        %v5264 = vrot.slane %v5229, 7
        %v5265 = vrot.slane %v5264, 4
        %v5266 = vrot.slane %v5230, 7
        %v5267 = vsel %vm5263, %v5265, %v5266
        %v5268 = vrot.slane %v5266, 4
        %v5269 = vrot.slane %v5231, 7
        %v5270 = vrot.slane %v5269, 4
        %v5271 = vrot.slane %v5232, 7
        %v5272 = vsel %vm5263, %v5270, %v5271
        %v5273 = vrot.slane %v5271, 4
        %v5274 = vrot.slane %v5233, 7
        %v5275 = vrot.slane %v5274, 4
        %v5276 = vrot.slane %v5234, 7
        %v5277 = vsel %vm5263, %v5275, %v5276
        %v5278 = vrot.slane %v5276, 4
        %v5279 = vrot.slane %v5235, 7
        %v5280 = vrot.slane %v5279, 4
        %v5281 = vrot.slane %v5236, 7
        %v5282 = vsel %vm5263, %v5280, %v5281
        %v5283 = vrot.slane %v5281, 4
        %v5284 = vrot.slane %v5237, 7
        %v5285 = vrot.slane %v5284, 4
        %v5286 = vrot.slane %v5238, 7
        %v5287 = vsel %vm5263, %v5285, %v5286
        %v5288 = vrot.slane %v5286, 4
        %v5289 = vrot.slane %v5239, 7
        %v5290 = vrot.slane %v5289, 4
        %v5291 = vrot.slane %v5240, 7
        %v5292 = vsel %vm5263, %v5290, %v5291
        %v5293 = vrot.slane %v5291, 4
        %v5294 = vrot.slane %v5241, 7
        %v5295 = vrot.slane %v5294, 4
        %v5296 = vrot.slane %v5242, 7
        %v5297 = vsel %vm5263, %v5295, %v5296
        %v5298 = vrot.slane %v5296, 4
        %v5299 = vrot.slane %v5243, 7
        %v5300 = vrot.slane %v5299, 4
        %v5301 = vrot.slane %v5244, 7
        %v5302 = vsel %vm5263, %v5300, %v5301
        %v5303 = vrot.slane %v5301, 4
        %v5304 = vrot.slane %v5245, 7
        %v5305 = vrot.slane %v5304, 4
        %v5306 = vrot.slane %v5246, 7
        %v5307 = vsel %vm5263, %v5305, %v5306
        %v5308 = vrot.slane %v5306, 4
        %v5309 = vrot.slane %v5247, 7
        %v5310 = vrot.slane %v5309, 4
        %v5311 = vrot.slane %v5248, 7
        %v5312 = vsel %vm5263, %v5310, %v5311
        %v5313 = vrot.slane %v5311, 4
        %v5314 = vrot.slane %v5249, 7
        %v5315 = vrot.slane %v5314, 4
        %v5316 = vrot.slane %v5250, 7
        %v5317 = vsel %vm5263, %v5315, %v5316
        %v5318 = vrot.slane %v5316, 4
        %v5319 = vrot.slane %v5251, 7
        %v5320 = vrot.slane %v5319, 4
        %v5321 = vrot.slane %v5252, 7
        %v5322 = vsel %vm5263, %v5320, %v5321
        %v5323 = vrot.slane %v5321, 4
        %v5324 = vrot.slane %v5253, 7
        %v5325 = vrot.slane %v5324, 4
        %v5326 = vrot.slane %v5254, 7
        %v5327 = vsel %vm5263, %v5325, %v5326
        %v5328 = vrot.slane %v5326, 4
        %v5329 = vrot.slane %v5255, 7
        %v5330 = vrot.slane %v5329, 4
        %v5331 = vrot.slane %v5256, 7
        %v5332 = vsel %vm5263, %v5330, %v5331
        %v5333 = vrot.slane %v5331, 4
        %v5334 = vrot.slane %v5257, 7
        %v5335 = vrot.slane %v5334, 4
        %v5336 = vrot.slane %v5258, 7
        %v5337 = vsel %vm5263, %v5335, %v5336
        %v5338 = vrot.slane %v5336, 4
        %v5339 = vrot.slane %v5259, 7
        %v5340 = vrot.slane %v5339, 4
        %v5341 = vrot.slane %v5260, 7
        %v5342 = vsel %vm5263, %v5340, %v5341
        %v5343 = vrot.slane %v5341, 4
        %5392 = vst [vmem:[%s252] sm:$0xe] %v5264
        %5393 = vst [vmem:[%s252 + $0x4] sm:$0xf] %v5267
        %5394 = vst [vmem:[%s252 + $0x8] sm:$0x1] %v5268
        %5395 = vst [vmem:[%s252 + $0xc] sm:$0xe] %v5269
        %5396 = vst [vmem:[%s252 + $0x10] sm:$0xf] %v5272
        %5397 = vst [vmem:[%s252 + $0x14] sm:$0x1] %v5273
        %5398 = vst [vmem:[%s252 + $0x18] sm:$0xe] %v5274
        %5399 = vst [vmem:[%s252 + $0x1c] sm:$0xf] %v5277
        %5400 = vst [vmem:[%s252 + $0x20] sm:$0x1] %v5278
        %5401 = vst [vmem:[%s252 + $0x24] sm:$0xe] %v5279
        %5402 = vst [vmem:[%s252 + $0x28] sm:$0xf] %v5282
        %5403 = vst [vmem:[%s252 + $0x2c] sm:$0x1] %v5283
        %5404 = vst [vmem:[%s252 + $0x30] sm:$0xe] %v5284
        %5405 = vst [vmem:[%s252 + $0x34] sm:$0xf] %v5287
        %5406 = vst [vmem:[%s252 + $0x38] sm:$0x1] %v5288
        %5407 = vst [vmem:[%s252 + $0x3c] sm:$0xe] %v5289
        %5408 = vst [vmem:[%s252 + $0x40] sm:$0xf] %v5292
        %5409 = vst [vmem:[%s252 + $0x44] sm:$0x1] %v5293
        %5410 = vst [vmem:[%s252 + $0x48] sm:$0xe] %v5294
        %5411 = vst [vmem:[%s252 + $0x4c] sm:$0xf] %v5297
        %5412 = vst [vmem:[%s252 + $0x50] sm:$0x1] %v5298
        %5413 = vst [vmem:[%s252 + $0x54] sm:$0xe] %v5299
        %5414 = vst [vmem:[%s252 + $0x58] sm:$0xf] %v5302
        %5415 = vst [vmem:[%s252 + $0x5c] sm:$0x1] %v5303
        %5416 = vst [vmem:[%s252 + $0x60] sm:$0xe] %v5304
        %5417 = vst [vmem:[%s252 + $0x64] sm:$0xf] %v5307
        %5418 = vst [vmem:[%s252 + $0x68] sm:$0x1] %v5308
        %5419 = vst [vmem:[%s252 + $0x6c] sm:$0xe] %v5309
        %5420 = vst [vmem:[%s252 + $0x70] sm:$0xf] %v5312
        %5421 = vst [vmem:[%s252 + $0x74] sm:$0x1] %v5313
        %5422 = vst [vmem:[%s252 + $0x78] sm:$0xe] %v5314
        %5423 = vst [vmem:[%s252 + $0x7c] sm:$0xf] %v5317
        %5424 = vst [vmem:[%s252 + $0x80] sm:$0x1] %v5318
        %5425 = vst [vmem:[%s252 + $0x84] sm:$0xe] %v5319
        %5426 = vst [vmem:[%s252 + $0x88] sm:$0xf] %v5322
        %5427 = vst [vmem:[%s252 + $0x8c] sm:$0x1] %v5323
        %5428 = vst [vmem:[%s252 + $0x90] sm:$0xe] %v5324
        %5429 = vst [vmem:[%s252 + $0x94] sm:$0xf] %v5327
        %5430 = vst [vmem:[%s252 + $0x98] sm:$0x1] %v5328
        %5431 = vst [vmem:[%s252 + $0x9c] sm:$0xe] %v5329
        %5432 = vst [vmem:[%s252 + $0xa0] sm:$0xf] %v5332
        %5433 = vst [vmem:[%s252 + $0xa4] sm:$0x1] %v5333
        %5434 = vst [vmem:[%s252 + $0xa8] sm:$0xe] %v5334
        %5435 = vst [vmem:[%s252 + $0xac] sm:$0xf] %v5337
        %5436 = vst [vmem:[%s252 + $0xb0] sm:$0x1] %v5338
        %5437 = vst [vmem:[%s252 + $0xb4] sm:$0xe] %v5339
        %5438 = vst [vmem:[%s252 + $0xb8] sm:$0xf] %v5342
        %5439 = vst [vmem:[%s252 + $0xbc] sm:$0x1] %v5343
        %v5440 = vld [vmem:[#allocation2] sm:$0xf]
        %v5441 = vld [vmem:[#allocation2 + $0x4] sm:$0xf]
        %v5442 = vld [vmem:[#allocation2 + $0xc] sm:$0xf]
        %v5443 = vld [vmem:[#allocation2 + $0x10] sm:$0xf]
        %v5444 = vld [vmem:[#allocation2 + $0x18] sm:$0xf]
        %v5445 = vld [vmem:[#allocation2 + $0x1c] sm:$0xf]
        %v5446 = vld [vmem:[#allocation2 + $0x24] sm:$0xf]
        %v5447 = vld [vmem:[#allocation2 + $0x28] sm:$0xf]
        %v5448 = vld [vmem:[#allocation2 + $0x30] sm:$0xf]
        %v5449 = vld [vmem:[#allocation2 + $0x34] sm:$0xf]
        %v5450 = vld [vmem:[#allocation2 + $0x3c] sm:$0xf]
        %v5451 = vld [vmem:[#allocation2 + $0x40] sm:$0xf]
        %v5452 = vld [vmem:[#allocation2 + $0x48] sm:$0xf]
        %v5453 = vld [vmem:[#allocation2 + $0x4c] sm:$0xf]
        %v5454 = vld [vmem:[#allocation2 + $0x54] sm:$0xf]
        %v5455 = vld [vmem:[#allocation2 + $0x58] sm:$0xf]
        %v5456 = vld [vmem:[#allocation2 + $0x60] sm:$0xf]
        %v5457 = vld [vmem:[#allocation2 + $0x64] sm:$0xf]
        %v5458 = vld [vmem:[#allocation2 + $0x6c] sm:$0xf]
        %v5459 = vld [vmem:[#allocation2 + $0x70] sm:$0xf]
        %v5460 = vld [vmem:[#allocation2 + $0x78] sm:$0xf]
        %v5461 = vld [vmem:[#allocation2 + $0x7c] sm:$0xf]
        %v5462 = vld [vmem:[#allocation2 + $0x84] sm:$0xf]
        %v5463 = vld [vmem:[#allocation2 + $0x88] sm:$0xf]
        %v5464 = vld [vmem:[#allocation2 + $0x90] sm:$0xf]
        %v5465 = vld [vmem:[#allocation2 + $0x94] sm:$0xf]
        %v5466 = vld [vmem:[#allocation2 + $0x9c] sm:$0xf]
        %v5467 = vld [vmem:[#allocation2 + $0xa0] sm:$0xf]
        %v5468 = vld [vmem:[#allocation2 + $0xa8] sm:$0xf]
        %v5469 = vld [vmem:[#allocation2 + $0xac] sm:$0xf]
        %v5470 = vld [vmem:[#allocation2 + $0xb4] sm:$0xf]
        %v5471 = vld [vmem:[#allocation2 + $0xb8] sm:$0xf]
        %v5472 = vld [vmem:[#allocation3] sm:$0xf]
        %v5473 = vld [vmem:[#allocation3 + $0x4] sm:$0xf]
        %v5474 = vld [vmem:[#allocation3 + $0x8] sm:$0xf]
        %v5475 = vld [vmem:[#allocation3 + $0xc] sm:$0xf]
        %v5476 = vld [vmem:[#allocation3 + $0x10] sm:$0xf]
        %v5477 = vld [vmem:[#allocation3 + $0x14] sm:$0xf]
        %v5478 = vld [vmem:[#allocation3 + $0x18] sm:$0xf]
        %v5479 = vld [vmem:[#allocation3 + $0x1c] sm:$0xf]
        %v5480 = vld [vmem:[#allocation3 + $0x20] sm:$0xf]
        %v5481 = vld [vmem:[#allocation3 + $0x24] sm:$0xf]
        %v5482 = vld [vmem:[#allocation3 + $0x28] sm:$0xf]
        %v5483 = vld [vmem:[#allocation3 + $0x2c] sm:$0xf]
        %v5484 = vld [vmem:[#allocation3 + $0x30] sm:$0xf]
        %v5485 = vld [vmem:[#allocation3 + $0x34] sm:$0xf]
        %v5486 = vld [vmem:[#allocation3 + $0x38] sm:$0xf]
        %v5487 = vld [vmem:[#allocation3 + $0x3c] sm:$0xf]
        %v5488 = vld [vmem:[#allocation2] sm:$0xe]
        %v5489 = vld [vmem:[#allocation2 + $0x8] sm:$0x1]
        %v5490 = vld [vmem:[#allocation2 + $0xc] sm:$0xe]
        %v5491 = vld [vmem:[#allocation2 + $0x14] sm:$0x1]
        %v5492 = vld [vmem:[#allocation2 + $0x18] sm:$0xe]
        %v5493 = vld [vmem:[#allocation2 + $0x20] sm:$0x1]
        %v5494 = vld [vmem:[#allocation2 + $0x24] sm:$0xe]
        %v5495 = vld [vmem:[#allocation2 + $0x2c] sm:$0x1]
        %v5496 = vld [vmem:[#allocation2 + $0x30] sm:$0xe]
        %v5497 = vld [vmem:[#allocation2 + $0x38] sm:$0x1]
        %v5498 = vld [vmem:[#allocation2 + $0x3c] sm:$0xe]
        %v5499 = vld [vmem:[#allocation2 + $0x44] sm:$0x1]
        %v5500 = vld [vmem:[#allocation2 + $0x48] sm:$0xe]
        %v5501 = vld [vmem:[#allocation2 + $0x50] sm:$0x1]
        %v5502 = vld [vmem:[#allocation2 + $0x54] sm:$0xe]
        %v5503 = vld [vmem:[#allocation2 + $0x5c] sm:$0x1]
        %v5504 = vld [vmem:[#allocation2 + $0x60] sm:$0xe]
        %v5505 = vld [vmem:[#allocation2 + $0x68] sm:$0x1]
        %v5506 = vld [vmem:[#allocation2 + $0x6c] sm:$0xe]
        %v5507 = vld [vmem:[#allocation2 + $0x74] sm:$0x1]
        %v5508 = vld [vmem:[#allocation2 + $0x78] sm:$0xe]
        %v5509 = vld [vmem:[#allocation2 + $0x80] sm:$0x1]
        %v5510 = vld [vmem:[#allocation2 + $0x84] sm:$0xe]
        %v5511 = vld [vmem:[#allocation2 + $0x8c] sm:$0x1]
        %v5512 = vld [vmem:[#allocation2 + $0x90] sm:$0xe]
        %v5513 = vld [vmem:[#allocation2 + $0x98] sm:$0x1]
        %v5514 = vld [vmem:[#allocation2 + $0x9c] sm:$0xe]
        %v5515 = vld [vmem:[#allocation2 + $0xa4] sm:$0x1]
        %v5516 = vld [vmem:[#allocation2 + $0xa8] sm:$0xe]
        %v5517 = vld [vmem:[#allocation2 + $0xb0] sm:$0x1]
        %v5518 = vld [vmem:[#allocation2 + $0xb4] sm:$0xe]
        %v5519 = vld [vmem:[#allocation2 + $0xbc] sm:$0x1]
        %v5568 = vrot.slane %v5488, 5
        %v5569 = vrot.slane %v5568, 4
        %v5570 = vrot.slane %v5441, 5
        %v5571 = vsel %vm1381, %v5569, %v5570
        %v5572 = vrot.slane %v5570, 4
        %v5573 = vrot.slane %v5489, 5
        %v5574 = vsel %vm1381, %v5572, %v5573
        %v5575 = vrot.slane %v5490, 5
        %v5576 = vrot.slane %v5575, 4
        %v5577 = vrot.slane %v5443, 5
        %v5578 = vsel %vm1381, %v5576, %v5577
        %v5579 = vrot.slane %v5577, 4
        %v5580 = vrot.slane %v5491, 5
        %v5581 = vsel %vm1381, %v5579, %v5580
        %v5582 = vrot.slane %v5492, 5
        %v5583 = vrot.slane %v5582, 4
        %v5584 = vrot.slane %v5445, 5
        %v5585 = vsel %vm1381, %v5583, %v5584
        %v5586 = vrot.slane %v5584, 4
        %v5587 = vrot.slane %v5493, 5
        %v5588 = vsel %vm1381, %v5586, %v5587
        %v5589 = vrot.slane %v5494, 5
        %v5590 = vrot.slane %v5589, 4
        %v5591 = vrot.slane %v5447, 5
        %v5592 = vsel %vm1381, %v5590, %v5591
        %v5593 = vrot.slane %v5591, 4
        %v5594 = vrot.slane %v5495, 5
        %v5595 = vsel %vm1381, %v5593, %v5594
        %v5596 = vrot.slane %v5496, 5
        %v5597 = vrot.slane %v5596, 4
        %v5598 = vrot.slane %v5449, 5
        %v5599 = vsel %vm1381, %v5597, %v5598
        %v5600 = vrot.slane %v5598, 4
        %v5601 = vrot.slane %v5497, 5
        %v5602 = vsel %vm1381, %v5600, %v5601
        %v5603 = vrot.slane %v5498, 5
        %v5604 = vrot.slane %v5603, 4
        %v5605 = vrot.slane %v5451, 5
        %v5606 = vsel %vm1381, %v5604, %v5605
        %v5607 = vrot.slane %v5605, 4
        %v5608 = vrot.slane %v5499, 5
        %v5609 = vsel %vm1381, %v5607, %v5608
        %v5610 = vrot.slane %v5500, 5
        %v5611 = vrot.slane %v5610, 4
        %v5612 = vrot.slane %v5453, 5
        %v5613 = vsel %vm1381, %v5611, %v5612
        %v5614 = vrot.slane %v5612, 4
        %v5615 = vrot.slane %v5501, 5
        %v5616 = vsel %vm1381, %v5614, %v5615
        %v5617 = vrot.slane %v5502, 5
        %v5618 = vrot.slane %v5617, 4
        %v5619 = vrot.slane %v5455, 5
        %v5620 = vsel %vm1381, %v5618, %v5619
        %v5621 = vrot.slane %v5619, 4
        %v5622 = vrot.slane %v5503, 5
        %v5623 = vsel %vm1381, %v5621, %v5622
        %v5624 = vrot.slane %v5504, 5
        %v5625 = vrot.slane %v5624, 4
        %v5626 = vrot.slane %v5457, 5
        %v5627 = vsel %vm1381, %v5625, %v5626
        %v5628 = vrot.slane %v5626, 4
        %v5629 = vrot.slane %v5505, 5
        %v5630 = vsel %vm1381, %v5628, %v5629
        %v5631 = vrot.slane %v5506, 5
        %v5632 = vrot.slane %v5631, 4
        %v5633 = vrot.slane %v5459, 5
        %v5634 = vsel %vm1381, %v5632, %v5633
        %v5635 = vrot.slane %v5633, 4
        %v5636 = vrot.slane %v5507, 5
        %v5637 = vsel %vm1381, %v5635, %v5636
        %v5638 = vrot.slane %v5508, 5
        %v5639 = vrot.slane %v5638, 4
        %v5640 = vrot.slane %v5461, 5
        %v5641 = vsel %vm1381, %v5639, %v5640
        %v5642 = vrot.slane %v5640, 4
        %v5643 = vrot.slane %v5509, 5
        %v5644 = vsel %vm1381, %v5642, %v5643
        %v5645 = vrot.slane %v5510, 5
        %v5646 = vrot.slane %v5645, 4
        %v5647 = vrot.slane %v5463, 5
        %v5648 = vsel %vm1381, %v5646, %v5647
        %v5649 = vrot.slane %v5647, 4
        %v5650 = vrot.slane %v5511, 5
        %v5651 = vsel %vm1381, %v5649, %v5650
        %v5652 = vrot.slane %v5512, 5
        %v5653 = vrot.slane %v5652, 4
        %v5654 = vrot.slane %v5465, 5
        %v5655 = vsel %vm1381, %v5653, %v5654
        %v5656 = vrot.slane %v5654, 4
        %v5657 = vrot.slane %v5513, 5
        %v5658 = vsel %vm1381, %v5656, %v5657
        %v5659 = vrot.slane %v5514, 5
        %v5660 = vrot.slane %v5659, 4
        %v5661 = vrot.slane %v5467, 5
        %v5662 = vsel %vm1381, %v5660, %v5661
        %v5663 = vrot.slane %v5661, 4
        %v5664 = vrot.slane %v5515, 5
        %v5665 = vsel %vm1381, %v5663, %v5664
        %v5666 = vrot.slane %v5516, 5
        %v5667 = vrot.slane %v5666, 4
        %v5668 = vrot.slane %v5469, 5
        %v5669 = vsel %vm1381, %v5667, %v5668
        %v5670 = vrot.slane %v5668, 4
        %v5671 = vrot.slane %v5517, 5
        %v5672 = vsel %vm1381, %v5670, %v5671
        %v5673 = vrot.slane %v5518, 5
        %v5674 = vrot.slane %v5673, 4
        %v5675 = vrot.slane %v5471, 5
        %v5676 = vsel %vm1381, %v5674, %v5675
        %v5677 = vrot.slane %v5675, 4
        %v5678 = vrot.slane %v5519, 5
        %v5679 = vsel %vm1381, %v5677, %v5678
        %s5680 = scalar_lea.vmem [#allocation3], 64
        %v5681 = vld [vmem:[%s5680] sm:$0xf]
        %v5682 = vld [vmem:[%s5680 + $0x4] sm:$0xf]
        %v5683 = vld [vmem:[%s5680 + $0x8] sm:$0xf]
        %v5684 = vld [vmem:[%s5680 + $0xc] sm:$0xf]
        %v5685 = vld [vmem:[%s5680 + $0x10] sm:$0xf]
        %v5686 = vld [vmem:[%s5680 + $0x14] sm:$0xf]
        %v5687 = vld [vmem:[%s5680 + $0x18] sm:$0xf]
        %v5688 = vld [vmem:[%s5680 + $0x1c] sm:$0xf]
        %v5689 = vld [vmem:[%s5680 + $0x20] sm:$0xf]
        %v5690 = vld [vmem:[%s5680 + $0x24] sm:$0xf]
        %v5691 = vld [vmem:[%s5680 + $0x28] sm:$0xf]
        %v5692 = vld [vmem:[%s5680 + $0x2c] sm:$0xf]
        %v5693 = vld [vmem:[%s5680 + $0x30] sm:$0xf]
        %v5694 = vld [vmem:[%s5680 + $0x34] sm:$0xf]
        %v5695 = vld [vmem:[%s5680 + $0x38] sm:$0xf]
        %v5696 = vld [vmem:[%s5680 + $0x3c] sm:$0xf]
        %v5697 = vunpack.c.l.b16 %v5571
        %v5698 = vunpack.c.l.b16 %v5574
        %v5699 = vunpack.c.l.b16 %v5578
        %v5700 = vunpack.c.l.b16 %v5581
        %v5701 = vunpack.c.l.b16 %v5585
        %v5702 = vunpack.c.l.b16 %v5588
        %v5703 = vunpack.c.l.b16 %v5592
        %v5704 = vunpack.c.l.b16 %v5595
        %v5705 = vunpack.c.l.b16 %v5599
        %v5706 = vunpack.c.l.b16 %v5602
        %v5707 = vunpack.c.l.b16 %v5606
        %v5708 = vunpack.c.l.b16 %v5609
        %v5709 = vunpack.c.l.b16 %v5613
        %v5710 = vunpack.c.l.b16 %v5616
        %v5711 = vunpack.c.l.b16 %v5620
        %v5712 = vunpack.c.l.b16 %v5623
        %v5713 = vunpack.c.l.b16 %v5627
        %v5714 = vunpack.c.l.b16 %v5630
        %v5715 = vunpack.c.l.b16 %v5634
        %v5716 = vunpack.c.l.b16 %v5637
        %v5717 = vunpack.c.l.b16 %v5641
        %v5718 = vunpack.c.l.b16 %v5644
        %v5719 = vunpack.c.l.b16 %v5648
        %v5720 = vunpack.c.l.b16 %v5651
        %v5721 = vunpack.c.l.b16 %v5655
        %v5722 = vunpack.c.l.b16 %v5658
        %v5723 = vunpack.c.l.b16 %v5662
        %v5724 = vunpack.c.l.b16 %v5665
        %v5725 = vunpack.c.l.b16 %v5669
        %v5726 = vunpack.c.l.b16 %v5672
        %v5727 = vunpack.c.l.b16 %v5676
        %v5728 = vunpack.c.l.b16 %v5679
        %v5729 = vpack.c.b16 %v5698, %v5697
        %v5730 = vpack.c.b16 %v5700, %v5699
        %v5731 = vpack.c.b16 %v5702, %v5701
        %v5732 = vpack.c.b16 %v5704, %v5703
        %v5733 = vpack.c.b16 %v5706, %v5705
        %v5734 = vpack.c.b16 %v5708, %v5707
        %v5735 = vpack.c.b16 %v5710, %v5709
        %v5736 = vpack.c.b16 %v5712, %v5711
        %v5737 = vpack.c.b16 %v5714, %v5713
        %v5738 = vpack.c.b16 %v5716, %v5715
        %v5739 = vpack.c.b16 %v5718, %v5717
        %v5740 = vpack.c.b16 %v5720, %v5719
        %v5741 = vpack.c.b16 %v5722, %v5721
        %v5742 = vpack.c.b16 %v5724, %v5723
        %v5743 = vpack.c.b16 %v5726, %v5725
        %v5744 = vpack.c.b16 %v5728, %v5727
        %v5777 = vunpack.c.l.b16 %v5681
        %v5778 = vunpack.c.l.b16 %v5682
        %v5779 = vunpack.c.l.b16 %v5683
        %v5780 = vunpack.c.l.b16 %v5684
        %v5781 = vunpack.c.l.b16 %v5685
        %v5782 = vunpack.c.l.b16 %v5686
        %v5783 = vunpack.c.l.b16 %v5687
        %v5784 = vunpack.c.l.b16 %v5688
        %v5785 = vunpack.c.l.b16 %v5689
        %v5786 = vunpack.c.l.b16 %v5690
        %v5787 = vunpack.c.l.b16 %v5691
        %v5788 = vunpack.c.l.b16 %v5692
        %v5789 = vunpack.c.l.b16 %v5693
        %v5790 = vunpack.c.l.b16 %v5694
        %v5791 = vunpack.c.l.b16 %v5695
        %v5792 = vunpack.c.l.b16 %v5696
        %v5793 = vpack.c.b16 %v5778, %v5777
        %v5794 = vpack.c.b16 %v5780, %v5779
        %v5795 = vpack.c.b16 %v5782, %v5781
        %v5796 = vpack.c.b16 %v5784, %v5783
        %v5797 = vpack.c.b16 %v5786, %v5785
        %v5798 = vpack.c.b16 %v5788, %v5787
        %v5799 = vpack.c.b16 %v5790, %v5789
        %v5800 = vpack.c.b16 %v5792, %v5791
        %5809 = vmatprep.subr.bf16.mxu0 0
        %5810 = vmatpush1.bf16.msra.mxu0 %v5793
        %5811 = vmatprep.subr.bf16.mxu0 0
        %5812 = vmatpush1.bf16.msra.mxu0 %v5794
        %5813 = vmatprep.subr.bf16.mxu0 0
        %5814 = vmatpush1.bf16.msra.mxu0 %v5795
        %5815 = vmatprep.subr.bf16.mxu0 0
        %5816 = vmatpush1.bf16.msra.mxu0 %v5796
        %5817 = vmatprep.subr.bf16.mxu0 0
        %5818 = vmatpush1.bf16.msra.mxu0 %v5797
        %5819 = vmatprep.subr.bf16.mxu0 0
        %5820 = vmatpush1.bf16.msra.mxu0 %v5798
        %5821 = vmatprep.subr.bf16.mxu0 0
        %5822 = vmatpush1.bf16.msra.mxu0 %v5799
        %5823 = vmatprep.subr.bf16.mxu0 0
        %5824 = vmatpush1.bf16.msra.mxu0 %v5800
        %5825 = vmatprep.subr.bf16.mxu0 0
        %5826 = vmatpush1.bf16.msra.mxu0 0
        %5827 = vmatprep.subr.bf16.mxu0 0
        %5828 = vmatpush1.bf16.msra.mxu0 0
        %5829 = vmatprep.subr.bf16.mxu0 0
        %5830 = vmatpush1.bf16.msra.mxu0 0
        %5831 = vmatprep.subr.bf16.mxu0 0
        %5832 = vmatpush1.bf16.msra.mxu0 0
        %5833 = vmatprep.subr.bf16.mxu0 0
        %5834 = vmatpush1.bf16.msra.mxu0 0
        %5835 = vmatprep.subr.bf16.mxu0 0
        %5836 = vmatpush1.bf16.msra.mxu0 0
        %5837 = vmatprep.subr.bf16.mxu0 0
        %5838 = vmatpush1.bf16.msra.mxu0 0
        %5839 = vmatprep.subr.bf16.mxu0 0
        %5840 = vmatpush1.bf16.msra.mxu0 0
        %5841 = vmatprep.mubr.bf16.mxu0 0
        %5842 = vmatmul.mubr.bf16.gmra.mrb[0].mxu0 %v5729
        %v5843 = vpop.f32.mrb[0].mxu0
        %v5844 = vadd.f32 0.0, %v5843
        %v5845 = vpop.f32.mrb[0].mxu0
        %v5846 = vpop.f32.mrb[0].mxu0
        %v5847 = vadd.f32 0.0, %v5846
        %v5848 = vpop.f32.mrb[0].mxu0
        %5849 = vmatprep.mubr.bf16.mxu0 0
        %5850 = vmatmul.mubr.bf16.gmra.mrb[0].mxu0 %v5730
        %v5851 = vpop.f32.mrb[0].mxu0
        %v5852 = vadd.f32 0.0, %v5851
        %v5853 = vpop.f32.mrb[0].mxu0
        %v5854 = vpop.f32.mrb[0].mxu0
        %v5855 = vadd.f32 0.0, %v5854
        %v5856 = vpop.f32.mrb[0].mxu0
        %5857 = vmatprep.mubr.bf16.mxu0 0
        %5858 = vmatmul.mubr.bf16.gmra.mrb[0].mxu0 %v5731
        %v5859 = vpop.f32.mrb[0].mxu0
        %v5860 = vadd.f32 0.0, %v5859
        %v5861 = vpop.f32.mrb[0].mxu0
        %v5862 = vpop.f32.mrb[0].mxu0
        %v5863 = vadd.f32 0.0, %v5862
        %v5864 = vpop.f32.mrb[0].mxu0
        %5865 = vmatprep.mubr.bf16.mxu0 0
        %5866 = vmatmul.mubr.bf16.gmra.mrb[0].mxu0 %v5732
        %v5867 = vpop.f32.mrb[0].mxu0
        %v5868 = vadd.f32 0.0, %v5867
        %v5869 = vpop.f32.mrb[0].mxu0
        %v5870 = vpop.f32.mrb[0].mxu0
        %v5871 = vadd.f32 0.0, %v5870
        %v5872 = vpop.f32.mrb[0].mxu0
        %5873 = vmatprep.mubr.bf16.mxu0 0
        %5874 = vmatmul.mubr.bf16.gmra.mrb[0].mxu0 %v5733
        %v5875 = vpop.f32.mrb[0].mxu0
        %v5876 = vadd.f32 0.0, %v5875
        %v5877 = vpop.f32.mrb[0].mxu0
        %v5878 = vpop.f32.mrb[0].mxu0
        %v5879 = vadd.f32 0.0, %v5878
        %v5880 = vpop.f32.mrb[0].mxu0
        %5881 = vmatprep.mubr.bf16.mxu0 0
        %5882 = vmatmul.mubr.bf16.gmra.mrb[0].mxu0 %v5734
        %v5883 = vpop.f32.mrb[0].mxu0
        %v5884 = vadd.f32 0.0, %v5883
        %v5885 = vpop.f32.mrb[0].mxu0
        %v5886 = vpop.f32.mrb[0].mxu0
        %v5887 = vadd.f32 0.0, %v5886
        %v5888 = vpop.f32.mrb[0].mxu0
        %5889 = vmatprep.mubr.bf16.mxu0 0
        %5890 = vmatmul.mubr.bf16.gmra.mrb[0].mxu0 %v5735
        %v5891 = vpop.f32.mrb[0].mxu0
        %v5892 = vadd.f32 0.0, %v5891
        %v5893 = vpop.f32.mrb[0].mxu0
        %v5894 = vpop.f32.mrb[0].mxu0
        %v5895 = vadd.f32 0.0, %v5894
        %v5896 = vpop.f32.mrb[0].mxu0
        %5897 = vmatprep.mubr.bf16.mxu0 0
        %5898 = vmatmul.mubr.bf16.gmra.mrb[0].mxu0 %v5736
        %v5899 = vpop.f32.mrb[0].mxu0
        %v5900 = vadd.f32 0.0, %v5899
        %v5901 = vpop.f32.mrb[0].mxu0
        %v5902 = vpop.f32.mrb[0].mxu0
        %v5903 = vadd.f32 0.0, %v5902
        %v5904 = vpop.f32.mrb[0].mxu0
        %5905 = vmatprep.mubr.bf16.mxu0 0
        %5906 = vmatmul.mubr.bf16.gmra.mrb[0].mxu0 %v5737
        %v5907 = vpop.f32.mrb[0].mxu0
        %v5908 = vadd.f32 0.0, %v5907
        %v5909 = vpop.f32.mrb[0].mxu0
        %v5910 = vpop.f32.mrb[0].mxu0
        %v5911 = vadd.f32 0.0, %v5910
        %v5912 = vpop.f32.mrb[0].mxu0
        %5913 = vmatprep.mubr.bf16.mxu0 0
        %5914 = vmatmul.mubr.bf16.gmra.mrb[0].mxu0 %v5738
        %v5915 = vpop.f32.mrb[0].mxu0
        %v5916 = vadd.f32 0.0, %v5915
        %v5917 = vpop.f32.mrb[0].mxu0
        %v5918 = vpop.f32.mrb[0].mxu0
        %v5919 = vadd.f32 0.0, %v5918
        %v5920 = vpop.f32.mrb[0].mxu0
        %5921 = vmatprep.mubr.bf16.mxu0 0
        %5922 = vmatmul.mubr.bf16.gmra.mrb[0].mxu0 %v5739
        %v5923 = vpop.f32.mrb[0].mxu0
        %v5924 = vadd.f32 0.0, %v5923
        %v5925 = vpop.f32.mrb[0].mxu0
        %v5926 = vpop.f32.mrb[0].mxu0
        %v5927 = vadd.f32 0.0, %v5926
        %v5928 = vpop.f32.mrb[0].mxu0
        %5929 = vmatprep.mubr.bf16.mxu0 0
        %5930 = vmatmul.mubr.bf16.gmra.mrb[0].mxu0 %v5740
        %v5931 = vpop.f32.mrb[0].mxu0
        %v5932 = vadd.f32 0.0, %v5931
        %v5933 = vpop.f32.mrb[0].mxu0
        %v5934 = vpop.f32.mrb[0].mxu0
        %v5935 = vadd.f32 0.0, %v5934
        %v5936 = vpop.f32.mrb[0].mxu0
        %5937 = vmatprep.mubr.bf16.mxu0 0
        %5938 = vmatmul.mubr.bf16.gmra.mrb[0].mxu0 %v5741
        %v5939 = vpop.f32.mrb[0].mxu0
        %v5940 = vadd.f32 0.0, %v5939
        %v5941 = vpop.f32.mrb[0].mxu0
        %v5942 = vpop.f32.mrb[0].mxu0
        %v5943 = vadd.f32 0.0, %v5942
        %v5944 = vpop.f32.mrb[0].mxu0
        %5945 = vmatprep.mubr.bf16.mxu0 0
        %5946 = vmatmul.mubr.bf16.gmra.mrb[0].mxu0 %v5742
        %v5947 = vpop.f32.mrb[0].mxu0
        %v5948 = vadd.f32 0.0, %v5947
        %v5949 = vpop.f32.mrb[0].mxu0
        %v5950 = vpop.f32.mrb[0].mxu0
        %v5951 = vadd.f32 0.0, %v5950
        %v5952 = vpop.f32.mrb[0].mxu0
        %5953 = vmatprep.mubr.bf16.mxu0 0
        %5954 = vmatmul.mubr.bf16.gmra.mrb[0].mxu0 %v5743
        %v5955 = vpop.f32.mrb[0].mxu0
        %v5956 = vadd.f32 0.0, %v5955
        %v5957 = vpop.f32.mrb[0].mxu0
        %v5958 = vpop.f32.mrb[0].mxu0
        %v5959 = vadd.f32 0.0, %v5958
        %v5960 = vpop.f32.mrb[0].mxu0
        %5961 = vmatprep.mubr.bf16.mxu0 0
        %5962 = vmatmul.mubr.bf16.gmra.mrb[0].mxu0 %v5744
        %v5963 = vpop.f32.mrb[0].mxu0
        %v5964 = vadd.f32 0.0, %v5963
        %v5965 = vpop.f32.mrb[0].mxu0
        %v5966 = vpop.f32.mrb[0].mxu0
        %v5967 = vadd.f32 0.0, %v5966
        %v5968 = vpop.f32.mrb[0].mxu0
        %5969 = vdwg.mxu0
        %v5986 = vunpack.c.l.b16 %v5440
        %v5987 = vunpack.c.l.b16 %v5441
        %v5988 = vunpack.c.l.b16 %v5442
        %v5989 = vunpack.c.l.b16 %v5443
        %v5990 = vunpack.c.l.b16 %v5444
        %v5991 = vunpack.c.l.b16 %v5445
        %v5992 = vunpack.c.l.b16 %v5446
        %v5993 = vunpack.c.l.b16 %v5447
        %v5994 = vunpack.c.l.b16 %v5448
        %v5995 = vunpack.c.l.b16 %v5449
        %v5996 = vunpack.c.l.b16 %v5450
        %v5997 = vunpack.c.l.b16 %v5451
        %v5998 = vunpack.c.l.b16 %v5452
        %v5999 = vunpack.c.l.b16 %v5453
        %v6000 = vunpack.c.l.b16 %v5454
        %v6001 = vunpack.c.l.b16 %v5455
        %v6002 = vunpack.c.l.b16 %v5456
        %v6003 = vunpack.c.l.b16 %v5457
        %v6004 = vunpack.c.l.b16 %v5458
        %v6005 = vunpack.c.l.b16 %v5459
        %v6006 = vunpack.c.l.b16 %v5460
        %v6007 = vunpack.c.l.b16 %v5461
        %v6008 = vunpack.c.l.b16 %v5462
        %v6009 = vunpack.c.l.b16 %v5463
        %v6010 = vunpack.c.l.b16 %v5464
        %v6011 = vunpack.c.l.b16 %v5465
        %v6012 = vunpack.c.l.b16 %v5466
        %v6013 = vunpack.c.l.b16 %v5467
        %v6014 = vunpack.c.l.b16 %v5468
        %v6015 = vunpack.c.l.b16 %v5469
        %v6016 = vunpack.c.l.b16 %v5470
        %v6017 = vunpack.c.l.b16 %v5471
        %v6018 = vpack.c.b16 %v5987, %v5986
        %v6019 = vpack.c.b16 %v5989, %v5988
        %v6020 = vpack.c.b16 %v5991, %v5990
        %v6021 = vpack.c.b16 %v5993, %v5992
        %v6022 = vpack.c.b16 %v5995, %v5994
        %v6023 = vpack.c.b16 %v5997, %v5996
        %v6024 = vpack.c.b16 %v5999, %v5998
        %v6025 = vpack.c.b16 %v6001, %v6000
        %v6026 = vpack.c.b16 %v6003, %v6002
        %v6027 = vpack.c.b16 %v6005, %v6004
        %v6028 = vpack.c.b16 %v6007, %v6006
        %v6029 = vpack.c.b16 %v6009, %v6008
        %v6030 = vpack.c.b16 %v6011, %v6010
        %v6031 = vpack.c.b16 %v6013, %v6012
        %v6032 = vpack.c.b16 %v6015, %v6014
        %v6033 = vpack.c.b16 %v6017, %v6016
        %v6066 = vunpack.c.l.b16 %v5472
        %v6067 = vunpack.c.l.b16 %v5473
        %v6068 = vunpack.c.l.b16 %v5474
        %v6069 = vunpack.c.l.b16 %v5475
        %v6070 = vunpack.c.l.b16 %v5476
        %v6071 = vunpack.c.l.b16 %v5477
        %v6072 = vunpack.c.l.b16 %v5478
        %v6073 = vunpack.c.l.b16 %v5479
        %v6074 = vunpack.c.l.b16 %v5480
        %v6075 = vunpack.c.l.b16 %v5481
        %v6076 = vunpack.c.l.b16 %v5482
        %v6077 = vunpack.c.l.b16 %v5483
        %v6078 = vunpack.c.l.b16 %v5484
        %v6079 = vunpack.c.l.b16 %v5485
        %v6080 = vunpack.c.l.b16 %v5486
        %v6081 = vunpack.c.l.b16 %v5487
        %v6082 = vpack.c.b16 %v6067, %v6066
        %v6083 = vpack.c.b16 %v6069, %v6068
        %v6084 = vpack.c.b16 %v6071, %v6070
        %v6085 = vpack.c.b16 %v6073, %v6072
        %v6086 = vpack.c.b16 %v6075, %v6074
        %v6087 = vpack.c.b16 %v6077, %v6076
        %v6088 = vpack.c.b16 %v6079, %v6078
        %v6089 = vpack.c.b16 %v6081, %v6080
        %6098 = vmatprep.subr.bf16.mxu0 0
        %6099 = vmatpush1.bf16.msra.mxu0 %v6082
        %6100 = vmatprep.subr.bf16.mxu0 0
        %6101 = vmatpush1.bf16.msra.mxu0 %v6083
        %6102 = vmatprep.subr.bf16.mxu0 0
        %6103 = vmatpush1.bf16.msra.mxu0 %v6084
        %6104 = vmatprep.subr.bf16.mxu0 0
        %6105 = vmatpush1.bf16.msra.mxu0 %v6085
        %6106 = vmatprep.subr.bf16.mxu0 0
        %6107 = vmatpush1.bf16.msra.mxu0 %v6086
        %6108 = vmatprep.subr.bf16.mxu0 0
        %6109 = vmatpush1.bf16.msra.mxu0 %v6087
        %6110 = vmatprep.subr.bf16.mxu0 0
        %6111 = vmatpush1.bf16.msra.mxu0 %v6088
        %6112 = vmatprep.subr.bf16.mxu0 0
        %6113 = vmatpush1.bf16.msra.mxu0 %v6089
        %6114 = vmatprep.subr.bf16.mxu0 0
        %6115 = vmatpush1.bf16.msra.mxu0 0
        %6116 = vmatprep.subr.bf16.mxu0 0
        %6117 = vmatpush1.bf16.msra.mxu0 0
        %6118 = vmatprep.subr.bf16.mxu0 0
        %6119 = vmatpush1.bf16.msra.mxu0 0
        %6120 = vmatprep.subr.bf16.mxu0 0
        %6121 = vmatpush1.bf16.msra.mxu0 0
        %6122 = vmatprep.subr.bf16.mxu0 0
        %6123 = vmatpush1.bf16.msra.mxu0 0
        %6124 = vmatprep.subr.bf16.mxu0 0
        %6125 = vmatpush1.bf16.msra.mxu0 0
        %6126 = vmatprep.subr.bf16.mxu0 0
        %6127 = vmatpush1.bf16.msra.mxu0 0
        %6128 = vmatprep.subr.bf16.mxu0 0
        %6129 = vmatpush1.bf16.msra.mxu0 0
        %6130 = vmatprep.mubr.bf16.mxu0 0
        %6131 = vmatmul.mubr.bf16.gmra.mrb[0].mxu0 %v6018
        %v6132 = vpop.f32.mrb[0].mxu0
        %v6133 = vadd.f32 %v5844, %v6132
        %v6134 = vpop.f32.mrb[0].mxu0
        %v6135 = vpop.f32.mrb[0].mxu0
        %v6136 = vadd.f32 %v5847, %v6135
        %v6137 = vpop.f32.mrb[0].mxu0
        %6138 = vmatprep.mubr.bf16.mxu0 0
        %6139 = vmatmul.mubr.bf16.gmra.mrb[0].mxu0 %v6019
        %v6140 = vpop.f32.mrb[0].mxu0
        %v6141 = vadd.f32 %v5852, %v6140
        %v6142 = vpop.f32.mrb[0].mxu0
        %v6143 = vpop.f32.mrb[0].mxu0
        %v6144 = vadd.f32 %v5855, %v6143
        %v6145 = vpop.f32.mrb[0].mxu0
        %6146 = vmatprep.mubr.bf16.mxu0 0
        %6147 = vmatmul.mubr.bf16.gmra.mrb[0].mxu0 %v6020
        %v6148 = vpop.f32.mrb[0].mxu0
        %v6149 = vadd.f32 %v5860, %v6148
        %v6150 = vpop.f32.mrb[0].mxu0
        %v6151 = vpop.f32.mrb[0].mxu0
        %v6152 = vadd.f32 %v5863, %v6151
        %v6153 = vpop.f32.mrb[0].mxu0
        %6154 = vmatprep.mubr.bf16.mxu0 0
        %6155 = vmatmul.mubr.bf16.gmra.mrb[0].mxu0 %v6021
        %v6156 = vpop.f32.mrb[0].mxu0
        %v6157 = vadd.f32 %v5868, %v6156
        %v6158 = vpop.f32.mrb[0].mxu0
        %v6159 = vpop.f32.mrb[0].mxu0
        %v6160 = vadd.f32 %v5871, %v6159
        %v6161 = vpop.f32.mrb[0].mxu0
        %6162 = vmatprep.mubr.bf16.mxu0 0
        %6163 = vmatmul.mubr.bf16.gmra.mrb[0].mxu0 %v6022
        %v6164 = vpop.f32.mrb[0].mxu0
        %v6165 = vadd.f32 %v5876, %v6164
        %v6166 = vpop.f32.mrb[0].mxu0
        %v6167 = vpop.f32.mrb[0].mxu0
        %v6168 = vadd.f32 %v5879, %v6167
        %v6169 = vpop.f32.mrb[0].mxu0
        %6170 = vmatprep.mubr.bf16.mxu0 0
        %6171 = vmatmul.mubr.bf16.gmra.mrb[0].mxu0 %v6023
        %v6172 = vpop.f32.mrb[0].mxu0
        %v6173 = vadd.f32 %v5884, %v6172
        %v6174 = vpop.f32.mrb[0].mxu0
        %v6175 = vpop.f32.mrb[0].mxu0
        %v6176 = vadd.f32 %v5887, %v6175
        %v6177 = vpop.f32.mrb[0].mxu0
        %6178 = vmatprep.mubr.bf16.mxu0 0
        %6179 = vmatmul.mubr.bf16.gmra.mrb[0].mxu0 %v6024
        %v6180 = vpop.f32.mrb[0].mxu0
        %v6181 = vadd.f32 %v5892, %v6180
        %v6182 = vpop.f32.mrb[0].mxu0
        %v6183 = vpop.f32.mrb[0].mxu0
        %v6184 = vadd.f32 %v5895, %v6183
        %v6185 = vpop.f32.mrb[0].mxu0
        %6186 = vmatprep.mubr.bf16.mxu0 0
        %6187 = vmatmul.mubr.bf16.gmra.mrb[0].mxu0 %v6025
        %v6188 = vpop.f32.mrb[0].mxu0
        %v6189 = vadd.f32 %v5900, %v6188
        %v6190 = vpop.f32.mrb[0].mxu0
        %v6191 = vpop.f32.mrb[0].mxu0
        %v6192 = vadd.f32 %v5903, %v6191
        %v6193 = vpop.f32.mrb[0].mxu0
        %6194 = vmatprep.mubr.bf16.mxu0 0
        %6195 = vmatmul.mubr.bf16.gmra.mrb[0].mxu0 %v6026
        %v6196 = vpop.f32.mrb[0].mxu0
        %v6197 = vadd.f32 %v5908, %v6196
        %v6198 = vpop.f32.mrb[0].mxu0
        %v6199 = vpop.f32.mrb[0].mxu0
        %v6200 = vadd.f32 %v5911, %v6199
        %v6201 = vpop.f32.mrb[0].mxu0
        %6202 = vmatprep.mubr.bf16.mxu0 0
        %6203 = vmatmul.mubr.bf16.gmra.mrb[0].mxu0 %v6027
        %v6204 = vpop.f32.mrb[0].mxu0
        %v6205 = vadd.f32 %v5916, %v6204
        %v6206 = vpop.f32.mrb[0].mxu0
        %v6207 = vpop.f32.mrb[0].mxu0
        %v6208 = vadd.f32 %v5919, %v6207
        %v6209 = vpop.f32.mrb[0].mxu0
        %6210 = vmatprep.mubr.bf16.mxu0 0
        %6211 = vmatmul.mubr.bf16.gmra.mrb[0].mxu0 %v6028
        %v6212 = vpop.f32.mrb[0].mxu0
        %v6213 = vadd.f32 %v5924, %v6212
        %v6214 = vpop.f32.mrb[0].mxu0
        %v6215 = vpop.f32.mrb[0].mxu0
        %v6216 = vadd.f32 %v5927, %v6215
        %v6217 = vpop.f32.mrb[0].mxu0
        %6218 = vmatprep.mubr.bf16.mxu0 0
        %6219 = vmatmul.mubr.bf16.gmra.mrb[0].mxu0 %v6029
        %v6220 = vpop.f32.mrb[0].mxu0
        %v6221 = vadd.f32 %v5932, %v6220
        %v6222 = vpop.f32.mrb[0].mxu0
        %v6223 = vpop.f32.mrb[0].mxu0
        %v6224 = vadd.f32 %v5935, %v6223
        %v6225 = vpop.f32.mrb[0].mxu0
        %6226 = vmatprep.mubr.bf16.mxu0 0
        %6227 = vmatmul.mubr.bf16.gmra.mrb[0].mxu0 %v6030
        %v6228 = vpop.f32.mrb[0].mxu0
        %v6229 = vadd.f32 %v5940, %v6228
        %v6230 = vpop.f32.mrb[0].mxu0
        %v6231 = vpop.f32.mrb[0].mxu0
        %v6232 = vadd.f32 %v5943, %v6231
        %v6233 = vpop.f32.mrb[0].mxu0
        %6234 = vmatprep.mubr.bf16.mxu0 0
        %6235 = vmatmul.mubr.bf16.gmra.mrb[0].mxu0 %v6031
        %v6236 = vpop.f32.mrb[0].mxu0
        %v6237 = vadd.f32 %v5948, %v6236
        %v6238 = vpop.f32.mrb[0].mxu0
        %v6239 = vpop.f32.mrb[0].mxu0
        %v6240 = vadd.f32 %v5951, %v6239
        %v6241 = vpop.f32.mrb[0].mxu0
        %6242 = vmatprep.mubr.bf16.mxu0 0
        %6243 = vmatmul.mubr.bf16.gmra.mrb[0].mxu0 %v6032
        %v6244 = vpop.f32.mrb[0].mxu0
        %v6245 = vadd.f32 %v5956, %v6244
        %v6246 = vpop.f32.mrb[0].mxu0
        %v6247 = vpop.f32.mrb[0].mxu0
        %v6248 = vadd.f32 %v5959, %v6247
        %v6249 = vpop.f32.mrb[0].mxu0
        %6250 = vmatprep.mubr.bf16.mxu0 0
        %6251 = vmatmul.mubr.bf16.gmra.mrb[0].mxu0 %v6033
        %v6252 = vpop.f32.mrb[0].mxu0
        %v6253 = vadd.f32 %v5964, %v6252
        %v6254 = vpop.f32.mrb[0].mxu0
        %v6255 = vpop.f32.mrb[0].mxu0
        %v6256 = vadd.f32 %v5967, %v6255
        %v6257 = vpop.f32.mrb[0].mxu0
        %6258 = vdwg.mxu0
        %v6259 = vld [vmem:[#allocation2] sm:$0xc]
        %v6260 = vld [vmem:[#allocation2 + $0x8] sm:$0x3]
        %v6261 = vld [vmem:[#allocation2 + $0xc] sm:$0xc]
        %v6262 = vld [vmem:[#allocation2 + $0x14] sm:$0x3]
        %v6263 = vld [vmem:[#allocation2 + $0x18] sm:$0xc]
        %v6264 = vld [vmem:[#allocation2 + $0x20] sm:$0x3]
        %v6265 = vld [vmem:[#allocation2 + $0x24] sm:$0xc]
        %v6266 = vld [vmem:[#allocation2 + $0x2c] sm:$0x3]
        %v6267 = vld [vmem:[#allocation2 + $0x30] sm:$0xc]
        %v6268 = vld [vmem:[#allocation2 + $0x38] sm:$0x3]
        %v6269 = vld [vmem:[#allocation2 + $0x3c] sm:$0xc]
        %v6270 = vld [vmem:[#allocation2 + $0x44] sm:$0x3]
        %v6271 = vld [vmem:[#allocation2 + $0x48] sm:$0xc]
        %v6272 = vld [vmem:[#allocation2 + $0x50] sm:$0x3]
        %v6273 = vld [vmem:[#allocation2 + $0x54] sm:$0xc]
        %v6274 = vld [vmem:[#allocation2 + $0x5c] sm:$0x3]
        %v6275 = vld [vmem:[#allocation2 + $0x60] sm:$0xc]
        %v6276 = vld [vmem:[#allocation2 + $0x68] sm:$0x3]
        %v6277 = vld [vmem:[#allocation2 + $0x6c] sm:$0xc]
        %v6278 = vld [vmem:[#allocation2 + $0x74] sm:$0x3]
        %v6279 = vld [vmem:[#allocation2 + $0x78] sm:$0xc]
        %v6280 = vld [vmem:[#allocation2 + $0x80] sm:$0x3]
        %v6281 = vld [vmem:[#allocation2 + $0x84] sm:$0xc]
        %v6282 = vld [vmem:[#allocation2 + $0x8c] sm:$0x3]
        %v6283 = vld [vmem:[#allocation2 + $0x90] sm:$0xc]
        %v6284 = vld [vmem:[#allocation2 + $0x98] sm:$0x3]
        %v6285 = vld [vmem:[#allocation2 + $0x9c] sm:$0xc]
        %v6286 = vld [vmem:[#allocation2 + $0xa4] sm:$0x3]
        %v6287 = vld [vmem:[#allocation2 + $0xa8] sm:$0xc]
        %v6288 = vld [vmem:[#allocation2 + $0xb0] sm:$0x3]
        %v6289 = vld [vmem:[#allocation2 + $0xb4] sm:$0xc]
        %v6290 = vld [vmem:[#allocation2 + $0xbc] sm:$0x3]
        %vm6323 = vcmask 1041408
        %vm6324 = vcmask 1045508
        %vm6325 = vmor %vm6323, %vm6324
        %v6326 = vrot.slane %v6259, 6
        %v6327 = vrot.slane %v6326, 4
        %v6328 = vrot.slane %v5441, 6
        %v6329 = vsel %vm6325, %v6327, %v6328
        %v6330 = vrot.slane %v6328, 4
        %v6331 = vrot.slane %v6260, 6
        %v6332 = vsel %vm6325, %v6330, %v6331
        %v6333 = vrot.slane %v6261, 6
        %v6334 = vrot.slane %v6333, 4
        %v6335 = vrot.slane %v5443, 6
        %v6336 = vsel %vm6325, %v6334, %v6335
        %v6337 = vrot.slane %v6335, 4
        %v6338 = vrot.slane %v6262, 6
        %v6339 = vsel %vm6325, %v6337, %v6338
        %v6340 = vrot.slane %v6263, 6
        %v6341 = vrot.slane %v6340, 4
        %v6342 = vrot.slane %v5445, 6
        %v6343 = vsel %vm6325, %v6341, %v6342
        %v6344 = vrot.slane %v6342, 4
        %v6345 = vrot.slane %v6264, 6
        %v6346 = vsel %vm6325, %v6344, %v6345
        %v6347 = vrot.slane %v6265, 6
        %v6348 = vrot.slane %v6347, 4
        %v6349 = vrot.slane %v5447, 6
        %v6350 = vsel %vm6325, %v6348, %v6349
        %v6351 = vrot.slane %v6349, 4
        %v6352 = vrot.slane %v6266, 6
        %v6353 = vsel %vm6325, %v6351, %v6352
        %v6354 = vrot.slane %v6267, 6
        %v6355 = vrot.slane %v6354, 4
        %v6356 = vrot.slane %v5449, 6
        %v6357 = vsel %vm6325, %v6355, %v6356
        %v6358 = vrot.slane %v6356, 4
        %v6359 = vrot.slane %v6268, 6
        %v6360 = vsel %vm6325, %v6358, %v6359
        %v6361 = vrot.slane %v6269, 6
        %v6362 = vrot.slane %v6361, 4
        %v6363 = vrot.slane %v5451, 6
        %v6364 = vsel %vm6325, %v6362, %v6363
        %v6365 = vrot.slane %v6363, 4
        %v6366 = vrot.slane %v6270, 6
        %v6367 = vsel %vm6325, %v6365, %v6366
        %v6368 = vrot.slane %v6271, 6
        %v6369 = vrot.slane %v6368, 4
        %v6370 = vrot.slane %v5453, 6
        %v6371 = vsel %vm6325, %v6369, %v6370
        %v6372 = vrot.slane %v6370, 4
        %v6373 = vrot.slane %v6272, 6
        %v6374 = vsel %vm6325, %v6372, %v6373
        %v6375 = vrot.slane %v6273, 6
        %v6376 = vrot.slane %v6375, 4
        %v6377 = vrot.slane %v5455, 6
        %v6378 = vsel %vm6325, %v6376, %v6377
        %v6379 = vrot.slane %v6377, 4
        %v6380 = vrot.slane %v6274, 6
        %v6381 = vsel %vm6325, %v6379, %v6380
        %v6382 = vrot.slane %v6275, 6
        %v6383 = vrot.slane %v6382, 4
        %v6384 = vrot.slane %v5457, 6
        %v6385 = vsel %vm6325, %v6383, %v6384
        %v6386 = vrot.slane %v6384, 4
        %v6387 = vrot.slane %v6276, 6
        %v6388 = vsel %vm6325, %v6386, %v6387
        %v6389 = vrot.slane %v6277, 6
        %v6390 = vrot.slane %v6389, 4
        %v6391 = vrot.slane %v5459, 6
        %v6392 = vsel %vm6325, %v6390, %v6391
        %v6393 = vrot.slane %v6391, 4
        %v6394 = vrot.slane %v6278, 6
        %v6395 = vsel %vm6325, %v6393, %v6394
        %v6396 = vrot.slane %v6279, 6
        %v6397 = vrot.slane %v6396, 4
        %v6398 = vrot.slane %v5461, 6
        %v6399 = vsel %vm6325, %v6397, %v6398
        %v6400 = vrot.slane %v6398, 4
        %v6401 = vrot.slane %v6280, 6
        %v6402 = vsel %vm6325, %v6400, %v6401
        %v6403 = vrot.slane %v6281, 6
        %v6404 = vrot.slane %v6403, 4
        %v6405 = vrot.slane %v5463, 6
        %v6406 = vsel %vm6325, %v6404, %v6405
        %v6407 = vrot.slane %v6405, 4
        %v6408 = vrot.slane %v6282, 6
        %v6409 = vsel %vm6325, %v6407, %v6408
        %v6410 = vrot.slane %v6283, 6
        %v6411 = vrot.slane %v6410, 4
        %v6412 = vrot.slane %v5465, 6
        %v6413 = vsel %vm6325, %v6411, %v6412
        %v6414 = vrot.slane %v6412, 4
        %v6415 = vrot.slane %v6284, 6
        %v6416 = vsel %vm6325, %v6414, %v6415
        %v6417 = vrot.slane %v6285, 6
        %v6418 = vrot.slane %v6417, 4
        %v6419 = vrot.slane %v5467, 6
        %v6420 = vsel %vm6325, %v6418, %v6419
        %v6421 = vrot.slane %v6419, 4
        %v6422 = vrot.slane %v6286, 6
        %v6423 = vsel %vm6325, %v6421, %v6422
        %v6424 = vrot.slane %v6287, 6
        %v6425 = vrot.slane %v6424, 4
        %v6426 = vrot.slane %v5469, 6
        %v6427 = vsel %vm6325, %v6425, %v6426
        %v6428 = vrot.slane %v6426, 4
        %v6429 = vrot.slane %v6288, 6
        %v6430 = vsel %vm6325, %v6428, %v6429
        %v6431 = vrot.slane %v6289, 6
        %v6432 = vrot.slane %v6431, 4
        %v6433 = vrot.slane %v5471, 6
        %v6434 = vsel %vm6325, %v6432, %v6433
        %v6435 = vrot.slane %v6433, 4
        %v6436 = vrot.slane %v6290, 6
        %v6437 = vsel %vm6325, %v6435, %v6436
        %s6438 = scalar_lea.vmem [#allocation3], 128
        %v6439 = vld [vmem:[%s6438] sm:$0xf]
        %v6440 = vld [vmem:[%s6438 + $0x4] sm:$0xf]
        %v6441 = vld [vmem:[%s6438 + $0x8] sm:$0xf]
        %v6442 = vld [vmem:[%s6438 + $0xc] sm:$0xf]
        %v6443 = vld [vmem:[%s6438 + $0x10] sm:$0xf]
        %v6444 = vld [vmem:[%s6438 + $0x14] sm:$0xf]
        %v6445 = vld [vmem:[%s6438 + $0x18] sm:$0xf]
        %v6446 = vld [vmem:[%s6438 + $0x1c] sm:$0xf]
        %v6447 = vld [vmem:[%s6438 + $0x20] sm:$0xf]
        %v6448 = vld [vmem:[%s6438 + $0x24] sm:$0xf]
        %v6449 = vld [vmem:[%s6438 + $0x28] sm:$0xf]
        %v6450 = vld [vmem:[%s6438 + $0x2c] sm:$0xf]
        %v6451 = vld [vmem:[%s6438 + $0x30] sm:$0xf]
        %v6452 = vld [vmem:[%s6438 + $0x34] sm:$0xf]
        %v6453 = vld [vmem:[%s6438 + $0x38] sm:$0xf]
        %v6454 = vld [vmem:[%s6438 + $0x3c] sm:$0xf]
        %v6455 = vunpack.c.l.b16 %v6329
        %v6456 = vunpack.c.l.b16 %v6332
        %v6457 = vunpack.c.l.b16 %v6336
        %v6458 = vunpack.c.l.b16 %v6339
        %v6459 = vunpack.c.l.b16 %v6343
        %v6460 = vunpack.c.l.b16 %v6346
        %v6461 = vunpack.c.l.b16 %v6350
        %v6462 = vunpack.c.l.b16 %v6353
        %v6463 = vunpack.c.l.b16 %v6357
        %v6464 = vunpack.c.l.b16 %v6360
        %v6465 = vunpack.c.l.b16 %v6364
        %v6466 = vunpack.c.l.b16 %v6367
        %v6467 = vunpack.c.l.b16 %v6371
        %v6468 = vunpack.c.l.b16 %v6374
        %v6469 = vunpack.c.l.b16 %v6378
        %v6470 = vunpack.c.l.b16 %v6381
        %v6471 = vunpack.c.l.b16 %v6385
        %v6472 = vunpack.c.l.b16 %v6388
        %v6473 = vunpack.c.l.b16 %v6392
        %v6474 = vunpack.c.l.b16 %v6395
        %v6475 = vunpack.c.l.b16 %v6399
        %v6476 = vunpack.c.l.b16 %v6402
        %v6477 = vunpack.c.l.b16 %v6406
        %v6478 = vunpack.c.l.b16 %v6409
        %v6479 = vunpack.c.l.b16 %v6413
        %v6480 = vunpack.c.l.b16 %v6416
        %v6481 = vunpack.c.l.b16 %v6420
        %v6482 = vunpack.c.l.b16 %v6423
        %v6483 = vunpack.c.l.b16 %v6427
        %v6484 = vunpack.c.l.b16 %v6430
        %v6485 = vunpack.c.l.b16 %v6434
        %v6486 = vunpack.c.l.b16 %v6437
        %v6487 = vpack.c.b16 %v6456, %v6455
        %v6488 = vpack.c.b16 %v6458, %v6457
        %v6489 = vpack.c.b16 %v6460, %v6459
        %v6490 = vpack.c.b16 %v6462, %v6461
        %v6491 = vpack.c.b16 %v6464, %v6463
        %v6492 = vpack.c.b16 %v6466, %v6465
        %v6493 = vpack.c.b16 %v6468, %v6467
        %v6494 = vpack.c.b16 %v6470, %v6469
        %v6495 = vpack.c.b16 %v6472, %v6471
        %v6496 = vpack.c.b16 %v6474, %v6473
        %v6497 = vpack.c.b16 %v6476, %v6475
        %v6498 = vpack.c.b16 %v6478, %v6477
        %v6499 = vpack.c.b16 %v6480, %v6479
        %v6500 = vpack.c.b16 %v6482, %v6481
        %v6501 = vpack.c.b16 %v6484, %v6483
        %v6502 = vpack.c.b16 %v6486, %v6485
        %v6535 = vunpack.c.l.b16 %v6439
        %v6536 = vunpack.c.l.b16 %v6440
        %v6537 = vunpack.c.l.b16 %v6441
        %v6538 = vunpack.c.l.b16 %v6442
        %v6539 = vunpack.c.l.b16 %v6443
        %v6540 = vunpack.c.l.b16 %v6444
        %v6541 = vunpack.c.l.b16 %v6445
        %v6542 = vunpack.c.l.b16 %v6446
        %v6543 = vunpack.c.l.b16 %v6447
        %v6544 = vunpack.c.l.b16 %v6448
        %v6545 = vunpack.c.l.b16 %v6449
        %v6546 = vunpack.c.l.b16 %v6450
        %v6547 = vunpack.c.l.b16 %v6451
        %v6548 = vunpack.c.l.b16 %v6452
        %v6549 = vunpack.c.l.b16 %v6453
        %v6550 = vunpack.c.l.b16 %v6454
        %v6551 = vpack.c.b16 %v6536, %v6535
        %v6552 = vpack.c.b16 %v6538, %v6537
        %v6553 = vpack.c.b16 %v6540, %v6539
        %v6554 = vpack.c.b16 %v6542, %v6541
        %v6555 = vpack.c.b16 %v6544, %v6543
        %v6556 = vpack.c.b16 %v6546, %v6545
        %v6557 = vpack.c.b16 %v6548, %v6547
        %v6558 = vpack.c.b16 %v6550, %v6549
        %6567 = vmatprep.subr.bf16.mxu0 0
        %6568 = vmatpush1.bf16.msra.mxu0 %v6551
        %6569 = vmatprep.subr.bf16.mxu0 0
        %6570 = vmatpush1.bf16.msra.mxu0 %v6552
        %6571 = vmatprep.subr.bf16.mxu0 0
        %6572 = vmatpush1.bf16.msra.mxu0 %v6553
        %6573 = vmatprep.subr.bf16.mxu0 0
        %6574 = vmatpush1.bf16.msra.mxu0 %v6554
        %6575 = vmatprep.subr.bf16.mxu0 0
        %6576 = vmatpush1.bf16.msra.mxu0 %v6555
        %6577 = vmatprep.subr.bf16.mxu0 0
        %6578 = vmatpush1.bf16.msra.mxu0 %v6556
        %6579 = vmatprep.subr.bf16.mxu0 0
        %6580 = vmatpush1.bf16.msra.mxu0 %v6557
        %6581 = vmatprep.subr.bf16.mxu0 0
        %6582 = vmatpush1.bf16.msra.mxu0 %v6558
        %6583 = vmatprep.subr.bf16.mxu0 0
        %6584 = vmatpush1.bf16.msra.mxu0 0
        %6585 = vmatprep.subr.bf16.mxu0 0
        %6586 = vmatpush1.bf16.msra.mxu0 0
        %6587 = vmatprep.subr.bf16.mxu0 0
        %6588 = vmatpush1.bf16.msra.mxu0 0
        %6589 = vmatprep.subr.bf16.mxu0 0
        %6590 = vmatpush1.bf16.msra.mxu0 0
        %6591 = vmatprep.subr.bf16.mxu0 0
        %6592 = vmatpush1.bf16.msra.mxu0 0
        %6593 = vmatprep.subr.bf16.mxu0 0
        %6594 = vmatpush1.bf16.msra.mxu0 0
        %6595 = vmatprep.subr.bf16.mxu0 0
        %6596 = vmatpush1.bf16.msra.mxu0 0
        %6597 = vmatprep.subr.bf16.mxu0 0
        %6598 = vmatpush1.bf16.msra.mxu0 0
        %6599 = vmatprep.mubr.bf16.mxu0 0
        %6600 = vmatmul.mubr.bf16.gmra.mrb[0].mxu0 %v6487
        %v6601 = vpop.f32.mrb[0].mxu0
        %v6602 = vadd.f32 0.0, %v6601
        %v6603 = vpop.f32.mrb[0].mxu0
        %v6604 = vpop.f32.mrb[0].mxu0
        %v6605 = vadd.f32 0.0, %v6604
        %v6606 = vpop.f32.mrb[0].mxu0
        %6607 = vmatprep.mubr.bf16.mxu0 0
        %6608 = vmatmul.mubr.bf16.gmra.mrb[0].mxu0 %v6488
        %v6609 = vpop.f32.mrb[0].mxu0
        %v6610 = vadd.f32 0.0, %v6609
        %v6611 = vpop.f32.mrb[0].mxu0
        %v6612 = vpop.f32.mrb[0].mxu0
        %v6613 = vadd.f32 0.0, %v6612
        %v6614 = vpop.f32.mrb[0].mxu0
        %6615 = vmatprep.mubr.bf16.mxu0 0
        %6616 = vmatmul.mubr.bf16.gmra.mrb[0].mxu0 %v6489
        %v6617 = vpop.f32.mrb[0].mxu0
        %v6618 = vadd.f32 0.0, %v6617
        %v6619 = vpop.f32.mrb[0].mxu0
        %v6620 = vpop.f32.mrb[0].mxu0
        %v6621 = vadd.f32 0.0, %v6620
        %v6622 = vpop.f32.mrb[0].mxu0
        %6623 = vmatprep.mubr.bf16.mxu0 0
        %6624 = vmatmul.mubr.bf16.gmra.mrb[0].mxu0 %v6490
        %v6625 = vpop.f32.mrb[0].mxu0
        %v6626 = vadd.f32 0.0, %v6625
        %v6627 = vpop.f32.mrb[0].mxu0
        %v6628 = vpop.f32.mrb[0].mxu0
        %v6629 = vadd.f32 0.0, %v6628
        %v6630 = vpop.f32.mrb[0].mxu0
        %6631 = vmatprep.mubr.bf16.mxu0 0
        %6632 = vmatmul.mubr.bf16.gmra.mrb[0].mxu0 %v6491
        %v6633 = vpop.f32.mrb[0].mxu0
        %v6634 = vadd.f32 0.0, %v6633
        %v6635 = vpop.f32.mrb[0].mxu0
        %v6636 = vpop.f32.mrb[0].mxu0
        %v6637 = vadd.f32 0.0, %v6636
        %v6638 = vpop.f32.mrb[0].mxu0
        %6639 = vmatprep.mubr.bf16.mxu0 0
        %6640 = vmatmul.mubr.bf16.gmra.mrb[0].mxu0 %v6492
        %v6641 = vpop.f32.mrb[0].mxu0
        %v6642 = vadd.f32 0.0, %v6641
        %v6643 = vpop.f32.mrb[0].mxu0
        %v6644 = vpop.f32.mrb[0].mxu0
        %v6645 = vadd.f32 0.0, %v6644
        %v6646 = vpop.f32.mrb[0].mxu0
        %6647 = vmatprep.mubr.bf16.mxu0 0
        %6648 = vmatmul.mubr.bf16.gmra.mrb[0].mxu0 %v6493
        %v6649 = vpop.f32.mrb[0].mxu0
        %v6650 = vadd.f32 0.0, %v6649
        %v6651 = vpop.f32.mrb[0].mxu0
        %v6652 = vpop.f32.mrb[0].mxu0
        %v6653 = vadd.f32 0.0, %v6652
        %v6654 = vpop.f32.mrb[0].mxu0
        %6655 = vmatprep.mubr.bf16.mxu0 0
        %6656 = vmatmul.mubr.bf16.gmra.mrb[0].mxu0 %v6494
        %v6657 = vpop.f32.mrb[0].mxu0
        %v6658 = vadd.f32 0.0, %v6657
        %v6659 = vpop.f32.mrb[0].mxu0
        %v6660 = vpop.f32.mrb[0].mxu0
        %v6661 = vadd.f32 0.0, %v6660
        %v6662 = vpop.f32.mrb[0].mxu0
        %6663 = vmatprep.mubr.bf16.mxu0 0
        %6664 = vmatmul.mubr.bf16.gmra.mrb[0].mxu0 %v6495
        %v6665 = vpop.f32.mrb[0].mxu0
        %v6666 = vadd.f32 0.0, %v6665
        %v6667 = vpop.f32.mrb[0].mxu0
        %v6668 = vpop.f32.mrb[0].mxu0
        %v6669 = vadd.f32 0.0, %v6668
        %v6670 = vpop.f32.mrb[0].mxu0
        %6671 = vmatprep.mubr.bf16.mxu0 0
        %6672 = vmatmul.mubr.bf16.gmra.mrb[0].mxu0 %v6496
        %v6673 = vpop.f32.mrb[0].mxu0
        %v6674 = vadd.f32 0.0, %v6673
        %v6675 = vpop.f32.mrb[0].mxu0
        %v6676 = vpop.f32.mrb[0].mxu0
        %v6677 = vadd.f32 0.0, %v6676
        %v6678 = vpop.f32.mrb[0].mxu0
        %6679 = vmatprep.mubr.bf16.mxu0 0
        %6680 = vmatmul.mubr.bf16.gmra.mrb[0].mxu0 %v6497
        %v6681 = vpop.f32.mrb[0].mxu0
        %v6682 = vadd.f32 0.0, %v6681
        %v6683 = vpop.f32.mrb[0].mxu0
        %v6684 = vpop.f32.mrb[0].mxu0
        %v6685 = vadd.f32 0.0, %v6684
        %v6686 = vpop.f32.mrb[0].mxu0
        %6687 = vmatprep.mubr.bf16.mxu0 0
        %6688 = vmatmul.mubr.bf16.gmra.mrb[0].mxu0 %v6498
        %v6689 = vpop.f32.mrb[0].mxu0
        %v6690 = vadd.f32 0.0, %v6689
        %v6691 = vpop.f32.mrb[0].mxu0
        %v6692 = vpop.f32.mrb[0].mxu0
        %v6693 = vadd.f32 0.0, %v6692
        %v6694 = vpop.f32.mrb[0].mxu0
        %6695 = vmatprep.mubr.bf16.mxu0 0
        %6696 = vmatmul.mubr.bf16.gmra.mrb[0].mxu0 %v6499
        %v6697 = vpop.f32.mrb[0].mxu0
        %v6698 = vadd.f32 0.0, %v6697
        %v6699 = vpop.f32.mrb[0].mxu0
        %v6700 = vpop.f32.mrb[0].mxu0
        %v6701 = vadd.f32 0.0, %v6700
        %v6702 = vpop.f32.mrb[0].mxu0
        %6703 = vmatprep.mubr.bf16.mxu0 0
        %6704 = vmatmul.mubr.bf16.gmra.mrb[0].mxu0 %v6500
        %v6705 = vpop.f32.mrb[0].mxu0
        %v6706 = vadd.f32 0.0, %v6705
        %v6707 = vpop.f32.mrb[0].mxu0
        %v6708 = vpop.f32.mrb[0].mxu0
        %v6709 = vadd.f32 0.0, %v6708
        %v6710 = vpop.f32.mrb[0].mxu0
        %6711 = vmatprep.mubr.bf16.mxu0 0
        %6712 = vmatmul.mubr.bf16.gmra.mrb[0].mxu0 %v6501
        %v6713 = vpop.f32.mrb[0].mxu0
        %v6714 = vadd.f32 0.0, %v6713
        %v6715 = vpop.f32.mrb[0].mxu0
        %v6716 = vpop.f32.mrb[0].mxu0
        %v6717 = vadd.f32 0.0, %v6716
        %v6718 = vpop.f32.mrb[0].mxu0
        %6719 = vmatprep.mubr.bf16.mxu0 0
        %6720 = vmatmul.mubr.bf16.gmra.mrb[0].mxu0 %v6502
        %v6721 = vpop.f32.mrb[0].mxu0
        %v6722 = vadd.f32 0.0, %v6721
        %v6723 = vpop.f32.mrb[0].mxu0
        %v6724 = vpop.f32.mrb[0].mxu0
        %v6725 = vadd.f32 0.0, %v6724
        %v6726 = vpop.f32.mrb[0].mxu0
        %6727 = vdwg.mxu0
        %v6728 = vadd.f32 %v6133, %v6602
        %v6729 = vadd.f32 %v6136, %v6605
        %v6730 = vadd.f32 %v6141, %v6610
        %v6731 = vadd.f32 %v6144, %v6613
        %v6732 = vadd.f32 %v6149, %v6618
        %v6733 = vadd.f32 %v6152, %v6621
        %v6734 = vadd.f32 %v6157, %v6626
        %v6735 = vadd.f32 %v6160, %v6629
        %v6736 = vadd.f32 %v6165, %v6634
        %v6737 = vadd.f32 %v6168, %v6637
        %v6738 = vadd.f32 %v6173, %v6642
        %v6739 = vadd.f32 %v6176, %v6645
        %v6740 = vadd.f32 %v6181, %v6650
        %v6741 = vadd.f32 %v6184, %v6653
        %v6742 = vadd.f32 %v6189, %v6658
        %v6743 = vadd.f32 %v6192, %v6661
        %v6744 = vadd.f32 %v6197, %v6666
        %v6745 = vadd.f32 %v6200, %v6669
        %v6746 = vadd.f32 %v6205, %v6674
        %v6747 = vadd.f32 %v6208, %v6677
        %v6748 = vadd.f32 %v6213, %v6682
        %v6749 = vadd.f32 %v6216, %v6685
        %v6750 = vadd.f32 %v6221, %v6690
        %v6751 = vadd.f32 %v6224, %v6693
        %v6752 = vadd.f32 %v6229, %v6698
        %v6753 = vadd.f32 %v6232, %v6701
        %v6754 = vadd.f32 %v6237, %v6706
        %v6755 = vadd.f32 %v6240, %v6709
        %v6756 = vadd.f32 %v6245, %v6714
        %v6757 = vadd.f32 %v6248, %v6717
        %v6758 = vadd.f32 %v6253, %v6722
        %v6759 = vadd.f32 %v6256, %v6725
        %v6760 = vld [vmem:[%s252] sm:$0xf]
        %v6761 = vld [vmem:[%s252 + $0x4] sm:$0xf]
        %v6762 = vld [vmem:[%s252 + $0xc] sm:$0xf]
        %v6763 = vld [vmem:[%s252 + $0x10] sm:$0xf]
        %v6764 = vld [vmem:[%s252 + $0x18] sm:$0xf]
        %v6765 = vld [vmem:[%s252 + $0x1c] sm:$0xf]
        %v6766 = vld [vmem:[%s252 + $0x24] sm:$0xf]
        %v6767 = vld [vmem:[%s252 + $0x28] sm:$0xf]
        %v6768 = vld [vmem:[%s252 + $0x30] sm:$0xf]
        %v6769 = vld [vmem:[%s252 + $0x34] sm:$0xf]
        %v6770 = vld [vmem:[%s252 + $0x3c] sm:$0xf]
        %v6771 = vld [vmem:[%s252 + $0x40] sm:$0xf]
        %v6772 = vld [vmem:[%s252 + $0x48] sm:$0xf]
        %v6773 = vld [vmem:[%s252 + $0x4c] sm:$0xf]
        %v6774 = vld [vmem:[%s252 + $0x54] sm:$0xf]
        %v6775 = vld [vmem:[%s252 + $0x58] sm:$0xf]
        %v6776 = vld [vmem:[%s252 + $0x60] sm:$0xf]
        %v6777 = vld [vmem:[%s252 + $0x64] sm:$0xf]
        %v6778 = vld [vmem:[%s252 + $0x6c] sm:$0xf]
        %v6779 = vld [vmem:[%s252 + $0x70] sm:$0xf]
        %v6780 = vld [vmem:[%s252 + $0x78] sm:$0xf]
        %v6781 = vld [vmem:[%s252 + $0x7c] sm:$0xf]
        %v6782 = vld [vmem:[%s252 + $0x84] sm:$0xf]
        %v6783 = vld [vmem:[%s252 + $0x88] sm:$0xf]
        %v6784 = vld [vmem:[%s252 + $0x90] sm:$0xf]
        %v6785 = vld [vmem:[%s252 + $0x94] sm:$0xf]
        %v6786 = vld [vmem:[%s252 + $0x9c] sm:$0xf]
        %v6787 = vld [vmem:[%s252 + $0xa0] sm:$0xf]
        %v6788 = vld [vmem:[%s252 + $0xa8] sm:$0xf]
        %v6789 = vld [vmem:[%s252 + $0xac] sm:$0xf]
        %v6790 = vld [vmem:[%s252 + $0xb4] sm:$0xf]
        %v6791 = vld [vmem:[%s252 + $0xb8] sm:$0xf]
        %s6792 = scalar_lea.vmem [#allocation3], 192
        %v6793 = vld [vmem:[%s6792] sm:$0xf]
        %v6794 = vld [vmem:[%s6792 + $0x4] sm:$0xf]
        %v6795 = vld [vmem:[%s6792 + $0x8] sm:$0xf]
        %v6796 = vld [vmem:[%s6792 + $0xc] sm:$0xf]
        %v6797 = vld [vmem:[%s6792 + $0x10] sm:$0xf]
        %v6798 = vld [vmem:[%s6792 + $0x14] sm:$0xf]
        %v6799 = vld [vmem:[%s6792 + $0x18] sm:$0xf]
        %v6800 = vld [vmem:[%s6792 + $0x1c] sm:$0xf]
        %v6801 = vld [vmem:[%s6792 + $0x20] sm:$0xf]
        %v6802 = vld [vmem:[%s6792 + $0x24] sm:$0xf]
        %v6803 = vld [vmem:[%s6792 + $0x28] sm:$0xf]
        %v6804 = vld [vmem:[%s6792 + $0x2c] sm:$0xf]
        %v6805 = vld [vmem:[%s6792 + $0x30] sm:$0xf]
        %v6806 = vld [vmem:[%s6792 + $0x34] sm:$0xf]
        %v6807 = vld [vmem:[%s6792 + $0x38] sm:$0xf]
        %v6808 = vld [vmem:[%s6792 + $0x3c] sm:$0xf]
        %v6841 = vunpack.c.l.b16 %v6760
        %v6842 = vunpack.c.l.b16 %v6761
        %v6843 = vunpack.c.l.b16 %v6762
        %v6844 = vunpack.c.l.b16 %v6763
        %v6845 = vunpack.c.l.b16 %v6764
        %v6846 = vunpack.c.l.b16 %v6765
        %v6847 = vunpack.c.l.b16 %v6766
        %v6848 = vunpack.c.l.b16 %v6767
        %v6849 = vunpack.c.l.b16 %v6768
        %v6850 = vunpack.c.l.b16 %v6769
        %v6851 = vunpack.c.l.b16 %v6770
        %v6852 = vunpack.c.l.b16 %v6771
        %v6853 = vunpack.c.l.b16 %v6772
        %v6854 = vunpack.c.l.b16 %v6773
        %v6855 = vunpack.c.l.b16 %v6774
        %v6856 = vunpack.c.l.b16 %v6775
        %v6857 = vunpack.c.l.b16 %v6776
        %v6858 = vunpack.c.l.b16 %v6777
        %v6859 = vunpack.c.l.b16 %v6778
        %v6860 = vunpack.c.l.b16 %v6779
        %v6861 = vunpack.c.l.b16 %v6780
        %v6862 = vunpack.c.l.b16 %v6781
        %v6863 = vunpack.c.l.b16 %v6782
        %v6864 = vunpack.c.l.b16 %v6783
        %v6865 = vunpack.c.l.b16 %v6784
        %v6866 = vunpack.c.l.b16 %v6785
        %v6867 = vunpack.c.l.b16 %v6786
        %v6868 = vunpack.c.l.b16 %v6787
        %v6869 = vunpack.c.l.b16 %v6788
        %v6870 = vunpack.c.l.b16 %v6789
        %v6871 = vunpack.c.l.b16 %v6790
        %v6872 = vunpack.c.l.b16 %v6791
        %v6873 = vpack.c.b16 %v6842, %v6841
        %v6874 = vpack.c.b16 %v6844, %v6843
        %v6875 = vpack.c.b16 %v6846, %v6845
        %v6876 = vpack.c.b16 %v6848, %v6847
        %v6877 = vpack.c.b16 %v6850, %v6849
        %v6878 = vpack.c.b16 %v6852, %v6851
        %v6879 = vpack.c.b16 %v6854, %v6853
        %v6880 = vpack.c.b16 %v6856, %v6855
        %v6881 = vpack.c.b16 %v6858, %v6857
        %v6882 = vpack.c.b16 %v6860, %v6859
        %v6883 = vpack.c.b16 %v6862, %v6861
        %v6884 = vpack.c.b16 %v6864, %v6863
        %v6885 = vpack.c.b16 %v6866, %v6865
        %v6886 = vpack.c.b16 %v6868, %v6867
        %v6887 = vpack.c.b16 %v6870, %v6869
        %v6888 = vpack.c.b16 %v6872, %v6871
        %v6921 = vunpack.c.l.b16 %v6793
        %v6922 = vunpack.c.l.b16 %v6794
        %v6923 = vunpack.c.l.b16 %v6795
        %v6924 = vunpack.c.l.b16 %v6796
        %v6925 = vunpack.c.l.b16 %v6797
        %v6926 = vunpack.c.l.b16 %v6798
        %v6927 = vunpack.c.l.b16 %v6799
        %v6928 = vunpack.c.l.b16 %v6800
        %v6929 = vunpack.c.l.b16 %v6801
        %v6930 = vunpack.c.l.b16 %v6802
        %v6931 = vunpack.c.l.b16 %v6803
        %v6932 = vunpack.c.l.b16 %v6804
        %v6933 = vunpack.c.l.b16 %v6805
        %v6934 = vunpack.c.l.b16 %v6806
        %v6935 = vunpack.c.l.b16 %v6807
        %v6936 = vunpack.c.l.b16 %v6808
        %v6937 = vpack.c.b16 %v6922, %v6921
        %v6938 = vpack.c.b16 %v6924, %v6923
        %v6939 = vpack.c.b16 %v6926, %v6925
        %v6940 = vpack.c.b16 %v6928, %v6927
        %v6941 = vpack.c.b16 %v6930, %v6929
        %v6942 = vpack.c.b16 %v6932, %v6931
        %v6943 = vpack.c.b16 %v6934, %v6933
        %v6944 = vpack.c.b16 %v6936, %v6935
        %6953 = vmatprep.subr.bf16.mxu0 0
        %6954 = vmatpush1.bf16.msra.mxu0 %v6937
        %6955 = vmatprep.subr.bf16.mxu0 0
        %6956 = vmatpush1.bf16.msra.mxu0 %v6938
        %6957 = vmatprep.subr.bf16.mxu0 0
        %6958 = vmatpush1.bf16.msra.mxu0 %v6939
        %6959 = vmatprep.subr.bf16.mxu0 0
        %6960 = vmatpush1.bf16.msra.mxu0 %v6940
        %6961 = vmatprep.subr.bf16.mxu0 0
        %6962 = vmatpush1.bf16.msra.mxu0 %v6941
        %6963 = vmatprep.subr.bf16.mxu0 0
        %6964 = vmatpush1.bf16.msra.mxu0 %v6942
        %6965 = vmatprep.subr.bf16.mxu0 0
        %6966 = vmatpush1.bf16.msra.mxu0 %v6943
        %6967 = vmatprep.subr.bf16.mxu0 0
        %6968 = vmatpush1.bf16.msra.mxu0 %v6944
        %6969 = vmatprep.subr.bf16.mxu0 0
        %6970 = vmatpush1.bf16.msra.mxu0 0
        %6971 = vmatprep.subr.bf16.mxu0 0
        %6972 = vmatpush1.bf16.msra.mxu0 0
        %6973 = vmatprep.subr.bf16.mxu0 0
        %6974 = vmatpush1.bf16.msra.mxu0 0
        %6975 = vmatprep.subr.bf16.mxu0 0
        %6976 = vmatpush1.bf16.msra.mxu0 0
        %6977 = vmatprep.subr.bf16.mxu0 0
        %6978 = vmatpush1.bf16.msra.mxu0 0
        %6979 = vmatprep.subr.bf16.mxu0 0
        %6980 = vmatpush1.bf16.msra.mxu0 0
        %6981 = vmatprep.subr.bf16.mxu0 0
        %6982 = vmatpush1.bf16.msra.mxu0 0
        %6983 = vmatprep.subr.bf16.mxu0 0
        %6984 = vmatpush1.bf16.msra.mxu0 0
        %6985 = vmatprep.mubr.bf16.mxu0 0
        %6986 = vmatmul.mubr.bf16.gmra.mrb[0].mxu0 %v6873
        %v6987 = vpop.f32.mrb[0].mxu0
        %v6988 = vadd.f32 0.0, %v6987
        %v6989 = vpop.f32.mrb[0].mxu0
        %v6990 = vpop.f32.mrb[0].mxu0
        %v6991 = vadd.f32 0.0, %v6990
        %v6992 = vpop.f32.mrb[0].mxu0
        %6993 = vmatprep.mubr.bf16.mxu0 0
        %6994 = vmatmul.mubr.bf16.gmra.mrb[0].mxu0 %v6874
        %v6995 = vpop.f32.mrb[0].mxu0
        %v6996 = vadd.f32 0.0, %v6995
        %v6997 = vpop.f32.mrb[0].mxu0
        %v6998 = vpop.f32.mrb[0].mxu0
        %v6999 = vadd.f32 0.0, %v6998
        %v7000 = vpop.f32.mrb[0].mxu0
        %7001 = vmatprep.mubr.bf16.mxu0 0
        %7002 = vmatmul.mubr.bf16.gmra.mrb[0].mxu0 %v6875
        %v7003 = vpop.f32.mrb[0].mxu0
        %v7004 = vadd.f32 0.0, %v7003
        %v7005 = vpop.f32.mrb[0].mxu0
        %v7006 = vpop.f32.mrb[0].mxu0
        %v7007 = vadd.f32 0.0, %v7006
        %v7008 = vpop.f32.mrb[0].mxu0
        %7009 = vmatprep.mubr.bf16.mxu0 0
        %7010 = vmatmul.mubr.bf16.gmra.mrb[0].mxu0 %v6876
        %v7011 = vpop.f32.mrb[0].mxu0
        %v7012 = vadd.f32 0.0, %v7011
        %v7013 = vpop.f32.mrb[0].mxu0
        %v7014 = vpop.f32.mrb[0].mxu0
        %v7015 = vadd.f32 0.0, %v7014
        %v7016 = vpop.f32.mrb[0].mxu0
        %7017 = vmatprep.mubr.bf16.mxu0 0
        %7018 = vmatmul.mubr.bf16.gmra.mrb[0].mxu0 %v6877
        %v7019 = vpop.f32.mrb[0].mxu0
        %v7020 = vadd.f32 0.0, %v7019
        %v7021 = vpop.f32.mrb[0].mxu0
        %v7022 = vpop.f32.mrb[0].mxu0
        %v7023 = vadd.f32 0.0, %v7022
        %v7024 = vpop.f32.mrb[0].mxu0
        %7025 = vmatprep.mubr.bf16.mxu0 0
        %7026 = vmatmul.mubr.bf16.gmra.mrb[0].mxu0 %v6878
        %v7027 = vpop.f32.mrb[0].mxu0
        %v7028 = vadd.f32 0.0, %v7027
        %v7029 = vpop.f32.mrb[0].mxu0
        %v7030 = vpop.f32.mrb[0].mxu0
        %v7031 = vadd.f32 0.0, %v7030
        %v7032 = vpop.f32.mrb[0].mxu0
        %7033 = vmatprep.mubr.bf16.mxu0 0
        %7034 = vmatmul.mubr.bf16.gmra.mrb[0].mxu0 %v6879
        %v7035 = vpop.f32.mrb[0].mxu0
        %v7036 = vadd.f32 0.0, %v7035
        %v7037 = vpop.f32.mrb[0].mxu0
        %v7038 = vpop.f32.mrb[0].mxu0
        %v7039 = vadd.f32 0.0, %v7038
        %v7040 = vpop.f32.mrb[0].mxu0
        %7041 = vmatprep.mubr.bf16.mxu0 0
        %7042 = vmatmul.mubr.bf16.gmra.mrb[0].mxu0 %v6880
        %v7043 = vpop.f32.mrb[0].mxu0
        %v7044 = vadd.f32 0.0, %v7043
        %v7045 = vpop.f32.mrb[0].mxu0
        %v7046 = vpop.f32.mrb[0].mxu0
        %v7047 = vadd.f32 0.0, %v7046
        %v7048 = vpop.f32.mrb[0].mxu0
        %7049 = vmatprep.mubr.bf16.mxu0 0
        %7050 = vmatmul.mubr.bf16.gmra.mrb[0].mxu0 %v6881
        %v7051 = vpop.f32.mrb[0].mxu0
        %v7052 = vadd.f32 0.0, %v7051
        %v7053 = vpop.f32.mrb[0].mxu0
        %v7054 = vpop.f32.mrb[0].mxu0
        %v7055 = vadd.f32 0.0, %v7054
        %v7056 = vpop.f32.mrb[0].mxu0
        %7057 = vmatprep.mubr.bf16.mxu0 0
        %7058 = vmatmul.mubr.bf16.gmra.mrb[0].mxu0 %v6882
        %v7059 = vpop.f32.mrb[0].mxu0
        %v7060 = vadd.f32 0.0, %v7059
        %v7061 = vpop.f32.mrb[0].mxu0
        %v7062 = vpop.f32.mrb[0].mxu0
        %v7063 = vadd.f32 0.0, %v7062
        %v7064 = vpop.f32.mrb[0].mxu0
        %7065 = vmatprep.mubr.bf16.mxu0 0
        %7066 = vmatmul.mubr.bf16.gmra.mrb[0].mxu0 %v6883
        %v7067 = vpop.f32.mrb[0].mxu0
        %v7068 = vadd.f32 0.0, %v7067
        %v7069 = vpop.f32.mrb[0].mxu0
        %v7070 = vpop.f32.mrb[0].mxu0
        %v7071 = vadd.f32 0.0, %v7070
        %v7072 = vpop.f32.mrb[0].mxu0
        %7073 = vmatprep.mubr.bf16.mxu0 0
        %7074 = vmatmul.mubr.bf16.gmra.mrb[0].mxu0 %v6884
        %v7075 = vpop.f32.mrb[0].mxu0
        %v7076 = vadd.f32 0.0, %v7075
        %v7077 = vpop.f32.mrb[0].mxu0
        %v7078 = vpop.f32.mrb[0].mxu0
        %v7079 = vadd.f32 0.0, %v7078
        %v7080 = vpop.f32.mrb[0].mxu0
        %7081 = vmatprep.mubr.bf16.mxu0 0
        %7082 = vmatmul.mubr.bf16.gmra.mrb[0].mxu0 %v6885
        %v7083 = vpop.f32.mrb[0].mxu0
        %v7084 = vadd.f32 0.0, %v7083
        %v7085 = vpop.f32.mrb[0].mxu0
        %v7086 = vpop.f32.mrb[0].mxu0
        %v7087 = vadd.f32 0.0, %v7086
        %v7088 = vpop.f32.mrb[0].mxu0
        %7089 = vmatprep.mubr.bf16.mxu0 0
        %7090 = vmatmul.mubr.bf16.gmra.mrb[0].mxu0 %v6886
        %v7091 = vpop.f32.mrb[0].mxu0
        %v7092 = vadd.f32 0.0, %v7091
        %v7093 = vpop.f32.mrb[0].mxu0
        %v7094 = vpop.f32.mrb[0].mxu0
        %v7095 = vadd.f32 0.0, %v7094
        %v7096 = vpop.f32.mrb[0].mxu0
        %7097 = vmatprep.mubr.bf16.mxu0 0
        %7098 = vmatmul.mubr.bf16.gmra.mrb[0].mxu0 %v6887
        %v7099 = vpop.f32.mrb[0].mxu0
        %v7100 = vadd.f32 0.0, %v7099
        %v7101 = vpop.f32.mrb[0].mxu0
        %v7102 = vpop.f32.mrb[0].mxu0
        %v7103 = vadd.f32 0.0, %v7102
        %v7104 = vpop.f32.mrb[0].mxu0
        %7105 = vmatprep.mubr.bf16.mxu0 0
        %7106 = vmatmul.mubr.bf16.gmra.mrb[0].mxu0 %v6888
        %v7107 = vpop.f32.mrb[0].mxu0
        %v7108 = vadd.f32 0.0, %v7107
        %v7109 = vpop.f32.mrb[0].mxu0
        %v7110 = vpop.f32.mrb[0].mxu0
        %v7111 = vadd.f32 0.0, %v7110
        %v7112 = vpop.f32.mrb[0].mxu0
        %7113 = vdwg.mxu0
        %v7114 = vadd.f32 %v6728, %v6988
        %v7115 = vadd.f32 %v6729, %v6991
        %v7116 = vadd.f32 %v6730, %v6996
        %v7117 = vadd.f32 %v6731, %v6999
        %v7118 = vadd.f32 %v6732, %v7004
        %v7119 = vadd.f32 %v6733, %v7007
        %v7120 = vadd.f32 %v6734, %v7012
        %v7121 = vadd.f32 %v6735, %v7015
        %v7122 = vadd.f32 %v6736, %v7020
        %v7123 = vadd.f32 %v6737, %v7023
        %v7124 = vadd.f32 %v6738, %v7028
        %v7125 = vadd.f32 %v6739, %v7031
        %v7126 = vadd.f32 %v6740, %v7036
        %v7127 = vadd.f32 %v6741, %v7039
        %v7128 = vadd.f32 %v6742, %v7044
        %v7129 = vadd.f32 %v6743, %v7047
        %v7130 = vadd.f32 %v6744, %v7052
        %v7131 = vadd.f32 %v6745, %v7055
        %v7132 = vadd.f32 %v6746, %v7060
        %v7133 = vadd.f32 %v6747, %v7063
        %v7134 = vadd.f32 %v6748, %v7068
        %v7135 = vadd.f32 %v6749, %v7071
        %v7136 = vadd.f32 %v6750, %v7076
        %v7137 = vadd.f32 %v6751, %v7079
        %v7138 = vadd.f32 %v6752, %v7084
        %v7139 = vadd.f32 %v6753, %v7087
        %v7140 = vadd.f32 %v6754, %v7092
        %v7141 = vadd.f32 %v6755, %v7095
        %v7142 = vadd.f32 %v6756, %v7100
        %v7143 = vadd.f32 %v6757, %v7103
        %v7144 = vadd.f32 %v6758, %v7108
        %v7145 = vadd.f32 %v6759, %v7111
        %v7146 = vld [vmem:[%s252] sm:$0xe]
        %v7147 = vld [vmem:[%s252 + $0x4] sm:$0xf]
        %v7148 = vld [vmem:[%s252 + $0x8] sm:$0x1]
        %v7149 = vld [vmem:[%s252 + $0xc] sm:$0xe]
        %v7150 = vld [vmem:[%s252 + $0x10] sm:$0xf]
        %v7151 = vld [vmem:[%s252 + $0x14] sm:$0x1]
        %v7152 = vld [vmem:[%s252 + $0x18] sm:$0xe]
        %v7153 = vld [vmem:[%s252 + $0x1c] sm:$0xf]
        %v7154 = vld [vmem:[%s252 + $0x20] sm:$0x1]
        %v7155 = vld [vmem:[%s252 + $0x24] sm:$0xe]
        %v7156 = vld [vmem:[%s252 + $0x28] sm:$0xf]
        %v7157 = vld [vmem:[%s252 + $0x2c] sm:$0x1]
        %v7158 = vld [vmem:[%s252 + $0x30] sm:$0xe]
        %v7159 = vld [vmem:[%s252 + $0x34] sm:$0xf]
        %v7160 = vld [vmem:[%s252 + $0x38] sm:$0x1]
        %v7161 = vld [vmem:[%s252 + $0x3c] sm:$0xe]
        %v7162 = vld [vmem:[%s252 + $0x40] sm:$0xf]
        %v7163 = vld [vmem:[%s252 + $0x44] sm:$0x1]
        %v7164 = vld [vmem:[%s252 + $0x48] sm:$0xe]
        %v7165 = vld [vmem:[%s252 + $0x4c] sm:$0xf]
        %v7166 = vld [vmem:[%s252 + $0x50] sm:$0x1]
        %v7167 = vld [vmem:[%s252 + $0x54] sm:$0xe]
        %v7168 = vld [vmem:[%s252 + $0x58] sm:$0xf]
        %v7169 = vld [vmem:[%s252 + $0x5c] sm:$0x1]
        %v7170 = vld [vmem:[%s252 + $0x60] sm:$0xe]
        %v7171 = vld [vmem:[%s252 + $0x64] sm:$0xf]
        %v7172 = vld [vmem:[%s252 + $0x68] sm:$0x1]
        %v7173 = vld [vmem:[%s252 + $0x6c] sm:$0xe]
        %v7174 = vld [vmem:[%s252 + $0x70] sm:$0xf]
        %v7175 = vld [vmem:[%s252 + $0x74] sm:$0x1]
        %v7176 = vld [vmem:[%s252 + $0x78] sm:$0xe]
        %v7177 = vld [vmem:[%s252 + $0x7c] sm:$0xf]
        %v7178 = vld [vmem:[%s252 + $0x80] sm:$0x1]
        %v7179 = vld [vmem:[%s252 + $0x84] sm:$0xe]
        %v7180 = vld [vmem:[%s252 + $0x88] sm:$0xf]
        %v7181 = vld [vmem:[%s252 + $0x8c] sm:$0x1]
        %v7182 = vld [vmem:[%s252 + $0x90] sm:$0xe]
        %v7183 = vld [vmem:[%s252 + $0x94] sm:$0xf]
        %v7184 = vld [vmem:[%s252 + $0x98] sm:$0x1]
        %v7185 = vld [vmem:[%s252 + $0x9c] sm:$0xe]
        %v7186 = vld [vmem:[%s252 + $0xa0] sm:$0xf]
        %v7187 = vld [vmem:[%s252 + $0xa4] sm:$0x1]
        %v7188 = vld [vmem:[%s252 + $0xa8] sm:$0xe]
        %v7189 = vld [vmem:[%s252 + $0xac] sm:$0xf]
        %v7190 = vld [vmem:[%s252 + $0xb0] sm:$0x1]
        %v7191 = vld [vmem:[%s252 + $0xb4] sm:$0xe]
        %v7192 = vld [vmem:[%s252 + $0xb8] sm:$0xf]
        %v7193 = vld [vmem:[%s252 + $0xbc] sm:$0x1]
        %v7242 = vrot.slane %v7146, 5
        %v7243 = vrot.slane %v7242, 4
        %v7244 = vrot.slane %v7147, 5
        %v7245 = vsel %vm1381, %v7243, %v7244
        %v7246 = vrot.slane %v7244, 4
        %v7247 = vrot.slane %v7148, 5
        %v7248 = vsel %vm1381, %v7246, %v7247
        %v7249 = vrot.slane %v7149, 5
        %v7250 = vrot.slane %v7249, 4
        %v7251 = vrot.slane %v7150, 5
        %v7252 = vsel %vm1381, %v7250, %v7251
        %v7253 = vrot.slane %v7251, 4
        %v7254 = vrot.slane %v7151, 5
        %v7255 = vsel %vm1381, %v7253, %v7254
        %v7256 = vrot.slane %v7152, 5
        %v7257 = vrot.slane %v7256, 4
        %v7258 = vrot.slane %v7153, 5
        %v7259 = vsel %vm1381, %v7257, %v7258
        %v7260 = vrot.slane %v7258, 4
        %v7261 = vrot.slane %v7154, 5
        %v7262 = vsel %vm1381, %v7260, %v7261
        %v7263 = vrot.slane %v7155, 5
        %v7264 = vrot.slane %v7263, 4
        %v7265 = vrot.slane %v7156, 5
        %v7266 = vsel %vm1381, %v7264, %v7265
        %v7267 = vrot.slane %v7265, 4
        %v7268 = vrot.slane %v7157, 5
        %v7269 = vsel %vm1381, %v7267, %v7268
        %v7270 = vrot.slane %v7158, 5
        %v7271 = vrot.slane %v7270, 4
        %v7272 = vrot.slane %v7159, 5
        %v7273 = vsel %vm1381, %v7271, %v7272
        %v7274 = vrot.slane %v7272, 4
        %v7275 = vrot.slane %v7160, 5
        %v7276 = vsel %vm1381, %v7274, %v7275
        %v7277 = vrot.slane %v7161, 5
        %v7278 = vrot.slane %v7277, 4
        %v7279 = vrot.slane %v7162, 5
        %v7280 = vsel %vm1381, %v7278, %v7279
        %v7281 = vrot.slane %v7279, 4
        %v7282 = vrot.slane %v7163, 5
        %v7283 = vsel %vm1381, %v7281, %v7282
        %v7284 = vrot.slane %v7164, 5
        %v7285 = vrot.slane %v7284, 4
        %v7286 = vrot.slane %v7165, 5
        %v7287 = vsel %vm1381, %v7285, %v7286
        %v7288 = vrot.slane %v7286, 4
        %v7289 = vrot.slane %v7166, 5
        %v7290 = vsel %vm1381, %v7288, %v7289
        %v7291 = vrot.slane %v7167, 5
        %v7292 = vrot.slane %v7291, 4
        %v7293 = vrot.slane %v7168, 5
        %v7294 = vsel %vm1381, %v7292, %v7293
        %v7295 = vrot.slane %v7293, 4
        %v7296 = vrot.slane %v7169, 5
        %v7297 = vsel %vm1381, %v7295, %v7296
        %v7298 = vrot.slane %v7170, 5
        %v7299 = vrot.slane %v7298, 4
        %v7300 = vrot.slane %v7171, 5
        %v7301 = vsel %vm1381, %v7299, %v7300
        %v7302 = vrot.slane %v7300, 4
        %v7303 = vrot.slane %v7172, 5
        %v7304 = vsel %vm1381, %v7302, %v7303
        %v7305 = vrot.slane %v7173, 5
        %v7306 = vrot.slane %v7305, 4
        %v7307 = vrot.slane %v7174, 5
        %v7308 = vsel %vm1381, %v7306, %v7307
        %v7309 = vrot.slane %v7307, 4
        %v7310 = vrot.slane %v7175, 5
        %v7311 = vsel %vm1381, %v7309, %v7310
        %v7312 = vrot.slane %v7176, 5
        %v7313 = vrot.slane %v7312, 4
        %v7314 = vrot.slane %v7177, 5
        %v7315 = vsel %vm1381, %v7313, %v7314
        %v7316 = vrot.slane %v7314, 4
        %v7317 = vrot.slane %v7178, 5
        %v7318 = vsel %vm1381, %v7316, %v7317
        %v7319 = vrot.slane %v7179, 5
        %v7320 = vrot.slane %v7319, 4
        %v7321 = vrot.slane %v7180, 5
        %v7322 = vsel %vm1381, %v7320, %v7321
        %v7323 = vrot.slane %v7321, 4
        %v7324 = vrot.slane %v7181, 5
        %v7325 = vsel %vm1381, %v7323, %v7324
        %v7326 = vrot.slane %v7182, 5
        %v7327 = vrot.slane %v7326, 4
        %v7328 = vrot.slane %v7183, 5
        %v7329 = vsel %vm1381, %v7327, %v7328
        %v7330 = vrot.slane %v7328, 4
        %v7331 = vrot.slane %v7184, 5
        %v7332 = vsel %vm1381, %v7330, %v7331
        %v7333 = vrot.slane %v7185, 5
        %v7334 = vrot.slane %v7333, 4
        %v7335 = vrot.slane %v7186, 5
        %v7336 = vsel %vm1381, %v7334, %v7335
        %v7337 = vrot.slane %v7335, 4
        %v7338 = vrot.slane %v7187, 5
        %v7339 = vsel %vm1381, %v7337, %v7338
        %v7340 = vrot.slane %v7188, 5
        %v7341 = vrot.slane %v7340, 4
        %v7342 = vrot.slane %v7189, 5
        %v7343 = vsel %vm1381, %v7341, %v7342
        %v7344 = vrot.slane %v7342, 4
        %v7345 = vrot.slane %v7190, 5
        %v7346 = vsel %vm1381, %v7344, %v7345
        %v7347 = vrot.slane %v7191, 5
        %v7348 = vrot.slane %v7347, 4
        %v7349 = vrot.slane %v7192, 5
        %v7350 = vsel %vm1381, %v7348, %v7349
        %v7351 = vrot.slane %v7349, 4
        %v7352 = vrot.slane %v7193, 5
        %v7353 = vsel %vm1381, %v7351, %v7352
        %s7354 = scalar_lea.vmem [#allocation3], 256
        %v7355 = vld [vmem:[%s7354] sm:$0xf]
        %v7356 = vld [vmem:[%s7354 + $0x4] sm:$0xf]
        %v7357 = vld [vmem:[%s7354 + $0x8] sm:$0xf]
        %v7358 = vld [vmem:[%s7354 + $0xc] sm:$0xf]
        %v7359 = vld [vmem:[%s7354 + $0x10] sm:$0xf]
        %v7360 = vld [vmem:[%s7354 + $0x14] sm:$0xf]
        %v7361 = vld [vmem:[%s7354 + $0x18] sm:$0xf]
        %v7362 = vld [vmem:[%s7354 + $0x1c] sm:$0xf]
        %v7363 = vld [vmem:[%s7354 + $0x20] sm:$0xf]
        %v7364 = vld [vmem:[%s7354 + $0x24] sm:$0xf]
        %v7365 = vld [vmem:[%s7354 + $0x28] sm:$0xf]
        %v7366 = vld [vmem:[%s7354 + $0x2c] sm:$0xf]
        %v7367 = vld [vmem:[%s7354 + $0x30] sm:$0xf]
        %v7368 = vld [vmem:[%s7354 + $0x34] sm:$0xf]
        %v7369 = vld [vmem:[%s7354 + $0x38] sm:$0xf]
        %v7370 = vld [vmem:[%s7354 + $0x3c] sm:$0xf]
        %v7371 = vunpack.c.l.b16 %v7245
        %v7372 = vunpack.c.l.b16 %v7248
        %v7373 = vunpack.c.l.b16 %v7252
        %v7374 = vunpack.c.l.b16 %v7255
        %v7375 = vunpack.c.l.b16 %v7259
        %v7376 = vunpack.c.l.b16 %v7262
        %v7377 = vunpack.c.l.b16 %v7266
        %v7378 = vunpack.c.l.b16 %v7269
        %v7379 = vunpack.c.l.b16 %v7273
        %v7380 = vunpack.c.l.b16 %v7276
        %v7381 = vunpack.c.l.b16 %v7280
        %v7382 = vunpack.c.l.b16 %v7283
        %v7383 = vunpack.c.l.b16 %v7287
        %v7384 = vunpack.c.l.b16 %v7290
        %v7385 = vunpack.c.l.b16 %v7294
        %v7386 = vunpack.c.l.b16 %v7297
        %v7387 = vunpack.c.l.b16 %v7301
        %v7388 = vunpack.c.l.b16 %v7304
        %v7389 = vunpack.c.l.b16 %v7308
        %v7390 = vunpack.c.l.b16 %v7311
        %v7391 = vunpack.c.l.b16 %v7315
        %v7392 = vunpack.c.l.b16 %v7318
        %v7393 = vunpack.c.l.b16 %v7322
        %v7394 = vunpack.c.l.b16 %v7325
        %v7395 = vunpack.c.l.b16 %v7329
        %v7396 = vunpack.c.l.b16 %v7332
        %v7397 = vunpack.c.l.b16 %v7336
        %v7398 = vunpack.c.l.b16 %v7339
        %v7399 = vunpack.c.l.b16 %v7343
        %v7400 = vunpack.c.l.b16 %v7346
        %v7401 = vunpack.c.l.b16 %v7350
        %v7402 = vunpack.c.l.b16 %v7353
        %v7403 = vpack.c.b16 %v7372, %v7371
        %v7404 = vpack.c.b16 %v7374, %v7373
        %v7405 = vpack.c.b16 %v7376, %v7375
        %v7406 = vpack.c.b16 %v7378, %v7377
        %v7407 = vpack.c.b16 %v7380, %v7379
        %v7408 = vpack.c.b16 %v7382, %v7381
        %v7409 = vpack.c.b16 %v7384, %v7383
        %v7410 = vpack.c.b16 %v7386, %v7385
        %v7411 = vpack.c.b16 %v7388, %v7387
        %v7412 = vpack.c.b16 %v7390, %v7389
        %v7413 = vpack.c.b16 %v7392, %v7391
        %v7414 = vpack.c.b16 %v7394, %v7393
        %v7415 = vpack.c.b16 %v7396, %v7395
        %v7416 = vpack.c.b16 %v7398, %v7397
        %v7417 = vpack.c.b16 %v7400, %v7399
        %v7418 = vpack.c.b16 %v7402, %v7401
        %v7451 = vunpack.c.l.b16 %v7355
        %v7452 = vunpack.c.l.b16 %v7356
        %v7453 = vunpack.c.l.b16 %v7357
        %v7454 = vunpack.c.l.b16 %v7358
        %v7455 = vunpack.c.l.b16 %v7359
        %v7456 = vunpack.c.l.b16 %v7360
        %v7457 = vunpack.c.l.b16 %v7361
        %v7458 = vunpack.c.l.b16 %v7362
        %v7459 = vunpack.c.l.b16 %v7363
        %v7460 = vunpack.c.l.b16 %v7364
        %v7461 = vunpack.c.l.b16 %v7365
        %v7462 = vunpack.c.l.b16 %v7366
        %v7463 = vunpack.c.l.b16 %v7367
        %v7464 = vunpack.c.l.b16 %v7368
        %v7465 = vunpack.c.l.b16 %v7369
        %v7466 = vunpack.c.l.b16 %v7370
        %v7467 = vpack.c.b16 %v7452, %v7451
        %v7468 = vpack.c.b16 %v7454, %v7453
        %v7469 = vpack.c.b16 %v7456, %v7455
        %v7470 = vpack.c.b16 %v7458, %v7457
        %v7471 = vpack.c.b16 %v7460, %v7459
        %v7472 = vpack.c.b16 %v7462, %v7461
        %v7473 = vpack.c.b16 %v7464, %v7463
        %v7474 = vpack.c.b16 %v7466, %v7465
        %7483 = vmatprep.subr.bf16.mxu0 0
        %7484 = vmatpush1.bf16.msra.mxu0 %v7467
        %7485 = vmatprep.subr.bf16.mxu0 0
        %7486 = vmatpush1.bf16.msra.mxu0 %v7468
        %7487 = vmatprep.subr.bf16.mxu0 0
        %7488 = vmatpush1.bf16.msra.mxu0 %v7469
        %7489 = vmatprep.subr.bf16.mxu0 0
        %7490 = vmatpush1.bf16.msra.mxu0 %v7470
        %7491 = vmatprep.subr.bf16.mxu0 0
        %7492 = vmatpush1.bf16.msra.mxu0 %v7471
        %7493 = vmatprep.subr.bf16.mxu0 0
        %7494 = vmatpush1.bf16.msra.mxu0 %v7472
        %7495 = vmatprep.subr.bf16.mxu0 0
        %7496 = vmatpush1.bf16.msra.mxu0 %v7473
        %7497 = vmatprep.subr.bf16.mxu0 0
        %7498 = vmatpush1.bf16.msra.mxu0 %v7474
        %7499 = vmatprep.subr.bf16.mxu0 0
        %7500 = vmatpush1.bf16.msra.mxu0 0
        %7501 = vmatprep.subr.bf16.mxu0 0
        %7502 = vmatpush1.bf16.msra.mxu0 0
        %7503 = vmatprep.subr.bf16.mxu0 0
        %7504 = vmatpush1.bf16.msra.mxu0 0
        %7505 = vmatprep.subr.bf16.mxu0 0
        %7506 = vmatpush1.bf16.msra.mxu0 0
        %7507 = vmatprep.subr.bf16.mxu0 0
        %7508 = vmatpush1.bf16.msra.mxu0 0
        %7509 = vmatprep.subr.bf16.mxu0 0
        %7510 = vmatpush1.bf16.msra.mxu0 0
        %7511 = vmatprep.subr.bf16.mxu0 0
        %7512 = vmatpush1.bf16.msra.mxu0 0
        %7513 = vmatprep.subr.bf16.mxu0 0
        %7514 = vmatpush1.bf16.msra.mxu0 0
        %7515 = vmatprep.mubr.bf16.mxu0 0
        %7516 = vmatmul.mubr.bf16.gmra.mrb[0].mxu0 %v7403
        %v7517 = vpop.f32.mrb[0].mxu0
        %v7518 = vadd.f32 0.0, %v7517
        %v7519 = vpop.f32.mrb[0].mxu0
        %v7520 = vpop.f32.mrb[0].mxu0
        %v7521 = vadd.f32 0.0, %v7520
        %v7522 = vpop.f32.mrb[0].mxu0
        %7523 = vmatprep.mubr.bf16.mxu0 0
        %7524 = vmatmul.mubr.bf16.gmra.mrb[0].mxu0 %v7404
        %v7525 = vpop.f32.mrb[0].mxu0
        %v7526 = vadd.f32 0.0, %v7525
        %v7527 = vpop.f32.mrb[0].mxu0
        %v7528 = vpop.f32.mrb[0].mxu0
        %v7529 = vadd.f32 0.0, %v7528
        %v7530 = vpop.f32.mrb[0].mxu0
        %7531 = vmatprep.mubr.bf16.mxu0 0
        %7532 = vmatmul.mubr.bf16.gmra.mrb[0].mxu0 %v7405
        %v7533 = vpop.f32.mrb[0].mxu0
        %v7534 = vadd.f32 0.0, %v7533
        %v7535 = vpop.f32.mrb[0].mxu0
        %v7536 = vpop.f32.mrb[0].mxu0
        %v7537 = vadd.f32 0.0, %v7536
        %v7538 = vpop.f32.mrb[0].mxu0
        %7539 = vmatprep.mubr.bf16.mxu0 0
        %7540 = vmatmul.mubr.bf16.gmra.mrb[0].mxu0 %v7406
        %v7541 = vpop.f32.mrb[0].mxu0
        %v7542 = vadd.f32 0.0, %v7541
        %v7543 = vpop.f32.mrb[0].mxu0
        %v7544 = vpop.f32.mrb[0].mxu0
        %v7545 = vadd.f32 0.0, %v7544
        %v7546 = vpop.f32.mrb[0].mxu0
        %7547 = vmatprep.mubr.bf16.mxu0 0
        %7548 = vmatmul.mubr.bf16.gmra.mrb[0].mxu0 %v7407
        %v7549 = vpop.f32.mrb[0].mxu0
        %v7550 = vadd.f32 0.0, %v7549
        %v7551 = vpop.f32.mrb[0].mxu0
        %v7552 = vpop.f32.mrb[0].mxu0
        %v7553 = vadd.f32 0.0, %v7552
        %v7554 = vpop.f32.mrb[0].mxu0
        %7555 = vmatprep.mubr.bf16.mxu0 0
        %7556 = vmatmul.mubr.bf16.gmra.mrb[0].mxu0 %v7408
        %v7557 = vpop.f32.mrb[0].mxu0
        %v7558 = vadd.f32 0.0, %v7557
        %v7559 = vpop.f32.mrb[0].mxu0
        %v7560 = vpop.f32.mrb[0].mxu0
        %v7561 = vadd.f32 0.0, %v7560
        %v7562 = vpop.f32.mrb[0].mxu0
        %7563 = vmatprep.mubr.bf16.mxu0 0
        %7564 = vmatmul.mubr.bf16.gmra.mrb[0].mxu0 %v7409
        %v7565 = vpop.f32.mrb[0].mxu0
        %v7566 = vadd.f32 0.0, %v7565
        %v7567 = vpop.f32.mrb[0].mxu0
        %v7568 = vpop.f32.mrb[0].mxu0
        %v7569 = vadd.f32 0.0, %v7568
        %v7570 = vpop.f32.mrb[0].mxu0
        %7571 = vmatprep.mubr.bf16.mxu0 0
        %7572 = vmatmul.mubr.bf16.gmra.mrb[0].mxu0 %v7410
        %v7573 = vpop.f32.mrb[0].mxu0
        %v7574 = vadd.f32 0.0, %v7573
        %v7575 = vpop.f32.mrb[0].mxu0
        %v7576 = vpop.f32.mrb[0].mxu0
        %v7577 = vadd.f32 0.0, %v7576
        %v7578 = vpop.f32.mrb[0].mxu0
        %7579 = vmatprep.mubr.bf16.mxu0 0
        %7580 = vmatmul.mubr.bf16.gmra.mrb[0].mxu0 %v7411
        %v7581 = vpop.f32.mrb[0].mxu0
        %v7582 = vadd.f32 0.0, %v7581
        %v7583 = vpop.f32.mrb[0].mxu0
        %v7584 = vpop.f32.mrb[0].mxu0
        %v7585 = vadd.f32 0.0, %v7584
        %v7586 = vpop.f32.mrb[0].mxu0
        %7587 = vmatprep.mubr.bf16.mxu0 0
        %7588 = vmatmul.mubr.bf16.gmra.mrb[0].mxu0 %v7412
        %v7589 = vpop.f32.mrb[0].mxu0
        %v7590 = vadd.f32 0.0, %v7589
        %v7591 = vpop.f32.mrb[0].mxu0
        %v7592 = vpop.f32.mrb[0].mxu0
        %v7593 = vadd.f32 0.0, %v7592
        %v7594 = vpop.f32.mrb[0].mxu0
        %7595 = vmatprep.mubr.bf16.mxu0 0
        %7596 = vmatmul.mubr.bf16.gmra.mrb[0].mxu0 %v7413
        %v7597 = vpop.f32.mrb[0].mxu0
        %v7598 = vadd.f32 0.0, %v7597
        %v7599 = vpop.f32.mrb[0].mxu0
        %v7600 = vpop.f32.mrb[0].mxu0
        %v7601 = vadd.f32 0.0, %v7600
        %v7602 = vpop.f32.mrb[0].mxu0
        %7603 = vmatprep.mubr.bf16.mxu0 0
        %7604 = vmatmul.mubr.bf16.gmra.mrb[0].mxu0 %v7414
        %v7605 = vpop.f32.mrb[0].mxu0
        %v7606 = vadd.f32 0.0, %v7605
        %v7607 = vpop.f32.mrb[0].mxu0
        %v7608 = vpop.f32.mrb[0].mxu0
        %v7609 = vadd.f32 0.0, %v7608
        %v7610 = vpop.f32.mrb[0].mxu0
        %7611 = vmatprep.mubr.bf16.mxu0 0
        %7612 = vmatmul.mubr.bf16.gmra.mrb[0].mxu0 %v7415
        %v7613 = vpop.f32.mrb[0].mxu0
        %v7614 = vadd.f32 0.0, %v7613
        %v7615 = vpop.f32.mrb[0].mxu0
        %v7616 = vpop.f32.mrb[0].mxu0
        %v7617 = vadd.f32 0.0, %v7616
        %v7618 = vpop.f32.mrb[0].mxu0
        %7619 = vmatprep.mubr.bf16.mxu0 0
        %7620 = vmatmul.mubr.bf16.gmra.mrb[0].mxu0 %v7416
        %v7621 = vpop.f32.mrb[0].mxu0
        %v7622 = vadd.f32 0.0, %v7621
        %v7623 = vpop.f32.mrb[0].mxu0
        %v7624 = vpop.f32.mrb[0].mxu0
        %v7625 = vadd.f32 0.0, %v7624
        %v7626 = vpop.f32.mrb[0].mxu0
        %7627 = vmatprep.mubr.bf16.mxu0 0
        %7628 = vmatmul.mubr.bf16.gmra.mrb[0].mxu0 %v7417
        %v7629 = vpop.f32.mrb[0].mxu0
        %v7630 = vadd.f32 0.0, %v7629
        %v7631 = vpop.f32.mrb[0].mxu0
        %v7632 = vpop.f32.mrb[0].mxu0
        %v7633 = vadd.f32 0.0, %v7632
        %v7634 = vpop.f32.mrb[0].mxu0
        %7635 = vmatprep.mubr.bf16.mxu0 0
        %7636 = vmatmul.mubr.bf16.gmra.mrb[0].mxu0 %v7418
        %v7637 = vpop.f32.mrb[0].mxu0
        %v7638 = vadd.f32 0.0, %v7637
        %v7639 = vpop.f32.mrb[0].mxu0
        %v7640 = vpop.f32.mrb[0].mxu0
        %v7641 = vadd.f32 0.0, %v7640
        %v7642 = vpop.f32.mrb[0].mxu0
        %7643 = vdwg.mxu0
        %v7644 = vadd.f32 %v7114, %v7518
        %v7645 = vadd.f32 %v7115, %v7521
        %v7646 = vadd.f32 %v7116, %v7526
        %v7647 = vadd.f32 %v7117, %v7529
        %v7648 = vadd.f32 %v7118, %v7534
        %v7649 = vadd.f32 %v7119, %v7537
        %v7650 = vadd.f32 %v7120, %v7542
        %v7651 = vadd.f32 %v7121, %v7545
        %v7652 = vadd.f32 %v7122, %v7550
        %v7653 = vadd.f32 %v7123, %v7553
        %v7654 = vadd.f32 %v7124, %v7558
        %v7655 = vadd.f32 %v7125, %v7561
        %v7656 = vadd.f32 %v7126, %v7566
        %v7657 = vadd.f32 %v7127, %v7569
        %v7658 = vadd.f32 %v7128, %v7574
        %v7659 = vadd.f32 %v7129, %v7577
        %v7660 = vadd.f32 %v7130, %v7582
        %v7661 = vadd.f32 %v7131, %v7585
        %v7662 = vadd.f32 %v7132, %v7590
        %v7663 = vadd.f32 %v7133, %v7593
        %v7664 = vadd.f32 %v7134, %v7598
        %v7665 = vadd.f32 %v7135, %v7601
        %v7666 = vadd.f32 %v7136, %v7606
        %v7667 = vadd.f32 %v7137, %v7609
        %v7668 = vadd.f32 %v7138, %v7614
        %v7669 = vadd.f32 %v7139, %v7617
        %v7670 = vadd.f32 %v7140, %v7622
        %v7671 = vadd.f32 %v7141, %v7625
        %v7672 = vadd.f32 %v7142, %v7630
        %v7673 = vadd.f32 %v7143, %v7633
        %v7674 = vadd.f32 %v7144, %v7638
        %v7675 = vadd.f32 %v7145, %v7641
        %v7676 = vld [vmem:[%s252] sm:$0xc]
        %v7677 = vld [vmem:[%s252 + $0x8] sm:$0x3]
        %v7678 = vld [vmem:[%s252 + $0xc] sm:$0xc]
        %v7679 = vld [vmem:[%s252 + $0x14] sm:$0x3]
        %v7680 = vld [vmem:[%s252 + $0x18] sm:$0xc]
        %v7681 = vld [vmem:[%s252 + $0x20] sm:$0x3]
        %v7682 = vld [vmem:[%s252 + $0x24] sm:$0xc]
        %v7683 = vld [vmem:[%s252 + $0x2c] sm:$0x3]
        %v7684 = vld [vmem:[%s252 + $0x30] sm:$0xc]
        %v7685 = vld [vmem:[%s252 + $0x38] sm:$0x3]
        %v7686 = vld [vmem:[%s252 + $0x3c] sm:$0xc]
        %v7687 = vld [vmem:[%s252 + $0x44] sm:$0x3]
        %v7688 = vld [vmem:[%s252 + $0x48] sm:$0xc]
        %v7689 = vld [vmem:[%s252 + $0x50] sm:$0x3]
        %v7690 = vld [vmem:[%s252 + $0x54] sm:$0xc]
        %v7691 = vld [vmem:[%s252 + $0x5c] sm:$0x3]
        %v7692 = vld [vmem:[%s252 + $0x60] sm:$0xc]
        %v7693 = vld [vmem:[%s252 + $0x68] sm:$0x3]
        %v7694 = vld [vmem:[%s252 + $0x6c] sm:$0xc]
        %v7695 = vld [vmem:[%s252 + $0x74] sm:$0x3]
        %v7696 = vld [vmem:[%s252 + $0x78] sm:$0xc]
        %v7697 = vld [vmem:[%s252 + $0x80] sm:$0x3]
        %v7698 = vld [vmem:[%s252 + $0x84] sm:$0xc]
        %v7699 = vld [vmem:[%s252 + $0x8c] sm:$0x3]
        %v7700 = vld [vmem:[%s252 + $0x90] sm:$0xc]
        %v7701 = vld [vmem:[%s252 + $0x98] sm:$0x3]
        %v7702 = vld [vmem:[%s252 + $0x9c] sm:$0xc]
        %v7703 = vld [vmem:[%s252 + $0xa4] sm:$0x3]
        %v7704 = vld [vmem:[%s252 + $0xa8] sm:$0xc]
        %v7705 = vld [vmem:[%s252 + $0xb0] sm:$0x3]
        %v7706 = vld [vmem:[%s252 + $0xb4] sm:$0xc]
        %v7707 = vld [vmem:[%s252 + $0xbc] sm:$0x3]
        %v7740 = vrot.slane %v7676, 6
        %v7741 = vrot.slane %v7740, 4
        %v7742 = vrot.slane %v7147, 6
        %v7743 = vsel %vm6325, %v7741, %v7742
        %v7744 = vrot.slane %v7742, 4
        %v7745 = vrot.slane %v7677, 6
        %v7746 = vsel %vm6325, %v7744, %v7745
        %v7747 = vrot.slane %v7678, 6
        %v7748 = vrot.slane %v7747, 4
        %v7749 = vrot.slane %v7150, 6
        %v7750 = vsel %vm6325, %v7748, %v7749
        %v7751 = vrot.slane %v7749, 4
        %v7752 = vrot.slane %v7679, 6
        %v7753 = vsel %vm6325, %v7751, %v7752
        %v7754 = vrot.slane %v7680, 6
        %v7755 = vrot.slane %v7754, 4
        %v7756 = vrot.slane %v7153, 6
        %v7757 = vsel %vm6325, %v7755, %v7756
        %v7758 = vrot.slane %v7756, 4
        %v7759 = vrot.slane %v7681, 6
        %v7760 = vsel %vm6325, %v7758, %v7759
        %v7761 = vrot.slane %v7682, 6
        %v7762 = vrot.slane %v7761, 4
        %v7763 = vrot.slane %v7156, 6
        %v7764 = vsel %vm6325, %v7762, %v7763
        %v7765 = vrot.slane %v7763, 4
        %v7766 = vrot.slane %v7683, 6
        %v7767 = vsel %vm6325, %v7765, %v7766
        %v7768 = vrot.slane %v7684, 6
        %v7769 = vrot.slane %v7768, 4
        %v7770 = vrot.slane %v7159, 6
        %v7771 = vsel %vm6325, %v7769, %v7770
        %v7772 = vrot.slane %v7770, 4
        %v7773 = vrot.slane %v7685, 6
        %v7774 = vsel %vm6325, %v7772, %v7773
        %v7775 = vrot.slane %v7686, 6
        %v7776 = vrot.slane %v7775, 4
        %v7777 = vrot.slane %v7162, 6
        %v7778 = vsel %vm6325, %v7776, %v7777
        %v7779 = vrot.slane %v7777, 4
        %v7780 = vrot.slane %v7687, 6
        %v7781 = vsel %vm6325, %v7779, %v7780
        %v7782 = vrot.slane %v7688, 6
        %v7783 = vrot.slane %v7782, 4
        %v7784 = vrot.slane %v7165, 6
        %v7785 = vsel %vm6325, %v7783, %v7784
        %v7786 = vrot.slane %v7784, 4
        %v7787 = vrot.slane %v7689, 6
        %v7788 = vsel %vm6325, %v7786, %v7787
        %v7789 = vrot.slane %v7690, 6
        %v7790 = vrot.slane %v7789, 4
        %v7791 = vrot.slane %v7168, 6
        %v7792 = vsel %vm6325, %v7790, %v7791
        %v7793 = vrot.slane %v7791, 4
        %v7794 = vrot.slane %v7691, 6
        %v7795 = vsel %vm6325, %v7793, %v7794
        %v7796 = vrot.slane %v7692, 6
        %v7797 = vrot.slane %v7796, 4
        %v7798 = vrot.slane %v7171, 6
        %v7799 = vsel %vm6325, %v7797, %v7798
        %v7800 = vrot.slane %v7798, 4
        %v7801 = vrot.slane %v7693, 6
        %v7802 = vsel %vm6325, %v7800, %v7801
        %v7803 = vrot.slane %v7694, 6
        %v7804 = vrot.slane %v7803, 4
        %v7805 = vrot.slane %v7174, 6
        %v7806 = vsel %vm6325, %v7804, %v7805
        %v7807 = vrot.slane %v7805, 4
        %v7808 = vrot.slane %v7695, 6
        %v7809 = vsel %vm6325, %v7807, %v7808
        %v7810 = vrot.slane %v7696, 6
        %v7811 = vrot.slane %v7810, 4
        %v7812 = vrot.slane %v7177, 6
        %v7813 = vsel %vm6325, %v7811, %v7812
        %v7814 = vrot.slane %v7812, 4
        %v7815 = vrot.slane %v7697, 6
        %v7816 = vsel %vm6325, %v7814, %v7815
        %v7817 = vrot.slane %v7698, 6
        %v7818 = vrot.slane %v7817, 4
        %v7819 = vrot.slane %v7180, 6
        %v7820 = vsel %vm6325, %v7818, %v7819
        %v7821 = vrot.slane %v7819, 4
        %v7822 = vrot.slane %v7699, 6
        %v7823 = vsel %vm6325, %v7821, %v7822
        %v7824 = vrot.slane %v7700, 6
        %v7825 = vrot.slane %v7824, 4
        %v7826 = vrot.slane %v7183, 6
        %v7827 = vsel %vm6325, %v7825, %v7826
        %v7828 = vrot.slane %v7826, 4
        %v7829 = vrot.slane %v7701, 6
        %v7830 = vsel %vm6325, %v7828, %v7829
        %v7831 = vrot.slane %v7702, 6
        %v7832 = vrot.slane %v7831, 4
        %v7833 = vrot.slane %v7186, 6
        %v7834 = vsel %vm6325, %v7832, %v7833
        %v7835 = vrot.slane %v7833, 4
        %v7836 = vrot.slane %v7703, 6
        %v7837 = vsel %vm6325, %v7835, %v7836
        %v7838 = vrot.slane %v7704, 6
        %v7839 = vrot.slane %v7838, 4
        %v7840 = vrot.slane %v7189, 6
        %v7841 = vsel %vm6325, %v7839, %v7840
        %v7842 = vrot.slane %v7840, 4
        %v7843 = vrot.slane %v7705, 6
        %v7844 = vsel %vm6325, %v7842, %v7843
        %v7845 = vrot.slane %v7706, 6
        %v7846 = vrot.slane %v7845, 4
        %v7847 = vrot.slane %v7192, 6
        %v7848 = vsel %vm6325, %v7846, %v7847
        %v7849 = vrot.slane %v7847, 4
        %v7850 = vrot.slane %v7707, 6
        %v7851 = vsel %vm6325, %v7849, %v7850
        %s7852 = scalar_lea.vmem [#allocation3], 320
        %v7853 = vld [vmem:[%s7852] sm:$0xf]
        %v7854 = vld [vmem:[%s7852 + $0x4] sm:$0xf]
        %v7855 = vld [vmem:[%s7852 + $0x8] sm:$0xf]
        %v7856 = vld [vmem:[%s7852 + $0xc] sm:$0xf]
        %v7857 = vld [vmem:[%s7852 + $0x10] sm:$0xf]
        %v7858 = vld [vmem:[%s7852 + $0x14] sm:$0xf]
        %v7859 = vld [vmem:[%s7852 + $0x18] sm:$0xf]
        %v7860 = vld [vmem:[%s7852 + $0x1c] sm:$0xf]
        %v7861 = vld [vmem:[%s7852 + $0x20] sm:$0xf]
        %v7862 = vld [vmem:[%s7852 + $0x24] sm:$0xf]
        %v7863 = vld [vmem:[%s7852 + $0x28] sm:$0xf]
        %v7864 = vld [vmem:[%s7852 + $0x2c] sm:$0xf]
        %v7865 = vld [vmem:[%s7852 + $0x30] sm:$0xf]
        %v7866 = vld [vmem:[%s7852 + $0x34] sm:$0xf]
        %v7867 = vld [vmem:[%s7852 + $0x38] sm:$0xf]
        %v7868 = vld [vmem:[%s7852 + $0x3c] sm:$0xf]
        %v7869 = vunpack.c.l.b16 %v7743
        %v7870 = vunpack.c.l.b16 %v7746
        %v7871 = vunpack.c.l.b16 %v7750
        %v7872 = vunpack.c.l.b16 %v7753
        %v7873 = vunpack.c.l.b16 %v7757
        %v7874 = vunpack.c.l.b16 %v7760
        %v7875 = vunpack.c.l.b16 %v7764
        %v7876 = vunpack.c.l.b16 %v7767
        %v7877 = vunpack.c.l.b16 %v7771
        %v7878 = vunpack.c.l.b16 %v7774
        %v7879 = vunpack.c.l.b16 %v7778
        %v7880 = vunpack.c.l.b16 %v7781
        %v7881 = vunpack.c.l.b16 %v7785
        %v7882 = vunpack.c.l.b16 %v7788
        %v7883 = vunpack.c.l.b16 %v7792
        %v7884 = vunpack.c.l.b16 %v7795
        %v7885 = vunpack.c.l.b16 %v7799
        %v7886 = vunpack.c.l.b16 %v7802
        %v7887 = vunpack.c.l.b16 %v7806
        %v7888 = vunpack.c.l.b16 %v7809
        %v7889 = vunpack.c.l.b16 %v7813
        %v7890 = vunpack.c.l.b16 %v7816
        %v7891 = vunpack.c.l.b16 %v7820
        %v7892 = vunpack.c.l.b16 %v7823
        %v7893 = vunpack.c.l.b16 %v7827
        %v7894 = vunpack.c.l.b16 %v7830
        %v7895 = vunpack.c.l.b16 %v7834
        %v7896 = vunpack.c.l.b16 %v7837
        %v7897 = vunpack.c.l.b16 %v7841
        %v7898 = vunpack.c.l.b16 %v7844
        %v7899 = vunpack.c.l.b16 %v7848
        %v7900 = vunpack.c.l.b16 %v7851
        %v7901 = vpack.c.b16 %v7870, %v7869
        %v7902 = vpack.c.b16 %v7872, %v7871
        %v7903 = vpack.c.b16 %v7874, %v7873
        %v7904 = vpack.c.b16 %v7876, %v7875
        %v7905 = vpack.c.b16 %v7878, %v7877
        %v7906 = vpack.c.b16 %v7880, %v7879
        %v7907 = vpack.c.b16 %v7882, %v7881
        %v7908 = vpack.c.b16 %v7884, %v7883
        %v7909 = vpack.c.b16 %v7886, %v7885
        %v7910 = vpack.c.b16 %v7888, %v7887
        %v7911 = vpack.c.b16 %v7890, %v7889
        %v7912 = vpack.c.b16 %v7892, %v7891
        %v7913 = vpack.c.b16 %v7894, %v7893
        %v7914 = vpack.c.b16 %v7896, %v7895
        %v7915 = vpack.c.b16 %v7898, %v7897
        %v7916 = vpack.c.b16 %v7900, %v7899
        %v7949 = vunpack.c.l.b16 %v7853
        %v7950 = vunpack.c.l.b16 %v7854
        %v7951 = vunpack.c.l.b16 %v7855
        %v7952 = vunpack.c.l.b16 %v7856
        %v7953 = vunpack.c.l.b16 %v7857
        %v7954 = vunpack.c.l.b16 %v7858
        %v7955 = vunpack.c.l.b16 %v7859
        %v7956 = vunpack.c.l.b16 %v7860
        %v7957 = vunpack.c.l.b16 %v7861
        %v7958 = vunpack.c.l.b16 %v7862
        %v7959 = vunpack.c.l.b16 %v7863
        %v7960 = vunpack.c.l.b16 %v7864
        %v7961 = vunpack.c.l.b16 %v7865
        %v7962 = vunpack.c.l.b16 %v7866
        %v7963 = vunpack.c.l.b16 %v7867
        %v7964 = vunpack.c.l.b16 %v7868
        %v7965 = vpack.c.b16 %v7950, %v7949
        %v7966 = vpack.c.b16 %v7952, %v7951
        %v7967 = vpack.c.b16 %v7954, %v7953
        %v7968 = vpack.c.b16 %v7956, %v7955
        %v7969 = vpack.c.b16 %v7958, %v7957
        %v7970 = vpack.c.b16 %v7960, %v7959
        %v7971 = vpack.c.b16 %v7962, %v7961
        %v7972 = vpack.c.b16 %v7964, %v7963
        %7981 = vmatprep.subr.bf16.mxu0 0
        %7982 = vmatpush1.bf16.msra.mxu0 %v7965
        %7983 = vmatprep.subr.bf16.mxu0 0
        %7984 = vmatpush1.bf16.msra.mxu0 %v7966
        %7985 = vmatprep.subr.bf16.mxu0 0
        %7986 = vmatpush1.bf16.msra.mxu0 %v7967
        %7987 = vmatprep.subr.bf16.mxu0 0
        %7988 = vmatpush1.bf16.msra.mxu0 %v7968
        %7989 = vmatprep.subr.bf16.mxu0 0
        %7990 = vmatpush1.bf16.msra.mxu0 %v7969
        %7991 = vmatprep.subr.bf16.mxu0 0
        %7992 = vmatpush1.bf16.msra.mxu0 %v7970
        %7993 = vmatprep.subr.bf16.mxu0 0
        %7994 = vmatpush1.bf16.msra.mxu0 %v7971
        %7995 = vmatprep.subr.bf16.mxu0 0
        %7996 = vmatpush1.bf16.msra.mxu0 %v7972
        %7997 = vmatprep.subr.bf16.mxu0 0
        %7998 = vmatpush1.bf16.msra.mxu0 0
        %7999 = vmatprep.subr.bf16.mxu0 0
        %8000 = vmatpush1.bf16.msra.mxu0 0
        %8001 = vmatprep.subr.bf16.mxu0 0
        %8002 = vmatpush1.bf16.msra.mxu0 0
        %8003 = vmatprep.subr.bf16.mxu0 0
        %8004 = vmatpush1.bf16.msra.mxu0 0
        %8005 = vmatprep.subr.bf16.mxu0 0
        %8006 = vmatpush1.bf16.msra.mxu0 0
        %8007 = vmatprep.subr.bf16.mxu0 0
        %8008 = vmatpush1.bf16.msra.mxu0 0
        %8009 = vmatprep.subr.bf16.mxu0 0
        %8010 = vmatpush1.bf16.msra.mxu0 0
        %8011 = vmatprep.subr.bf16.mxu0 0
        %8012 = vmatpush1.bf16.msra.mxu0 0
        %8013 = vmatprep.mubr.bf16.mxu0 0
        %8014 = vmatmul.mubr.bf16.gmra.mrb[0].mxu0 %v7901
        %v8015 = vpop.f32.mrb[0].mxu0
        %v8016 = vadd.f32 0.0, %v8015
        %v8017 = vpop.f32.mrb[0].mxu0
        %v8018 = vpop.f32.mrb[0].mxu0
        %v8019 = vadd.f32 0.0, %v8018
        %v8020 = vpop.f32.mrb[0].mxu0
        %8021 = vmatprep.mubr.bf16.mxu0 0
        %8022 = vmatmul.mubr.bf16.gmra.mrb[0].mxu0 %v7902
        %v8023 = vpop.f32.mrb[0].mxu0
        %v8024 = vadd.f32 0.0, %v8023
        %v8025 = vpop.f32.mrb[0].mxu0
        %v8026 = vpop.f32.mrb[0].mxu0
        %v8027 = vadd.f32 0.0, %v8026
        %v8028 = vpop.f32.mrb[0].mxu0
        %8029 = vmatprep.mubr.bf16.mxu0 0
        %8030 = vmatmul.mubr.bf16.gmra.mrb[0].mxu0 %v7903
        %v8031 = vpop.f32.mrb[0].mxu0
        %v8032 = vadd.f32 0.0, %v8031
        %v8033 = vpop.f32.mrb[0].mxu0
        %v8034 = vpop.f32.mrb[0].mxu0
        %v8035 = vadd.f32 0.0, %v8034
        %v8036 = vpop.f32.mrb[0].mxu0
        %8037 = vmatprep.mubr.bf16.mxu0 0
        %8038 = vmatmul.mubr.bf16.gmra.mrb[0].mxu0 %v7904
        %v8039 = vpop.f32.mrb[0].mxu0
        %v8040 = vadd.f32 0.0, %v8039
        %v8041 = vpop.f32.mrb[0].mxu0
        %v8042 = vpop.f32.mrb[0].mxu0
        %v8043 = vadd.f32 0.0, %v8042
        %v8044 = vpop.f32.mrb[0].mxu0
        %8045 = vmatprep.mubr.bf16.mxu0 0
        %8046 = vmatmul.mubr.bf16.gmra.mrb[0].mxu0 %v7905
        %v8047 = vpop.f32.mrb[0].mxu0
        %v8048 = vadd.f32 0.0, %v8047
        %v8049 = vpop.f32.mrb[0].mxu0
        %v8050 = vpop.f32.mrb[0].mxu0
        %v8051 = vadd.f32 0.0, %v8050
        %v8052 = vpop.f32.mrb[0].mxu0
        %8053 = vmatprep.mubr.bf16.mxu0 0
        %8054 = vmatmul.mubr.bf16.gmra.mrb[0].mxu0 %v7906
        %v8055 = vpop.f32.mrb[0].mxu0
        %v8056 = vadd.f32 0.0, %v8055
        %v8057 = vpop.f32.mrb[0].mxu0
        %v8058 = vpop.f32.mrb[0].mxu0
        %v8059 = vadd.f32 0.0, %v8058
        %v8060 = vpop.f32.mrb[0].mxu0
        %8061 = vmatprep.mubr.bf16.mxu0 0
        %8062 = vmatmul.mubr.bf16.gmra.mrb[0].mxu0 %v7907
        %v8063 = vpop.f32.mrb[0].mxu0
        %v8064 = vadd.f32 0.0, %v8063
        %v8065 = vpop.f32.mrb[0].mxu0
        %v8066 = vpop.f32.mrb[0].mxu0
        %v8067 = vadd.f32 0.0, %v8066
        %v8068 = vpop.f32.mrb[0].mxu0
        %8069 = vmatprep.mubr.bf16.mxu0 0
        %8070 = vmatmul.mubr.bf16.gmra.mrb[0].mxu0 %v7908
        %v8071 = vpop.f32.mrb[0].mxu0
        %v8072 = vadd.f32 0.0, %v8071
        %v8073 = vpop.f32.mrb[0].mxu0
        %v8074 = vpop.f32.mrb[0].mxu0
        %v8075 = vadd.f32 0.0, %v8074
        %v8076 = vpop.f32.mrb[0].mxu0
        %8077 = vmatprep.mubr.bf16.mxu0 0
        %8078 = vmatmul.mubr.bf16.gmra.mrb[0].mxu0 %v7909
        %v8079 = vpop.f32.mrb[0].mxu0
        %v8080 = vadd.f32 0.0, %v8079
        %v8081 = vpop.f32.mrb[0].mxu0
        %v8082 = vpop.f32.mrb[0].mxu0
        %v8083 = vadd.f32 0.0, %v8082
        %v8084 = vpop.f32.mrb[0].mxu0
        %8085 = vmatprep.mubr.bf16.mxu0 0
        %8086 = vmatmul.mubr.bf16.gmra.mrb[0].mxu0 %v7910
        %v8087 = vpop.f32.mrb[0].mxu0
        %v8088 = vadd.f32 0.0, %v8087
        %v8089 = vpop.f32.mrb[0].mxu0
        %v8090 = vpop.f32.mrb[0].mxu0
        %v8091 = vadd.f32 0.0, %v8090
        %v8092 = vpop.f32.mrb[0].mxu0
        %8093 = vmatprep.mubr.bf16.mxu0 0
        %8094 = vmatmul.mubr.bf16.gmra.mrb[0].mxu0 %v7911
        %v8095 = vpop.f32.mrb[0].mxu0
        %v8096 = vadd.f32 0.0, %v8095
        %v8097 = vpop.f32.mrb[0].mxu0
        %v8098 = vpop.f32.mrb[0].mxu0
        %v8099 = vadd.f32 0.0, %v8098
        %v8100 = vpop.f32.mrb[0].mxu0
        %8101 = vmatprep.mubr.bf16.mxu0 0
        %8102 = vmatmul.mubr.bf16.gmra.mrb[0].mxu0 %v7912
        %v8103 = vpop.f32.mrb[0].mxu0
        %v8104 = vadd.f32 0.0, %v8103
        %v8105 = vpop.f32.mrb[0].mxu0
        %v8106 = vpop.f32.mrb[0].mxu0
        %v8107 = vadd.f32 0.0, %v8106
        %v8108 = vpop.f32.mrb[0].mxu0
        %8109 = vmatprep.mubr.bf16.mxu0 0
        %8110 = vmatmul.mubr.bf16.gmra.mrb[0].mxu0 %v7913
        %v8111 = vpop.f32.mrb[0].mxu0
        %v8112 = vadd.f32 0.0, %v8111
        %v8113 = vpop.f32.mrb[0].mxu0
        %v8114 = vpop.f32.mrb[0].mxu0
        %v8115 = vadd.f32 0.0, %v8114
        %v8116 = vpop.f32.mrb[0].mxu0
        %8117 = vmatprep.mubr.bf16.mxu0 0
        %8118 = vmatmul.mubr.bf16.gmra.mrb[0].mxu0 %v7914
        %v8119 = vpop.f32.mrb[0].mxu0
        %v8120 = vadd.f32 0.0, %v8119
        %v8121 = vpop.f32.mrb[0].mxu0
        %v8122 = vpop.f32.mrb[0].mxu0
        %v8123 = vadd.f32 0.0, %v8122
        %v8124 = vpop.f32.mrb[0].mxu0
        %8125 = vmatprep.mubr.bf16.mxu0 0
        %8126 = vmatmul.mubr.bf16.gmra.mrb[0].mxu0 %v7915
        %v8127 = vpop.f32.mrb[0].mxu0
        %v8128 = vadd.f32 0.0, %v8127
        %v8129 = vpop.f32.mrb[0].mxu0
        %v8130 = vpop.f32.mrb[0].mxu0
        %v8131 = vadd.f32 0.0, %v8130
        %v8132 = vpop.f32.mrb[0].mxu0
        %8133 = vmatprep.mubr.bf16.mxu0 0
        %8134 = vmatmul.mubr.bf16.gmra.mrb[0].mxu0 %v7916
        %v8135 = vpop.f32.mrb[0].mxu0
        %v8136 = vadd.f32 0.0, %v8135
        %v8137 = vpop.f32.mrb[0].mxu0
        %v8138 = vpop.f32.mrb[0].mxu0
        %v8139 = vadd.f32 0.0, %v8138
        %v8140 = vpop.f32.mrb[0].mxu0
        %8141 = vdwg.mxu0
        %v8142 = vadd.f32 %v7644, %v8016
        %v8143 = vadd.f32 %v7645, %v8019
        %v8144 = vadd.f32 %v7646, %v8024
        %v8145 = vadd.f32 %v7647, %v8027
        %v8146 = vadd.f32 %v7648, %v8032
        %v8147 = vadd.f32 %v7649, %v8035
        %v8148 = vadd.f32 %v7650, %v8040
        %v8149 = vadd.f32 %v7651, %v8043
        %v8150 = vadd.f32 %v7652, %v8048
        %v8151 = vadd.f32 %v7653, %v8051
        %v8152 = vadd.f32 %v7654, %v8056
        %v8153 = vadd.f32 %v7655, %v8059
        %v8154 = vadd.f32 %v7656, %v8064
        %v8155 = vadd.f32 %v7657, %v8067
        %v8156 = vadd.f32 %v7658, %v8072
        %v8157 = vadd.f32 %v7659, %v8075
        %v8158 = vadd.f32 %v7660, %v8080
        %v8159 = vadd.f32 %v7661, %v8083
        %v8160 = vadd.f32 %v7662, %v8088
        %v8161 = vadd.f32 %v7663, %v8091
        %v8162 = vadd.f32 %v7664, %v8096
        %v8163 = vadd.f32 %v7665, %v8099
        %v8164 = vadd.f32 %v7666, %v8104
        %v8165 = vadd.f32 %v7667, %v8107
        %v8166 = vadd.f32 %v7668, %v8112
        %v8167 = vadd.f32 %v7669, %v8115
        %v8168 = vadd.f32 %v7670, %v8120
        %v8169 = vadd.f32 %v7671, %v8123
        %v8170 = vadd.f32 %v7672, %v8128
        %v8171 = vadd.f32 %v7673, %v8131
        %v8172 = vadd.f32 %v7674, %v8136
        %v8173 = vadd.f32 %v7675, %v8139
        %s8174 = scalar_lea.vmem [#allocation2], 48
        %v8175 = vld [vmem:[%s8174] sm:$0xf]
        %v8176 = vld [vmem:[%s8174 + $0x4] sm:$0xf]
        %v8177 = vld [vmem:[%s8174 + $0xc] sm:$0xf]
        %v8178 = vld [vmem:[%s8174 + $0x10] sm:$0xf]
        %v8179 = vld [vmem:[%s8174 + $0x18] sm:$0xf]
        %v8180 = vld [vmem:[%s8174 + $0x1c] sm:$0xf]
        %v8181 = vld [vmem:[%s8174 + $0x24] sm:$0xf]
        %v8182 = vld [vmem:[%s8174 + $0x28] sm:$0xf]
        %v8183 = vld [vmem:[%s8174 + $0x30] sm:$0xf]
        %v8184 = vld [vmem:[%s8174 + $0x34] sm:$0xf]
        %v8185 = vld [vmem:[%s8174 + $0x3c] sm:$0xf]
        %v8186 = vld [vmem:[%s8174 + $0x40] sm:$0xf]
        %v8187 = vld [vmem:[%s8174 + $0x48] sm:$0xf]
        %v8188 = vld [vmem:[%s8174 + $0x4c] sm:$0xf]
        %v8189 = vld [vmem:[%s8174 + $0x54] sm:$0xf]
        %v8190 = vld [vmem:[%s8174 + $0x58] sm:$0xf]
        %v8191 = vld [vmem:[%s8174 + $0x60] sm:$0xf]
        %v8192 = vld [vmem:[%s8174 + $0x64] sm:$0xf]
        %v8193 = vld [vmem:[%s8174 + $0x6c] sm:$0xf]
        %v8194 = vld [vmem:[%s8174 + $0x70] sm:$0xf]
        %v8195 = vld [vmem:[%s8174 + $0x78] sm:$0xf]
        %v8196 = vld [vmem:[%s8174 + $0x7c] sm:$0xf]
        %v8197 = vld [vmem:[%s8174 + $0x84] sm:$0xf]
        %v8198 = vld [vmem:[%s8174 + $0x88] sm:$0xf]
        %v8199 = vld [vmem:[%s8174 + $0x90] sm:$0xf]
        %v8200 = vld [vmem:[%s8174 + $0x94] sm:$0xf]
        %v8201 = vld [vmem:[%s8174 + $0x9c] sm:$0xf]
        %v8202 = vld [vmem:[%s8174 + $0xa0] sm:$0xf]
        %v8203 = vld [vmem:[%s8174 + $0xa8] sm:$0xf]
        %v8204 = vld [vmem:[%s8174 + $0xac] sm:$0xf]
        %v8205 = vld [vmem:[%s8174 + $0xb4] sm:$0xf]
        %v8206 = vld [vmem:[%s8174 + $0xb8] sm:$0xf]
        %s8207 = scalar_lea.vmem [#allocation3], 384
        %v8208 = vld [vmem:[%s8207] sm:$0xf]
        %v8209 = vld [vmem:[%s8207 + $0x4] sm:$0xf]
        %v8210 = vld [vmem:[%s8207 + $0x8] sm:$0xf]
        %v8211 = vld [vmem:[%s8207 + $0xc] sm:$0xf]
        %v8212 = vld [vmem:[%s8207 + $0x10] sm:$0xf]
        %v8213 = vld [vmem:[%s8207 + $0x14] sm:$0xf]
        %v8214 = vld [vmem:[%s8207 + $0x18] sm:$0xf]
        %v8215 = vld [vmem:[%s8207 + $0x1c] sm:$0xf]
        %v8216 = vld [vmem:[%s8207 + $0x20] sm:$0xf]
        %v8217 = vld [vmem:[%s8207 + $0x24] sm:$0xf]
        %v8218 = vld [vmem:[%s8207 + $0x28] sm:$0xf]
        %v8219 = vld [vmem:[%s8207 + $0x2c] sm:$0xf]
        %v8220 = vld [vmem:[%s8207 + $0x30] sm:$0xf]
        %v8221 = vld [vmem:[%s8207 + $0x34] sm:$0xf]
        %v8222 = vld [vmem:[%s8207 + $0x38] sm:$0xf]
        %v8223 = vld [vmem:[%s8207 + $0x3c] sm:$0xf]
        %v8256 = vunpack.c.l.b16 %v8175
        %v8257 = vunpack.c.l.b16 %v8176
        %v8258 = vunpack.c.l.b16 %v8177
        %v8259 = vunpack.c.l.b16 %v8178
        %v8260 = vunpack.c.l.b16 %v8179
        %v8261 = vunpack.c.l.b16 %v8180
        %v8262 = vunpack.c.l.b16 %v8181
        %v8263 = vunpack.c.l.b16 %v8182
        %v8264 = vunpack.c.l.b16 %v8183
        %v8265 = vunpack.c.l.b16 %v8184
        %v8266 = vunpack.c.l.b16 %v8185
        %v8267 = vunpack.c.l.b16 %v8186
        %v8268 = vunpack.c.l.b16 %v8187
        %v8269 = vunpack.c.l.b16 %v8188
        %v8270 = vunpack.c.l.b16 %v8189
        %v8271 = vunpack.c.l.b16 %v8190
        %v8272 = vunpack.c.l.b16 %v8191
        %v8273 = vunpack.c.l.b16 %v8192
        %v8274 = vunpack.c.l.b16 %v8193
        %v8275 = vunpack.c.l.b16 %v8194
        %v8276 = vunpack.c.l.b16 %v8195
        %v8277 = vunpack.c.l.b16 %v8196
        %v8278 = vunpack.c.l.b16 %v8197
        %v8279 = vunpack.c.l.b16 %v8198
        %v8280 = vunpack.c.l.b16 %v8199
        %v8281 = vunpack.c.l.b16 %v8200
        %v8282 = vunpack.c.l.b16 %v8201
        %v8283 = vunpack.c.l.b16 %v8202
        %v8284 = vunpack.c.l.b16 %v8203
        %v8285 = vunpack.c.l.b16 %v8204
        %v8286 = vunpack.c.l.b16 %v8205
        %v8287 = vunpack.c.l.b16 %v8206
        %v8288 = vpack.c.b16 %v8257, %v8256
        %v8289 = vpack.c.b16 %v8259, %v8258
        %v8290 = vpack.c.b16 %v8261, %v8260
        %v8291 = vpack.c.b16 %v8263, %v8262
        %v8292 = vpack.c.b16 %v8265, %v8264
        %v8293 = vpack.c.b16 %v8267, %v8266
        %v8294 = vpack.c.b16 %v8269, %v8268
        %v8295 = vpack.c.b16 %v8271, %v8270
        %v8296 = vpack.c.b16 %v8273, %v8272
        %v8297 = vpack.c.b16 %v8275, %v8274
        %v8298 = vpack.c.b16 %v8277, %v8276
        %v8299 = vpack.c.b16 %v8279, %v8278
        %v8300 = vpack.c.b16 %v8281, %v8280
        %v8301 = vpack.c.b16 %v8283, %v8282
        %v8302 = vpack.c.b16 %v8285, %v8284
        %v8303 = vpack.c.b16 %v8287, %v8286
        %v8336 = vunpack.c.l.b16 %v8208
        %v8337 = vunpack.c.l.b16 %v8209
        %v8338 = vunpack.c.l.b16 %v8210
        %v8339 = vunpack.c.l.b16 %v8211
        %v8340 = vunpack.c.l.b16 %v8212
        %v8341 = vunpack.c.l.b16 %v8213
        %v8342 = vunpack.c.l.b16 %v8214
        %v8343 = vunpack.c.l.b16 %v8215
        %v8344 = vunpack.c.l.b16 %v8216
        %v8345 = vunpack.c.l.b16 %v8217
        %v8346 = vunpack.c.l.b16 %v8218
        %v8347 = vunpack.c.l.b16 %v8219
        %v8348 = vunpack.c.l.b16 %v8220
        %v8349 = vunpack.c.l.b16 %v8221
        %v8350 = vunpack.c.l.b16 %v8222
        %v8351 = vunpack.c.l.b16 %v8223
        %v8352 = vpack.c.b16 %v8337, %v8336
        %v8353 = vpack.c.b16 %v8339, %v8338
        %v8354 = vpack.c.b16 %v8341, %v8340
        %v8355 = vpack.c.b16 %v8343, %v8342
        %v8356 = vpack.c.b16 %v8345, %v8344
        %v8357 = vpack.c.b16 %v8347, %v8346
        %v8358 = vpack.c.b16 %v8349, %v8348
        %v8359 = vpack.c.b16 %v8351, %v8350
        %8368 = vmatprep.subr.bf16.mxu0 0
        %8369 = vmatpush1.bf16.msra.mxu0 %v8352
        %8370 = vmatprep.subr.bf16.mxu0 0
        %8371 = vmatpush1.bf16.msra.mxu0 %v8353
        %8372 = vmatprep.subr.bf16.mxu0 0
        %8373 = vmatpush1.bf16.msra.mxu0 %v8354
        %8374 = vmatprep.subr.bf16.mxu0 0
        %8375 = vmatpush1.bf16.msra.mxu0 %v8355
        %8376 = vmatprep.subr.bf16.mxu0 0
        %8377 = vmatpush1.bf16.msra.mxu0 %v8356
        %8378 = vmatprep.subr.bf16.mxu0 0
        %8379 = vmatpush1.bf16.msra.mxu0 %v8357
        %8380 = vmatprep.subr.bf16.mxu0 0
        %8381 = vmatpush1.bf16.msra.mxu0 %v8358
        %8382 = vmatprep.subr.bf16.mxu0 0
        %8383 = vmatpush1.bf16.msra.mxu0 %v8359
        %8384 = vmatprep.subr.bf16.mxu0 0
        %8385 = vmatpush1.bf16.msra.mxu0 0
        %8386 = vmatprep.subr.bf16.mxu0 0
        %8387 = vmatpush1.bf16.msra.mxu0 0
        %8388 = vmatprep.subr.bf16.mxu0 0
        %8389 = vmatpush1.bf16.msra.mxu0 0
        %8390 = vmatprep.subr.bf16.mxu0 0
        %8391 = vmatpush1.bf16.msra.mxu0 0
        %8392 = vmatprep.subr.bf16.mxu0 0
        %8393 = vmatpush1.bf16.msra.mxu0 0
        %8394 = vmatprep.subr.bf16.mxu0 0
        %8395 = vmatpush1.bf16.msra.mxu0 0
        %8396 = vmatprep.subr.bf16.mxu0 0
        %8397 = vmatpush1.bf16.msra.mxu0 0
        %8398 = vmatprep.subr.bf16.mxu0 0
        %8399 = vmatpush1.bf16.msra.mxu0 0
        %8400 = vmatprep.mubr.bf16.mxu0 0
        %8401 = vmatmul.mubr.bf16.gmra.mrb[0].mxu0 %v8288
        %v8402 = vpop.f32.mrb[0].mxu0
        %v8403 = vadd.f32 0.0, %v8402
        %v8404 = vpop.f32.mrb[0].mxu0
        %v8405 = vpop.f32.mrb[0].mxu0
        %v8406 = vadd.f32 0.0, %v8405
        %v8407 = vpop.f32.mrb[0].mxu0
        %8408 = vmatprep.mubr.bf16.mxu0 0
        %8409 = vmatmul.mubr.bf16.gmra.mrb[0].mxu0 %v8289
        %v8410 = vpop.f32.mrb[0].mxu0
        %v8411 = vadd.f32 0.0, %v8410
        %v8412 = vpop.f32.mrb[0].mxu0
        %v8413 = vpop.f32.mrb[0].mxu0
        %v8414 = vadd.f32 0.0, %v8413
        %v8415 = vpop.f32.mrb[0].mxu0
        %8416 = vmatprep.mubr.bf16.mxu0 0
        %8417 = vmatmul.mubr.bf16.gmra.mrb[0].mxu0 %v8290
        %v8418 = vpop.f32.mrb[0].mxu0
        %v8419 = vadd.f32 0.0, %v8418
        %v8420 = vpop.f32.mrb[0].mxu0
        %v8421 = vpop.f32.mrb[0].mxu0
        %v8422 = vadd.f32 0.0, %v8421
        %v8423 = vpop.f32.mrb[0].mxu0
        %8424 = vmatprep.mubr.bf16.mxu0 0
        %8425 = vmatmul.mubr.bf16.gmra.mrb[0].mxu0 %v8291
        %v8426 = vpop.f32.mrb[0].mxu0
        %v8427 = vadd.f32 0.0, %v8426
        %v8428 = vpop.f32.mrb[0].mxu0
        %v8429 = vpop.f32.mrb[0].mxu0
        %v8430 = vadd.f32 0.0, %v8429
        %v8431 = vpop.f32.mrb[0].mxu0
        %8432 = vmatprep.mubr.bf16.mxu0 0
        %8433 = vmatmul.mubr.bf16.gmra.mrb[0].mxu0 %v8292
        %v8434 = vpop.f32.mrb[0].mxu0
        %v8435 = vadd.f32 0.0, %v8434
        %v8436 = vpop.f32.mrb[0].mxu0
        %v8437 = vpop.f32.mrb[0].mxu0
        %v8438 = vadd.f32 0.0, %v8437
        %v8439 = vpop.f32.mrb[0].mxu0
        %8440 = vmatprep.mubr.bf16.mxu0 0
        %8441 = vmatmul.mubr.bf16.gmra.mrb[0].mxu0 %v8293
        %v8442 = vpop.f32.mrb[0].mxu0
        %v8443 = vadd.f32 0.0, %v8442
        %v8444 = vpop.f32.mrb[0].mxu0
        %v8445 = vpop.f32.mrb[0].mxu0
        %v8446 = vadd.f32 0.0, %v8445
        %v8447 = vpop.f32.mrb[0].mxu0
        %8448 = vmatprep.mubr.bf16.mxu0 0
        %8449 = vmatmul.mubr.bf16.gmra.mrb[0].mxu0 %v8294
        %v8450 = vpop.f32.mrb[0].mxu0
        %v8451 = vadd.f32 0.0, %v8450
        %v8452 = vpop.f32.mrb[0].mxu0
        %v8453 = vpop.f32.mrb[0].mxu0
        %v8454 = vadd.f32 0.0, %v8453
        %v8455 = vpop.f32.mrb[0].mxu0
        %8456 = vmatprep.mubr.bf16.mxu0 0
        %8457 = vmatmul.mubr.bf16.gmra.mrb[0].mxu0 %v8295
        %v8458 = vpop.f32.mrb[0].mxu0
        %v8459 = vadd.f32 0.0, %v8458
        %v8460 = vpop.f32.mrb[0].mxu0
        %v8461 = vpop.f32.mrb[0].mxu0
        %v8462 = vadd.f32 0.0, %v8461
        %v8463 = vpop.f32.mrb[0].mxu0
        %8464 = vmatprep.mubr.bf16.mxu0 0
        %8465 = vmatmul.mubr.bf16.gmra.mrb[0].mxu0 %v8296
        %v8466 = vpop.f32.mrb[0].mxu0
        %v8467 = vadd.f32 0.0, %v8466
        %v8468 = vpop.f32.mrb[0].mxu0
        %v8469 = vpop.f32.mrb[0].mxu0
        %v8470 = vadd.f32 0.0, %v8469
        %v8471 = vpop.f32.mrb[0].mxu0
        %8472 = vmatprep.mubr.bf16.mxu0 0
        %8473 = vmatmul.mubr.bf16.gmra.mrb[0].mxu0 %v8297
        %v8474 = vpop.f32.mrb[0].mxu0
        %v8475 = vadd.f32 0.0, %v8474
        %v8476 = vpop.f32.mrb[0].mxu0
        %v8477 = vpop.f32.mrb[0].mxu0
        %v8478 = vadd.f32 0.0, %v8477
        %v8479 = vpop.f32.mrb[0].mxu0
        %8480 = vmatprep.mubr.bf16.mxu0 0
        %8481 = vmatmul.mubr.bf16.gmra.mrb[0].mxu0 %v8298
        %v8482 = vpop.f32.mrb[0].mxu0
        %v8483 = vadd.f32 0.0, %v8482
        %v8484 = vpop.f32.mrb[0].mxu0
        %v8485 = vpop.f32.mrb[0].mxu0
        %v8486 = vadd.f32 0.0, %v8485
        %v8487 = vpop.f32.mrb[0].mxu0
        %8488 = vmatprep.mubr.bf16.mxu0 0
        %8489 = vmatmul.mubr.bf16.gmra.mrb[0].mxu0 %v8299
        %v8490 = vpop.f32.mrb[0].mxu0
        %v8491 = vadd.f32 0.0, %v8490
        %v8492 = vpop.f32.mrb[0].mxu0
        %v8493 = vpop.f32.mrb[0].mxu0
        %v8494 = vadd.f32 0.0, %v8493
        %v8495 = vpop.f32.mrb[0].mxu0
        %8496 = vmatprep.mubr.bf16.mxu0 0
        %8497 = vmatmul.mubr.bf16.gmra.mrb[0].mxu0 %v8300
        %v8498 = vpop.f32.mrb[0].mxu0
        %v8499 = vadd.f32 0.0, %v8498
        %v8500 = vpop.f32.mrb[0].mxu0
        %v8501 = vpop.f32.mrb[0].mxu0
        %v8502 = vadd.f32 0.0, %v8501
        %v8503 = vpop.f32.mrb[0].mxu0
        %8504 = vmatprep.mubr.bf16.mxu0 0
        %8505 = vmatmul.mubr.bf16.gmra.mrb[0].mxu0 %v8301
        %v8506 = vpop.f32.mrb[0].mxu0
        %v8507 = vadd.f32 0.0, %v8506
        %v8508 = vpop.f32.mrb[0].mxu0
        %v8509 = vpop.f32.mrb[0].mxu0
        %v8510 = vadd.f32 0.0, %v8509
        %v8511 = vpop.f32.mrb[0].mxu0
        %8512 = vmatprep.mubr.bf16.mxu0 0
        %8513 = vmatmul.mubr.bf16.gmra.mrb[0].mxu0 %v8302
        %v8514 = vpop.f32.mrb[0].mxu0
        %v8515 = vadd.f32 0.0, %v8514
        %v8516 = vpop.f32.mrb[0].mxu0
        %v8517 = vpop.f32.mrb[0].mxu0
        %v8518 = vadd.f32 0.0, %v8517
        %v8519 = vpop.f32.mrb[0].mxu0
        %8520 = vmatprep.mubr.bf16.mxu0 0
        %8521 = vmatmul.mubr.bf16.gmra.mrb[0].mxu0 %v8303
        %v8522 = vpop.f32.mrb[0].mxu0
        %v8523 = vadd.f32 0.0, %v8522
        %v8524 = vpop.f32.mrb[0].mxu0
        %v8525 = vpop.f32.mrb[0].mxu0
        %v8526 = vadd.f32 0.0, %v8525
        %v8527 = vpop.f32.mrb[0].mxu0
        %8528 = vdwg.mxu0
        %v8529 = vadd.f32 %v8142, %v8403
        %v8530 = vadd.f32 %v8143, %v8406
        %v8531 = vadd.f32 %v8144, %v8411
        %v8532 = vadd.f32 %v8145, %v8414
        %v8533 = vadd.f32 %v8146, %v8419
        %v8534 = vadd.f32 %v8147, %v8422
        %v8535 = vadd.f32 %v8148, %v8427
        %v8536 = vadd.f32 %v8149, %v8430
        %v8537 = vadd.f32 %v8150, %v8435
        %v8538 = vadd.f32 %v8151, %v8438
        %v8539 = vadd.f32 %v8152, %v8443
        %v8540 = vadd.f32 %v8153, %v8446
        %v8541 = vadd.f32 %v8154, %v8451
        %v8542 = vadd.f32 %v8155, %v8454
        %v8543 = vadd.f32 %v8156, %v8459
        %v8544 = vadd.f32 %v8157, %v8462
        %v8545 = vadd.f32 %v8158, %v8467
        %v8546 = vadd.f32 %v8159, %v8470
        %v8547 = vadd.f32 %v8160, %v8475
        %v8548 = vadd.f32 %v8161, %v8478
        %v8549 = vadd.f32 %v8162, %v8483
        %v8550 = vadd.f32 %v8163, %v8486
        %v8551 = vadd.f32 %v8164, %v8491
        %v8552 = vadd.f32 %v8165, %v8494
        %v8553 = vadd.f32 %v8166, %v8499
        %v8554 = vadd.f32 %v8167, %v8502
        %v8555 = vadd.f32 %v8168, %v8507
        %v8556 = vadd.f32 %v8169, %v8510
        %v8557 = vadd.f32 %v8170, %v8515
        %v8558 = vadd.f32 %v8171, %v8518
        %v8559 = vadd.f32 %v8172, %v8523
        %v8560 = vadd.f32 %v8173, %v8526
        %v8561 = vld [vmem:[%s8174] sm:$0xe]
        %v8562 = vld [vmem:[%s8174 + $0x4] sm:$0xf]
        %v8563 = vld [vmem:[%s8174 + $0x8] sm:$0x1]
        %v8564 = vld [vmem:[%s8174 + $0xc] sm:$0xe]
        %v8565 = vld [vmem:[%s8174 + $0x10] sm:$0xf]
        %v8566 = vld [vmem:[%s8174 + $0x14] sm:$0x1]
        %v8567 = vld [vmem:[%s8174 + $0x18] sm:$0xe]
        %v8568 = vld [vmem:[%s8174 + $0x1c] sm:$0xf]
        %v8569 = vld [vmem:[%s8174 + $0x20] sm:$0x1]
        %v8570 = vld [vmem:[%s8174 + $0x24] sm:$0xe]
        %v8571 = vld [vmem:[%s8174 + $0x28] sm:$0xf]
        %v8572 = vld [vmem:[%s8174 + $0x2c] sm:$0x1]
        %v8573 = vld [vmem:[%s8174 + $0x30] sm:$0xe]
        %v8574 = vld [vmem:[%s8174 + $0x34] sm:$0xf]
        %v8575 = vld [vmem:[%s8174 + $0x38] sm:$0x1]
        %v8576 = vld [vmem:[%s8174 + $0x3c] sm:$0xe]
        %v8577 = vld [vmem:[%s8174 + $0x40] sm:$0xf]
        %v8578 = vld [vmem:[%s8174 + $0x44] sm:$0x1]
        %v8579 = vld [vmem:[%s8174 + $0x48] sm:$0xe]
        %v8580 = vld [vmem:[%s8174 + $0x4c] sm:$0xf]
        %v8581 = vld [vmem:[%s8174 + $0x50] sm:$0x1]
        %v8582 = vld [vmem:[%s8174 + $0x54] sm:$0xe]
        %v8583 = vld [vmem:[%s8174 + $0x58] sm:$0xf]
        %v8584 = vld [vmem:[%s8174 + $0x5c] sm:$0x1]
        %v8585 = vld [vmem:[%s8174 + $0x60] sm:$0xe]
        %v8586 = vld [vmem:[%s8174 + $0x64] sm:$0xf]
        %v8587 = vld [vmem:[%s8174 + $0x68] sm:$0x1]
        %v8588 = vld [vmem:[%s8174 + $0x6c] sm:$0xe]
        %v8589 = vld [vmem:[%s8174 + $0x70] sm:$0xf]
        %v8590 = vld [vmem:[%s8174 + $0x74] sm:$0x1]
        %v8591 = vld [vmem:[%s8174 + $0x78] sm:$0xe]
        %v8592 = vld [vmem:[%s8174 + $0x7c] sm:$0xf]
        %v8593 = vld [vmem:[%s8174 + $0x80] sm:$0x1]
        %v8594 = vld [vmem:[%s8174 + $0x84] sm:$0xe]
        %v8595 = vld [vmem:[%s8174 + $0x88] sm:$0xf]
        %v8596 = vld [vmem:[%s8174 + $0x8c] sm:$0x1]
        %v8597 = vld [vmem:[%s8174 + $0x90] sm:$0xe]
        %v8598 = vld [vmem:[%s8174 + $0x94] sm:$0xf]
        %v8599 = vld [vmem:[%s8174 + $0x98] sm:$0x1]
        %v8600 = vld [vmem:[%s8174 + $0x9c] sm:$0xe]
        %v8601 = vld [vmem:[%s8174 + $0xa0] sm:$0xf]
        %v8602 = vld [vmem:[%s8174 + $0xa4] sm:$0x1]
        %v8603 = vld [vmem:[%s8174 + $0xa8] sm:$0xe]
        %v8604 = vld [vmem:[%s8174 + $0xac] sm:$0xf]
        %v8605 = vld [vmem:[%s8174 + $0xb0] sm:$0x1]
        %v8606 = vld [vmem:[%s8174 + $0xb4] sm:$0xe]
        %v8607 = vld [vmem:[%s8174 + $0xb8] sm:$0xf]
        %v8608 = vld [vmem:[%s8174 + $0xbc] sm:$0x1]
        %v8657 = vrot.slane %v8561, 5
        %v8658 = vrot.slane %v8657, 4
        %v8659 = vrot.slane %v8562, 5
        %v8660 = vsel %vm1381, %v8658, %v8659
        %v8661 = vrot.slane %v8659, 4
        %v8662 = vrot.slane %v8563, 5
        %v8663 = vsel %vm1381, %v8661, %v8662
        %v8664 = vrot.slane %v8564, 5
        %v8665 = vrot.slane %v8664, 4
        %v8666 = vrot.slane %v8565, 5
        %v8667 = vsel %vm1381, %v8665, %v8666
        %v8668 = vrot.slane %v8666, 4
        %v8669 = vrot.slane %v8566, 5
        %v8670 = vsel %vm1381, %v8668, %v8669
        %v8671 = vrot.slane %v8567, 5
        %v8672 = vrot.slane %v8671, 4
        %v8673 = vrot.slane %v8568, 5
        %v8674 = vsel %vm1381, %v8672, %v8673
        %v8675 = vrot.slane %v8673, 4
        %v8676 = vrot.slane %v8569, 5
        %v8677 = vsel %vm1381, %v8675, %v8676
        %v8678 = vrot.slane %v8570, 5
        %v8679 = vrot.slane %v8678, 4
        %v8680 = vrot.slane %v8571, 5
        %v8681 = vsel %vm1381, %v8679, %v8680
        %v8682 = vrot.slane %v8680, 4
        %v8683 = vrot.slane %v8572, 5
        %v8684 = vsel %vm1381, %v8682, %v8683
        %v8685 = vrot.slane %v8573, 5
        %v8686 = vrot.slane %v8685, 4
        %v8687 = vrot.slane %v8574, 5
        %v8688 = vsel %vm1381, %v8686, %v8687
        %v8689 = vrot.slane %v8687, 4
        %v8690 = vrot.slane %v8575, 5
        %v8691 = vsel %vm1381, %v8689, %v8690
        %v8692 = vrot.slane %v8576, 5
        %v8693 = vrot.slane %v8692, 4
        %v8694 = vrot.slane %v8577, 5
        %v8695 = vsel %vm1381, %v8693, %v8694
        %v8696 = vrot.slane %v8694, 4
        %v8697 = vrot.slane %v8578, 5
        %v8698 = vsel %vm1381, %v8696, %v8697
        %v8699 = vrot.slane %v8579, 5
        %v8700 = vrot.slane %v8699, 4
        %v8701 = vrot.slane %v8580, 5
        %v8702 = vsel %vm1381, %v8700, %v8701
        %v8703 = vrot.slane %v8701, 4
        %v8704 = vrot.slane %v8581, 5
        %v8705 = vsel %vm1381, %v8703, %v8704
        %v8706 = vrot.slane %v8582, 5
        %v8707 = vrot.slane %v8706, 4
        %v8708 = vrot.slane %v8583, 5
        %v8709 = vsel %vm1381, %v8707, %v8708
        %v8710 = vrot.slane %v8708, 4
        %v8711 = vrot.slane %v8584, 5
        %v8712 = vsel %vm1381, %v8710, %v8711
        %v8713 = vrot.slane %v8585, 5
        %v8714 = vrot.slane %v8713, 4
        %v8715 = vrot.slane %v8586, 5
        %v8716 = vsel %vm1381, %v8714, %v8715
        %v8717 = vrot.slane %v8715, 4
        %v8718 = vrot.slane %v8587, 5
        %v8719 = vsel %vm1381, %v8717, %v8718
        %v8720 = vrot.slane %v8588, 5
        %v8721 = vrot.slane %v8720, 4
        %v8722 = vrot.slane %v8589, 5
        %v8723 = vsel %vm1381, %v8721, %v8722
        %v8724 = vrot.slane %v8722, 4
        %v8725 = vrot.slane %v8590, 5
        %v8726 = vsel %vm1381, %v8724, %v8725
        %v8727 = vrot.slane %v8591, 5
        %v8728 = vrot.slane %v8727, 4
        %v8729 = vrot.slane %v8592, 5
        %v8730 = vsel %vm1381, %v8728, %v8729
        %v8731 = vrot.slane %v8729, 4
        %v8732 = vrot.slane %v8593, 5
        %v8733 = vsel %vm1381, %v8731, %v8732
        %v8734 = vrot.slane %v8594, 5
        %v8735 = vrot.slane %v8734, 4
        %v8736 = vrot.slane %v8595, 5
        %v8737 = vsel %vm1381, %v8735, %v8736
        %v8738 = vrot.slane %v8736, 4
        %v8739 = vrot.slane %v8596, 5
        %v8740 = vsel %vm1381, %v8738, %v8739
        %v8741 = vrot.slane %v8597, 5
        %v8742 = vrot.slane %v8741, 4
        %v8743 = vrot.slane %v8598, 5
        %v8744 = vsel %vm1381, %v8742, %v8743
        %v8745 = vrot.slane %v8743, 4
        %v8746 = vrot.slane %v8599, 5
        %v8747 = vsel %vm1381, %v8745, %v8746
        %v8748 = vrot.slane %v8600, 5
        %v8749 = vrot.slane %v8748, 4
        %v8750 = vrot.slane %v8601, 5
        %v8751 = vsel %vm1381, %v8749, %v8750
        %v8752 = vrot.slane %v8750, 4
        %v8753 = vrot.slane %v8602, 5
        %v8754 = vsel %vm1381, %v8752, %v8753
        %v8755 = vrot.slane %v8603, 5
        %v8756 = vrot.slane %v8755, 4
        %v8757 = vrot.slane %v8604, 5
        %v8758 = vsel %vm1381, %v8756, %v8757
        %v8759 = vrot.slane %v8757, 4
        %v8760 = vrot.slane %v8605, 5
        %v8761 = vsel %vm1381, %v8759, %v8760
        %v8762 = vrot.slane %v8606, 5
        %v8763 = vrot.slane %v8762, 4
        %v8764 = vrot.slane %v8607, 5
        %v8765 = vsel %vm1381, %v8763, %v8764
        %v8766 = vrot.slane %v8764, 4
        %v8767 = vrot.slane %v8608, 5
        %v8768 = vsel %vm1381, %v8766, %v8767
        %s8769 = scalar_lea.vmem [#allocation3], 448
        %v8770 = vld [vmem:[%s8769] sm:$0xf]
        %v8771 = vld [vmem:[%s8769 + $0x4] sm:$0xf]
        %v8772 = vld [vmem:[%s8769 + $0x8] sm:$0xf]
        %v8773 = vld [vmem:[%s8769 + $0xc] sm:$0xf]
        %v8774 = vld [vmem:[%s8769 + $0x10] sm:$0xf]
        %v8775 = vld [vmem:[%s8769 + $0x14] sm:$0xf]
        %v8776 = vld [vmem:[%s8769 + $0x18] sm:$0xf]
        %v8777 = vld [vmem:[%s8769 + $0x1c] sm:$0xf]
        %v8778 = vld [vmem:[%s8769 + $0x20] sm:$0xf]
        %v8779 = vld [vmem:[%s8769 + $0x24] sm:$0xf]
        %v8780 = vld [vmem:[%s8769 + $0x28] sm:$0xf]
        %v8781 = vld [vmem:[%s8769 + $0x2c] sm:$0xf]
        %v8782 = vld [vmem:[%s8769 + $0x30] sm:$0xf]
        %v8783 = vld [vmem:[%s8769 + $0x34] sm:$0xf]
        %v8784 = vld [vmem:[%s8769 + $0x38] sm:$0xf]
        %v8785 = vld [vmem:[%s8769 + $0x3c] sm:$0xf]
        %v8786 = vunpack.c.l.b16 %v8660
        %v8787 = vunpack.c.l.b16 %v8663
        %v8788 = vunpack.c.l.b16 %v8667
        %v8789 = vunpack.c.l.b16 %v8670
        %v8790 = vunpack.c.l.b16 %v8674
        %v8791 = vunpack.c.l.b16 %v8677
        %v8792 = vunpack.c.l.b16 %v8681
        %v8793 = vunpack.c.l.b16 %v8684
        %v8794 = vunpack.c.l.b16 %v8688
        %v8795 = vunpack.c.l.b16 %v8691
        %v8796 = vunpack.c.l.b16 %v8695
        %v8797 = vunpack.c.l.b16 %v8698
        %v8798 = vunpack.c.l.b16 %v8702
        %v8799 = vunpack.c.l.b16 %v8705
        %v8800 = vunpack.c.l.b16 %v8709
        %v8801 = vunpack.c.l.b16 %v8712
        %v8802 = vunpack.c.l.b16 %v8716
        %v8803 = vunpack.c.l.b16 %v8719
        %v8804 = vunpack.c.l.b16 %v8723
        %v8805 = vunpack.c.l.b16 %v8726
        %v8806 = vunpack.c.l.b16 %v8730
        %v8807 = vunpack.c.l.b16 %v8733
        %v8808 = vunpack.c.l.b16 %v8737
        %v8809 = vunpack.c.l.b16 %v8740
        %v8810 = vunpack.c.l.b16 %v8744
        %v8811 = vunpack.c.l.b16 %v8747
        %v8812 = vunpack.c.l.b16 %v8751
        %v8813 = vunpack.c.l.b16 %v8754
        %v8814 = vunpack.c.l.b16 %v8758
        %v8815 = vunpack.c.l.b16 %v8761
        %v8816 = vunpack.c.l.b16 %v8765
        %v8817 = vunpack.c.l.b16 %v8768
        %v8818 = vpack.c.b16 %v8787, %v8786
        %v8819 = vpack.c.b16 %v8789, %v8788
        %v8820 = vpack.c.b16 %v8791, %v8790
        %v8821 = vpack.c.b16 %v8793, %v8792
        %v8822 = vpack.c.b16 %v8795, %v8794
        %v8823 = vpack.c.b16 %v8797, %v8796
        %v8824 = vpack.c.b16 %v8799, %v8798
        %v8825 = vpack.c.b16 %v8801, %v8800
        %v8826 = vpack.c.b16 %v8803, %v8802
        %v8827 = vpack.c.b16 %v8805, %v8804
        %v8828 = vpack.c.b16 %v8807, %v8806
        %v8829 = vpack.c.b16 %v8809, %v8808
        %v8830 = vpack.c.b16 %v8811, %v8810
        %v8831 = vpack.c.b16 %v8813, %v8812
        %v8832 = vpack.c.b16 %v8815, %v8814
        %v8833 = vpack.c.b16 %v8817, %v8816
        %v8866 = vunpack.c.l.b16 %v8770
        %v8867 = vunpack.c.l.b16 %v8771
        %v8868 = vunpack.c.l.b16 %v8772
        %v8869 = vunpack.c.l.b16 %v8773
        %v8870 = vunpack.c.l.b16 %v8774
        %v8871 = vunpack.c.l.b16 %v8775
        %v8872 = vunpack.c.l.b16 %v8776
        %v8873 = vunpack.c.l.b16 %v8777
        %v8874 = vunpack.c.l.b16 %v8778
        %v8875 = vunpack.c.l.b16 %v8779
        %v8876 = vunpack.c.l.b16 %v8780
        %v8877 = vunpack.c.l.b16 %v8781
        %v8878 = vunpack.c.l.b16 %v8782
        %v8879 = vunpack.c.l.b16 %v8783
        %v8880 = vunpack.c.l.b16 %v8784
        %v8881 = vunpack.c.l.b16 %v8785
        %v8882 = vpack.c.b16 %v8867, %v8866
        %v8883 = vpack.c.b16 %v8869, %v8868
        %v8884 = vpack.c.b16 %v8871, %v8870
        %v8885 = vpack.c.b16 %v8873, %v8872
        %v8886 = vpack.c.b16 %v8875, %v8874
        %v8887 = vpack.c.b16 %v8877, %v8876
        %v8888 = vpack.c.b16 %v8879, %v8878
        %v8889 = vpack.c.b16 %v8881, %v8880
        %8898 = vmatprep.subr.bf16.mxu0 0
        %8899 = vmatpush1.bf16.msra.mxu0 %v8882
        %8900 = vmatprep.subr.bf16.mxu0 0
        %8901 = vmatpush1.bf16.msra.mxu0 %v8883
        %8902 = vmatprep.subr.bf16.mxu0 0
        %8903 = vmatpush1.bf16.msra.mxu0 %v8884
        %8904 = vmatprep.subr.bf16.mxu0 0
        %8905 = vmatpush1.bf16.msra.mxu0 %v8885
        %8906 = vmatprep.subr.bf16.mxu0 0
        %8907 = vmatpush1.bf16.msra.mxu0 %v8886
        %8908 = vmatprep.subr.bf16.mxu0 0
        %8909 = vmatpush1.bf16.msra.mxu0 %v8887
        %8910 = vmatprep.subr.bf16.mxu0 0
        %8911 = vmatpush1.bf16.msra.mxu0 %v8888
        %8912 = vmatprep.subr.bf16.mxu0 0
        %8913 = vmatpush1.bf16.msra.mxu0 %v8889
        %8914 = vmatprep.subr.bf16.mxu0 0
        %8915 = vmatpush1.bf16.msra.mxu0 0
        %8916 = vmatprep.subr.bf16.mxu0 0
        %8917 = vmatpush1.bf16.msra.mxu0 0
        %8918 = vmatprep.subr.bf16.mxu0 0
        %8919 = vmatpush1.bf16.msra.mxu0 0
        %8920 = vmatprep.subr.bf16.mxu0 0
        %8921 = vmatpush1.bf16.msra.mxu0 0
        %8922 = vmatprep.subr.bf16.mxu0 0
        %8923 = vmatpush1.bf16.msra.mxu0 0
        %8924 = vmatprep.subr.bf16.mxu0 0
        %8925 = vmatpush1.bf16.msra.mxu0 0
        %8926 = vmatprep.subr.bf16.mxu0 0
        %8927 = vmatpush1.bf16.msra.mxu0 0
        %8928 = vmatprep.subr.bf16.mxu0 0
        %8929 = vmatpush1.bf16.msra.mxu0 0
        %8930 = vmatprep.mubr.bf16.mxu0 0
        %8931 = vmatmul.mubr.bf16.gmra.mrb[0].mxu0 %v8818
        %v8932 = vpop.f32.mrb[0].mxu0
        %v8933 = vadd.f32 0.0, %v8932
        %v8934 = vpop.f32.mrb[0].mxu0
        %v8935 = vpop.f32.mrb[0].mxu0
        %v8936 = vadd.f32 0.0, %v8935
        %v8937 = vpop.f32.mrb[0].mxu0
        %8938 = vmatprep.mubr.bf16.mxu0 0
        %8939 = vmatmul.mubr.bf16.gmra.mrb[0].mxu0 %v8819
        %v8940 = vpop.f32.mrb[0].mxu0
        %v8941 = vadd.f32 0.0, %v8940
        %v8942 = vpop.f32.mrb[0].mxu0
        %v8943 = vpop.f32.mrb[0].mxu0
        %v8944 = vadd.f32 0.0, %v8943
        %v8945 = vpop.f32.mrb[0].mxu0
        %8946 = vmatprep.mubr.bf16.mxu0 0
        %8947 = vmatmul.mubr.bf16.gmra.mrb[0].mxu0 %v8820
        %v8948 = vpop.f32.mrb[0].mxu0
        %v8949 = vadd.f32 0.0, %v8948
        %v8950 = vpop.f32.mrb[0].mxu0
        %v8951 = vpop.f32.mrb[0].mxu0
        %v8952 = vadd.f32 0.0, %v8951
        %v8953 = vpop.f32.mrb[0].mxu0
        %8954 = vmatprep.mubr.bf16.mxu0 0
        %8955 = vmatmul.mubr.bf16.gmra.mrb[0].mxu0 %v8821
        %v8956 = vpop.f32.mrb[0].mxu0
        %v8957 = vadd.f32 0.0, %v8956
        %v8958 = vpop.f32.mrb[0].mxu0
        %v8959 = vpop.f32.mrb[0].mxu0
        %v8960 = vadd.f32 0.0, %v8959
        %v8961 = vpop.f32.mrb[0].mxu0
        %8962 = vmatprep.mubr.bf16.mxu0 0
        %8963 = vmatmul.mubr.bf16.gmra.mrb[0].mxu0 %v8822
        %v8964 = vpop.f32.mrb[0].mxu0
        %v8965 = vadd.f32 0.0, %v8964
        %v8966 = vpop.f32.mrb[0].mxu0
        %v8967 = vpop.f32.mrb[0].mxu0
        %v8968 = vadd.f32 0.0, %v8967
        %v8969 = vpop.f32.mrb[0].mxu0
        %8970 = vmatprep.mubr.bf16.mxu0 0
        %8971 = vmatmul.mubr.bf16.gmra.mrb[0].mxu0 %v8823
        %v8972 = vpop.f32.mrb[0].mxu0
        %v8973 = vadd.f32 0.0, %v8972
        %v8974 = vpop.f32.mrb[0].mxu0
        %v8975 = vpop.f32.mrb[0].mxu0
        %v8976 = vadd.f32 0.0, %v8975
        %v8977 = vpop.f32.mrb[0].mxu0
        %8978 = vmatprep.mubr.bf16.mxu0 0
        %8979 = vmatmul.mubr.bf16.gmra.mrb[0].mxu0 %v8824
        %v8980 = vpop.f32.mrb[0].mxu0
        %v8981 = vadd.f32 0.0, %v8980
        %v8982 = vpop.f32.mrb[0].mxu0
        %v8983 = vpop.f32.mrb[0].mxu0
        %v8984 = vadd.f32 0.0, %v8983
        %v8985 = vpop.f32.mrb[0].mxu0
        %8986 = vmatprep.mubr.bf16.mxu0 0
        %8987 = vmatmul.mubr.bf16.gmra.mrb[0].mxu0 %v8825
        %v8988 = vpop.f32.mrb[0].mxu0
        %v8989 = vadd.f32 0.0, %v8988
        %v8990 = vpop.f32.mrb[0].mxu0
        %v8991 = vpop.f32.mrb[0].mxu0
        %v8992 = vadd.f32 0.0, %v8991
        %v8993 = vpop.f32.mrb[0].mxu0
        %8994 = vmatprep.mubr.bf16.mxu0 0
        %8995 = vmatmul.mubr.bf16.gmra.mrb[0].mxu0 %v8826
        %v8996 = vpop.f32.mrb[0].mxu0
        %v8997 = vadd.f32 0.0, %v8996
        %v8998 = vpop.f32.mrb[0].mxu0
        %v8999 = vpop.f32.mrb[0].mxu0
        %v9000 = vadd.f32 0.0, %v8999
        %v9001 = vpop.f32.mrb[0].mxu0
        %9002 = vmatprep.mubr.bf16.mxu0 0
        %9003 = vmatmul.mubr.bf16.gmra.mrb[0].mxu0 %v8827
        %v9004 = vpop.f32.mrb[0].mxu0
        %v9005 = vadd.f32 0.0, %v9004
        %v9006 = vpop.f32.mrb[0].mxu0
        %v9007 = vpop.f32.mrb[0].mxu0
        %v9008 = vadd.f32 0.0, %v9007
        %v9009 = vpop.f32.mrb[0].mxu0
        %9010 = vmatprep.mubr.bf16.mxu0 0
        %9011 = vmatmul.mubr.bf16.gmra.mrb[0].mxu0 %v8828
        %v9012 = vpop.f32.mrb[0].mxu0
        %v9013 = vadd.f32 0.0, %v9012
        %v9014 = vpop.f32.mrb[0].mxu0
        %v9015 = vpop.f32.mrb[0].mxu0
        %v9016 = vadd.f32 0.0, %v9015
        %v9017 = vpop.f32.mrb[0].mxu0
        %9018 = vmatprep.mubr.bf16.mxu0 0
        %9019 = vmatmul.mubr.bf16.gmra.mrb[0].mxu0 %v8829
        %v9020 = vpop.f32.mrb[0].mxu0
        %v9021 = vadd.f32 0.0, %v9020
        %v9022 = vpop.f32.mrb[0].mxu0
        %v9023 = vpop.f32.mrb[0].mxu0
        %v9024 = vadd.f32 0.0, %v9023
        %v9025 = vpop.f32.mrb[0].mxu0
        %9026 = vmatprep.mubr.bf16.mxu0 0
        %9027 = vmatmul.mubr.bf16.gmra.mrb[0].mxu0 %v8830
        %v9028 = vpop.f32.mrb[0].mxu0
        %v9029 = vadd.f32 0.0, %v9028
        %v9030 = vpop.f32.mrb[0].mxu0
        %v9031 = vpop.f32.mrb[0].mxu0
        %v9032 = vadd.f32 0.0, %v9031
        %v9033 = vpop.f32.mrb[0].mxu0
        %9034 = vmatprep.mubr.bf16.mxu0 0
        %9035 = vmatmul.mubr.bf16.gmra.mrb[0].mxu0 %v8831
        %v9036 = vpop.f32.mrb[0].mxu0
        %v9037 = vadd.f32 0.0, %v9036
        %v9038 = vpop.f32.mrb[0].mxu0
        %v9039 = vpop.f32.mrb[0].mxu0
        %v9040 = vadd.f32 0.0, %v9039
        %v9041 = vpop.f32.mrb[0].mxu0
        %9042 = vmatprep.mubr.bf16.mxu0 0
        %9043 = vmatmul.mubr.bf16.gmra.mrb[0].mxu0 %v8832
        %v9044 = vpop.f32.mrb[0].mxu0
        %v9045 = vadd.f32 0.0, %v9044
        %v9046 = vpop.f32.mrb[0].mxu0
        %v9047 = vpop.f32.mrb[0].mxu0
        %v9048 = vadd.f32 0.0, %v9047
        %v9049 = vpop.f32.mrb[0].mxu0
        %9050 = vmatprep.mubr.bf16.mxu0 0
        %9051 = vmatmul.mubr.bf16.gmra.mrb[0].mxu0 %v8833
        %v9052 = vpop.f32.mrb[0].mxu0
        %v9053 = vadd.f32 0.0, %v9052
        %v9054 = vpop.f32.mrb[0].mxu0
        %v9055 = vpop.f32.mrb[0].mxu0
        %v9056 = vadd.f32 0.0, %v9055
        %v9057 = vpop.f32.mrb[0].mxu0
        %9058 = vdwg.mxu0
        %v9059 = vadd.f32 %v8529, %v8933
        %v9060 = vadd.f32 %v8530, %v8936
        %v9061 = vadd.f32 %v8531, %v8941
        %v9062 = vadd.f32 %v8532, %v8944
        %v9063 = vadd.f32 %v8533, %v8949
        %v9064 = vadd.f32 %v8534, %v8952
        %v9065 = vadd.f32 %v8535, %v8957
        %v9066 = vadd.f32 %v8536, %v8960
        %v9067 = vadd.f32 %v8537, %v8965
        %v9068 = vadd.f32 %v8538, %v8968
        %v9069 = vadd.f32 %v8539, %v8973
        %v9070 = vadd.f32 %v8540, %v8976
        %v9071 = vadd.f32 %v8541, %v8981
        %v9072 = vadd.f32 %v8542, %v8984
        %v9073 = vadd.f32 %v8543, %v8989
        %v9074 = vadd.f32 %v8544, %v8992
        %v9075 = vadd.f32 %v8545, %v8997
        %v9076 = vadd.f32 %v8546, %v9000
        %v9077 = vadd.f32 %v8547, %v9005
        %v9078 = vadd.f32 %v8548, %v9008
        %v9079 = vadd.f32 %v8549, %v9013
        %v9080 = vadd.f32 %v8550, %v9016
        %v9081 = vadd.f32 %v8551, %v9021
        %v9082 = vadd.f32 %v8552, %v9024
        %v9083 = vadd.f32 %v8553, %v9029
        %v9084 = vadd.f32 %v8554, %v9032
        %v9085 = vadd.f32 %v8555, %v9037
        %v9086 = vadd.f32 %v8556, %v9040
        %v9087 = vadd.f32 %v8557, %v9045
        %v9088 = vadd.f32 %v8558, %v9048
        %v9089 = vadd.f32 %v8559, %v9053
        %v9090 = vadd.f32 %v8560, %v9056
        %v9091 = vld [vmem:[%s8174] sm:$0xc]
        %v9092 = vld [vmem:[%s8174 + $0x8] sm:$0x3]
        %v9093 = vld [vmem:[%s8174 + $0xc] sm:$0xc]
        %v9094 = vld [vmem:[%s8174 + $0x14] sm:$0x3]
        %v9095 = vld [vmem:[%s8174 + $0x18] sm:$0xc]
        %v9096 = vld [vmem:[%s8174 + $0x20] sm:$0x3]
        %v9097 = vld [vmem:[%s8174 + $0x24] sm:$0xc]
        %v9098 = vld [vmem:[%s8174 + $0x2c] sm:$0x3]
        %v9099 = vld [vmem:[%s8174 + $0x30] sm:$0xc]
        %v9100 = vld [vmem:[%s8174 + $0x38] sm:$0x3]
        %v9101 = vld [vmem:[%s8174 + $0x3c] sm:$0xc]
        %v9102 = vld [vmem:[%s8174 + $0x44] sm:$0x3]
        %v9103 = vld [vmem:[%s8174 + $0x48] sm:$0xc]
        %v9104 = vld [vmem:[%s8174 + $0x50] sm:$0x3]
        %v9105 = vld [vmem:[%s8174 + $0x54] sm:$0xc]
        %v9106 = vld [vmem:[%s8174 + $0x5c] sm:$0x3]
        %v9107 = vld [vmem:[%s8174 + $0x60] sm:$0xc]
        %v9108 = vld [vmem:[%s8174 + $0x68] sm:$0x3]
        %v9109 = vld [vmem:[%s8174 + $0x6c] sm:$0xc]
        %v9110 = vld [vmem:[%s8174 + $0x74] sm:$0x3]
        %v9111 = vld [vmem:[%s8174 + $0x78] sm:$0xc]
        %v9112 = vld [vmem:[%s8174 + $0x80] sm:$0x3]
        %v9113 = vld [vmem:[%s8174 + $0x84] sm:$0xc]
        %v9114 = vld [vmem:[%s8174 + $0x8c] sm:$0x3]
        %v9115 = vld [vmem:[%s8174 + $0x90] sm:$0xc]
        %v9116 = vld [vmem:[%s8174 + $0x98] sm:$0x3]
        %v9117 = vld [vmem:[%s8174 + $0x9c] sm:$0xc]
        %v9118 = vld [vmem:[%s8174 + $0xa4] sm:$0x3]
        %v9119 = vld [vmem:[%s8174 + $0xa8] sm:$0xc]
        %v9120 = vld [vmem:[%s8174 + $0xb0] sm:$0x3]
        %v9121 = vld [vmem:[%s8174 + $0xb4] sm:$0xc]
        %v9122 = vld [vmem:[%s8174 + $0xbc] sm:$0x3]
        %v9155 = vrot.slane %v9091, 6
        %v9156 = vrot.slane %v9155, 4
        %v9157 = vrot.slane %v8562, 6
        %v9158 = vsel %vm6325, %v9156, %v9157
        %v9159 = vrot.slane %v9157, 4
        %v9160 = vrot.slane %v9092, 6
        %v9161 = vsel %vm6325, %v9159, %v9160
        %v9162 = vrot.slane %v9093, 6
        %v9163 = vrot.slane %v9162, 4
        %v9164 = vrot.slane %v8565, 6
        %v9165 = vsel %vm6325, %v9163, %v9164
        %v9166 = vrot.slane %v9164, 4
        %v9167 = vrot.slane %v9094, 6
        %v9168 = vsel %vm6325, %v9166, %v9167
        %v9169 = vrot.slane %v9095, 6
        %v9170 = vrot.slane %v9169, 4
        %v9171 = vrot.slane %v8568, 6
        %v9172 = vsel %vm6325, %v9170, %v9171
        %v9173 = vrot.slane %v9171, 4
        %v9174 = vrot.slane %v9096, 6
        %v9175 = vsel %vm6325, %v9173, %v9174
        %v9176 = vrot.slane %v9097, 6
        %v9177 = vrot.slane %v9176, 4
        %v9178 = vrot.slane %v8571, 6
        %v9179 = vsel %vm6325, %v9177, %v9178
        %v9180 = vrot.slane %v9178, 4
        %v9181 = vrot.slane %v9098, 6
        %v9182 = vsel %vm6325, %v9180, %v9181
        %v9183 = vrot.slane %v9099, 6
        %v9184 = vrot.slane %v9183, 4
        %v9185 = vrot.slane %v8574, 6
        %v9186 = vsel %vm6325, %v9184, %v9185
        %v9187 = vrot.slane %v9185, 4
        %v9188 = vrot.slane %v9100, 6
        %v9189 = vsel %vm6325, %v9187, %v9188
        %v9190 = vrot.slane %v9101, 6
        %v9191 = vrot.slane %v9190, 4
        %v9192 = vrot.slane %v8577, 6
        %v9193 = vsel %vm6325, %v9191, %v9192
        %v9194 = vrot.slane %v9192, 4
        %v9195 = vrot.slane %v9102, 6
        %v9196 = vsel %vm6325, %v9194, %v9195
        %v9197 = vrot.slane %v9103, 6
        %v9198 = vrot.slane %v9197, 4
        %v9199 = vrot.slane %v8580, 6
        %v9200 = vsel %vm6325, %v9198, %v9199
        %v9201 = vrot.slane %v9199, 4
        %v9202 = vrot.slane %v9104, 6
        %v9203 = vsel %vm6325, %v9201, %v9202
        %v9204 = vrot.slane %v9105, 6
        %v9205 = vrot.slane %v9204, 4
        %v9206 = vrot.slane %v8583, 6
        %v9207 = vsel %vm6325, %v9205, %v9206
        %v9208 = vrot.slane %v9206, 4
        %v9209 = vrot.slane %v9106, 6
        %v9210 = vsel %vm6325, %v9208, %v9209
        %v9211 = vrot.slane %v9107, 6
        %v9212 = vrot.slane %v9211, 4
        %v9213 = vrot.slane %v8586, 6
        %v9214 = vsel %vm6325, %v9212, %v9213
        %v9215 = vrot.slane %v9213, 4
        %v9216 = vrot.slane %v9108, 6
        %v9217 = vsel %vm6325, %v9215, %v9216
        %v9218 = vrot.slane %v9109, 6
        %v9219 = vrot.slane %v9218, 4
        %v9220 = vrot.slane %v8589, 6
        %v9221 = vsel %vm6325, %v9219, %v9220
        %v9222 = vrot.slane %v9220, 4
        %v9223 = vrot.slane %v9110, 6
        %v9224 = vsel %vm6325, %v9222, %v9223
        %v9225 = vrot.slane %v9111, 6
        %v9226 = vrot.slane %v9225, 4
        %v9227 = vrot.slane %v8592, 6
        %v9228 = vsel %vm6325, %v9226, %v9227
        %v9229 = vrot.slane %v9227, 4
        %v9230 = vrot.slane %v9112, 6
        %v9231 = vsel %vm6325, %v9229, %v9230
        %v9232 = vrot.slane %v9113, 6
        %v9233 = vrot.slane %v9232, 4
        %v9234 = vrot.slane %v8595, 6
        %v9235 = vsel %vm6325, %v9233, %v9234
        %v9236 = vrot.slane %v9234, 4
        %v9237 = vrot.slane %v9114, 6
        %v9238 = vsel %vm6325, %v9236, %v9237
        %v9239 = vrot.slane %v9115, 6
        %v9240 = vrot.slane %v9239, 4
        %v9241 = vrot.slane %v8598, 6
        %v9242 = vsel %vm6325, %v9240, %v9241
        %v9243 = vrot.slane %v9241, 4
        %v9244 = vrot.slane %v9116, 6
        %v9245 = vsel %vm6325, %v9243, %v9244
        %v9246 = vrot.slane %v9117, 6
        %v9247 = vrot.slane %v9246, 4
        %v9248 = vrot.slane %v8601, 6
        %v9249 = vsel %vm6325, %v9247, %v9248
        %v9250 = vrot.slane %v9248, 4
        %v9251 = vrot.slane %v9118, 6
        %v9252 = vsel %vm6325, %v9250, %v9251
        %v9253 = vrot.slane %v9119, 6
        %v9254 = vrot.slane %v9253, 4
        %v9255 = vrot.slane %v8604, 6
        %v9256 = vsel %vm6325, %v9254, %v9255
        %v9257 = vrot.slane %v9255, 4
        %v9258 = vrot.slane %v9120, 6
        %v9259 = vsel %vm6325, %v9257, %v9258
        %v9260 = vrot.slane %v9121, 6
        %v9261 = vrot.slane %v9260, 4
        %v9262 = vrot.slane %v8607, 6
        %v9263 = vsel %vm6325, %v9261, %v9262
        %v9264 = vrot.slane %v9262, 4
        %v9265 = vrot.slane %v9122, 6
        %v9266 = vsel %vm6325, %v9264, %v9265
        %s9267 = scalar_lea.vmem [#allocation3], 512
        %v9268 = vld [vmem:[%s9267] sm:$0xf]
        %v9269 = vld [vmem:[%s9267 + $0x4] sm:$0xf]
        %v9270 = vld [vmem:[%s9267 + $0x8] sm:$0xf]
        %v9271 = vld [vmem:[%s9267 + $0xc] sm:$0xf]
        %v9272 = vld [vmem:[%s9267 + $0x10] sm:$0xf]
        %v9273 = vld [vmem:[%s9267 + $0x14] sm:$0xf]
        %v9274 = vld [vmem:[%s9267 + $0x18] sm:$0xf]
        %v9275 = vld [vmem:[%s9267 + $0x1c] sm:$0xf]
        %v9276 = vld [vmem:[%s9267 + $0x20] sm:$0xf]
        %v9277 = vld [vmem:[%s9267 + $0x24] sm:$0xf]
        %v9278 = vld [vmem:[%s9267 + $0x28] sm:$0xf]
        %v9279 = vld [vmem:[%s9267 + $0x2c] sm:$0xf]
        %v9280 = vld [vmem:[%s9267 + $0x30] sm:$0xf]
        %v9281 = vld [vmem:[%s9267 + $0x34] sm:$0xf]
        %v9282 = vld [vmem:[%s9267 + $0x38] sm:$0xf]
        %v9283 = vld [vmem:[%s9267 + $0x3c] sm:$0xf]
        %v9284 = vunpack.c.l.b16 %v9158
        %v9285 = vunpack.c.l.b16 %v9161
        %v9286 = vunpack.c.l.b16 %v9165
        %v9287 = vunpack.c.l.b16 %v9168
        %v9288 = vunpack.c.l.b16 %v9172
        %v9289 = vunpack.c.l.b16 %v9175
        %v9290 = vunpack.c.l.b16 %v9179
        %v9291 = vunpack.c.l.b16 %v9182
        %v9292 = vunpack.c.l.b16 %v9186
        %v9293 = vunpack.c.l.b16 %v9189
        %v9294 = vunpack.c.l.b16 %v9193
        %v9295 = vunpack.c.l.b16 %v9196
        %v9296 = vunpack.c.l.b16 %v9200
        %v9297 = vunpack.c.l.b16 %v9203
        %v9298 = vunpack.c.l.b16 %v9207
        %v9299 = vunpack.c.l.b16 %v9210
        %v9300 = vunpack.c.l.b16 %v9214
        %v9301 = vunpack.c.l.b16 %v9217
        %v9302 = vunpack.c.l.b16 %v9221
        %v9303 = vunpack.c.l.b16 %v9224
        %v9304 = vunpack.c.l.b16 %v9228
        %v9305 = vunpack.c.l.b16 %v9231
        %v9306 = vunpack.c.l.b16 %v9235
        %v9307 = vunpack.c.l.b16 %v9238
        %v9308 = vunpack.c.l.b16 %v9242
        %v9309 = vunpack.c.l.b16 %v9245
        %v9310 = vunpack.c.l.b16 %v9249
        %v9311 = vunpack.c.l.b16 %v9252
        %v9312 = vunpack.c.l.b16 %v9256
        %v9313 = vunpack.c.l.b16 %v9259
        %v9314 = vunpack.c.l.b16 %v9263
        %v9315 = vunpack.c.l.b16 %v9266
        %v9316 = vpack.c.b16 %v9285, %v9284
        %v9317 = vpack.c.b16 %v9287, %v9286
        %v9318 = vpack.c.b16 %v9289, %v9288
        %v9319 = vpack.c.b16 %v9291, %v9290
        %v9320 = vpack.c.b16 %v9293, %v9292
        %v9321 = vpack.c.b16 %v9295, %v9294
        %v9322 = vpack.c.b16 %v9297, %v9296
        %v9323 = vpack.c.b16 %v9299, %v9298
        %v9324 = vpack.c.b16 %v9301, %v9300
        %v9325 = vpack.c.b16 %v9303, %v9302
        %v9326 = vpack.c.b16 %v9305, %v9304
        %v9327 = vpack.c.b16 %v9307, %v9306
        %v9328 = vpack.c.b16 %v9309, %v9308
        %v9329 = vpack.c.b16 %v9311, %v9310
        %v9330 = vpack.c.b16 %v9313, %v9312
        %v9331 = vpack.c.b16 %v9315, %v9314
        %v9364 = vunpack.c.l.b16 %v9268
        %v9365 = vunpack.c.l.b16 %v9269
        %v9366 = vunpack.c.l.b16 %v9270
        %v9367 = vunpack.c.l.b16 %v9271
        %v9368 = vunpack.c.l.b16 %v9272
        %v9369 = vunpack.c.l.b16 %v9273
        %v9370 = vunpack.c.l.b16 %v9274
        %v9371 = vunpack.c.l.b16 %v9275
        %v9372 = vunpack.c.l.b16 %v9276
        %v9373 = vunpack.c.l.b16 %v9277
        %v9374 = vunpack.c.l.b16 %v9278
        %v9375 = vunpack.c.l.b16 %v9279
        %v9376 = vunpack.c.l.b16 %v9280
        %v9377 = vunpack.c.l.b16 %v9281
        %v9378 = vunpack.c.l.b16 %v9282
        %v9379 = vunpack.c.l.b16 %v9283
        %v9380 = vpack.c.b16 %v9365, %v9364
        %v9381 = vpack.c.b16 %v9367, %v9366
        %v9382 = vpack.c.b16 %v9369, %v9368
        %v9383 = vpack.c.b16 %v9371, %v9370
        %v9384 = vpack.c.b16 %v9373, %v9372
        %v9385 = vpack.c.b16 %v9375, %v9374
        %v9386 = vpack.c.b16 %v9377, %v9376
        %v9387 = vpack.c.b16 %v9379, %v9378
        %9396 = vmatprep.subr.bf16.mxu0 0
        %9397 = vmatpush1.bf16.msra.mxu0 %v9380
        %9398 = vmatprep.subr.bf16.mxu0 0
        %9399 = vmatpush1.bf16.msra.mxu0 %v9381
        %9400 = vmatprep.subr.bf16.mxu0 0
        %9401 = vmatpush1.bf16.msra.mxu0 %v9382
        %9402 = vmatprep.subr.bf16.mxu0 0
        %9403 = vmatpush1.bf16.msra.mxu0 %v9383
        %9404 = vmatprep.subr.bf16.mxu0 0
        %9405 = vmatpush1.bf16.msra.mxu0 %v9384
        %9406 = vmatprep.subr.bf16.mxu0 0
        %9407 = vmatpush1.bf16.msra.mxu0 %v9385
        %9408 = vmatprep.subr.bf16.mxu0 0
        %9409 = vmatpush1.bf16.msra.mxu0 %v9386
        %9410 = vmatprep.subr.bf16.mxu0 0
        %9411 = vmatpush1.bf16.msra.mxu0 %v9387
        %9412 = vmatprep.subr.bf16.mxu0 0
        %9413 = vmatpush1.bf16.msra.mxu0 0
        %9414 = vmatprep.subr.bf16.mxu0 0
        %9415 = vmatpush1.bf16.msra.mxu0 0
        %9416 = vmatprep.subr.bf16.mxu0 0
        %9417 = vmatpush1.bf16.msra.mxu0 0
        %9418 = vmatprep.subr.bf16.mxu0 0
        %9419 = vmatpush1.bf16.msra.mxu0 0
        %9420 = vmatprep.subr.bf16.mxu0 0
        %9421 = vmatpush1.bf16.msra.mxu0 0
        %9422 = vmatprep.subr.bf16.mxu0 0
        %9423 = vmatpush1.bf16.msra.mxu0 0
        %9424 = vmatprep.subr.bf16.mxu0 0
        %9425 = vmatpush1.bf16.msra.mxu0 0
        %9426 = vmatprep.subr.bf16.mxu0 0
        %9427 = vmatpush1.bf16.msra.mxu0 0
        %9428 = vmatprep.mubr.bf16.mxu0 0
        %9429 = vmatmul.mubr.bf16.gmra.mrb[0].mxu0 %v9316
        %v9430 = vpop.f32.mrb[0].mxu0
        %v9431 = vadd.f32 0.0, %v9430
        %v9432 = vpop.f32.mrb[0].mxu0
        %v9433 = vpop.f32.mrb[0].mxu0
        %v9434 = vadd.f32 0.0, %v9433
        %v9435 = vpop.f32.mrb[0].mxu0
        %9436 = vmatprep.mubr.bf16.mxu0 0
        %9437 = vmatmul.mubr.bf16.gmra.mrb[0].mxu0 %v9317
        %v9438 = vpop.f32.mrb[0].mxu0
        %v9439 = vadd.f32 0.0, %v9438
        %v9440 = vpop.f32.mrb[0].mxu0
        %v9441 = vpop.f32.mrb[0].mxu0
        %v9442 = vadd.f32 0.0, %v9441
        %v9443 = vpop.f32.mrb[0].mxu0
        %9444 = vmatprep.mubr.bf16.mxu0 0
        %9445 = vmatmul.mubr.bf16.gmra.mrb[0].mxu0 %v9318
        %v9446 = vpop.f32.mrb[0].mxu0
        %v9447 = vadd.f32 0.0, %v9446
        %v9448 = vpop.f32.mrb[0].mxu0
        %v9449 = vpop.f32.mrb[0].mxu0
        %v9450 = vadd.f32 0.0, %v9449
        %v9451 = vpop.f32.mrb[0].mxu0
        %9452 = vmatprep.mubr.bf16.mxu0 0
        %9453 = vmatmul.mubr.bf16.gmra.mrb[0].mxu0 %v9319
        %v9454 = vpop.f32.mrb[0].mxu0
        %v9455 = vadd.f32 0.0, %v9454
        %v9456 = vpop.f32.mrb[0].mxu0
        %v9457 = vpop.f32.mrb[0].mxu0
        %v9458 = vadd.f32 0.0, %v9457
        %v9459 = vpop.f32.mrb[0].mxu0
        %9460 = vmatprep.mubr.bf16.mxu0 0
        %9461 = vmatmul.mubr.bf16.gmra.mrb[0].mxu0 %v9320
        %v9462 = vpop.f32.mrb[0].mxu0
        %v9463 = vadd.f32 0.0, %v9462
        %v9464 = vpop.f32.mrb[0].mxu0
        %v9465 = vpop.f32.mrb[0].mxu0
        %v9466 = vadd.f32 0.0, %v9465
        %v9467 = vpop.f32.mrb[0].mxu0
        %9468 = vmatprep.mubr.bf16.mxu0 0
        %9469 = vmatmul.mubr.bf16.gmra.mrb[0].mxu0 %v9321
        %v9470 = vpop.f32.mrb[0].mxu0
        %v9471 = vadd.f32 0.0, %v9470
        %v9472 = vpop.f32.mrb[0].mxu0
        %v9473 = vpop.f32.mrb[0].mxu0
        %v9474 = vadd.f32 0.0, %v9473
        %v9475 = vpop.f32.mrb[0].mxu0
        %9476 = vmatprep.mubr.bf16.mxu0 0
        %9477 = vmatmul.mubr.bf16.gmra.mrb[0].mxu0 %v9322
        %v9478 = vpop.f32.mrb[0].mxu0
        %v9479 = vadd.f32 0.0, %v9478
        %v9480 = vpop.f32.mrb[0].mxu0
        %v9481 = vpop.f32.mrb[0].mxu0
        %v9482 = vadd.f32 0.0, %v9481
        %v9483 = vpop.f32.mrb[0].mxu0
        %9484 = vmatprep.mubr.bf16.mxu0 0
        %9485 = vmatmul.mubr.bf16.gmra.mrb[0].mxu0 %v9323
        %v9486 = vpop.f32.mrb[0].mxu0
        %v9487 = vadd.f32 0.0, %v9486
        %v9488 = vpop.f32.mrb[0].mxu0
        %v9489 = vpop.f32.mrb[0].mxu0
        %v9490 = vadd.f32 0.0, %v9489
        %v9491 = vpop.f32.mrb[0].mxu0
        %9492 = vmatprep.mubr.bf16.mxu0 0
        %9493 = vmatmul.mubr.bf16.gmra.mrb[0].mxu0 %v9324
        %v9494 = vpop.f32.mrb[0].mxu0
        %v9495 = vadd.f32 0.0, %v9494
        %v9496 = vpop.f32.mrb[0].mxu0
        %v9497 = vpop.f32.mrb[0].mxu0
        %v9498 = vadd.f32 0.0, %v9497
        %v9499 = vpop.f32.mrb[0].mxu0
        %9500 = vmatprep.mubr.bf16.mxu0 0
        %9501 = vmatmul.mubr.bf16.gmra.mrb[0].mxu0 %v9325
        %v9502 = vpop.f32.mrb[0].mxu0
        %v9503 = vadd.f32 0.0, %v9502
        %v9504 = vpop.f32.mrb[0].mxu0
        %v9505 = vpop.f32.mrb[0].mxu0
        %v9506 = vadd.f32 0.0, %v9505
        %v9507 = vpop.f32.mrb[0].mxu0
        %9508 = vmatprep.mubr.bf16.mxu0 0
        %9509 = vmatmul.mubr.bf16.gmra.mrb[0].mxu0 %v9326
        %v9510 = vpop.f32.mrb[0].mxu0
        %v9511 = vadd.f32 0.0, %v9510
        %v9512 = vpop.f32.mrb[0].mxu0
        %v9513 = vpop.f32.mrb[0].mxu0
        %v9514 = vadd.f32 0.0, %v9513
        %v9515 = vpop.f32.mrb[0].mxu0
        %9516 = vmatprep.mubr.bf16.mxu0 0
        %9517 = vmatmul.mubr.bf16.gmra.mrb[0].mxu0 %v9327
        %v9518 = vpop.f32.mrb[0].mxu0
        %v9519 = vadd.f32 0.0, %v9518
        %v9520 = vpop.f32.mrb[0].mxu0
        %v9521 = vpop.f32.mrb[0].mxu0
        %v9522 = vadd.f32 0.0, %v9521
        %v9523 = vpop.f32.mrb[0].mxu0
        %9524 = vmatprep.mubr.bf16.mxu0 0
        %9525 = vmatmul.mubr.bf16.gmra.mrb[0].mxu0 %v9328
        %v9526 = vpop.f32.mrb[0].mxu0
        %v9527 = vadd.f32 0.0, %v9526
        %v9528 = vpop.f32.mrb[0].mxu0
        %v9529 = vpop.f32.mrb[0].mxu0
        %v9530 = vadd.f32 0.0, %v9529
        %v9531 = vpop.f32.mrb[0].mxu0
        %9532 = vmatprep.mubr.bf16.mxu0 0
        %9533 = vmatmul.mubr.bf16.gmra.mrb[0].mxu0 %v9329
        %v9534 = vpop.f32.mrb[0].mxu0
        %v9535 = vadd.f32 0.0, %v9534
        %v9536 = vpop.f32.mrb[0].mxu0
        %v9537 = vpop.f32.mrb[0].mxu0
        %v9538 = vadd.f32 0.0, %v9537
        %v9539 = vpop.f32.mrb[0].mxu0
        %9540 = vmatprep.mubr.bf16.mxu0 0
        %9541 = vmatmul.mubr.bf16.gmra.mrb[0].mxu0 %v9330
        %v9542 = vpop.f32.mrb[0].mxu0
        %v9543 = vadd.f32 0.0, %v9542
        %v9544 = vpop.f32.mrb[0].mxu0
        %v9545 = vpop.f32.mrb[0].mxu0
        %v9546 = vadd.f32 0.0, %v9545
        %v9547 = vpop.f32.mrb[0].mxu0
        %9548 = vmatprep.mubr.bf16.mxu0 0
        %9549 = vmatmul.mubr.bf16.gmra.mrb[0].mxu0 %v9331
        %v9550 = vpop.f32.mrb[0].mxu0
        %v9551 = vadd.f32 0.0, %v9550
        %v9552 = vpop.f32.mrb[0].mxu0
        %v9553 = vpop.f32.mrb[0].mxu0
        %v9554 = vadd.f32 0.0, %v9553
        %v9555 = vpop.f32.mrb[0].mxu0
        %9556 = vdwg.mxu0
        %v9557 = vadd.f32 %v9059, %v9431
        %v9558 = vadd.f32 %v9060, %v9434
        %v9559 = vadd.f32 %v9061, %v9439
        %v9560 = vadd.f32 %v9062, %v9442
        %v9561 = vadd.f32 %v9063, %v9447
        %v9562 = vadd.f32 %v9064, %v9450
        %v9563 = vadd.f32 %v9065, %v9455
        %v9564 = vadd.f32 %v9066, %v9458
        %v9565 = vadd.f32 %v9067, %v9463
        %v9566 = vadd.f32 %v9068, %v9466
        %v9567 = vadd.f32 %v9069, %v9471
        %v9568 = vadd.f32 %v9070, %v9474
        %v9569 = vadd.f32 %v9071, %v9479
        %v9570 = vadd.f32 %v9072, %v9482
        %v9571 = vadd.f32 %v9073, %v9487
        %v9572 = vadd.f32 %v9074, %v9490
        %v9573 = vadd.f32 %v9075, %v9495
        %v9574 = vadd.f32 %v9076, %v9498
        %v9575 = vadd.f32 %v9077, %v9503
        %v9576 = vadd.f32 %v9078, %v9506
        %v9577 = vadd.f32 %v9079, %v9511
        %v9578 = vadd.f32 %v9080, %v9514
        %v9579 = vadd.f32 %v9081, %v9519
        %v9580 = vadd.f32 %v9082, %v9522
        %v9581 = vadd.f32 %v9083, %v9527
        %v9582 = vadd.f32 %v9084, %v9530
        %v9583 = vadd.f32 %v9085, %v9535
        %v9584 = vadd.f32 %v9086, %v9538
        %v9585 = vadd.f32 %v9087, %v9543
        %v9586 = vadd.f32 %v9088, %v9546
        %v9587 = vadd.f32 %v9089, %v9551
        %v9588 = vadd.f32 %v9090, %v9554
        %v9589 = vld [vmem:[%s1816] sm:$0xf]
        %v9590 = vld [vmem:[%s1816 + $0x4] sm:$0xf]
        %v9591 = vld [vmem:[%s1816 + $0x8] sm:$0x1]
        %v9592 = vld [vmem:[%s1816 + $0xc] sm:$0xf]
        %v9593 = vld [vmem:[%s1816 + $0x10] sm:$0xf]
        %v9594 = vld [vmem:[%s1816 + $0x14] sm:$0x1]
        %v9595 = vld [vmem:[%s1816 + $0x18] sm:$0xf]
        %v9596 = vld [vmem:[%s1816 + $0x1c] sm:$0xf]
        %v9597 = vld [vmem:[%s1816 + $0x20] sm:$0x1]
        %v9598 = vld [vmem:[%s1816 + $0x24] sm:$0xf]
        %v9599 = vld [vmem:[%s1816 + $0x28] sm:$0xf]
        %v9600 = vld [vmem:[%s1816 + $0x2c] sm:$0x1]
        %v9601 = vld [vmem:[%s1816 + $0x30] sm:$0xf]
        %v9602 = vld [vmem:[%s1816 + $0x34] sm:$0xf]
        %v9603 = vld [vmem:[%s1816 + $0x38] sm:$0x1]
        %v9604 = vld [vmem:[%s1816 + $0x3c] sm:$0xf]
        %v9605 = vld [vmem:[%s1816 + $0x40] sm:$0xf]
        %v9606 = vld [vmem:[%s1816 + $0x44] sm:$0x1]
        %v9607 = vld [vmem:[%s1816 + $0x48] sm:$0xf]
        %v9608 = vld [vmem:[%s1816 + $0x4c] sm:$0xf]
        %v9609 = vld [vmem:[%s1816 + $0x50] sm:$0x1]
        %v9610 = vld [vmem:[%s1816 + $0x54] sm:$0xf]
        %v9611 = vld [vmem:[%s1816 + $0x58] sm:$0xf]
        %v9612 = vld [vmem:[%s1816 + $0x5c] sm:$0x1]
        %v9613 = vld [vmem:[%s1816 + $0x60] sm:$0xf]
        %v9614 = vld [vmem:[%s1816 + $0x64] sm:$0xf]
        %v9615 = vld [vmem:[%s1816 + $0x68] sm:$0x1]
        %v9616 = vld [vmem:[%s1816 + $0x6c] sm:$0xf]
        %v9617 = vld [vmem:[%s1816 + $0x70] sm:$0xf]
        %v9618 = vld [vmem:[%s1816 + $0x74] sm:$0x1]
        %v9619 = vld [vmem:[%s1816 + $0x78] sm:$0xf]
        %v9620 = vld [vmem:[%s1816 + $0x7c] sm:$0xf]
        %v9621 = vld [vmem:[%s1816 + $0x80] sm:$0x1]
        %v9622 = vld [vmem:[%s1816 + $0x84] sm:$0xf]
        %v9623 = vld [vmem:[%s1816 + $0x88] sm:$0xf]
        %v9624 = vld [vmem:[%s1816 + $0x8c] sm:$0x1]
        %v9625 = vld [vmem:[%s1816 + $0x90] sm:$0xf]
        %v9626 = vld [vmem:[%s1816 + $0x94] sm:$0xf]
        %v9627 = vld [vmem:[%s1816 + $0x98] sm:$0x1]
        %v9628 = vld [vmem:[%s1816 + $0x9c] sm:$0xf]
        %v9629 = vld [vmem:[%s1816 + $0xa0] sm:$0xf]
        %v9630 = vld [vmem:[%s1816 + $0xa4] sm:$0x1]
        %v9631 = vld [vmem:[%s1816 + $0xa8] sm:$0xf]
        %v9632 = vld [vmem:[%s1816 + $0xac] sm:$0xf]
        %v9633 = vld [vmem:[%s1816 + $0xb0] sm:$0x1]
        %v9634 = vld [vmem:[%s1816 + $0xb4] sm:$0xf]
        %v9635 = vld [vmem:[%s1816 + $0xb8] sm:$0xf]
        %v9636 = vld [vmem:[%s1816 + $0xbc] sm:$0x1]
        %v9637 = vunpack.c.l.bf16 %v9589
        %v9638 = vunpack.c.l.bf16 %v9590
        %v9639 = vunpack.c.l.bf16 %v9591
        %v9640 = vunpack.c.l.bf16 %v9592
        %v9641 = vunpack.c.l.bf16 %v9593
        %v9642 = vunpack.c.l.bf16 %v9594
        %v9643 = vunpack.c.l.bf16 %v9595
        %v9644 = vunpack.c.l.bf16 %v9596
        %v9645 = vunpack.c.l.bf16 %v9597
        %v9646 = vunpack.c.l.bf16 %v9598
        %v9647 = vunpack.c.l.bf16 %v9599
        %v9648 = vunpack.c.l.bf16 %v9600
        %v9649 = vunpack.c.l.bf16 %v9601
        %v9650 = vunpack.c.l.bf16 %v9602
        %v9651 = vunpack.c.l.bf16 %v9603
        %v9652 = vunpack.c.l.bf16 %v9604
        %v9653 = vunpack.c.l.bf16 %v9605
        %v9654 = vunpack.c.l.bf16 %v9606
        %v9655 = vunpack.c.l.bf16 %v9607
        %v9656 = vunpack.c.l.bf16 %v9608
        %v9657 = vunpack.c.l.bf16 %v9609
        %v9658 = vunpack.c.l.bf16 %v9610
        %v9659 = vunpack.c.l.bf16 %v9611
        %v9660 = vunpack.c.l.bf16 %v9612
        %v9661 = vunpack.c.l.bf16 %v9613
        %v9662 = vunpack.c.l.bf16 %v9614
        %v9663 = vunpack.c.l.bf16 %v9615
        %v9664 = vunpack.c.l.bf16 %v9616
        %v9665 = vunpack.c.l.bf16 %v9617
        %v9666 = vunpack.c.l.bf16 %v9618
        %v9667 = vunpack.c.l.bf16 %v9619
        %v9668 = vunpack.c.l.bf16 %v9620
        %v9669 = vunpack.c.l.bf16 %v9621
        %v9670 = vunpack.c.l.bf16 %v9622
        %v9671 = vunpack.c.l.bf16 %v9623
        %v9672 = vunpack.c.l.bf16 %v9624
        %v9673 = vunpack.c.l.bf16 %v9625
        %v9674 = vunpack.c.l.bf16 %v9626
        %v9675 = vunpack.c.l.bf16 %v9627
        %v9676 = vunpack.c.l.bf16 %v9628
        %v9677 = vunpack.c.l.bf16 %v9629
        %v9678 = vunpack.c.l.bf16 %v9630
        %v9679 = vunpack.c.l.bf16 %v9631
        %v9680 = vunpack.c.l.bf16 %v9632
        %v9681 = vunpack.c.l.bf16 %v9633
        %v9682 = vunpack.c.l.bf16 %v9634
        %v9683 = vunpack.c.l.bf16 %v9635
        %v9684 = vunpack.c.l.bf16 %v9636
        %vm9733 = vcmask 1046528
        %v9734 = vrot.slane %v9637, 1
        %v9735 = vrot.slane %v9638, 1
        %v9736 = vsel %vm9733, %v9734, %v9735
        %v9737 = vrot.slane %v9639, 1
        %v9738 = vsel %vm9733, %v9735, %v9737
        %v9739 = vrot.slane %v9640, 1
        %v9740 = vrot.slane %v9641, 1
        %v9741 = vsel %vm9733, %v9739, %v9740
        %v9742 = vrot.slane %v9642, 1
        %v9743 = vsel %vm9733, %v9740, %v9742
        %v9744 = vrot.slane %v9643, 1
        %v9745 = vrot.slane %v9644, 1
        %v9746 = vsel %vm9733, %v9744, %v9745
        %v9747 = vrot.slane %v9645, 1
        %v9748 = vsel %vm9733, %v9745, %v9747
        %v9749 = vrot.slane %v9646, 1
        %v9750 = vrot.slane %v9647, 1
        %v9751 = vsel %vm9733, %v9749, %v9750
        %v9752 = vrot.slane %v9648, 1
        %v9753 = vsel %vm9733, %v9750, %v9752
        %v9754 = vrot.slane %v9649, 1
        %v9755 = vrot.slane %v9650, 1
        %v9756 = vsel %vm9733, %v9754, %v9755
        %v9757 = vrot.slane %v9651, 1
        %v9758 = vsel %vm9733, %v9755, %v9757
        %v9759 = vrot.slane %v9652, 1
        %v9760 = vrot.slane %v9653, 1
        %v9761 = vsel %vm9733, %v9759, %v9760
        %v9762 = vrot.slane %v9654, 1
        %v9763 = vsel %vm9733, %v9760, %v9762
        %v9764 = vrot.slane %v9655, 1
        %v9765 = vrot.slane %v9656, 1
        %v9766 = vsel %vm9733, %v9764, %v9765
        %v9767 = vrot.slane %v9657, 1
        %v9768 = vsel %vm9733, %v9765, %v9767
        %v9769 = vrot.slane %v9658, 1
        %v9770 = vrot.slane %v9659, 1
        %v9771 = vsel %vm9733, %v9769, %v9770
        %v9772 = vrot.slane %v9660, 1
        %v9773 = vsel %vm9733, %v9770, %v9772
        %v9774 = vrot.slane %v9661, 1
        %v9775 = vrot.slane %v9662, 1
        %v9776 = vsel %vm9733, %v9774, %v9775
        %v9777 = vrot.slane %v9663, 1
        %v9778 = vsel %vm9733, %v9775, %v9777
        %v9779 = vrot.slane %v9664, 1
        %v9780 = vrot.slane %v9665, 1
        %v9781 = vsel %vm9733, %v9779, %v9780
        %v9782 = vrot.slane %v9666, 1
        %v9783 = vsel %vm9733, %v9780, %v9782
        %v9784 = vrot.slane %v9667, 1
        %v9785 = vrot.slane %v9668, 1
        %v9786 = vsel %vm9733, %v9784, %v9785
        %v9787 = vrot.slane %v9669, 1
        %v9788 = vsel %vm9733, %v9785, %v9787
        %v9789 = vrot.slane %v9670, 1
        %v9790 = vrot.slane %v9671, 1
        %v9791 = vsel %vm9733, %v9789, %v9790
        %v9792 = vrot.slane %v9672, 1
        %v9793 = vsel %vm9733, %v9790, %v9792
        %v9794 = vrot.slane %v9673, 1
        %v9795 = vrot.slane %v9674, 1
        %v9796 = vsel %vm9733, %v9794, %v9795
        %v9797 = vrot.slane %v9675, 1
        %v9798 = vsel %vm9733, %v9795, %v9797
        %v9799 = vrot.slane %v9676, 1
        %v9800 = vrot.slane %v9677, 1
        %v9801 = vsel %vm9733, %v9799, %v9800
        %v9802 = vrot.slane %v9678, 1
        %v9803 = vsel %vm9733, %v9800, %v9802
        %v9804 = vrot.slane %v9679, 1
        %v9805 = vrot.slane %v9680, 1
        %v9806 = vsel %vm9733, %v9804, %v9805
        %v9807 = vrot.slane %v9681, 1
        %v9808 = vsel %vm9733, %v9805, %v9807
        %v9809 = vrot.slane %v9682, 1
        %v9810 = vrot.slane %v9683, 1
        %v9811 = vsel %vm9733, %v9809, %v9810
        %v9812 = vrot.slane %v9684, 1
        %v9813 = vsel %vm9733, %v9810, %v9812
        %v9846 = vld [vmem:[%s4] sm:$0x1]
        %v9848 = vlaneseq
        %v9849 = vshrl.u32 %v9848, 7
        %v9850 = vsub.s32 0, %v9849
        %v9851 = vrot.slane %v9846, %v9850
        %v9853 = vadd.f32 %v9557, %v9851
        %v9854 = vadd.f32 %v9558, %v9851
        %v9855 = vadd.f32 %v9559, %v9851
        %v9856 = vadd.f32 %v9560, %v9851
        %v9857 = vadd.f32 %v9561, %v9851
        %v9858 = vadd.f32 %v9562, %v9851
        %v9859 = vadd.f32 %v9563, %v9851
        %v9860 = vadd.f32 %v9564, %v9851
        %v9861 = vadd.f32 %v9565, %v9851
        %v9862 = vadd.f32 %v9566, %v9851
        %v9863 = vadd.f32 %v9567, %v9851
        %v9864 = vadd.f32 %v9568, %v9851
        %v9865 = vadd.f32 %v9569, %v9851
        %v9866 = vadd.f32 %v9570, %v9851
        %v9867 = vadd.f32 %v9571, %v9851
        %v9868 = vadd.f32 %v9572, %v9851
        %v9869 = vadd.f32 %v9573, %v9851
        %v9870 = vadd.f32 %v9574, %v9851
        %v9871 = vadd.f32 %v9575, %v9851
        %v9872 = vadd.f32 %v9576, %v9851
        %v9873 = vadd.f32 %v9577, %v9851
        %v9874 = vadd.f32 %v9578, %v9851
        %v9875 = vadd.f32 %v9579, %v9851
        %v9876 = vadd.f32 %v9580, %v9851
        %v9877 = vadd.f32 %v9581, %v9851
        %v9878 = vadd.f32 %v9582, %v9851
        %v9879 = vadd.f32 %v9583, %v9851
        %v9880 = vadd.f32 %v9584, %v9851
        %v9881 = vadd.f32 %v9585, %v9851
        %v9882 = vadd.f32 %v9586, %v9851
        %v9883 = vadd.f32 %v9587, %v9851
        %v9884 = vadd.f32 %v9588, %v9851
        %v9885 = vadd.f32 %v9853, %v9736
        %v9886 = vadd.f32 %v9854, %v9738
        %v9887 = vadd.f32 %v9855, %v9741
        %v9888 = vadd.f32 %v9856, %v9743
        %v9889 = vadd.f32 %v9857, %v9746
        %v9890 = vadd.f32 %v9858, %v9748
        %v9891 = vadd.f32 %v9859, %v9751
        %v9892 = vadd.f32 %v9860, %v9753
        %v9893 = vadd.f32 %v9861, %v9756
        %v9894 = vadd.f32 %v9862, %v9758
        %v9895 = vadd.f32 %v9863, %v9761
        %v9896 = vadd.f32 %v9864, %v9763
        %v9897 = vadd.f32 %v9865, %v9766
        %v9898 = vadd.f32 %v9866, %v9768
        %v9899 = vadd.f32 %v9867, %v9771
        %v9900 = vadd.f32 %v9868, %v9773
        %v9901 = vadd.f32 %v9869, %v9776
        %v9902 = vadd.f32 %v9870, %v9778
        %v9903 = vadd.f32 %v9871, %v9781
        %v9904 = vadd.f32 %v9872, %v9783
        %v9905 = vadd.f32 %v9873, %v9786
        %v9906 = vadd.f32 %v9874, %v9788
        %v9907 = vadd.f32 %v9875, %v9791
        %v9908 = vadd.f32 %v9876, %v9793
        %v9909 = vadd.f32 %v9877, %v9796
        %v9910 = vadd.f32 %v9878, %v9798
        %v9911 = vadd.f32 %v9879, %v9801
        %v9912 = vadd.f32 %v9880, %v9803
        %v9913 = vadd.f32 %v9881, %v9806
        %v9914 = vadd.f32 %v9882, %v9808
        %v9915 = vadd.f32 %v9883, %v9811
        %v9916 = vadd.f32 %v9884, %v9813
        %v9917 = vmax.f32 %v9885, 0.0
        %v9918 = vmax.f32 %v9886, 0.0
        %v9919 = vmax.f32 %v9887, 0.0
        %v9920 = vmax.f32 %v9888, 0.0
        %v9921 = vmax.f32 %v9889, 0.0
        %v9922 = vmax.f32 %v9890, 0.0
        %v9923 = vmax.f32 %v9891, 0.0
        %v9924 = vmax.f32 %v9892, 0.0
        %v9925 = vmax.f32 %v9893, 0.0
        %v9926 = vmax.f32 %v9894, 0.0
        %v9927 = vmax.f32 %v9895, 0.0
        %v9928 = vmax.f32 %v9896, 0.0
        %v9929 = vmax.f32 %v9897, 0.0
        %v9930 = vmax.f32 %v9898, 0.0
        %v9931 = vmax.f32 %v9899, 0.0
        %v9932 = vmax.f32 %v9900, 0.0
        %v9933 = vmax.f32 %v9901, 0.0
        %v9934 = vmax.f32 %v9902, 0.0
        %v9935 = vmax.f32 %v9903, 0.0
        %v9936 = vmax.f32 %v9904, 0.0
        %v9937 = vmax.f32 %v9905, 0.0
        %v9938 = vmax.f32 %v9906, 0.0
        %v9939 = vmax.f32 %v9907, 0.0
        %v9940 = vmax.f32 %v9908, 0.0
        %v9941 = vmax.f32 %v9909, 0.0
        %v9942 = vmax.f32 %v9910, 0.0
        %v9943 = vmax.f32 %v9911, 0.0
        %v9944 = vmax.f32 %v9912, 0.0
        %v9945 = vmax.f32 %v9913, 0.0
        %v9946 = vmax.f32 %v9914, 0.0
        %v9947 = vmax.f32 %v9915, 0.0
        %v9948 = vmax.f32 %v9916, 0.0
        %v9949 = vpack.c.bf16 %v9918, %v9917
        %v9950 = vpack.c.bf16 %v9920, %v9919
        %v9951 = vpack.c.bf16 %v9922, %v9921
        %v9952 = vpack.c.bf16 %v9924, %v9923
        %v9953 = vpack.c.bf16 %v9926, %v9925
        %v9954 = vpack.c.bf16 %v9928, %v9927
        %v9955 = vpack.c.bf16 %v9930, %v9929
        %v9956 = vpack.c.bf16 %v9932, %v9931
        %v9957 = vpack.c.bf16 %v9934, %v9933
        %v9958 = vpack.c.bf16 %v9936, %v9935
        %v9959 = vpack.c.bf16 %v9938, %v9937
        %v9960 = vpack.c.bf16 %v9940, %v9939
        %v9961 = vpack.c.bf16 %v9942, %v9941
        %v9962 = vpack.c.bf16 %v9944, %v9943
        %v9963 = vpack.c.bf16 %v9946, %v9945
        %v9964 = vpack.c.bf16 %v9948, %v9947
        %v9981 = vunpack.c.l.b16 %v9949
        %v9982 = vunpack.c.h.b16 %v9949
        %v9983 = vunpack.c.l.b16 %v9950
        %v9984 = vunpack.c.h.b16 %v9950
        %v9985 = vunpack.c.l.b16 %v9951
        %v9986 = vunpack.c.h.b16 %v9951
        %v9987 = vunpack.c.l.b16 %v9952
        %v9988 = vunpack.c.h.b16 %v9952
        %v9989 = vunpack.c.l.b16 %v9953
        %v9990 = vunpack.c.h.b16 %v9953
        %v9991 = vunpack.c.l.b16 %v9954
        %v9992 = vunpack.c.h.b16 %v9954
        %v9993 = vunpack.c.l.b16 %v9955
        %v9994 = vunpack.c.h.b16 %v9955
        %v9995 = vunpack.c.l.b16 %v9956
        %v9996 = vunpack.c.h.b16 %v9956
        %v9997 = vunpack.c.l.b16 %v9957
        %v9998 = vunpack.c.h.b16 %v9957
        %v9999 = vunpack.c.l.b16 %v9958
        %v10000 = vunpack.c.h.b16 %v9958
        %v10001 = vunpack.c.l.b16 %v9959
        %v10002 = vunpack.c.h.b16 %v9959
        %v10003 = vunpack.c.l.b16 %v9960
        %v10004 = vunpack.c.h.b16 %v9960
        %v10005 = vunpack.c.l.b16 %v9961
        %v10006 = vunpack.c.h.b16 %v9961
        %v10007 = vunpack.c.l.b16 %v9962
        %v10008 = vunpack.c.h.b16 %v9962
        %v10009 = vunpack.c.l.b16 %v9963
        %v10010 = vunpack.c.h.b16 %v9963
        %v10011 = vunpack.c.l.b16 %v9964
        %v10012 = vunpack.c.h.b16 %v9964
        %v10013 = vpack.c.b16 %v9981, %v9981
        %v10014 = vpack.c.b16 %v9982, %v9982
        %v10015 = vpack.c.b16 %v9983, %v9983
        %v10016 = vpack.c.b16 %v9984, %v9984
        %v10017 = vpack.c.b16 %v9985, %v9985
        %v10018 = vpack.c.b16 %v9986, %v9986
        %v10019 = vpack.c.b16 %v9987, %v9987
        %v10020 = vpack.c.b16 %v9988, %v9988
        %v10021 = vpack.c.b16 %v9989, %v9989
        %v10022 = vpack.c.b16 %v9990, %v9990
        %v10023 = vpack.c.b16 %v9991, %v9991
        %v10024 = vpack.c.b16 %v9992, %v9992
        %v10025 = vpack.c.b16 %v9993, %v9993
        %v10026 = vpack.c.b16 %v9994, %v9994
        %v10027 = vpack.c.b16 %v9995, %v9995
        %v10028 = vpack.c.b16 %v9996, %v9996
        %v10029 = vpack.c.b16 %v9997, %v9997
        %v10030 = vpack.c.b16 %v9998, %v9998
        %v10031 = vpack.c.b16 %v9999, %v9999
        %v10032 = vpack.c.b16 %v10000, %v10000
        %v10033 = vpack.c.b16 %v10001, %v10001
        %v10034 = vpack.c.b16 %v10002, %v10002
        %v10035 = vpack.c.b16 %v10003, %v10003
        %v10036 = vpack.c.b16 %v10004, %v10004
        %v10037 = vpack.c.b16 %v10005, %v10005
        %v10038 = vpack.c.b16 %v10006, %v10006
        %v10039 = vpack.c.b16 %v10007, %v10007
        %v10040 = vpack.c.b16 %v10008, %v10008
        %v10041 = vpack.c.b16 %v10009, %v10009
        %v10042 = vpack.c.b16 %v10010, %v10010
        %v10043 = vpack.c.b16 %v10011, %v10011
        %v10044 = vpack.c.b16 %v10012, %v10012
        %10077 = vst [vmem:[%s232] sm:$0xf] %v10013
        %10078 = vst [vmem:[%s232 + $0x4] sm:$0xf] %v10014
        %10079 = vst [vmem:[%s232 + $0x8] sm:$0xf] %v10015
        %10080 = vst [vmem:[%s232 + $0xc] sm:$0xf] %v10016
        %10081 = vst [vmem:[%s232 + $0x10] sm:$0xf] %v10017
        %10082 = vst [vmem:[%s232 + $0x14] sm:$0xf] %v10018
        %10083 = vst [vmem:[%s232 + $0x18] sm:$0xf] %v10019
        %10084 = vst [vmem:[%s232 + $0x1c] sm:$0xf] %v10020
        %10085 = vst [vmem:[%s232 + $0x20] sm:$0xf] %v10021
        %10086 = vst [vmem:[%s232 + $0x24] sm:$0xf] %v10022
        %10087 = vst [vmem:[%s232 + $0x28] sm:$0xf] %v10023
        %10088 = vst [vmem:[%s232 + $0x2c] sm:$0xf] %v10024
        %10089 = vst [vmem:[%s232 + $0x30] sm:$0xf] %v10025
        %10090 = vst [vmem:[%s232 + $0x34] sm:$0xf] %v10026
        %10091 = vst [vmem:[%s232 + $0x38] sm:$0xf] %v10027
        %10092 = vst [vmem:[%s232 + $0x3c] sm:$0xf] %v10028
        %10093 = vst [vmem:[%s232 + $0x40] sm:$0xf] %v10029
        %10094 = vst [vmem:[%s232 + $0x44] sm:$0xf] %v10030
        %10095 = vst [vmem:[%s232 + $0x48] sm:$0xf] %v10031
        %10096 = vst [vmem:[%s232 + $0x4c] sm:$0xf] %v10032
        %10097 = vst [vmem:[%s232 + $0x50] sm:$0xf] %v10033
        %10098 = vst [vmem:[%s232 + $0x54] sm:$0xf] %v10034
        %10099 = vst [vmem:[%s232 + $0x58] sm:$0xf] %v10035
        %10100 = vst [vmem:[%s232 + $0x5c] sm:$0xf] %v10036
        %10101 = vst [vmem:[%s232 + $0x60] sm:$0xf] %v10037
        %10102 = vst [vmem:[%s232 + $0x64] sm:$0xf] %v10038
        %10103 = vst [vmem:[%s232 + $0x68] sm:$0xf] %v10039
        %10104 = vst [vmem:[%s232 + $0x6c] sm:$0xf] %v10040
        %10105 = vst [vmem:[%s232 + $0x70] sm:$0xf] %v10041
        %10106 = vst [vmem:[%s232 + $0x74] sm:$0xf] %v10042
        %10107 = vst [vmem:[%s232 + $0x78] sm:$0xf] %v10043
        %10108 = vst [vmem:[%s232 + $0x7c] sm:$0xf] %v10044
        %s10109 = sand.u32 %s138, 1
        %s10110 = scalar_lea.sflag [#allocation5], %s10109
        %s10111 = sand.u32 %s138, 1
        %s10112 = smul.addr %s10111, 128
        %s10113 = scalar_lea.vmem [#allocation6], %s10112
        // Predicated region
        $region45: #{tpu_custom_call.1} parent=39 // pred_check
          %p10114 = pneg %p148
        $region46: #{tpu_custom_call.1} parent=39 // pred_check_branch
          %10116 = sbr.rel (%p10114) target = $region48
        $region47: #{tpu_custom_call.1} parent=39 // pred_region
          %s10118 = ssub.s32 2048, 2048
          %10119 = vsyncadd %s10110, %s10118
          %s10120 = smul.addr %s20, 32
          %s10121 = smul.addr %s10120, 64
          %s10122 = scalar_lea.hbm %s5, %s10121
          %s10123 = sshll.u32 %s10113, 4
          %s10124 = int_to_ptr.vmem [resolvable:$true] %s10123
          %10129 = dma.vmem_to_hbm [thread:$0]  %s10124, 2048, %s10122, %s10110, 64, 64, 4
        $region48: #{tpu_custom_call.1} parent=39 // pred_fallthru
          _
      $region40: #{tpu_custom_call.1} parent=5 // pred_fallthru
        _
      %p10130 = scmp.le.s32.totalorder 2, %s15
      // Predicated region
      $region49: #{tpu_custom_call.1} parent=5 // pred_check
        %p10131 = pneg %p10130
      $region50: #{tpu_custom_call.1} parent=5 // pred_check_branch
        %10133 = sbr.rel (%p10131) target = $region52
      $region51: #{tpu_custom_call.1} parent=5 // pred_region
        %s10134 = ssub.s32 %s15, 2
        // Predicated region
        $region53: #{tpu_custom_call.1} parent=51 // pred_check
          %p10135 = pneg %p154
        $region54: #{tpu_custom_call.1} parent=51 // pred_check_branch
          %10137 = sbr.rel (%p10135) target = $region56
        $region55: #{tpu_custom_call.1} parent=51 // pred_region
          %s10138 = sand.u32 %s139, 1
          %s10139 = scalar_lea.sflag [#allocation5], %s10138
          %s10140 = sand.u32 %s139, 1
          %s10141 = smul.addr %s10140, 128
          %s10142 = scalar_lea.vmem [#allocation6], %s10141
          %10143 = dma.done %s10139, 2048
        $region56: #{tpu_custom_call.1} parent=51 // pred_fallthru
          _
      $region52: #{tpu_custom_call.1} parent=5 // pred_fallthru
        _
    $region6: #{tpu_custom_call.1} parent=1 // loop_footer
      %s19 = sadd.s32 1, %s15
    $region7: #{tpu_custom_call.1} parent=1 // loop_footer_branch
      %14 = sbr.rel target = $region3
    $region8: #{tpu_custom_call.1} parent=1 // loop_exit
      _
    %10144 = vsyncpa [#allocation4], 1
    %s10145 = scalar_lea.sflag [#allocation4], 1
    %10146 = vsyncpa %s10145, 1
    %10147 = vsyncpa [#allocation5], 1
    %s10148 = scalar_lea.sflag [#allocation5], 1
    %10149 = vsyncpa %s10148, 1

</llo_original>
